<compile_context>
chip_gen: v7x
topology: tpu7x:2x2x1
jax: 0.10.0
libtpu: 0.0.40
codegen_flags: <defaults>
</compile_context>

<pallas_src>
import jax
import jax.numpy as jnp
import numpy as np
from jax.experimental import pallas as pl
from jax.experimental.pallas import tpu as pltpu


# ------------------------------- helpers ---------------------------------

def _round_up(x, m):
    return (x + m - 1) // m * m


def _pick_row_tile(h):
    """Row-tile height: whole image for small H, else 32-row tiles.
    H is padded up to a multiple of T, so no divisibility requirement."""
    if h <= 48:
        return _round_up(max(h, 8), 8)
    return 32


# ----------------------------- fused kernel -------------------------------

def _make_fused_kernel(T, H, W, Wo, Wa, Cp):
    Hh = T + 6          # conv0 output rows needed by one tile (3-row halo/side)

    def kernel(x_ref, w0_ref, b0_ref, w1_ref, b1_ref, w2_ref, b2_ref, o_ref):
        # x_ref : (Hp+8, Wx, Cp) bf16   whole zero-padded image of batch elem n
        # w0_ref: (9*Cp, Cp)     bf16   conv0 taps, tap-major rows (ky*3 + kx)
        # w1_ref: (9*Cp, Cp)     bf16   folded conv_spatial taps
        # w2_ref: (Cp, Cp)       bf16   1x1 conv
        # b*_ref: (1, Cp)        f32
        # o_ref : (T, Wo, Cp)    bf16   output row tile
        r = pl.program_id(1)
        row0 = pl.multiple_of(r * T, T)
        xb = x_ref[pl.ds(row0, T + 8)]                 # (T+8, Wx, Cp)

        # ---- conv0 (3x3, pad=1): single MXU matmul with K = 9*Cp ----------
        # 9 shifted views concatenated on the lane axis -> (Hh*Wa, 9*Cp).
        # (Column offsets 4..6 are not sublane aligned, but the im2col concat
        #  copies the data anyway, so the shift is folded into that write.)
        p = [xb[ky:ky + Hh, 4 + kx:4 + kx + Wa, :]
             for ky in range(3) for kx in range(3)]
        lhs0 = jnp.concatenate(p, axis=-1).reshape(Hh * Wa, 9 * Cp)
        a0 = jnp.dot(lhs0, w0_ref[...], preferred_element_type=jnp.float32)
        a0 = (a0 + b0_ref[...]).reshape(Hh, Wa, Cp).astype(jnp.bfloat16)

        # conv_spatial zero-pads conv0's output: zero every a0 position that
        # lies outside the true HxW image.  Tiny (Hh, Wa) 2-D mask + one bf16
        # broadcast multiply (a0 col a <-> image col a-3, row <-> row0-3+h).
        rows = jax.lax.broadcasted_iota(jnp.int32, (Hh, Wa), 0) + (row0 - 3)
        cols = jax.lax.broadcasted_iota(jnp.int32, (Hh, Wa), 1) - 3
        valid = (rows >= 0) & (rows < H) & (cols >= 0) & (cols < W)
        a0 = a0 * valid.astype(jnp.bfloat16)[:, :, None]

        # ---- conv_spatial (3x3, dilation=3, cat folded): K = 9*Cp matmul ---
        q = [a0[3 * ky:3 * ky + T, 3 * kx:3 * kx + Wo, :]
             for ky in range(3) for kx in range(3)]
        lhs1 = jnp.concatenate(q, axis=-1).reshape(T * Wo, 9 * Cp)
        a1 = jnp.dot(lhs1, w1_ref[...], preferred_element_type=jnp.float32)
        a1 = (a1 + b1_ref[...]).astype(jnp.bfloat16)

        # ---- conv1 (1x1) + residual multiply -------------------------------
        a2 = jnp.dot(a1, w2_ref[...], preferred_element_type=jnp.float32)
        a2 = a2 + b2_ref[...]
        # residual uses the bf16-quantized x (matches the quantized reference);
        # sublane-aligned read: true image starts at padded column 8.
        xc = xb[4:4 + T, 8:8 + Wo, :].reshape(T * Wo, Cp).astype(jnp.float32)
        o_ref[...] = (xc * a2).reshape(T, Wo, Cp).astype(o_ref.dtype)

    return kernel


# --------------------------- parameter helpers ----------------------------

def quaternion_conv_weight(key, in_channels, out_channels, k):
    """Hamilton-product block weight in HWIO layout (k, k, Cin, Cout)."""
    co, ci = out_channels // 4, in_channels // 4
    kr, ki_, kj, kk = jax.random.split(key, 4)
    scale = 0.1
    r = scale * jax.random.normal(kr, (co, ci, k, k), jnp.float32)
    i = scale * jax.random.normal(ki_, (co, ci, k, k), jnp.float32)
    j = scale * jax.random.normal(kj, (co, ci, k, k), jnp.float32)
    q = scale * jax.random.normal(kk, (co, ci, k, k), jnp.float32)
    row_r = jnp.concatenate([r, -i, -j, -q], axis=1)
    row_i = jnp.concatenate([i,  r, -q,  j], axis=1)
    row_j = jnp.concatenate([j,  q,  r, -i], axis=1)
    row_k = jnp.concatenate([q, -j,  i,  r], axis=1)
    w_oihw = jnp.concatenate([row_r, row_i, row_j, row_k], axis=0)  # (Co,Ci,k,k)
    return jnp.transpose(w_oihw, (2, 3, 1, 0))                       # HWIO


def init_params(key, dim):
    ks = jax.random.split(key, 6)
    return dict(
        w0=quaternion_conv_weight(ks[0], dim, dim, 3),
        b0=0.01 * jax.random.normal(ks[1], (dim,), jnp.float32),
        w1=quaternion_conv_weight(ks[2], 2 * dim, dim, 3),
        b1=0.01 * jax.random.normal(ks[3], (dim,), jnp.float32),
        w2=quaternion_conv_weight(ks[4], dim, dim, 1),
        b2=0.01 * jax.random.normal(ks[5], (dim,), jnp.float32),
    )


def _taps_matrix(w_hwio, cp):
    """(kh,kw,Cin,Cout) HWIO -> (kh*kw*cp, cp) bf16 matmul RHS, tap-major rows."""
    kh, kw, c, d = w_hwio.shape
    w = w_hwio.reshape(kh * kw, c, d)
    w = jnp.pad(w, ((0, 0), (0, cp - c), (0, cp - d)))
    return w.reshape(kh * kw * cp, cp).astype(jnp.bfloat16)


def _bias_f32(b, cp):
    return jnp.pad(b, (0, cp - b.shape[0])).reshape(1, cp).astype(jnp.float32)


# ------------------------------- wrapper ----------------------------------

def attention_module(x_nchw, params, row_tile=None):
    N, C, H, W = x_nchw.shape
    Cp = _round_up(C, 128)       # lane-dense channels (MXU / unmasked stores)
    Wo = _round_up(W, 8)         # computed output width (cols >= W sliced off)
    Wa = Wo + 8                  # conv0-output (a0) width incl. +/-3 col halo
    Wx = Wo + 16                 # padded-x width (true col c -> padded col c+8)
    T = row_tile if row_tile is not None else _pick_row_tile(H)
    Hp = _round_up(H, T)         # pad H up to a multiple of T; tail is masked

    # NHWC + zero pad: 4 rows top, 4 + (Hp-H) bottom, 8 cols left, rest right,
    # channels to Cp; bf16 for HBM/VMEM/MXU.
    x_nhwc = jnp.transpose(x_nchw, (0, 2, 3, 1)).astype(jnp.float32)
    xp = jnp.pad(x_nhwc, ((0, 0), (4, 4 + Hp - H), (8, Wx - 8 - W), (0, Cp - C)))
    xp = xp.astype(jnp.bfloat16)

    w0 = _taps_matrix(params["w0"], Cp)                             # (9*Cp, Cp)
    # fold cat([a, a], channel): both halves of w1 see the same input (exact).
    w1_folded = params["w1"][:, :, :C, :] + params["w1"][:, :, C:, :]
    w1 = _taps_matrix(w1_folded, Cp)                                # (9*Cp, Cp)
    w2 = jnp.pad(params["w2"].reshape(C, C),
                 ((0, Cp - C), (0, Cp - C))).astype(jnp.bfloat16)   # (Cp, Cp)
    b0 = _bias_f32(params["b0"], Cp)
    b1 = _bias_f32(params["b1"], Cp)
    b2 = _bias_f32(params["b2"], Cp)

    R = Hp // T
    Hh = T + 6
    flops = int(N * R * 2 * Cp * Cp * (9 * Hh * Wa + 10 * T * Wo))
    bytes_accessed = int(xp.size * 2 + N * Hp * Wo * Cp * 2
                         + (w0.size + w1.size + w2.size) * 2
                         + (b0.size + b1.size + b2.size) * 4)

    kernel = _make_fused_kernel(T, H, W, Wo, Wa, Cp)
    out = pl.pallas_call(
        kernel,
        out_shape=jax.ShapeDtypeStruct((N, Hp, Wo, Cp), jnp.bfloat16),
        grid=(N, R),
        in_specs=[
            # Whole padded image of batch element n; block index constant over
            # the row-tile axis -> DMA'd once per n, VMEM-resident.
            # TODO(synk): per-tile halo DMA for v7x (64 MiB VMEM) large images.
            pl.BlockSpec((None, Hp + 8, Wx, Cp), lambda n, r: (n, 0, 0, 0)),
            pl.BlockSpec((9 * Cp, Cp), lambda n, r: (0, 0)),
            pl.BlockSpec((1, Cp), lambda n, r: (0, 0)),
            pl.BlockSpec((9 * Cp, Cp), lambda n, r: (0, 0)),
            pl.BlockSpec((1, Cp), lambda n, r: (0, 0)),
            pl.BlockSpec((Cp, Cp), lambda n, r: (0, 0)),
            pl.BlockSpec((1, Cp), lambda n, r: (0, 0)),
        ],
        out_specs=pl.BlockSpec((None, T, Wo, Cp), lambda n, r: (n, r, 0, 0)),
        compiler_params=pltpu.CompilerParams(
            # batch axis parallel (megacore / v7x 2-TC shards batches); the
            # row-tile axis stays "arbitrary" so both cores do not each
            # re-DMA the whole image.
            dimension_semantics=("parallel", "arbitrary"),
            vmem_limit_bytes=64 * 1024 * 1024),
        cost_estimate=pl.CostEstimate(flops=flops, transcendentals=0,
                                      bytes_accessed=bytes_accessed),
    )(xp, w0, b0, w1, b1, w2, b2)

    out = out[:, :H, :W, :C].astype(jnp.float32)
    return jnp.transpose(out, (0, 3, 1, 2))   # back to NCHW


# --------------------------- pure-JAX reference ---------------------------

def _conv_ref(x, w_hwio, b, pad, dil):
    y = jax.lax.conv_general_dilated(
        x, w_hwio, window_strides=(1, 1),
        padding=[(pad, pad), (pad, pad)], rhs_dilation=(dil, dil),
        dimension_numbers=("NHWC", "HWIO", "NHWC"))
    return y + b.reshape(1, 1, 1, -1)


def _q(x):
    # quantize to the bf16 grid (the kernel feeds the MXU in bf16, f32 accum)
    return x.astype(jnp.bfloat16).astype(jnp.float32)


def attention_module_ref(x_nchw, params):
    """Reference of the PyTorch module with activations/weights rounded to
    bf16 at the same points as the kernel (isolates structural errors from
    MXU precision)."""
    x = jnp.transpose(x_nchw, (0, 2, 3, 1)).astype(jnp.float32)
    xq = _q(x)
    a = _conv_ref(xq, _q(params["w0"]), params["b0"], 1, 1)
    a = _q(a)
    a = _conv_ref(jnp.concatenate([a, a], axis=-1), _q(params["w1"]),
                  params["b1"], 3, 3)
    a = _q(a)
    a = _conv_ref(a, _q(params["w2"]), params["b2"], 0, 1)
    return jnp.transpose(xq * a, (0, 3, 1, 2))


if __name__ == "__main__":
    key = jax.random.PRNGKey(0)
    kx_, kp = jax.random.split(key)
    # dim must be divisible by 4 for QuaternionConv; small test shapes.
    N, dim, H, W = 2, 8, 16, 16
    x = jax.random.normal(kx_, (N, dim, H, W), jnp.float32)
    params = init_params(kp, dim)

    out = jax.jit(attention_module)(x, params)
    out = jax.block_until_ready(out)

    ref = attention_module_ref(x, params)
    np.testing.assert_allclose(np.asarray(out), np.asarray(ref),
                               rtol=2e-2, atol=2e-2)
    print("KERNEL_OK")
</pallas_src>

<mosaic_0001>
module attributes {stable_mosaic.version = 11 : i64} {
  func.func @kernel(%arg0: i32, %arg1: i32, %arg2: memref<1x24x32x128xbf16, #tpu.memory_space<vmem>>, %arg3: memref<1152x128xbf16, #tpu.memory_space<vmem>>, %arg4: memref<1x128xf32, #tpu.memory_space<vmem>>, %arg5: memref<1152x128xbf16, #tpu.memory_space<vmem>>, %arg6: memref<1x128xf32, #tpu.memory_space<vmem>>, %arg7: memref<128x128xbf16, #tpu.memory_space<vmem>>, %arg8: memref<1x128xf32, #tpu.memory_space<vmem>>, %arg9: memref<1x16x16x128xbf16, #tpu.memory_space<vmem>>) attributes {dimension_semantics = [#tpu.dimension_semantics<parallel>, #tpu.dimension_semantics<arbitrary>], iteration_bounds = array<i64: 2, 1>, scalar_prefetch = 0 : i64, scratch_operands = 0 : i64, tpu.core_type = #tpu.core_type<tc>, window_params = [{transform_indices = @transform_0, window_bounds = array<i64: 1, 24, 32, 128>}, {pipeline_mode = #tpu.pipeline_mode<synchronous>, transform_indices = @transform_1, window_bounds = array<i64: 1152, 128>}, {pipeline_mode = #tpu.pipeline_mode<synchronous>, transform_indices = @transform_2, window_bounds = array<i64: 1, 128>}, {pipeline_mode = #tpu.pipeline_mode<synchronous>, transform_indices = @transform_3, window_bounds = array<i64: 1152, 128>}, {pipeline_mode = #tpu.pipeline_mode<synchronous>, transform_indices = @transform_4, window_bounds = array<i64: 1, 128>}, {pipeline_mode = #tpu.pipeline_mode<synchronous>, transform_indices = @transform_5, window_bounds = array<i64: 128, 128>}, {pipeline_mode = #tpu.pipeline_mode<synchronous>, transform_indices = @transform_6, window_bounds = array<i64: 1, 128>}, {transform_indices = @transform_7, window_bounds = array<i64: 1, 16, 16, 128>}]} {
    %c16_i32 = arith.constant 16 : i32
    %0 = arith.muli %arg1, %c16_i32 : i32
    %1 = tpu.assume_multiple %0, 16 : i32
    %c0 = arith.constant 0 : index
    %2 = arith.index_cast %1 : i32 to index
    %c0_0 = arith.constant 0 : index
    %c0_1 = arith.constant 0 : index
    %3 = vector.load %arg2[%c0, %2, %c0_0, %c0_1] : memref<1x24x32x128xbf16, #tpu.memory_space<vmem>>, vector<1x24x32x128xbf16>
    %4 = vector.shape_cast %3 : vector<1x24x32x128xbf16> to vector<24x32x128xbf16>
    %5 = vector.extract_strided_slice %4 {offsets = [0, 4, 0], sizes = [22, 24, 128], strides = [1, 1, 1]} : vector<24x32x128xbf16> to vector<22x24x128xbf16>
    %6 = vector.extract_strided_slice %4 {offsets = [0, 5, 0], sizes = [22, 24, 128], strides = [1, 1, 1]} : vector<24x32x128xbf16> to vector<22x24x128xbf16>
    %7 = vector.extract_strided_slice %4 {offsets = [0, 6, 0], sizes = [22, 24, 128], strides = [1, 1, 1]} : vector<24x32x128xbf16> to vector<22x24x128xbf16>
    %8 = vector.extract_strided_slice %4 {offsets = [1, 4, 0], sizes = [22, 24, 128], strides = [1, 1, 1]} : vector<24x32x128xbf16> to vector<22x24x128xbf16>
    %9 = vector.extract_strided_slice %4 {offsets = [1, 5, 0], sizes = [22, 24, 128], strides = [1, 1, 1]} : vector<24x32x128xbf16> to vector<22x24x128xbf16>
    %10 = vector.extract_strided_slice %4 {offsets = [1, 6, 0], sizes = [22, 24, 128], strides = [1, 1, 1]} : vector<24x32x128xbf16> to vector<22x24x128xbf16>
    %11 = vector.extract_strided_slice %4 {offsets = [2, 4, 0], sizes = [22, 24, 128], strides = [1, 1, 1]} : vector<24x32x128xbf16> to vector<22x24x128xbf16>
    %12 = vector.extract_strided_slice %4 {offsets = [2, 5, 0], sizes = [22, 24, 128], strides = [1, 1, 1]} : vector<24x32x128xbf16> to vector<22x24x128xbf16>
    %13 = vector.extract_strided_slice %4 {offsets = [2, 6, 0], sizes = [22, 24, 128], strides = [1, 1, 1]} : vector<24x32x128xbf16> to vector<22x24x128xbf16>
    %14 = tpu.concatenate %5, %6, %7, %8, %9, %10, %11, %12, %13 in 2 : vector<22x24x128xbf16>, vector<22x24x128xbf16>, vector<22x24x128xbf16>, vector<22x24x128xbf16>, vector<22x24x128xbf16>, vector<22x24x128xbf16>, vector<22x24x128xbf16>, vector<22x24x128xbf16>, vector<22x24x128xbf16> -> vector<22x24x1152xbf16>
    %15 = vector.shape_cast %14 : vector<22x24x1152xbf16> to vector<528x1152xbf16>
    %c0_2 = arith.constant 0 : index
    %c0_3 = arith.constant 0 : index
    %16 = vector.load %arg3[%c0_2, %c0_3] : memref<1152x128xbf16, #tpu.memory_space<vmem>>, vector<1152x128xbf16>
    %cst = arith.constant dense<0.000000e+00> : vector<528x128xf32>
    %17 = tpu.matmul %15, %16, %cst {dimension_numbers = #tpu.dot_dimension_numbers<[1], [0], [0], [1], [0, 0, 1, 1], [], []>} : vector<528x1152xbf16>, vector<1152x128xbf16>, vector<528x128xf32> -> vector<528x128xf32>
    %c0_4 = arith.constant 0 : index
    %c0_5 = arith.constant 0 : index
    %18 = vector.load %arg4[%c0_4, %c0_5] : memref<1x128xf32, #tpu.memory_space<vmem>>, vector<1x128xf32>
    %19 = vector.broadcast %18 : vector<1x128xf32> to vector<528x128xf32>
    %20 = arith.addf %17, %19 : vector<528x128xf32>
    %21 = vector.shape_cast %20 : vector<528x128xf32> to vector<22x24x128xf32>
    %22 = arith.truncf %21 : vector<22x24x128xf32> to vector<22x24x128xbf16>
    %23 = tpu.iota {dimensions = array<i32: 0>} : vector<22x24xi32>
    %c3_i32 = arith.constant 3 : i32
    %24 = arith.subi %1, %c3_i32 : i32
    %25 = vector.broadcast %24 : i32 to vector<22x24xi32>
    %26 = arith.addi %23, %25 : vector<22x24xi32>
    %27 = tpu.iota {dimensions = array<i32: 1>} : vector<22x24xi32>
    %c3_i32_6 = arith.constant 3 : i32
    %28 = vector.broadcast %c3_i32_6 : i32 to vector<22x24xi32>
    %29 = arith.subi %27, %28 : vector<22x24xi32>
    %c0_i32 = arith.constant 0 : i32
    %30 = vector.broadcast %c0_i32 : i32 to vector<22x24xi32>
    %31 = arith.cmpi sge, %26, %30 : vector<22x24xi32>
    %c16_i32_7 = arith.constant 16 : i32
    %32 = vector.broadcast %c16_i32_7 : i32 to vector<22x24xi32>
    %33 = arith.cmpi slt, %26, %32 : vector<22x24xi32>
    %34 = arith.andi %31, %33 : vector<22x24xi1>
    %c0_i32_8 = arith.constant 0 : i32
    %35 = vector.broadcast %c0_i32_8 : i32 to vector<22x24xi32>
    %36 = arith.cmpi sge, %29, %35 : vector<22x24xi32>
    %37 = arith.andi %34, %36 : vector<22x24xi1>
    %c16_i32_9 = arith.constant 16 : i32
    %38 = vector.broadcast %c16_i32_9 : i32 to vector<22x24xi32>
    %39 = arith.cmpi slt, %29, %38 : vector<22x24xi32>
    %40 = arith.andi %37, %39 : vector<22x24xi1>
    %41 = arith.extui %40 : vector<22x24xi1> to vector<22x24xi32>
    %42 = arith.sitofp %41 : vector<22x24xi32> to vector<22x24xf32>
    %43 = arith.truncf %42 : vector<22x24xf32> to vector<22x24xbf16>
    %44 = vector.shape_cast %43 : vector<22x24xbf16> to vector<22x24x1xbf16>
    %45 = vector.broadcast %44 : vector<22x24x1xbf16> to vector<22x24x128xbf16>
    %46 = arith.mulf %22, %45 : vector<22x24x128xbf16>
    %47 = vector.extract_strided_slice %46 {offsets = [0, 0, 0], sizes = [16, 16, 128], strides = [1, 1, 1]} : vector<22x24x128xbf16> to vector<16x16x128xbf16>
    %48 = vector.extract_strided_slice %46 {offsets = [0, 3, 0], sizes = [16, 16, 128], strides = [1, 1, 1]} : vector<22x24x128xbf16> to vector<16x16x128xbf16>
    %49 = vector.extract_strided_slice %46 {offsets = [0, 6, 0], sizes = [16, 16, 128], strides = [1, 1, 1]} : vector<22x24x128xbf16> to vector<16x16x128xbf16>
    %50 = vector.extract_strided_slice %46 {offsets = [3, 0, 0], sizes = [16, 16, 128], strides = [1, 1, 1]} : vector<22x24x128xbf16> to vector<16x16x128xbf16>
    %51 = vector.extract_strided_slice %46 {offsets = [3, 3, 0], sizes = [16, 16, 128], strides = [1, 1, 1]} : vector<22x24x128xbf16> to vector<16x16x128xbf16>
    %52 = vector.extract_strided_slice %46 {offsets = [3, 6, 0], sizes = [16, 16, 128], strides = [1, 1, 1]} : vector<22x24x128xbf16> to vector<16x16x128xbf16>
    %53 = vector.extract_strided_slice %46 {offsets = [6, 0, 0], sizes = [16, 16, 128], strides = [1, 1, 1]} : vector<22x24x128xbf16> to vector<16x16x128xbf16>
    %54 = vector.extract_strided_slice %46 {offsets = [6, 3, 0], sizes = [16, 16, 128], strides = [1, 1, 1]} : vector<22x24x128xbf16> to vector<16x16x128xbf16>
    %55 = vector.extract_strided_slice %46 {offsets = [6, 6, 0], sizes = [16, 16, 128], strides = [1, 1, 1]} : vector<22x24x128xbf16> to vector<16x16x128xbf16>
    %56 = tpu.concatenate %47, %48, %49, %50, %51, %52, %53, %54, %55 in 2 : vector<16x16x128xbf16>, vector<16x16x128xbf16>, vector<16x16x128xbf16>, vector<16x16x128xbf16>, vector<16x16x128xbf16>, vector<16x16x128xbf16>, vector<16x16x128xbf16>, vector<16x16x128xbf16>, vector<16x16x128xbf16> -> vector<16x16x1152xbf16>
    %57 = vector.shape_cast %56 : vector<16x16x1152xbf16> to vector<256x1152xbf16>
    %c0_10 = arith.constant 0 : index
    %c0_11 = arith.constant 0 : index
    %58 = vector.load %arg5[%c0_10, %c0_11] : memref<1152x128xbf16, #tpu.memory_space<vmem>>, vector<1152x128xbf16>
    %cst_12 = arith.constant dense<0.000000e+00> : vector<256x128xf32>
    %59 = tpu.matmul %57, %58, %cst_12 {dimension_numbers = #tpu.dot_dimension_numbers<[1], [0], [0], [1], [0, 0, 1, 1], [], []>} : vector<256x1152xbf16>, vector<1152x128xbf16>, vector<256x128xf32> -> vector<256x128xf32>
    %c0_13 = arith.constant 0 : index
    %c0_14 = arith.constant 0 : index
    %60 = vector.load %arg6[%c0_13, %c0_14] : memref<1x128xf32, #tpu.memory_space<vmem>>, vector<1x128xf32>
    %61 = vector.broadcast %60 : vector<1x128xf32> to vector<256x128xf32>
    %62 = arith.addf %59, %61 : vector<256x128xf32>
    %63 = arith.truncf %62 : vector<256x128xf32> to vector<256x128xbf16>
    %c0_15 = arith.constant 0 : index
    %c0_16 = arith.constant 0 : index
    %64 = vector.load %arg7[%c0_15, %c0_16] : memref<128x128xbf16, #tpu.memory_space<vmem>>, vector<128x128xbf16>
    %cst_17 = arith.constant dense<0.000000e+00> : vector<256x128xf32>
    %65 = tpu.matmul %63, %64, %cst_17 {dimension_numbers = #tpu.dot_dimension_numbers<[1], [0], [0], [1], [0, 0, 1, 1], [], []>} : vector<256x128xbf16>, vector<128x128xbf16>, vector<256x128xf32> -> vector<256x128xf32>
    %c0_18 = arith.constant 0 : index
    %c0_19 = arith.constant 0 : index
    %66 = vector.load %arg8[%c0_18, %c0_19] : memref<1x128xf32, #tpu.memory_space<vmem>>, vector<1x128xf32>
    %67 = vector.broadcast %66 : vector<1x128xf32> to vector<256x128xf32>
    %68 = arith.addf %65, %67 : vector<256x128xf32>
    %69 = vector.extract_strided_slice %4 {offsets = [4, 8, 0], sizes = [16, 16, 128], strides = [1, 1, 1]} : vector<24x32x128xbf16> to vector<16x16x128xbf16>
    %70 = vector.shape_cast %69 : vector<16x16x128xbf16> to vector<256x128xbf16>
    %71 = arith.extf %70 : vector<256x128xbf16> to vector<256x128xf32>
    %72 = arith.mulf %71, %68 : vector<256x128xf32>
    %73 = vector.shape_cast %72 : vector<256x128xf32> to vector<16x16x128xf32>
    %74 = arith.truncf %73 : vector<16x16x128xf32> to vector<16x16x128xbf16>
    %c0_20 = arith.constant 0 : index
    %c0_21 = arith.constant 0 : index
    %c0_22 = arith.constant 0 : index
    %c0_23 = arith.constant 0 : index
    %75 = vector.load %arg9[%c0_20, %c0_21, %c0_22, %c0_23] : memref<1x16x16x128xbf16, #tpu.memory_space<vmem>>, vector<1x16x16x128xbf16>
    %76 = vector.shape_cast %75 : vector<1x16x16x128xbf16> to vector<16x16x128xbf16>
    %77 = vector.shape_cast %74 : vector<16x16x128xbf16> to vector<1x16x16x128xbf16>
    tpu.vector_store %arg9[%c0_20, %c0_21, %c0_22, %c0_23], %77 {strides = array<i32>} : memref<1x16x16x128xbf16, #tpu.memory_space<vmem>>, vector<1x16x16x128xbf16>,
    return
  }
  func.func @transform_0(%arg0: i32, %arg1: i32) -> (i32, i32, i32, i32) {
    %c0_i32 = arith.constant 0 : i32
    %c0_i32_0 = arith.constant 0 : i32
    %c0_i32_1 = arith.constant 0 : i32
    %c0_i32_2 = arith.constant 0 : i32
    return %arg0, %c0_i32, %c0_i32_0, %c0_i32_1 : i32, i32, i32, i32
  }
  func.func @transform_1(%arg0: i32, %arg1: i32) -> (i32, i32) {
    %c0_i32 = arith.constant 0 : i32
    %c0_i32_0 = arith.constant 0 : i32
    %c0_i32_1 = arith.constant 0 : i32
    return %c0_i32, %c0_i32_0 : i32, i32
  }
  func.func @transform_2(%arg0: i32, %arg1: i32) -> (i32, i32) {
    %c0_i32 = arith.constant 0 : i32
    %c0_i32_0 = arith.constant 0 : i32
    %c0_i32_1 = arith.constant 0 : i32
    return %c0_i32, %c0_i32_0 : i32, i32
  }
  func.func @transform_3(%arg0: i32, %arg1: i32) -> (i32, i32) {
    %c0_i32 = arith.constant 0 : i32
    %c0_i32_0 = arith.constant 0 : i32
    %c0_i32_1 = arith.constant 0 : i32
    return %c0_i32, %c0_i32_0 : i32, i32
  }
  func.func @transform_4(%arg0: i32, %arg1: i32) -> (i32, i32) {
    %c0_i32 = arith.constant 0 : i32
    %c0_i32_0 = arith.constant 0 : i32
    %c0_i32_1 = arith.constant 0 : i32
    return %c0_i32, %c0_i32_0 : i32, i32
  }
  func.func @transform_5(%arg0: i32, %arg1: i32) -> (i32, i32) {
    %c0_i32 = arith.constant 0 : i32
    %c0_i32_0 = arith.constant 0 : i32
    %c0_i32_1 = arith.constant 0 : i32
    return %c0_i32, %c0_i32_0 : i32, i32
  }
  func.func @transform_6(%arg0: i32, %arg1: i32) -> (i32, i32) {
    %c0_i32 = arith.constant 0 : i32
    %c0_i32_0 = arith.constant 0 : i32
    %c0_i32_1 = arith.constant 0 : i32
    return %c0_i32, %c0_i32_0 : i32, i32
  }
  func.func @transform_7(%arg0: i32, %arg1: i32) -> (i32, i32, i32, i32) {
    %c0_i32 = arith.constant 0 : i32
    %c0_i32_0 = arith.constant 0 : i32
    %c0_i32_1 = arith.constant 0 : i32
    return %arg0, %arg1, %c0_i32, %c0_i32_0 : i32, i32, i32, i32
  }
}

</mosaic_0001>

<llo_original>
// kernel: attention_module.1
$region0: #{attention_module.1}
  #allocation0 [shape = 'u32[]', space=smem, size = 0x4, offset = 0x4, fixed_abs, tag = 'smem constant byte address 0x4 - core index']
  #allocation1 [shape = 'u32[144,128]{1,0:T(1,128)}', space=vmem, size = 0x12000, scoped, tag = 'internal scratch']
  %s0 = inlined_call_operand.hbm [shape: bf16[2,24,32,128], index: 0, kind: input, shape index: {}]
  %s1 = inlined_call_operand.hbm [shape: bf16[1152,128], index: 1, kind: input, shape index: {}]
  %s2 = inlined_call_operand.hbm [shape: f32[1,128], index: 2, kind: input, shape index: {}]
  %s3 = inlined_call_operand.hbm [shape: bf16[1152,128], index: 3, kind: input, shape index: {}]
  %s4 = inlined_call_operand.hbm [shape: f32[1,128], index: 4, kind: input, shape index: {}]
  %s5 = inlined_call_operand.hbm [shape: bf16[128,128], index: 5, kind: input, shape index: {}]
  %s6 = inlined_call_operand.hbm [shape: f32[1,128], index: 6, kind: input, shape index: {}]
  %s7 = inlined_call_operand.hbm [shape: bf16[2,16,16,128], index: 7, kind: output, shape index: {}]
  %s8 = sld [smem:[#allocation0]]
  $region89: #{attention_module.1} parent=0
    _
  %s10 = ssub.s32 1, %s8
  %s11 = scalar_select 0, %s10, %s8
  $region1: #{attention_module.1} parent=0
    #allocation2 [shape = 'u8[393216]{0}', space=vmem, size = 0x60000, scoped, tag = 'input window, operand 0']
    #allocation3 [shape = 's32[2]{0}', space=sflag, size = 0x8, scoped, tag = 'scoped memory for attention_module.1']
    #allocation4 [shape = 's32[2]{0}', space=sflag, size = 0x8, scoped, tag = 'scoped memory for attention_module.1']
    #allocation5 [shape = 'u8[294912]{0}', space=vmem, size = 0x48000, scoped, tag = 'input window, operand 1, single buffered']
    #allocation6 [shape = 's32[1]{0}', space=sflag, size = 0x4, scoped, tag = 'scoped memory for attention_module.1']
    #allocation7 [shape = 'u8[512]{0}', space=vmem, size = 0x400, scoped, tag = 'input window, operand 2, single buffered']
    #allocation8 [shape = 'u8[294912]{0}', space=vmem, size = 0x48000, scoped, tag = 'input window, operand 3, single buffered']
    #allocation9 [shape = 's32[1]{0}', space=sflag, size = 0x4, scoped, tag = 'scoped memory for attention_module.1']
    #allocation10 [shape = 'u8[512]{0}', space=vmem, size = 0x400, scoped, tag = 'input window, operand 4, single buffered']
    #allocation11 [shape = 'u8[32768]{0}', space=vmem, size = 0x8000, scoped, tag = 'input window, operand 5, single buffered']
    #allocation12 [shape = 's32[1]{0}', space=sflag, size = 0x4, scoped, tag = 'scoped memory for attention_module.1']
    #allocation13 [shape = 'u8[512]{0}', space=vmem, size = 0x400, scoped, tag = 'input window, operand 6, single buffered']
    #allocation14 [shape = 'u8[131072]{0}', space=vmem, size = 0x20000, scoped, tag = 'output window, operand 0']
    %12 = vsyncpa [#allocation3], 0
    %s13 = scalar_lea.sflag [#allocation3], 1
    %14 = vsyncpa %s13, 0
    %15 = vsyncpa [#allocation6], 0
    %16 = vsyncpa [#allocation9], 0
    %17 = vsyncpa [#allocation12], 0
    %18 = vsyncpa [#allocation4], 0
    %s19 = scalar_lea.sflag [#allocation4], 1
    %20 = vsyncpa %s19, 0
    loop: start=0, step=1, limit=4
    $region2: #{attention_module.1} parent=1 // loop_pre_header
      _
    $region3: #{attention_module.1} parent=1 // loop_header
      %s22 = sphi 0, %s26
      %p23 = scmp.ge.s32.totalorder %s22, 4
      %s29 = sphi 0, %s41
      %s30 = sphi 0, %s37
      %s31 = sphi 0, %s29
      %s32 = sphi 0, %s30
      %s33 = sphi 0, %s31
      %s34 = sphi 0, %s32
      %s44 = sphi 0, %s46
      %s47 = sphi 0, %s44
      %s48 = sphi 0, %s47
      %s64 = sphi 0, %s48
      %s68 = sphi 0, %s68
      %s70 = sphi 0, %s68
      %s71 = sphi 0, %s70
      %s85 = sphi 0, %s71
      %s89 = sphi 0, %s89
      %s91 = sphi 0, %s89
      %s92 = sphi 0, %s91
      %s106 = sphi 0, %s92
      %s110 = sphi 0, %s110
      %s112 = sphi 0, %s110
      %s113 = sphi 0, %s112
      %s127 = sphi 0, %s113
      %s131 = sphi 0, %s131
      %s133 = sphi 0, %s131
      %s134 = sphi 0, %s133
      %s148 = sphi 0, %s134
      %s152 = sphi 0, %s152
      %s154 = sphi 0, %s152
      %s155 = sphi 0, %s154
      %s169 = sphi 0, %s155
      %s173 = sphi 0, %s173
      %s175 = sphi 0, %s173
      %s176 = sphi 0, %s175
      %s190 = sphi 0, %s176
      %s198 = sphi 0, %s200
      %s201 = sphi 0, %s198
      %s202 = sphi 0, %s201
      %s218 = sphi 0, %s202
    $region4: #{attention_module.1} parent=1 // loop_header_branch
      %25 = sbr.rel (%p23) target = $region8
    $region5: #{attention_module.1} parent=1 // loop_body
      %s27 = ssub.s32 %s22, 1
      %s28 = ssub.s32 %s22, 2
      %s35 = sadd.s32 1, %s30
      %p36 = scmp.ge.s32.totalorder %s35, 1
      %s37 = scalar_select %p36, 0, %s35
      %s38 = sadd.s32 1, %s29
      %s39 = scalar_select %p36, %s38, %s29
      %p40 = scmp.ge.s32.totalorder %s39, 2
      %s41 = scalar_select %p40, 0, %s39
      %s42 = ssub.s32 %s29, %s41
      %p43 = scmp.eq.s32.totalorder %s42, 0
      %s45 = sadd.s32 %s44, 1
      %s46 = scalar_select %p43, %s44, %s45
      %p49 = pneg %p43
      %p50 = scmp.eq.s32.totalorder %s22, 1
      %p51 = por %p49, %p50
      %p52 = scmp.ne.s32.totalorder %s44, %s47
      %p53 = scmp.eq.s32.totalorder %s22, 0
      %p54 = por %p52, %p53
      %p55 = scmp.ne.s32.totalorder %s44, %s47
      %p56 = scmp.eq.s32.totalorder %s27, 1
      %p57 = por %p55, %p56
      %p58 = scmp.ne.s32.totalorder %s47, %s48
      %p59 = scmp.eq.s32.totalorder %s27, 0
      %p60 = por %p58, %p59
      %p61 = scmp.ne.s32.totalorder %s47, %s48
      %p62 = scmp.eq.s32.totalorder %s28, 1
      %p63 = por %p61, %p62
      %p65 = scmp.ne.s32.totalorder %s48, %s64
      %p66 = scmp.eq.s32.totalorder %s28, 0
      %p67 = por %p65, %p66
      %s69 = sadd.s32 %s68, 1
      %p72 = scmp.eq.s32.totalorder %s22, 1
      %p73 = scmp.ne.s32.totalorder %s68, %s70
      %p74 = scmp.eq.s32.totalorder %s22, 0
      %p75 = por %p73, %p74
      %p76 = scmp.ne.s32.totalorder %s68, %s70
      %p77 = scmp.eq.s32.totalorder %s27, 1
      %p78 = por %p76, %p77
      %p79 = scmp.ne.s32.totalorder %s70, %s71
      %p80 = scmp.eq.s32.totalorder %s27, 0
      %p81 = por %p79, %p80
      %p82 = scmp.ne.s32.totalorder %s70, %s71
      %p83 = scmp.eq.s32.totalorder %s28, 1
      %p84 = por %p82, %p83
      %p86 = scmp.ne.s32.totalorder %s71, %s85
      %p87 = scmp.eq.s32.totalorder %s28, 0
      %p88 = por %p86, %p87
      %s90 = sadd.s32 %s89, 1
      %p93 = scmp.eq.s32.totalorder %s22, 1
      %p94 = scmp.ne.s32.totalorder %s89, %s91
      %p95 = scmp.eq.s32.totalorder %s22, 0
      %p96 = por %p94, %p95
      %p97 = scmp.ne.s32.totalorder %s89, %s91
      %p98 = scmp.eq.s32.totalorder %s27, 1
      %p99 = por %p97, %p98
      %p100 = scmp.ne.s32.totalorder %s91, %s92
      %p101 = scmp.eq.s32.totalorder %s27, 0
      %p102 = por %p100, %p101
      %p103 = scmp.ne.s32.totalorder %s91, %s92
      %p104 = scmp.eq.s32.totalorder %s28, 1
      %p105 = por %p103, %p104
      %p107 = scmp.ne.s32.totalorder %s92, %s106
      %p108 = scmp.eq.s32.totalorder %s28, 0
      %p109 = por %p107, %p108
      %s111 = sadd.s32 %s110, 1
      %p114 = scmp.eq.s32.totalorder %s22, 1
      %p115 = scmp.ne.s32.totalorder %s110, %s112
      %p116 = scmp.eq.s32.totalorder %s22, 0
      %p117 = por %p115, %p116
      %p118 = scmp.ne.s32.totalorder %s110, %s112
      %p119 = scmp.eq.s32.totalorder %s27, 1
      %p120 = por %p118, %p119
      %p121 = scmp.ne.s32.totalorder %s112, %s113
      %p122 = scmp.eq.s32.totalorder %s27, 0
      %p123 = por %p121, %p122
      %p124 = scmp.ne.s32.totalorder %s112, %s113
      %p125 = scmp.eq.s32.totalorder %s28, 1
      %p126 = por %p124, %p125
      %p128 = scmp.ne.s32.totalorder %s113, %s127
      %p129 = scmp.eq.s32.totalorder %s28, 0
      %p130 = por %p128, %p129
      %s132 = sadd.s32 %s131, 1
      %p135 = scmp.eq.s32.totalorder %s22, 1
      %p136 = scmp.ne.s32.totalorder %s131, %s133
      %p137 = scmp.eq.s32.totalorder %s22, 0
      %p138 = por %p136, %p137
      %p139 = scmp.ne.s32.totalorder %s131, %s133
      %p140 = scmp.eq.s32.totalorder %s27, 1
      %p141 = por %p139, %p140
      %p142 = scmp.ne.s32.totalorder %s133, %s134
      %p143 = scmp.eq.s32.totalorder %s27, 0
      %p144 = por %p142, %p143
      %p145 = scmp.ne.s32.totalorder %s133, %s134
      %p146 = scmp.eq.s32.totalorder %s28, 1
      %p147 = por %p145, %p146
      %p149 = scmp.ne.s32.totalorder %s134, %s148
      %p150 = scmp.eq.s32.totalorder %s28, 0
      %p151 = por %p149, %p150
      %s153 = sadd.s32 %s152, 1
      %p156 = scmp.eq.s32.totalorder %s22, 1
      %p157 = scmp.ne.s32.totalorder %s152, %s154
      %p158 = scmp.eq.s32.totalorder %s22, 0
      %p159 = por %p157, %p158
      %p160 = scmp.ne.s32.totalorder %s152, %s154
      %p161 = scmp.eq.s32.totalorder %s27, 1
      %p162 = por %p160, %p161
      %p163 = scmp.ne.s32.totalorder %s154, %s155
      %p164 = scmp.eq.s32.totalorder %s27, 0
      %p165 = por %p163, %p164
      %p166 = scmp.ne.s32.totalorder %s154, %s155
      %p167 = scmp.eq.s32.totalorder %s28, 1
      %p168 = por %p166, %p167
      %p170 = scmp.ne.s32.totalorder %s155, %s169
      %p171 = scmp.eq.s32.totalorder %s28, 0
      %p172 = por %p170, %p171
      %s174 = sadd.s32 %s173, 1
      %p177 = scmp.eq.s32.totalorder %s22, 1
      %p178 = scmp.ne.s32.totalorder %s173, %s175
      %p179 = scmp.eq.s32.totalorder %s22, 0
      %p180 = por %p178, %p179
      %p181 = scmp.ne.s32.totalorder %s173, %s175
      %p182 = scmp.eq.s32.totalorder %s27, 1
      %p183 = por %p181, %p182
      %p184 = scmp.ne.s32.totalorder %s175, %s176
      %p185 = scmp.eq.s32.totalorder %s27, 0
      %p186 = por %p184, %p185
      %p187 = scmp.ne.s32.totalorder %s175, %s176
      %p188 = scmp.eq.s32.totalorder %s28, 1
      %p189 = por %p187, %p188
      %p191 = scmp.ne.s32.totalorder %s176, %s190
      %p192 = scmp.eq.s32.totalorder %s28, 0
      %p193 = por %p191, %p192
      %s194 = ssub.s32 %s29, %s41
      %s195 = ssub.s32 %s30, %s37
      %s196 = sor.u32 %s194, %s195
      %p197 = scmp.eq.s32.totalorder %s196, 0
      %s199 = sadd.s32 %s198, 1
      %s200 = scalar_select %p197, %s198, %s199
      %p203 = pneg %p197
      %p204 = scmp.eq.s32.totalorder %s22, 1
      %p205 = por %p203, %p204
      %p206 = scmp.ne.s32.totalorder %s198, %s201
      %p207 = scmp.eq.s32.totalorder %s22, 0
      %p208 = por %p206, %p207
      %p209 = scmp.ne.s32.totalorder %s198, %s201
      %p210 = scmp.eq.s32.totalorder %s27, 1
      %p211 = por %p209, %p210
      %p212 = scmp.ne.s32.totalorder %s201, %s202
      %p213 = scmp.eq.s32.totalorder %s27, 0
      %p214 = por %p212, %p213
      %p215 = scmp.ne.s32.totalorder %s201, %s202
      %p216 = scmp.eq.s32.totalorder %s28, 1
      %p217 = por %p215, %p216
      %p219 = scmp.ne.s32.totalorder %s202, %s218
      %p220 = scmp.eq.s32.totalorder %s28, 0
      %p221 = por %p219, %p220
      %p222 = scmp.le.s32.totalorder 1, %s22
      %p223 = scmp.lt.s32.totalorder %s22, 3
      %p224 = pnand %p222, %p223
      %p225 = pneg %p224
      // Predicated region
      $region9: #{attention_module.1} parent=5 // pred_check
        _
      $region10: #{attention_module.1} parent=5 // pred_check_branch
        %227 = sbr.rel (%p224) target = $region12
      $region11: #{attention_module.1} parent=5 // pred_region
        %s228 = ssub.s32 %s22, 1
        // Predicated region
        $region13: #{attention_module.1} parent=11 // pred_check
          %p229 = pneg %p81
        $region14: #{attention_module.1} parent=11 // pred_check_branch
          %231 = sbr.rel (%p229) target = $region16
        $region15: #{attention_module.1} parent=11 // pred_region
          %s233 = ssub.s32 9216, 9216
          %234 = vsyncadd [#allocation6], %s233
          %s235 = sshll.u32 [#allocation5], 4
          %s236 = int_to_ptr.vmem [resolvable:$true] %s235
          %241 = dma.hbm_to_vmem [thread:$0]  %s1, 9216, %s236, [#allocation6], 64, 64, 4
        $region16: #{attention_module.1} parent=11 // pred_fallthru
          _
        // Predicated region
        $region17: #{attention_module.1} parent=11 // pred_check
          %p242 = pneg %p102
        $region18: #{attention_module.1} parent=11 // pred_check_branch
          %244 = sbr.rel (%p242) target = $region20
        $region19: #{attention_module.1} parent=11 // pred_region
          %s246 = ssub.s32 16, 16
          %247 = vsyncadd [#allocation6], %s246
          %s249 = sshll.u32 [#allocation7], 4
          %s250 = int_to_ptr.vmem [resolvable:$true] %s249
          %252 = dma.hbm_to_vmem [thread:$0]  %s2, 16, %s250, [#allocation6]
        $region20: #{attention_module.1} parent=11 // pred_fallthru
          _
        // Predicated region
        $region21: #{attention_module.1} parent=11 // pred_check
          %p253 = pneg %p123
        $region22: #{attention_module.1} parent=11 // pred_check_branch
          %255 = sbr.rel (%p253) target = $region24
        $region23: #{attention_module.1} parent=11 // pred_region
          %s257 = ssub.s32 9216, 9216
          %258 = vsyncadd [#allocation9], %s257
          %s259 = sshll.u32 [#allocation8], 4
          %s260 = int_to_ptr.vmem [resolvable:$true] %s259
          %265 = dma.hbm_to_vmem [thread:$0]  %s3, 9216, %s260, [#allocation9], 64, 64, 4
        $region24: #{attention_module.1} parent=11 // pred_fallthru
          _
        // Predicated region
        $region25: #{attention_module.1} parent=11 // pred_check
          %p266 = pneg %p144
        $region26: #{attention_module.1} parent=11 // pred_check_branch
          %268 = sbr.rel (%p266) target = $region28
        $region27: #{attention_module.1} parent=11 // pred_region
          %s270 = ssub.s32 16, 16
          %271 = vsyncadd [#allocation9], %s270
          %s273 = sshll.u32 [#allocation10], 4
          %s274 = int_to_ptr.vmem [resolvable:$true] %s273
          %276 = dma.hbm_to_vmem [thread:$0]  %s4, 16, %s274, [#allocation9]
        $region28: #{attention_module.1} parent=11 // pred_fallthru
          _
        // Predicated region
        $region29: #{attention_module.1} parent=11 // pred_check
          %p277 = pneg %p165
        $region30: #{attention_module.1} parent=11 // pred_check_branch
          %279 = sbr.rel (%p277) target = $region32
        $region31: #{attention_module.1} parent=11 // pred_region
          %s281 = ssub.s32 1024, 1024
          %282 = vsyncadd [#allocation12], %s281
          %s283 = sshll.u32 [#allocation11], 4
          %s284 = int_to_ptr.vmem [resolvable:$true] %s283
          %289 = dma.hbm_to_vmem [thread:$0]  %s5, 1024, %s284, [#allocation12], 64, 64, 4
        $region32: #{attention_module.1} parent=11 // pred_fallthru
          _
        // Predicated region
        $region33: #{attention_module.1} parent=11 // pred_check
          %p290 = pneg %p186
        $region34: #{attention_module.1} parent=11 // pred_check_branch
          %292 = sbr.rel (%p290) target = $region36
        $region35: #{attention_module.1} parent=11 // pred_region
          %s294 = ssub.s32 16, 16
          %295 = vsyncadd [#allocation12], %s294
          %s297 = sshll.u32 [#allocation13], 4
          %s298 = int_to_ptr.vmem [resolvable:$true] %s297
          %300 = dma.hbm_to_vmem [thread:$0]  %s6, 16, %s298, [#allocation12]
        $region36: #{attention_module.1} parent=11 // pred_fallthru
          _
      $region12: #{attention_module.1} parent=5 // pred_fallthru
        _
      %p301 = scmp.lt.s32.totalorder %s22, 2
      // Predicated region
      $region37: #{attention_module.1} parent=5 // pred_check
        %p302 = pneg %p301
      $region38: #{attention_module.1} parent=5 // pred_check_branch
        %304 = sbr.rel (%p302) target = $region40
      $region39: #{attention_module.1} parent=5 // pred_region
        // Predicated region
        $region41: #{attention_module.1} parent=39 // pred_check
          %p305 = pneg %p54
        $region42: #{attention_module.1} parent=39 // pred_check_branch
          %307 = sbr.rel (%p305) target = $region44
        $region43: #{attention_module.1} parent=39 // pred_region
          %s308 = sand.u32 %s44, 1
          %s309 = scalar_lea.sflag [#allocation3], %s308
          %s310 = sand.u32 %s44, 1
          %s311 = smul.addr %s310, 384
          %s312 = scalar_lea.vmem [#allocation2], %s311
          %s314 = ssub.s32 6144, 6144
          %315 = vsyncadd %s309, %s314
          %s316 = smul.addr %s29, 96
          %s317 = smul.addr %s316, 64
          %s318 = scalar_lea.hbm %s0, %s317
          %s319 = sshll.u32 %s312, 4
          %s320 = int_to_ptr.vmem [resolvable:$true] %s319
          %325 = dma.hbm_to_vmem [thread:$0]  %s318, 6144, %s320, %s309, 64, 64, 4
        $region44: #{attention_module.1} parent=39 // pred_fallthru
          _
      $region40: #{attention_module.1} parent=5 // pred_fallthru
        _
      %p326 = scmp.le.s32.totalorder 1, %s22
      %p327 = scmp.lt.s32.totalorder %s22, 3
      %p328 = pnand %p326, %p327
      %p329 = pneg %p328
      // Predicated region
      $region45: #{attention_module.1} parent=5 // pred_check
        _
      $region46: #{attention_module.1} parent=5 // pred_check_branch
        %331 = sbr.rel (%p328) target = $region48
      $region47: #{attention_module.1} parent=5 // pred_region
        %s332 = ssub.s32 %s22, 1
        %s333 = sand.u32 %s47, 1
        %s334 = scalar_lea.sflag [#allocation3], %s333
        %s335 = sand.u32 %s47, 1
        %s336 = smul.addr %s335, 384
        %s337 = scalar_lea.vmem [#allocation2], %s336
        // Predicated region
        $region49: #{attention_module.1} parent=47 // pred_check
          %p338 = pneg %p60
        $region50: #{attention_module.1} parent=47 // pred_check_branch
          %340 = sbr.rel (%p338) target = $region52
        $region51: #{attention_module.1} parent=47 // pred_region
          %341 = dma.done %s334, 6144
        $region52: #{attention_module.1} parent=47 // pred_fallthru
          _
        // Predicated region
        $region53: #{attention_module.1} parent=47 // pred_check
          %p342 = pneg %p81
        $region54: #{attention_module.1} parent=47 // pred_check_branch
          %344 = sbr.rel (%p342) target = $region56
        $region55: #{attention_module.1} parent=47 // pred_region
          %345 = dma.done [#allocation6], 9216
        $region56: #{attention_module.1} parent=47 // pred_fallthru
          _
        // Predicated region
        $region57: #{attention_module.1} parent=47 // pred_check
          %p346 = pneg %p102
        $region58: #{attention_module.1} parent=47 // pred_check_branch
          %348 = sbr.rel (%p346) target = $region60
        $region59: #{attention_module.1} parent=47 // pred_region
          %349 = dma.done [#allocation6], 16
        $region60: #{attention_module.1} parent=47 // pred_fallthru
          _
        // Predicated region
        $region61: #{attention_module.1} parent=47 // pred_check
          %p350 = pneg %p123
        $region62: #{attention_module.1} parent=47 // pred_check_branch
          %352 = sbr.rel (%p350) target = $region64
        $region63: #{attention_module.1} parent=47 // pred_region
          %353 = dma.done [#allocation9], 9216
        $region64: #{attention_module.1} parent=47 // pred_fallthru
          _
        // Predicated region
        $region65: #{attention_module.1} parent=47 // pred_check
          %p354 = pneg %p144
        $region66: #{attention_module.1} parent=47 // pred_check_branch
          %356 = sbr.rel (%p354) target = $region68
        $region67: #{attention_module.1} parent=47 // pred_region
          %357 = dma.done [#allocation9], 16
        $region68: #{attention_module.1} parent=47 // pred_fallthru
          _
        // Predicated region
        $region69: #{attention_module.1} parent=47 // pred_check
          %p358 = pneg %p165
        $region70: #{attention_module.1} parent=47 // pred_check_branch
          %360 = sbr.rel (%p358) target = $region72
        $region71: #{attention_module.1} parent=47 // pred_region
          %361 = dma.done [#allocation12], 1024
        $region72: #{attention_module.1} parent=47 // pred_fallthru
          _
        // Predicated region
        $region73: #{attention_module.1} parent=47 // pred_check
          %p362 = pneg %p186
        $region74: #{attention_module.1} parent=47 // pred_check_branch
          %364 = sbr.rel (%p362) target = $region76
        $region75: #{attention_module.1} parent=47 // pred_region
          %365 = dma.done [#allocation12], 16
        $region76: #{attention_module.1} parent=47 // pred_fallthru
          _
        %s366 = sand.u32 %s47, 1
        %s367 = scalar_lea.sflag [#allocation3], %s366
        %s368 = sand.u32 %s47, 1
        %s369 = smul.addr %s368, 384
        %s370 = scalar_lea.vmem [#allocation2], %s369
        %p371 = pneg %p60
        %p372 = pneg %p57
        %p373 = pneg %p81
        %p374 = pneg %p78
        %p375 = pneg %p102
        %p376 = pneg %p99
        %p377 = pneg %p123
        %p378 = pneg %p120
        %p379 = pneg %p144
        %p380 = pneg %p141
        %p381 = pneg %p165
        %p382 = pneg %p162
        %p383 = pneg %p186
        %p384 = pneg %p183
        %p385 = pneg %p214
        %p386 = pneg %p211
        %s387 = sand.u32 %s201, 1
        %s388 = scalar_lea.sflag [#allocation4], %s387
        %s389 = sand.u32 %s201, 1
        %s390 = smul.addr %s389, 128
        %s391 = scalar_lea.vmem [#allocation14], %s390
        %s392 = smul.u32 16, %s32
        %s394 = smul.u32 %s32, 16
        %s395 = smul.u32 %s394, 4
        %s396 = smul.addr %s395, 4
        %s397 = scalar_lea.vmem %s337, %s396 [#allocation2]
        %v398 = vld [vmem:[%s397] sm:$0xf]
        %v399 = vld [vmem:[%s397 + $0x4] sm:$0xf]
        %v400 = vld [vmem:[%s397 + $0x8] sm:$0xf]
        %v401 = vld [vmem:[%s397 + $0xc] sm:$0xf]
        %v402 = vld [vmem:[%s397 + $0x10] sm:$0xf]
        %v403 = vld [vmem:[%s397 + $0x14] sm:$0xf]
        %v404 = vld [vmem:[%s397 + $0x18] sm:$0xf]
        %v405 = vld [vmem:[%s397 + $0x1c] sm:$0xf]
        %v406 = vld [vmem:[%s397 + $0x20] sm:$0xf]
        %v407 = vld [vmem:[%s397 + $0x24] sm:$0xf]
        %v408 = vld [vmem:[%s397 + $0x28] sm:$0xf]
        %v409 = vld [vmem:[%s397 + $0x2c] sm:$0xf]
        %v410 = vld [vmem:[%s397 + $0x30] sm:$0xf]
        %v411 = vld [vmem:[%s397 + $0x34] sm:$0xf]
        %v412 = vld [vmem:[%s397 + $0x38] sm:$0xf]
        %v413 = vld [vmem:[%s397 + $0x3c] sm:$0xf]
        %v414 = vld [vmem:[%s397 + $0x40] sm:$0xf]
        %v415 = vld [vmem:[%s397 + $0x44] sm:$0xf]
        %v416 = vld [vmem:[%s397 + $0x48] sm:$0xf]
        %v417 = vld [vmem:[%s397 + $0x4c] sm:$0xf]
        %v418 = vld [vmem:[%s397 + $0x50] sm:$0xf]
        %v419 = vld [vmem:[%s397 + $0x54] sm:$0xf]
        %v420 = vld [vmem:[%s397 + $0x58] sm:$0xf]
        %v421 = vld [vmem:[%s397 + $0x5c] sm:$0xf]
        %v422 = vld [vmem:[%s397 + $0x60] sm:$0xf]
        %v423 = vld [vmem:[%s397 + $0x64] sm:$0xf]
        %v424 = vld [vmem:[%s397 + $0x68] sm:$0xf]
        %v425 = vld [vmem:[%s397 + $0x6c] sm:$0xf]
        %v426 = vld [vmem:[%s397 + $0x70] sm:$0xf]
        %v427 = vld [vmem:[%s397 + $0x74] sm:$0xf]
        %v428 = vld [vmem:[%s397 + $0x78] sm:$0xf]
        %v429 = vld [vmem:[%s397 + $0x7c] sm:$0xf]
        %v430 = vld [vmem:[%s397 + $0x80] sm:$0xf]
        %v431 = vld [vmem:[%s397 + $0x84] sm:$0xf]
        %v432 = vld [vmem:[%s397 + $0x88] sm:$0xf]
        %v433 = vld [vmem:[%s397 + $0x8c] sm:$0xf]
        %v434 = vld [vmem:[%s397 + $0x90] sm:$0xf]
        %v435 = vld [vmem:[%s397 + $0x94] sm:$0xf]
        %v436 = vld [vmem:[%s397 + $0x98] sm:$0xf]
        %v437 = vld [vmem:[%s397 + $0x9c] sm:$0xf]
        %v438 = vld [vmem:[%s397 + $0xa0] sm:$0xf]
        %v439 = vld [vmem:[%s397 + $0xa4] sm:$0xf]
        %v440 = vld [vmem:[%s397 + $0xa8] sm:$0xf]
        %v441 = vld [vmem:[%s397 + $0xac] sm:$0xf]
        %v442 = vld [vmem:[%s397 + $0xb0] sm:$0xf]
        %v443 = vld [vmem:[%s397 + $0xb4] sm:$0xf]
        %v444 = vld [vmem:[%s397 + $0xb8] sm:$0xf]
        %v445 = vld [vmem:[%s397 + $0xbc] sm:$0xf]
        %v446 = vld [vmem:[%s397 + $0xc0] sm:$0xf]
        %v447 = vld [vmem:[%s397 + $0xc4] sm:$0xf]
        %v448 = vld [vmem:[%s397 + $0xc8] sm:$0xf]
        %v449 = vld [vmem:[%s397 + $0xcc] sm:$0xf]
        %v450 = vld [vmem:[%s397 + $0xd0] sm:$0xf]
        %v451 = vld [vmem:[%s397 + $0xd4] sm:$0xf]
        %v452 = vld [vmem:[%s397 + $0xd8] sm:$0xf]
        %v453 = vld [vmem:[%s397 + $0xdc] sm:$0xf]
        %v454 = vld [vmem:[%s397 + $0xe0] sm:$0xf]
        %v455 = vld [vmem:[%s397 + $0xe4] sm:$0xf]
        %v456 = vld [vmem:[%s397 + $0xe8] sm:$0xf]
        %v457 = vld [vmem:[%s397 + $0xec] sm:$0xf]
        %v458 = vld [vmem:[%s397 + $0xf0] sm:$0xf]
        %v459 = vld [vmem:[%s397 + $0xf4] sm:$0xf]
        %v460 = vld [vmem:[%s397 + $0xf8] sm:$0xf]
        %v461 = vld [vmem:[%s397 + $0xfc] sm:$0xf]
        %v462 = vld [vmem:[%s397 + $0x100] sm:$0xf]
        %v463 = vld [vmem:[%s397 + $0x104] sm:$0xf]
        %v464 = vld [vmem:[%s397 + $0x108] sm:$0xf]
        %v465 = vld [vmem:[%s397 + $0x10c] sm:$0xf]
        %v466 = vld [vmem:[%s397 + $0x110] sm:$0xf]
        %v467 = vld [vmem:[%s397 + $0x114] sm:$0xf]
        %v468 = vld [vmem:[%s397 + $0x118] sm:$0xf]
        %v469 = vld [vmem:[%s397 + $0x11c] sm:$0xf]
        %v470 = vld [vmem:[%s397 + $0x120] sm:$0xf]
        %v471 = vld [vmem:[%s397 + $0x124] sm:$0xf]
        %v472 = vld [vmem:[%s397 + $0x128] sm:$0xf]
        %v473 = vld [vmem:[%s397 + $0x12c] sm:$0xf]
        %v474 = vld [vmem:[%s397 + $0x130] sm:$0xf]
        %v475 = vld [vmem:[%s397 + $0x134] sm:$0xf]
        %v476 = vld [vmem:[%s397 + $0x138] sm:$0xf]
        %v477 = vld [vmem:[%s397 + $0x13c] sm:$0xf]
        %v478 = vld [vmem:[%s397 + $0x140] sm:$0xf]
        %v479 = vld [vmem:[%s397 + $0x144] sm:$0xf]
        %v480 = vld [vmem:[%s397 + $0x148] sm:$0xf]
        %v481 = vld [vmem:[%s397 + $0x14c] sm:$0xf]
        %v482 = vld [vmem:[%s397 + $0x150] sm:$0xf]
        %v483 = vld [vmem:[%s397 + $0x154] sm:$0xf]
        %v484 = vld [vmem:[%s397 + $0x158] sm:$0xf]
        %v485 = vld [vmem:[%s397 + $0x15c] sm:$0xf]
        %v486 = vld [vmem:[%s397 + $0x160] sm:$0xf]
        %v487 = vld [vmem:[%s397 + $0x164] sm:$0xf]
        %v488 = vld [vmem:[%s397 + $0x168] sm:$0xf]
        %v489 = vld [vmem:[%s397 + $0x16c] sm:$0xf]
        %v490 = vld [vmem:[%s397 + $0x170] sm:$0xf]
        %v491 = vld [vmem:[%s397 + $0x174] sm:$0xf]
        %v492 = vld [vmem:[%s397 + $0x178] sm:$0xf]
        %v493 = vld [vmem:[%s397 + $0x17c] sm:$0xf]
        %v582 = vunpack.c.l.b16 %v398
        %v583 = vunpack.c.l.b16 %v399
        %v584 = vunpack.c.l.b16 %v400
        %v585 = vunpack.c.l.b16 %v401
        %v586 = vunpack.c.l.b16 %v402
        %v587 = vunpack.c.l.b16 %v403
        %v588 = vunpack.c.l.b16 %v404
        %v589 = vunpack.c.l.b16 %v405
        %v590 = vunpack.c.l.b16 %v406
        %v591 = vunpack.c.l.b16 %v407
        %v592 = vunpack.c.l.b16 %v408
        %v593 = vunpack.c.l.b16 %v409
        %v594 = vunpack.c.l.b16 %v410
        %v595 = vunpack.c.l.b16 %v411
        %v596 = vunpack.c.l.b16 %v412
        %v597 = vunpack.c.l.b16 %v413
        %v598 = vunpack.c.l.b16 %v414
        %v599 = vunpack.c.l.b16 %v415
        %v600 = vunpack.c.l.b16 %v416
        %v601 = vunpack.c.l.b16 %v417
        %v602 = vunpack.c.l.b16 %v418
        %v603 = vunpack.c.l.b16 %v419
        %v604 = vunpack.c.l.b16 %v420
        %v605 = vunpack.c.l.b16 %v421
        %v606 = vunpack.c.l.b16 %v422
        %v607 = vunpack.c.l.b16 %v423
        %v608 = vunpack.c.l.b16 %v424
        %v609 = vunpack.c.l.b16 %v425
        %v610 = vunpack.c.l.b16 %v426
        %v611 = vunpack.c.l.b16 %v427
        %v612 = vunpack.c.l.b16 %v428
        %v613 = vunpack.c.l.b16 %v429
        %v614 = vunpack.c.l.b16 %v430
        %v615 = vunpack.c.l.b16 %v431
        %v616 = vunpack.c.l.b16 %v432
        %v617 = vunpack.c.l.b16 %v433
        %v618 = vunpack.c.l.b16 %v434
        %v619 = vunpack.c.l.b16 %v435
        %v620 = vunpack.c.l.b16 %v436
        %v621 = vunpack.c.l.b16 %v437
        %v622 = vunpack.c.l.b16 %v438
        %v623 = vunpack.c.l.b16 %v439
        %v624 = vunpack.c.l.b16 %v440
        %v625 = vunpack.c.l.b16 %v441
        %v626 = vunpack.c.l.b16 %v442
        %v627 = vunpack.c.l.b16 %v443
        %v628 = vunpack.c.l.b16 %v444
        %v629 = vunpack.c.l.b16 %v445
        %v630 = vunpack.c.l.b16 %v446
        %v631 = vunpack.c.l.b16 %v447
        %v632 = vunpack.c.l.b16 %v448
        %v633 = vunpack.c.l.b16 %v449
        %v634 = vunpack.c.l.b16 %v450
        %v635 = vunpack.c.l.b16 %v451
        %v636 = vunpack.c.l.b16 %v452
        %v637 = vunpack.c.l.b16 %v453
        %v638 = vunpack.c.l.b16 %v454
        %v639 = vunpack.c.l.b16 %v455
        %v640 = vunpack.c.l.b16 %v456
        %v641 = vunpack.c.l.b16 %v457
        %v642 = vunpack.c.l.b16 %v458
        %v643 = vunpack.c.l.b16 %v459
        %v644 = vunpack.c.l.b16 %v460
        %v645 = vunpack.c.l.b16 %v461
        %v646 = vunpack.c.l.b16 %v462
        %v647 = vunpack.c.l.b16 %v463
        %v648 = vunpack.c.l.b16 %v464
        %v649 = vunpack.c.l.b16 %v465
        %v650 = vunpack.c.l.b16 %v466
        %v651 = vunpack.c.l.b16 %v467
        %v652 = vunpack.c.l.b16 %v468
        %v653 = vunpack.c.l.b16 %v469
        %v654 = vunpack.c.l.b16 %v470
        %v655 = vunpack.c.l.b16 %v471
        %v656 = vunpack.c.l.b16 %v472
        %v657 = vunpack.c.l.b16 %v473
        %v658 = vunpack.c.l.b16 %v474
        %v659 = vunpack.c.l.b16 %v475
        %v660 = vunpack.c.l.b16 %v476
        %v661 = vunpack.c.l.b16 %v477
        %v662 = vunpack.c.l.b16 %v478
        %v663 = vunpack.c.l.b16 %v479
        %v664 = vunpack.c.l.b16 %v480
        %v665 = vunpack.c.l.b16 %v481
        %v666 = vunpack.c.l.b16 %v482
        %v667 = vunpack.c.l.b16 %v483
        %v668 = vunpack.c.l.b16 %v484
        %v669 = vunpack.c.l.b16 %v485
        %v670 = vpack.c.b16 %v583, %v582
        %v671 = vpack.c.b16 %v585, %v584
        %v672 = vpack.c.b16 %v587, %v586
        %v673 = vpack.c.b16 %v589, %v588
        %v674 = vpack.c.b16 %v591, %v590
        %v675 = vpack.c.b16 %v593, %v592
        %v676 = vpack.c.b16 %v595, %v594
        %v677 = vpack.c.b16 %v597, %v596
        %v678 = vpack.c.b16 %v599, %v598
        %v679 = vpack.c.b16 %v601, %v600
        %v680 = vpack.c.b16 %v603, %v602
        %v681 = vpack.c.b16 %v605, %v604
        %v682 = vpack.c.b16 %v607, %v606
        %v683 = vpack.c.b16 %v609, %v608
        %v684 = vpack.c.b16 %v611, %v610
        %v685 = vpack.c.b16 %v613, %v612
        %v686 = vpack.c.b16 %v615, %v614
        %v687 = vpack.c.b16 %v617, %v616
        %v688 = vpack.c.b16 %v619, %v618
        %v689 = vpack.c.b16 %v621, %v620
        %v690 = vpack.c.b16 %v623, %v622
        %v691 = vpack.c.b16 %v625, %v624
        %v692 = vpack.c.b16 %v627, %v626
        %v693 = vpack.c.b16 %v629, %v628
        %v694 = vpack.c.b16 %v631, %v630
        %v695 = vpack.c.b16 %v633, %v632
        %v696 = vpack.c.b16 %v635, %v634
        %v697 = vpack.c.b16 %v637, %v636
        %v698 = vpack.c.b16 %v639, %v638
        %v699 = vpack.c.b16 %v641, %v640
        %v700 = vpack.c.b16 %v643, %v642
        %v701 = vpack.c.b16 %v645, %v644
        %v702 = vpack.c.b16 %v647, %v646
        %v703 = vpack.c.b16 %v649, %v648
        %v704 = vpack.c.b16 %v651, %v650
        %v705 = vpack.c.b16 %v653, %v652
        %v706 = vpack.c.b16 %v655, %v654
        %v707 = vpack.c.b16 %v657, %v656
        %v708 = vpack.c.b16 %v659, %v658
        %v709 = vpack.c.b16 %v661, %v660
        %v710 = vpack.c.b16 %v663, %v662
        %v711 = vpack.c.b16 %v665, %v664
        %v712 = vpack.c.b16 %v667, %v666
        %v713 = vpack.c.b16 %v669, %v668
        %vm714 = vsmask.f32 7424
        %v716 = vshrl.u32 %v670, 16
        %v718 = vshll.u32 %v670, 16
        %v720 = vrot.slane %v718, 1
        %v721 = vor.u32 %v716, %v720
        %v723 = vshll.u32 %v671, 16
        %v725 = vrot.slane %v723, 1
        %v726 = vsel %vm714, %v721, %v725
        %v727 = vshrl.u32 %v671, 16
        %v729 = vor.u32 %v727, %v725
        %v731 = vshrl.u32 %v672, 16
        %v733 = vshll.u32 %v672, 16
        %v735 = vrot.slane %v733, 1
        %v736 = vor.u32 %v731, %v735
        %v738 = vshll.u32 %v673, 16
        %v740 = vrot.slane %v738, 1
        %v741 = vsel %vm714, %v736, %v740
        %v742 = vshrl.u32 %v673, 16
        %v744 = vor.u32 %v742, %v740
        %v746 = vshrl.u32 %v674, 16
        %v748 = vshll.u32 %v674, 16
        %v750 = vrot.slane %v748, 1
        %v751 = vor.u32 %v746, %v750
        %v753 = vshll.u32 %v675, 16
        %v755 = vrot.slane %v753, 1
        %v756 = vsel %vm714, %v751, %v755
        %v757 = vshrl.u32 %v675, 16
        %v759 = vor.u32 %v757, %v755
        %v761 = vshrl.u32 %v676, 16
        %v763 = vshll.u32 %v676, 16
        %v765 = vrot.slane %v763, 1
        %v766 = vor.u32 %v761, %v765
        %v768 = vshll.u32 %v677, 16
        %v770 = vrot.slane %v768, 1
        %v771 = vsel %vm714, %v766, %v770
        %v772 = vshrl.u32 %v677, 16
        %v774 = vor.u32 %v772, %v770
        %v776 = vshrl.u32 %v678, 16
        %v778 = vshll.u32 %v678, 16
        %v780 = vrot.slane %v778, 1
        %v781 = vor.u32 %v776, %v780
        %v783 = vshll.u32 %v679, 16
        %v785 = vrot.slane %v783, 1
        %v786 = vsel %vm714, %v781, %v785
        %v787 = vshrl.u32 %v679, 16
        %v789 = vor.u32 %v787, %v785
        %v791 = vshrl.u32 %v680, 16
        %v793 = vshll.u32 %v680, 16
        %v795 = vrot.slane %v793, 1
        %v796 = vor.u32 %v791, %v795
        %v798 = vshll.u32 %v681, 16
        %v800 = vrot.slane %v798, 1
        %v801 = vsel %vm714, %v796, %v800
        %v802 = vshrl.u32 %v681, 16
        %v804 = vor.u32 %v802, %v800
        %v806 = vshrl.u32 %v682, 16
        %v808 = vshll.u32 %v682, 16
        %v810 = vrot.slane %v808, 1
        %v811 = vor.u32 %v806, %v810
        %v813 = vshll.u32 %v683, 16
        %v815 = vrot.slane %v813, 1
        %v816 = vsel %vm714, %v811, %v815
        %v817 = vshrl.u32 %v683, 16
        %v819 = vor.u32 %v817, %v815
        %v821 = vshrl.u32 %v684, 16
        %v823 = vshll.u32 %v684, 16
        %v825 = vrot.slane %v823, 1
        %v826 = vor.u32 %v821, %v825
        %v828 = vshll.u32 %v685, 16
        %v830 = vrot.slane %v828, 1
        %v831 = vsel %vm714, %v826, %v830
        %v832 = vshrl.u32 %v685, 16
        %v834 = vor.u32 %v832, %v830
        %v836 = vshrl.u32 %v686, 16
        %v838 = vshll.u32 %v686, 16
        %v840 = vrot.slane %v838, 1
        %v841 = vor.u32 %v836, %v840
        %v843 = vshll.u32 %v687, 16
        %v845 = vrot.slane %v843, 1
        %v846 = vsel %vm714, %v841, %v845
        %v847 = vshrl.u32 %v687, 16
        %v849 = vor.u32 %v847, %v845
        %v851 = vshrl.u32 %v688, 16
        %v853 = vshll.u32 %v688, 16
        %v855 = vrot.slane %v853, 1
        %v856 = vor.u32 %v851, %v855
        %v858 = vshll.u32 %v689, 16
        %v860 = vrot.slane %v858, 1
        %v861 = vsel %vm714, %v856, %v860
        %v862 = vshrl.u32 %v689, 16
        %v864 = vor.u32 %v862, %v860
        %v866 = vshrl.u32 %v690, 16
        %v868 = vshll.u32 %v690, 16
        %v870 = vrot.slane %v868, 1
        %v871 = vor.u32 %v866, %v870
        %v873 = vshll.u32 %v691, 16
        %v875 = vrot.slane %v873, 1
        %v876 = vsel %vm714, %v871, %v875
        %v877 = vshrl.u32 %v691, 16
        %v879 = vor.u32 %v877, %v875
        %v881 = vshrl.u32 %v692, 16
        %v883 = vshll.u32 %v692, 16
        %v885 = vrot.slane %v883, 1
        %v886 = vor.u32 %v881, %v885
        %v888 = vshll.u32 %v693, 16
        %v890 = vrot.slane %v888, 1
        %v891 = vsel %vm714, %v886, %v890
        %v892 = vshrl.u32 %v693, 16
        %v894 = vor.u32 %v892, %v890
        %v896 = vshrl.u32 %v694, 16
        %v898 = vshll.u32 %v694, 16
        %v900 = vrot.slane %v898, 1
        %v901 = vor.u32 %v896, %v900
        %v903 = vshll.u32 %v695, 16
        %v905 = vrot.slane %v903, 1
        %v906 = vsel %vm714, %v901, %v905
        %v907 = vshrl.u32 %v695, 16
        %v909 = vor.u32 %v907, %v905
        %v911 = vshrl.u32 %v696, 16
        %v913 = vshll.u32 %v696, 16
        %v915 = vrot.slane %v913, 1
        %v916 = vor.u32 %v911, %v915
        %v918 = vshll.u32 %v697, 16
        %v920 = vrot.slane %v918, 1
        %v921 = vsel %vm714, %v916, %v920
        %v922 = vshrl.u32 %v697, 16
        %v924 = vor.u32 %v922, %v920
        %v926 = vshrl.u32 %v698, 16
        %v928 = vshll.u32 %v698, 16
        %v930 = vrot.slane %v928, 1
        %v931 = vor.u32 %v926, %v930
        %v933 = vshll.u32 %v699, 16
        %v935 = vrot.slane %v933, 1
        %v936 = vsel %vm714, %v931, %v935
        %v937 = vshrl.u32 %v699, 16
        %v939 = vor.u32 %v937, %v935
        %v941 = vshrl.u32 %v700, 16
        %v943 = vshll.u32 %v700, 16
        %v945 = vrot.slane %v943, 1
        %v946 = vor.u32 %v941, %v945
        %v948 = vshll.u32 %v701, 16
        %v950 = vrot.slane %v948, 1
        %v951 = vsel %vm714, %v946, %v950
        %v952 = vshrl.u32 %v701, 16
        %v954 = vor.u32 %v952, %v950
        %v956 = vshrl.u32 %v702, 16
        %v958 = vshll.u32 %v702, 16
        %v960 = vrot.slane %v958, 1
        %v961 = vor.u32 %v956, %v960
        %v963 = vshll.u32 %v703, 16
        %v965 = vrot.slane %v963, 1
        %v966 = vsel %vm714, %v961, %v965
        %v967 = vshrl.u32 %v703, 16
        %v969 = vor.u32 %v967, %v965
        %v971 = vshrl.u32 %v704, 16
        %v973 = vshll.u32 %v704, 16
        %v975 = vrot.slane %v973, 1
        %v976 = vor.u32 %v971, %v975
        %v978 = vshll.u32 %v705, 16
        %v980 = vrot.slane %v978, 1
        %v981 = vsel %vm714, %v976, %v980
        %v982 = vshrl.u32 %v705, 16
        %v984 = vor.u32 %v982, %v980
        %v986 = vshrl.u32 %v706, 16
        %v988 = vshll.u32 %v706, 16
        %v990 = vrot.slane %v988, 1
        %v991 = vor.u32 %v986, %v990
        %v993 = vshll.u32 %v707, 16
        %v995 = vrot.slane %v993, 1
        %v996 = vsel %vm714, %v991, %v995
        %v997 = vshrl.u32 %v707, 16
        %v999 = vor.u32 %v997, %v995
        %v1001 = vshrl.u32 %v708, 16
        %v1003 = vshll.u32 %v708, 16
        %v1005 = vrot.slane %v1003, 1
        %v1006 = vor.u32 %v1001, %v1005
        %v1008 = vshll.u32 %v709, 16
        %v1010 = vrot.slane %v1008, 1
        %v1011 = vsel %vm714, %v1006, %v1010
        %v1012 = vshrl.u32 %v709, 16
        %v1014 = vor.u32 %v1012, %v1010
        %v1016 = vshrl.u32 %v710, 16
        %v1018 = vshll.u32 %v710, 16
        %v1020 = vrot.slane %v1018, 1
        %v1021 = vor.u32 %v1016, %v1020
        %v1023 = vshll.u32 %v711, 16
        %v1025 = vrot.slane %v1023, 1
        %v1026 = vsel %vm714, %v1021, %v1025
        %v1027 = vshrl.u32 %v711, 16
        %v1029 = vor.u32 %v1027, %v1025
        %v1031 = vshrl.u32 %v712, 16
        %v1033 = vshll.u32 %v712, 16
        %v1035 = vrot.slane %v1033, 1
        %v1036 = vor.u32 %v1031, %v1035
        %v1038 = vshll.u32 %v713, 16
        %v1040 = vrot.slane %v1038, 1
        %v1041 = vsel %vm714, %v1036, %v1040
        %v1042 = vshrl.u32 %v713, 16
        %v1044 = vor.u32 %v1042, %v1040
        %vm1045 = vcmask 1046528
        %v1046 = vrot.slane %v670, 1
        %v1047 = vrot.slane %v671, 1
        %v1048 = vsel %vm1045, %v1046, %v1047
        %v1049 = vrot.slane %v672, 1
        %v1050 = vrot.slane %v673, 1
        %v1051 = vsel %vm1045, %v1049, %v1050
        %v1052 = vrot.slane %v674, 1
        %v1053 = vrot.slane %v675, 1
        %v1054 = vsel %vm1045, %v1052, %v1053
        %v1055 = vrot.slane %v676, 1
        %v1056 = vrot.slane %v677, 1
        %v1057 = vsel %vm1045, %v1055, %v1056
        %v1058 = vrot.slane %v678, 1
        %v1059 = vrot.slane %v679, 1
        %v1060 = vsel %vm1045, %v1058, %v1059
        %v1061 = vrot.slane %v680, 1
        %v1062 = vrot.slane %v681, 1
        %v1063 = vsel %vm1045, %v1061, %v1062
        %v1064 = vrot.slane %v682, 1
        %v1065 = vrot.slane %v683, 1
        %v1066 = vsel %vm1045, %v1064, %v1065
        %v1067 = vrot.slane %v684, 1
        %v1068 = vrot.slane %v685, 1
        %v1069 = vsel %vm1045, %v1067, %v1068
        %v1070 = vrot.slane %v686, 1
        %v1071 = vrot.slane %v687, 1
        %v1072 = vsel %vm1045, %v1070, %v1071
        %v1073 = vrot.slane %v688, 1
        %v1074 = vrot.slane %v689, 1
        %v1075 = vsel %vm1045, %v1073, %v1074
        %v1076 = vrot.slane %v690, 1
        %v1077 = vrot.slane %v691, 1
        %v1078 = vsel %vm1045, %v1076, %v1077
        %v1079 = vrot.slane %v692, 1
        %v1080 = vrot.slane %v693, 1
        %v1081 = vsel %vm1045, %v1079, %v1080
        %v1082 = vrot.slane %v694, 1
        %v1083 = vrot.slane %v695, 1
        %v1084 = vsel %vm1045, %v1082, %v1083
        %v1085 = vrot.slane %v696, 1
        %v1086 = vrot.slane %v697, 1
        %v1087 = vsel %vm1045, %v1085, %v1086
        %v1088 = vrot.slane %v698, 1
        %v1089 = vrot.slane %v699, 1
        %v1090 = vsel %vm1045, %v1088, %v1089
        %v1091 = vrot.slane %v700, 1
        %v1092 = vrot.slane %v701, 1
        %v1093 = vsel %vm1045, %v1091, %v1092
        %v1094 = vrot.slane %v702, 1
        %v1095 = vrot.slane %v703, 1
        %v1096 = vsel %vm1045, %v1094, %v1095
        %v1097 = vrot.slane %v704, 1
        %v1098 = vrot.slane %v705, 1
        %v1099 = vsel %vm1045, %v1097, %v1098
        %v1100 = vrot.slane %v706, 1
        %v1101 = vrot.slane %v707, 1
        %v1102 = vsel %vm1045, %v1100, %v1101
        %v1103 = vrot.slane %v708, 1
        %v1104 = vrot.slane %v709, 1
        %v1105 = vsel %vm1045, %v1103, %v1104
        %v1106 = vrot.slane %v710, 1
        %v1107 = vrot.slane %v711, 1
        %v1108 = vsel %vm1045, %v1106, %v1107
        %v1109 = vrot.slane %v712, 1
        %v1110 = vrot.slane %v713, 1
        %v1111 = vsel %vm1045, %v1109, %v1110
        %v1116 = vunpack.c.l.b16 %v486
        %v1117 = vunpack.c.l.b16 %v487
        %v1118 = vunpack.c.l.b16 %v488
        %v1119 = vunpack.c.l.b16 %v489
        %v1120 = vpack.c.b16 %v1117, %v1116
        %v1121 = vpack.c.b16 %v1119, %v1118
        %v1123 = vshrl.u32 %v1120, 16
        %v1125 = vshll.u32 %v1120, 16
        %v1127 = vrot.slane %v1125, 1
        %v1128 = vor.u32 %v1123, %v1127
        %v1130 = vshll.u32 %v1121, 16
        %v1132 = vrot.slane %v1130, 1
        %v1133 = vsel %vm714, %v1128, %v1132
        %v1134 = vshrl.u32 %v1121, 16
        %v1136 = vor.u32 %v1134, %v1132
        %v1137 = vrot.slane %v1120, 1
        %v1138 = vrot.slane %v1121, 1
        %v1139 = vsel %vm1045, %v1137, %v1138
        %v1144 = vunpack.c.l.b16 %v490
        %v1145 = vunpack.c.l.b16 %v491
        %v1146 = vunpack.c.l.b16 %v492
        %v1147 = vunpack.c.l.b16 %v493
        %v1148 = vpack.c.b16 %v1145, %v1144
        %v1149 = vpack.c.b16 %v1147, %v1146
        %v1151 = vshrl.u32 %v1148, 16
        %v1153 = vshll.u32 %v1148, 16
        %v1155 = vrot.slane %v1153, 1
        %v1156 = vor.u32 %v1151, %v1155
        %v1158 = vshll.u32 %v1149, 16
        %v1160 = vrot.slane %v1158, 1
        %v1161 = vsel %vm714, %v1156, %v1160
        %v1162 = vshrl.u32 %v1149, 16
        %v1164 = vor.u32 %v1162, %v1160
        %v1165 = vrot.slane %v1148, 1
        %v1166 = vrot.slane %v1149, 1
        %v1167 = vsel %vm1045, %v1165, %v1166
        %v1168 = vunpack.c.l.b16 %v726
        %v1169 = vunpack.c.l.b16 %v1048
        %v1170 = vunpack.c.l.b16 %v741
        %v1171 = vunpack.c.l.b16 %v1051
        %v1172 = vunpack.c.l.b16 %v756
        %v1173 = vunpack.c.l.b16 %v1054
        %v1174 = vunpack.c.h.b16 %v726
        %v1175 = vunpack.c.h.b16 %v1048
        %v1176 = vunpack.c.h.b16 %v741
        %v1177 = vunpack.c.h.b16 %v1051
        %v1178 = vunpack.c.h.b16 %v756
        %v1179 = vunpack.c.h.b16 %v1054
        %v1180 = vunpack.c.l.b16 %v729
        %v1181 = vunpack.c.l.b16 %v1047
        %v1182 = vunpack.c.l.b16 %v744
        %v1183 = vunpack.c.l.b16 %v1050
        %v1184 = vunpack.c.l.b16 %v759
        %v1185 = vunpack.c.l.b16 %v1053
        %v1186 = vunpack.c.h.b16 %v729
        %v1187 = vunpack.c.h.b16 %v1047
        %v1188 = vunpack.c.h.b16 %v744
        %v1189 = vunpack.c.h.b16 %v1050
        %v1190 = vunpack.c.h.b16 %v759
        %v1191 = vunpack.c.h.b16 %v1053
        %v1192 = vunpack.c.l.b16 %v771
        %v1193 = vunpack.c.l.b16 %v1057
        %v1194 = vunpack.c.h.b16 %v771
        %v1195 = vunpack.c.h.b16 %v1057
        %v1196 = vunpack.c.l.b16 %v774
        %v1197 = vunpack.c.l.b16 %v1056
        %v1198 = vunpack.c.h.b16 %v774
        %v1199 = vunpack.c.h.b16 %v1056
        %v1200 = vunpack.c.l.b16 %v786
        %v1201 = vunpack.c.l.b16 %v1060
        %v1202 = vunpack.c.h.b16 %v786
        %v1203 = vunpack.c.h.b16 %v1060
        %v1204 = vunpack.c.l.b16 %v789
        %v1205 = vunpack.c.l.b16 %v1059
        %v1206 = vunpack.c.h.b16 %v789
        %v1207 = vunpack.c.h.b16 %v1059
        %v1208 = vunpack.c.l.b16 %v801
        %v1209 = vunpack.c.l.b16 %v1063
        %v1210 = vunpack.c.h.b16 %v801
        %v1211 = vunpack.c.h.b16 %v1063
        %v1212 = vunpack.c.l.b16 %v804
        %v1213 = vunpack.c.l.b16 %v1062
        %v1214 = vunpack.c.h.b16 %v804
        %v1215 = vunpack.c.h.b16 %v1062
        %v1216 = vunpack.c.l.b16 %v816
        %v1217 = vunpack.c.l.b16 %v1066
        %v1218 = vunpack.c.h.b16 %v816
        %v1219 = vunpack.c.h.b16 %v1066
        %v1220 = vunpack.c.l.b16 %v819
        %v1221 = vunpack.c.l.b16 %v1065
        %v1222 = vunpack.c.h.b16 %v819
        %v1223 = vunpack.c.h.b16 %v1065
        %v1224 = vunpack.c.l.b16 %v831
        %v1225 = vunpack.c.l.b16 %v1069
        %v1226 = vunpack.c.h.b16 %v831
        %v1227 = vunpack.c.h.b16 %v1069
        %v1228 = vunpack.c.l.b16 %v834
        %v1229 = vunpack.c.l.b16 %v1068
        %v1230 = vunpack.c.h.b16 %v834
        %v1231 = vunpack.c.h.b16 %v1068
        %v1232 = vunpack.c.l.b16 %v846
        %v1233 = vunpack.c.l.b16 %v1072
        %v1234 = vunpack.c.h.b16 %v846
        %v1235 = vunpack.c.h.b16 %v1072
        %v1236 = vunpack.c.l.b16 %v849
        %v1237 = vunpack.c.l.b16 %v1071
        %v1238 = vunpack.c.h.b16 %v849
        %v1239 = vunpack.c.h.b16 %v1071
        %v1240 = vunpack.c.l.b16 %v861
        %v1241 = vunpack.c.l.b16 %v1075
        %v1242 = vunpack.c.h.b16 %v861
        %v1243 = vunpack.c.h.b16 %v1075
        %v1244 = vunpack.c.l.b16 %v864
        %v1245 = vunpack.c.l.b16 %v1074
        %v1246 = vunpack.c.h.b16 %v864
        %v1247 = vunpack.c.h.b16 %v1074
        %v1248 = vunpack.c.l.b16 %v876
        %v1249 = vunpack.c.l.b16 %v1078
        %v1250 = vunpack.c.h.b16 %v876
        %v1251 = vunpack.c.h.b16 %v1078
        %v1252 = vunpack.c.l.b16 %v879
        %v1253 = vunpack.c.l.b16 %v1077
        %v1254 = vunpack.c.h.b16 %v879
        %v1255 = vunpack.c.h.b16 %v1077
        %v1256 = vunpack.c.l.b16 %v891
        %v1257 = vunpack.c.l.b16 %v1081
        %v1258 = vunpack.c.h.b16 %v891
        %v1259 = vunpack.c.h.b16 %v1081
        %v1260 = vunpack.c.l.b16 %v894
        %v1261 = vunpack.c.l.b16 %v1080
        %v1262 = vunpack.c.h.b16 %v894
        %v1263 = vunpack.c.h.b16 %v1080
        %v1264 = vunpack.c.l.b16 %v906
        %v1265 = vunpack.c.l.b16 %v1084
        %v1266 = vunpack.c.h.b16 %v906
        %v1267 = vunpack.c.h.b16 %v1084
        %v1268 = vunpack.c.l.b16 %v909
        %v1269 = vunpack.c.l.b16 %v1083
        %v1270 = vunpack.c.h.b16 %v909
        %v1271 = vunpack.c.h.b16 %v1083
        %v1272 = vunpack.c.l.b16 %v921
        %v1273 = vunpack.c.l.b16 %v1087
        %v1274 = vunpack.c.h.b16 %v921
        %v1275 = vunpack.c.h.b16 %v1087
        %v1276 = vunpack.c.l.b16 %v924
        %v1277 = vunpack.c.l.b16 %v1086
        %v1278 = vunpack.c.h.b16 %v924
        %v1279 = vunpack.c.h.b16 %v1086
        %v1280 = vunpack.c.l.b16 %v936
        %v1281 = vunpack.c.l.b16 %v1090
        %v1282 = vunpack.c.h.b16 %v936
        %v1283 = vunpack.c.h.b16 %v1090
        %v1284 = vunpack.c.l.b16 %v939
        %v1285 = vunpack.c.l.b16 %v1089
        %v1286 = vunpack.c.h.b16 %v939
        %v1287 = vunpack.c.h.b16 %v1089
        %v1288 = vunpack.c.l.b16 %v951
        %v1289 = vunpack.c.l.b16 %v1093
        %v1290 = vunpack.c.h.b16 %v951
        %v1291 = vunpack.c.h.b16 %v1093
        %v1292 = vunpack.c.l.b16 %v954
        %v1293 = vunpack.c.l.b16 %v1092
        %v1294 = vunpack.c.h.b16 %v954
        %v1295 = vunpack.c.h.b16 %v1092
        %v1296 = vunpack.c.l.b16 %v966
        %v1297 = vunpack.c.l.b16 %v1096
        %v1298 = vunpack.c.h.b16 %v966
        %v1299 = vunpack.c.h.b16 %v1096
        %v1300 = vunpack.c.l.b16 %v969
        %v1301 = vunpack.c.l.b16 %v1095
        %v1302 = vunpack.c.h.b16 %v969
        %v1303 = vunpack.c.h.b16 %v1095
        %v1304 = vunpack.c.l.b16 %v981
        %v1305 = vunpack.c.l.b16 %v1099
        %v1306 = vunpack.c.h.b16 %v981
        %v1307 = vunpack.c.h.b16 %v1099
        %v1308 = vunpack.c.l.b16 %v984
        %v1309 = vunpack.c.l.b16 %v1098
        %v1310 = vunpack.c.h.b16 %v984
        %v1311 = vunpack.c.h.b16 %v1098
        %v1312 = vunpack.c.l.b16 %v996
        %v1313 = vunpack.c.l.b16 %v1102
        %v1314 = vunpack.c.h.b16 %v996
        %v1315 = vunpack.c.h.b16 %v1102
        %v1316 = vunpack.c.l.b16 %v999
        %v1317 = vunpack.c.l.b16 %v1101
        %v1318 = vunpack.c.h.b16 %v999
        %v1319 = vunpack.c.h.b16 %v1101
        %v1320 = vunpack.c.l.b16 %v1011
        %v1321 = vunpack.c.l.b16 %v1105
        %v1322 = vunpack.c.h.b16 %v1011
        %v1323 = vunpack.c.h.b16 %v1105
        %v1324 = vunpack.c.l.b16 %v1014
        %v1325 = vunpack.c.l.b16 %v1104
        %v1326 = vunpack.c.h.b16 %v1014
        %v1327 = vunpack.c.h.b16 %v1104
        %v1328 = vunpack.c.l.b16 %v1026
        %v1329 = vunpack.c.l.b16 %v1108
        %v1330 = vunpack.c.h.b16 %v1026
        %v1331 = vunpack.c.h.b16 %v1108
        %v1332 = vunpack.c.l.b16 %v1029
        %v1333 = vunpack.c.l.b16 %v1107
        %v1334 = vunpack.c.h.b16 %v1029
        %v1335 = vunpack.c.h.b16 %v1107
        %v1336 = vunpack.c.l.b16 %v1041
        %v1337 = vunpack.c.l.b16 %v1111
        %v1338 = vunpack.c.h.b16 %v1041
        %v1339 = vunpack.c.h.b16 %v1111
        %v1340 = vunpack.c.l.b16 %v1044
        %v1341 = vunpack.c.l.b16 %v1110
        %v1342 = vunpack.c.h.b16 %v1044
        %v1343 = vunpack.c.h.b16 %v1110
        %v1344 = vunpack.c.l.b16 %v1133
        %v1345 = vunpack.c.l.b16 %v1139
        %v1346 = vunpack.c.h.b16 %v1133
        %v1347 = vunpack.c.h.b16 %v1139
        %v1348 = vunpack.c.l.b16 %v1136
        %v1349 = vunpack.c.l.b16 %v1138
        %v1350 = vunpack.c.h.b16 %v1136
        %v1351 = vunpack.c.h.b16 %v1138
        %v1352 = vunpack.c.l.b16 %v1161
        %v1353 = vunpack.c.l.b16 %v1167
        %v1354 = vunpack.c.h.b16 %v1161
        %v1355 = vunpack.c.h.b16 %v1167
        %v1356 = vunpack.c.l.b16 %v1164
        %v1357 = vunpack.c.l.b16 %v1166
        %v1358 = vunpack.c.h.b16 %v1164
        %v1359 = vunpack.c.h.b16 %v1166
        %v1360 = vpack.c.b16 %v1168, %v582
        %v1361 = vpack.c.b16 %v586, %v1169
        %v1362 = vpack.c.b16 %v1171, %v1170
        %v1363 = vpack.c.b16 %v1172, %v590
        %v1364 = vpack.c.b16 %v1173, %v1173
        %v1365 = vpack.c.b16 %v1174, %v583
        %v1366 = vpack.c.b16 %v587, %v1175
        %v1367 = vpack.c.b16 %v1177, %v1176
        %v1368 = vpack.c.b16 %v1178, %v591
        %v1369 = vpack.c.b16 %v1179, %v1179
        %v1370 = vpack.c.b16 %v1180, %v584
        %v1371 = vpack.c.b16 %v588, %v1181
        %v1372 = vpack.c.b16 %v1183, %v1182
        %v1373 = vpack.c.b16 %v1184, %v592
        %v1374 = vpack.c.b16 %v1185, %v1185
        %v1375 = vpack.c.b16 %v1186, %v585
        %v1376 = vpack.c.b16 %v589, %v1187
        %v1377 = vpack.c.b16 %v1189, %v1188
        %v1378 = vpack.c.b16 %v1190, %v593
        %v1379 = vpack.c.b16 %v1191, %v1191
        %v1380 = vpack.c.b16 %v1170, %v586
        %v1381 = vpack.c.b16 %v590, %v1171
        %v1382 = vpack.c.b16 %v1173, %v1172
        %v1383 = vpack.c.b16 %v1192, %v594
        %v1384 = vpack.c.b16 %v1193, %v1193
        %v1385 = vpack.c.b16 %v1176, %v587
        %v1386 = vpack.c.b16 %v591, %v1177
        %v1387 = vpack.c.b16 %v1179, %v1178
        %v1388 = vpack.c.b16 %v1194, %v595
        %v1389 = vpack.c.b16 %v1195, %v1195
        %v1390 = vpack.c.b16 %v1182, %v588
        %v1391 = vpack.c.b16 %v592, %v1183
        %v1392 = vpack.c.b16 %v1185, %v1184
        %v1393 = vpack.c.b16 %v1196, %v596
        %v1394 = vpack.c.b16 %v1197, %v1197
        %v1395 = vpack.c.b16 %v1188, %v589
        %v1396 = vpack.c.b16 %v593, %v1189
        %v1397 = vpack.c.b16 %v1191, %v1190
        %v1398 = vpack.c.b16 %v1198, %v597
        %v1399 = vpack.c.b16 %v1199, %v1199
        %v1400 = vpack.c.b16 %v594, %v1173
        %v1401 = vpack.c.b16 %v1193, %v1192
        %v1402 = vpack.c.b16 %v1200, %v598
        %v1403 = vpack.c.b16 %v1201, %v1201
        %v1404 = vpack.c.b16 %v595, %v1179
        %v1405 = vpack.c.b16 %v1195, %v1194
        %v1406 = vpack.c.b16 %v1202, %v599
        %v1407 = vpack.c.b16 %v1203, %v1203
        %v1408 = vpack.c.b16 %v596, %v1185
        %v1409 = vpack.c.b16 %v1197, %v1196
        %v1410 = vpack.c.b16 %v1204, %v600
        %v1411 = vpack.c.b16 %v1205, %v1205
        %v1412 = vpack.c.b16 %v597, %v1191
        %v1413 = vpack.c.b16 %v1199, %v1198
        %v1414 = vpack.c.b16 %v1206, %v601
        %v1415 = vpack.c.b16 %v1207, %v1207
        %v1416 = vpack.c.b16 %v598, %v1193
        %v1417 = vpack.c.b16 %v1201, %v1200
        %v1418 = vpack.c.b16 %v1208, %v602
        %v1419 = vpack.c.b16 %v1209, %v1209
        %v1420 = vpack.c.b16 %v599, %v1195
        %v1421 = vpack.c.b16 %v1203, %v1202
        %v1422 = vpack.c.b16 %v1210, %v603
        %v1423 = vpack.c.b16 %v1211, %v1211
        %v1424 = vpack.c.b16 %v600, %v1197
        %v1425 = vpack.c.b16 %v1205, %v1204
        %v1426 = vpack.c.b16 %v1212, %v604
        %v1427 = vpack.c.b16 %v1213, %v1213
        %v1428 = vpack.c.b16 %v601, %v1199
        %v1429 = vpack.c.b16 %v1207, %v1206
        %v1430 = vpack.c.b16 %v1214, %v605
        %v1431 = vpack.c.b16 %v1215, %v1215
        %v1432 = vpack.c.b16 %v602, %v1201
        %v1433 = vpack.c.b16 %v1209, %v1208
        %v1434 = vpack.c.b16 %v1216, %v606
        %v1435 = vpack.c.b16 %v1217, %v1217
        %v1436 = vpack.c.b16 %v603, %v1203
        %v1437 = vpack.c.b16 %v1211, %v1210
        %v1438 = vpack.c.b16 %v1218, %v607
        %v1439 = vpack.c.b16 %v1219, %v1219
        %v1440 = vpack.c.b16 %v604, %v1205
        %v1441 = vpack.c.b16 %v1213, %v1212
        %v1442 = vpack.c.b16 %v1220, %v608
        %v1443 = vpack.c.b16 %v1221, %v1221
        %v1444 = vpack.c.b16 %v605, %v1207
        %v1445 = vpack.c.b16 %v1215, %v1214
        %v1446 = vpack.c.b16 %v1222, %v609
        %v1447 = vpack.c.b16 %v1223, %v1223
        %v1448 = vpack.c.b16 %v606, %v1209
        %v1449 = vpack.c.b16 %v1217, %v1216
        %v1450 = vpack.c.b16 %v1224, %v610
        %v1451 = vpack.c.b16 %v1225, %v1225
        %v1452 = vpack.c.b16 %v607, %v1211
        %v1453 = vpack.c.b16 %v1219, %v1218
        %v1454 = vpack.c.b16 %v1226, %v611
        %v1455 = vpack.c.b16 %v1227, %v1227
        %v1456 = vpack.c.b16 %v608, %v1213
        %v1457 = vpack.c.b16 %v1221, %v1220
        %v1458 = vpack.c.b16 %v1228, %v612
        %v1459 = vpack.c.b16 %v1229, %v1229
        %v1460 = vpack.c.b16 %v609, %v1215
        %v1461 = vpack.c.b16 %v1223, %v1222
        %v1462 = vpack.c.b16 %v1230, %v613
        %v1463 = vpack.c.b16 %v1231, %v1231
        %v1464 = vpack.c.b16 %v610, %v1217
        %v1465 = vpack.c.b16 %v1225, %v1224
        %v1466 = vpack.c.b16 %v1232, %v614
        %v1467 = vpack.c.b16 %v1233, %v1233
        %v1468 = vpack.c.b16 %v611, %v1219
        %v1469 = vpack.c.b16 %v1227, %v1226
        %v1470 = vpack.c.b16 %v1234, %v615
        %v1471 = vpack.c.b16 %v1235, %v1235
        %v1472 = vpack.c.b16 %v612, %v1221
        %v1473 = vpack.c.b16 %v1229, %v1228
        %v1474 = vpack.c.b16 %v1236, %v616
        %v1475 = vpack.c.b16 %v1237, %v1237
        %v1476 = vpack.c.b16 %v613, %v1223
        %v1477 = vpack.c.b16 %v1231, %v1230
        %v1478 = vpack.c.b16 %v1238, %v617
        %v1479 = vpack.c.b16 %v1239, %v1239
        %v1480 = vpack.c.b16 %v614, %v1225
        %v1481 = vpack.c.b16 %v1233, %v1232
        %v1482 = vpack.c.b16 %v1240, %v618
        %v1483 = vpack.c.b16 %v1241, %v1241
        %v1484 = vpack.c.b16 %v615, %v1227
        %v1485 = vpack.c.b16 %v1235, %v1234
        %v1486 = vpack.c.b16 %v1242, %v619
        %v1487 = vpack.c.b16 %v1243, %v1243
        %v1488 = vpack.c.b16 %v616, %v1229
        %v1489 = vpack.c.b16 %v1237, %v1236
        %v1490 = vpack.c.b16 %v1244, %v620
        %v1491 = vpack.c.b16 %v1245, %v1245
        %v1492 = vpack.c.b16 %v617, %v1231
        %v1493 = vpack.c.b16 %v1239, %v1238
        %v1494 = vpack.c.b16 %v1246, %v621
        %v1495 = vpack.c.b16 %v1247, %v1247
        %v1496 = vpack.c.b16 %v618, %v1233
        %v1497 = vpack.c.b16 %v1241, %v1240
        %v1498 = vpack.c.b16 %v1248, %v622
        %v1499 = vpack.c.b16 %v1249, %v1249
        %v1500 = vpack.c.b16 %v619, %v1235
        %v1501 = vpack.c.b16 %v1243, %v1242
        %v1502 = vpack.c.b16 %v1250, %v623
        %v1503 = vpack.c.b16 %v1251, %v1251
        %v1504 = vpack.c.b16 %v620, %v1237
        %v1505 = vpack.c.b16 %v1245, %v1244
        %v1506 = vpack.c.b16 %v1252, %v624
        %v1507 = vpack.c.b16 %v1253, %v1253
        %v1508 = vpack.c.b16 %v621, %v1239
        %v1509 = vpack.c.b16 %v1247, %v1246
        %v1510 = vpack.c.b16 %v1254, %v625
        %v1511 = vpack.c.b16 %v1255, %v1255
        %v1512 = vpack.c.b16 %v622, %v1241
        %v1513 = vpack.c.b16 %v1249, %v1248
        %v1514 = vpack.c.b16 %v1256, %v626
        %v1515 = vpack.c.b16 %v1257, %v1257
        %v1516 = vpack.c.b16 %v623, %v1243
        %v1517 = vpack.c.b16 %v1251, %v1250
        %v1518 = vpack.c.b16 %v1258, %v627
        %v1519 = vpack.c.b16 %v1259, %v1259
        %v1520 = vpack.c.b16 %v624, %v1245
        %v1521 = vpack.c.b16 %v1253, %v1252
        %v1522 = vpack.c.b16 %v1260, %v628
        %v1523 = vpack.c.b16 %v1261, %v1261
        %v1524 = vpack.c.b16 %v625, %v1247
        %v1525 = vpack.c.b16 %v1255, %v1254
        %v1526 = vpack.c.b16 %v1262, %v629
        %v1527 = vpack.c.b16 %v1263, %v1263
        %v1528 = vpack.c.b16 %v626, %v1249
        %v1529 = vpack.c.b16 %v1257, %v1256
        %v1530 = vpack.c.b16 %v1264, %v630
        %v1531 = vpack.c.b16 %v1265, %v1265
        %v1532 = vpack.c.b16 %v627, %v1251
        %v1533 = vpack.c.b16 %v1259, %v1258
        %v1534 = vpack.c.b16 %v1266, %v631
        %v1535 = vpack.c.b16 %v1267, %v1267
        %v1536 = vpack.c.b16 %v628, %v1253
        %v1537 = vpack.c.b16 %v1261, %v1260
        %v1538 = vpack.c.b16 %v1268, %v632
        %v1539 = vpack.c.b16 %v1269, %v1269
        %v1540 = vpack.c.b16 %v629, %v1255
        %v1541 = vpack.c.b16 %v1263, %v1262
        %v1542 = vpack.c.b16 %v1270, %v633
        %v1543 = vpack.c.b16 %v1271, %v1271
        %v1544 = vpack.c.b16 %v630, %v1257
        %v1545 = vpack.c.b16 %v1265, %v1264
        %v1546 = vpack.c.b16 %v1272, %v634
        %v1547 = vpack.c.b16 %v1273, %v1273
        %v1548 = vpack.c.b16 %v631, %v1259
        %v1549 = vpack.c.b16 %v1267, %v1266
        %v1550 = vpack.c.b16 %v1274, %v635
        %v1551 = vpack.c.b16 %v1275, %v1275
        %v1552 = vpack.c.b16 %v632, %v1261
        %v1553 = vpack.c.b16 %v1269, %v1268
        %v1554 = vpack.c.b16 %v1276, %v636
        %v1555 = vpack.c.b16 %v1277, %v1277
        %v1556 = vpack.c.b16 %v633, %v1263
        %v1557 = vpack.c.b16 %v1271, %v1270
        %v1558 = vpack.c.b16 %v1278, %v637
        %v1559 = vpack.c.b16 %v1279, %v1279
        %v1560 = vpack.c.b16 %v634, %v1265
        %v1561 = vpack.c.b16 %v1273, %v1272
        %v1562 = vpack.c.b16 %v1280, %v638
        %v1563 = vpack.c.b16 %v1281, %v1281
        %v1564 = vpack.c.b16 %v635, %v1267
        %v1565 = vpack.c.b16 %v1275, %v1274
        %v1566 = vpack.c.b16 %v1282, %v639
        %v1567 = vpack.c.b16 %v1283, %v1283
        %v1568 = vpack.c.b16 %v636, %v1269
        %v1569 = vpack.c.b16 %v1277, %v1276
        %v1570 = vpack.c.b16 %v1284, %v640
        %v1571 = vpack.c.b16 %v1285, %v1285
        %v1572 = vpack.c.b16 %v637, %v1271
        %v1573 = vpack.c.b16 %v1279, %v1278
        %v1574 = vpack.c.b16 %v1286, %v641
        %v1575 = vpack.c.b16 %v1287, %v1287
        %v1576 = vpack.c.b16 %v638, %v1273
        %v1577 = vpack.c.b16 %v1281, %v1280
        %v1578 = vpack.c.b16 %v1288, %v642
        %v1579 = vpack.c.b16 %v1289, %v1289
        %v1580 = vpack.c.b16 %v639, %v1275
        %v1581 = vpack.c.b16 %v1283, %v1282
        %v1582 = vpack.c.b16 %v1290, %v643
        %v1583 = vpack.c.b16 %v1291, %v1291
        %v1584 = vpack.c.b16 %v640, %v1277
        %v1585 = vpack.c.b16 %v1285, %v1284
        %v1586 = vpack.c.b16 %v1292, %v644
        %v1587 = vpack.c.b16 %v1293, %v1293
        %v1588 = vpack.c.b16 %v641, %v1279
        %v1589 = vpack.c.b16 %v1287, %v1286
        %v1590 = vpack.c.b16 %v1294, %v645
        %v1591 = vpack.c.b16 %v1295, %v1295
        %v1592 = vpack.c.b16 %v642, %v1281
        %v1593 = vpack.c.b16 %v1289, %v1288
        %v1594 = vpack.c.b16 %v1296, %v646
        %v1595 = vpack.c.b16 %v1297, %v1297
        %v1596 = vpack.c.b16 %v643, %v1283
        %v1597 = vpack.c.b16 %v1291, %v1290
        %v1598 = vpack.c.b16 %v1298, %v647
        %v1599 = vpack.c.b16 %v1299, %v1299
        %v1600 = vpack.c.b16 %v644, %v1285
        %v1601 = vpack.c.b16 %v1293, %v1292
        %v1602 = vpack.c.b16 %v1300, %v648
        %v1603 = vpack.c.b16 %v1301, %v1301
        %v1604 = vpack.c.b16 %v645, %v1287
        %v1605 = vpack.c.b16 %v1295, %v1294
        %v1606 = vpack.c.b16 %v1302, %v649
        %v1607 = vpack.c.b16 %v1303, %v1303
        %v1608 = vpack.c.b16 %v646, %v1289
        %v1609 = vpack.c.b16 %v1297, %v1296
        %v1610 = vpack.c.b16 %v1304, %v650
        %v1611 = vpack.c.b16 %v1305, %v1305
        %v1612 = vpack.c.b16 %v647, %v1291
        %v1613 = vpack.c.b16 %v1299, %v1298
        %v1614 = vpack.c.b16 %v1306, %v651
        %v1615 = vpack.c.b16 %v1307, %v1307
        %v1616 = vpack.c.b16 %v648, %v1293
        %v1617 = vpack.c.b16 %v1301, %v1300
        %v1618 = vpack.c.b16 %v1308, %v652
        %v1619 = vpack.c.b16 %v1309, %v1309
        %v1620 = vpack.c.b16 %v649, %v1295
        %v1621 = vpack.c.b16 %v1303, %v1302
        %v1622 = vpack.c.b16 %v1310, %v653
        %v1623 = vpack.c.b16 %v1311, %v1311
        %v1624 = vpack.c.b16 %v650, %v1297
        %v1625 = vpack.c.b16 %v1305, %v1304
        %v1626 = vpack.c.b16 %v1312, %v654
        %v1627 = vpack.c.b16 %v1313, %v1313
        %v1628 = vpack.c.b16 %v651, %v1299
        %v1629 = vpack.c.b16 %v1307, %v1306
        %v1630 = vpack.c.b16 %v1314, %v655
        %v1631 = vpack.c.b16 %v1315, %v1315
        %v1632 = vpack.c.b16 %v652, %v1301
        %v1633 = vpack.c.b16 %v1309, %v1308
        %v1634 = vpack.c.b16 %v1316, %v656
        %v1635 = vpack.c.b16 %v1317, %v1317
        %v1636 = vpack.c.b16 %v653, %v1303
        %v1637 = vpack.c.b16 %v1311, %v1310
        %v1638 = vpack.c.b16 %v1318, %v657
        %v1639 = vpack.c.b16 %v1319, %v1319
        %v1640 = vpack.c.b16 %v654, %v1305
        %v1641 = vpack.c.b16 %v1313, %v1312
        %v1642 = vpack.c.b16 %v1320, %v658
        %v1643 = vpack.c.b16 %v1321, %v1321
        %v1644 = vpack.c.b16 %v655, %v1307
        %v1645 = vpack.c.b16 %v1315, %v1314
        %v1646 = vpack.c.b16 %v1322, %v659
        %v1647 = vpack.c.b16 %v1323, %v1323
        %v1648 = vpack.c.b16 %v656, %v1309
        %v1649 = vpack.c.b16 %v1317, %v1316
        %v1650 = vpack.c.b16 %v1324, %v660
        %v1651 = vpack.c.b16 %v1325, %v1325
        %v1652 = vpack.c.b16 %v657, %v1311
        %v1653 = vpack.c.b16 %v1319, %v1318
        %v1654 = vpack.c.b16 %v1326, %v661
        %v1655 = vpack.c.b16 %v1327, %v1327
        %v1656 = vpack.c.b16 %v658, %v1313
        %v1657 = vpack.c.b16 %v1321, %v1320
        %v1658 = vpack.c.b16 %v1328, %v662
        %v1659 = vpack.c.b16 %v1329, %v1329
        %v1660 = vpack.c.b16 %v659, %v1315
        %v1661 = vpack.c.b16 %v1323, %v1322
        %v1662 = vpack.c.b16 %v1330, %v663
        %v1663 = vpack.c.b16 %v1331, %v1331
        %v1664 = vpack.c.b16 %v660, %v1317
        %v1665 = vpack.c.b16 %v1325, %v1324
        %v1666 = vpack.c.b16 %v1332, %v664
        %v1667 = vpack.c.b16 %v1333, %v1333
        %v1668 = vpack.c.b16 %v661, %v1319
        %v1669 = vpack.c.b16 %v1327, %v1326
        %v1670 = vpack.c.b16 %v1334, %v665
        %v1671 = vpack.c.b16 %v1335, %v1335
        %v1672 = vpack.c.b16 %v662, %v1321
        %v1673 = vpack.c.b16 %v1329, %v1328
        %v1674 = vpack.c.b16 %v1336, %v666
        %v1675 = vpack.c.b16 %v1337, %v1337
        %v1676 = vpack.c.b16 %v663, %v1323
        %v1677 = vpack.c.b16 %v1331, %v1330
        %v1678 = vpack.c.b16 %v1338, %v667
        %v1679 = vpack.c.b16 %v1339, %v1339
        %v1680 = vpack.c.b16 %v664, %v1325
        %v1681 = vpack.c.b16 %v1333, %v1332
        %v1682 = vpack.c.b16 %v1340, %v668
        %v1683 = vpack.c.b16 %v1341, %v1341
        %v1684 = vpack.c.b16 %v665, %v1327
        %v1685 = vpack.c.b16 %v1335, %v1334
        %v1686 = vpack.c.b16 %v1342, %v669
        %v1687 = vpack.c.b16 %v1343, %v1343
        %v1688 = vpack.c.b16 %v666, %v1329
        %v1689 = vpack.c.b16 %v1337, %v1336
        %v1690 = vpack.c.b16 %v1344, %v1116
        %v1691 = vpack.c.b16 %v1345, %v1345
        %v1692 = vpack.c.b16 %v667, %v1331
        %v1693 = vpack.c.b16 %v1339, %v1338
        %v1694 = vpack.c.b16 %v1346, %v1117
        %v1695 = vpack.c.b16 %v1347, %v1347
        %v1696 = vpack.c.b16 %v668, %v1333
        %v1697 = vpack.c.b16 %v1341, %v1340
        %v1698 = vpack.c.b16 %v1348, %v1118
        %v1699 = vpack.c.b16 %v1349, %v1349
        %v1700 = vpack.c.b16 %v669, %v1335
        %v1701 = vpack.c.b16 %v1343, %v1342
        %v1702 = vpack.c.b16 %v1350, %v1119
        %v1703 = vpack.c.b16 %v1351, %v1351
        %v1704 = vpack.c.b16 %v1116, %v1337
        %v1705 = vpack.c.b16 %v1345, %v1344
        %v1706 = vpack.c.b16 %v1352, %v1144
        %v1707 = vpack.c.b16 %v1353, %v1353
        %v1708 = vpack.c.b16 %v1117, %v1339
        %v1709 = vpack.c.b16 %v1347, %v1346
        %v1710 = vpack.c.b16 %v1354, %v1145
        %v1711 = vpack.c.b16 %v1355, %v1355
        %v1712 = vpack.c.b16 %v1118, %v1341
        %v1713 = vpack.c.b16 %v1349, %v1348
        %v1714 = vpack.c.b16 %v1356, %v1146
        %v1715 = vpack.c.b16 %v1357, %v1357
        %v1716 = vpack.c.b16 %v1119, %v1343
        %v1717 = vpack.c.b16 %v1351, %v1350
        %v1718 = vpack.c.b16 %v1358, %v1147
        %v1719 = vpack.c.b16 %v1359, %v1359
        %vm1720 = vcmask 1041408
        %vm1721 = vcmask 1045508
        %vm1722 = vmor %vm1720, %vm1721
        %v1723 = vrot.slane %v1360, 6
        %v1724 = vrot.slane %v1723, 4
        %v1725 = vrot.slane %v1365, 6
        %v1726 = vsel %vm1722, %v1724, %v1725
        %v1727 = vrot.slane %v1361, 6
        %v1728 = vrot.slane %v1727, 4
        %v1729 = vrot.slane %v1366, 6
        %v1730 = vsel %vm1722, %v1728, %v1729
        %v1731 = vrot.slane %v1362, 6
        %v1732 = vrot.slane %v1731, 4
        %v1733 = vrot.slane %v1367, 6
        %v1734 = vsel %vm1722, %v1732, %v1733
        %v1735 = vrot.slane %v1363, 6
        %v1736 = vrot.slane %v1735, 4
        %v1737 = vrot.slane %v1368, 6
        %v1738 = vsel %vm1722, %v1736, %v1737
        %v1739 = vrot.slane %v1364, 6
        %v1740 = vrot.slane %v1739, 4
        %v1741 = vrot.slane %v1369, 6
        %v1742 = vsel %vm1722, %v1740, %v1741
        %v1743 = vrot.slane %v1725, 4
        %v1744 = vrot.slane %v1370, 6
        %v1745 = vsel %vm1722, %v1743, %v1744
        %v1746 = vrot.slane %v1729, 4
        %v1747 = vrot.slane %v1371, 6
        %v1748 = vsel %vm1722, %v1746, %v1747
        %v1749 = vrot.slane %v1733, 4
        %v1750 = vrot.slane %v1372, 6
        %v1751 = vsel %vm1722, %v1749, %v1750
        %v1752 = vrot.slane %v1737, 4
        %v1753 = vrot.slane %v1373, 6
        %v1754 = vsel %vm1722, %v1752, %v1753
        %v1755 = vrot.slane %v1741, 4
        %v1756 = vrot.slane %v1374, 6
        %v1757 = vsel %vm1722, %v1755, %v1756
        %v1758 = vrot.slane %v1744, 4
        %v1759 = vrot.slane %v1375, 6
        %v1760 = vsel %vm1722, %v1758, %v1759
        %v1761 = vrot.slane %v1747, 4
        %v1762 = vrot.slane %v1376, 6
        %v1763 = vsel %vm1722, %v1761, %v1762
        %v1764 = vrot.slane %v1750, 4
        %v1765 = vrot.slane %v1377, 6
        %v1766 = vsel %vm1722, %v1764, %v1765
        %v1767 = vrot.slane %v1753, 4
        %v1768 = vrot.slane %v1378, 6
        %v1769 = vsel %vm1722, %v1767, %v1768
        %v1770 = vrot.slane %v1756, 4
        %v1771 = vrot.slane %v1379, 6
        %v1772 = vsel %vm1722, %v1770, %v1771
        %v1773 = vrot.slane %v1380, 6
        %v1774 = vrot.slane %v1773, 4
        %v1775 = vrot.slane %v1385, 6
        %v1776 = vsel %vm1722, %v1774, %v1775
        %v1777 = vrot.slane %v1381, 6
        %v1778 = vrot.slane %v1777, 4
        %v1779 = vrot.slane %v1386, 6
        %v1780 = vsel %vm1722, %v1778, %v1779
        %v1781 = vrot.slane %v1382, 6
        %v1782 = vrot.slane %v1781, 4
        %v1783 = vrot.slane %v1387, 6
        %v1784 = vsel %vm1722, %v1782, %v1783
        %v1785 = vrot.slane %v1383, 6
        %v1786 = vrot.slane %v1785, 4
        %v1787 = vrot.slane %v1388, 6
        %v1788 = vsel %vm1722, %v1786, %v1787
        %v1789 = vrot.slane %v1384, 6
        %v1790 = vrot.slane %v1789, 4
        %v1791 = vrot.slane %v1389, 6
        %v1792 = vsel %vm1722, %v1790, %v1791
        %v1793 = vrot.slane %v1775, 4
        %v1794 = vrot.slane %v1390, 6
        %v1795 = vsel %vm1722, %v1793, %v1794
        %v1796 = vrot.slane %v1779, 4
        %v1797 = vrot.slane %v1391, 6
        %v1798 = vsel %vm1722, %v1796, %v1797
        %v1799 = vrot.slane %v1783, 4
        %v1800 = vrot.slane %v1392, 6
        %v1801 = vsel %vm1722, %v1799, %v1800
        %v1802 = vrot.slane %v1787, 4
        %v1803 = vrot.slane %v1393, 6
        %v1804 = vsel %vm1722, %v1802, %v1803
        %v1805 = vrot.slane %v1791, 4
        %v1806 = vrot.slane %v1394, 6
        %v1807 = vsel %vm1722, %v1805, %v1806
        %v1808 = vrot.slane %v1794, 4
        %v1809 = vrot.slane %v1395, 6
        %v1810 = vsel %vm1722, %v1808, %v1809
        %v1811 = vrot.slane %v1797, 4
        %v1812 = vrot.slane %v1396, 6
        %v1813 = vsel %vm1722, %v1811, %v1812
        %v1814 = vrot.slane %v1800, 4
        %v1815 = vrot.slane %v1397, 6
        %v1816 = vsel %vm1722, %v1814, %v1815
        %v1817 = vrot.slane %v1803, 4
        %v1818 = vrot.slane %v1398, 6
        %v1819 = vsel %vm1722, %v1817, %v1818
        %v1820 = vrot.slane %v1806, 4
        %v1821 = vrot.slane %v1399, 6
        %v1822 = vsel %vm1722, %v1820, %v1821
        %v1823 = vrot.slane %v1400, 6
        %v1824 = vrot.slane %v1823, 4
        %v1825 = vrot.slane %v1404, 6
        %v1826 = vsel %vm1722, %v1824, %v1825
        %v1827 = vrot.slane %v1401, 6
        %v1828 = vrot.slane %v1827, 4
        %v1829 = vrot.slane %v1405, 6
        %v1830 = vsel %vm1722, %v1828, %v1829
        %v1831 = vrot.slane %v1402, 6
        %v1832 = vrot.slane %v1831, 4
        %v1833 = vrot.slane %v1406, 6
        %v1834 = vsel %vm1722, %v1832, %v1833
        %v1835 = vrot.slane %v1403, 6
        %v1836 = vrot.slane %v1835, 4
        %v1837 = vrot.slane %v1407, 6
        %v1838 = vsel %vm1722, %v1836, %v1837
        %v1839 = vrot.slane %v1825, 4
        %v1840 = vrot.slane %v1408, 6
        %v1841 = vsel %vm1722, %v1839, %v1840
        %v1842 = vrot.slane %v1829, 4
        %v1843 = vrot.slane %v1409, 6
        %v1844 = vsel %vm1722, %v1842, %v1843
        %v1845 = vrot.slane %v1833, 4
        %v1846 = vrot.slane %v1410, 6
        %v1847 = vsel %vm1722, %v1845, %v1846
        %v1848 = vrot.slane %v1837, 4
        %v1849 = vrot.slane %v1411, 6
        %v1850 = vsel %vm1722, %v1848, %v1849
        %v1851 = vrot.slane %v1840, 4
        %v1852 = vrot.slane %v1412, 6
        %v1853 = vsel %vm1722, %v1851, %v1852
        %v1854 = vrot.slane %v1843, 4
        %v1855 = vrot.slane %v1413, 6
        %v1856 = vsel %vm1722, %v1854, %v1855
        %v1857 = vrot.slane %v1846, 4
        %v1858 = vrot.slane %v1414, 6
        %v1859 = vsel %vm1722, %v1857, %v1858
        %v1860 = vrot.slane %v1849, 4
        %v1861 = vrot.slane %v1415, 6
        %v1862 = vsel %vm1722, %v1860, %v1861
        %v1863 = vrot.slane %v1416, 6
        %v1864 = vrot.slane %v1863, 4
        %v1865 = vrot.slane %v1420, 6
        %v1866 = vsel %vm1722, %v1864, %v1865
        %v1867 = vrot.slane %v1417, 6
        %v1868 = vrot.slane %v1867, 4
        %v1869 = vrot.slane %v1421, 6
        %v1870 = vsel %vm1722, %v1868, %v1869
        %v1871 = vrot.slane %v1418, 6
        %v1872 = vrot.slane %v1871, 4
        %v1873 = vrot.slane %v1422, 6
        %v1874 = vsel %vm1722, %v1872, %v1873
        %v1875 = vrot.slane %v1419, 6
        %v1876 = vrot.slane %v1875, 4
        %v1877 = vrot.slane %v1423, 6
        %v1878 = vsel %vm1722, %v1876, %v1877
        %v1879 = vrot.slane %v1865, 4
        %v1880 = vrot.slane %v1424, 6
        %v1881 = vsel %vm1722, %v1879, %v1880
        %v1882 = vrot.slane %v1869, 4
        %v1883 = vrot.slane %v1425, 6
        %v1884 = vsel %vm1722, %v1882, %v1883
        %v1885 = vrot.slane %v1873, 4
        %v1886 = vrot.slane %v1426, 6
        %v1887 = vsel %vm1722, %v1885, %v1886
        %v1888 = vrot.slane %v1877, 4
        %v1889 = vrot.slane %v1427, 6
        %v1890 = vsel %vm1722, %v1888, %v1889
        %v1891 = vrot.slane %v1880, 4
        %v1892 = vrot.slane %v1428, 6
        %v1893 = vsel %vm1722, %v1891, %v1892
        %v1894 = vrot.slane %v1883, 4
        %v1895 = vrot.slane %v1429, 6
        %v1896 = vsel %vm1722, %v1894, %v1895
        %v1897 = vrot.slane %v1886, 4
        %v1898 = vrot.slane %v1430, 6
        %v1899 = vsel %vm1722, %v1897, %v1898
        %v1900 = vrot.slane %v1889, 4
        %v1901 = vrot.slane %v1431, 6
        %v1902 = vsel %vm1722, %v1900, %v1901
        %v1903 = vrot.slane %v1432, 6
        %v1904 = vrot.slane %v1903, 4
        %v1905 = vrot.slane %v1436, 6
        %v1906 = vsel %vm1722, %v1904, %v1905
        %v1907 = vrot.slane %v1433, 6
        %v1908 = vrot.slane %v1907, 4
        %v1909 = vrot.slane %v1437, 6
        %v1910 = vsel %vm1722, %v1908, %v1909
        %v1911 = vrot.slane %v1434, 6
        %v1912 = vrot.slane %v1911, 4
        %v1913 = vrot.slane %v1438, 6
        %v1914 = vsel %vm1722, %v1912, %v1913
        %v1915 = vrot.slane %v1435, 6
        %v1916 = vrot.slane %v1915, 4
        %v1917 = vrot.slane %v1439, 6
        %v1918 = vsel %vm1722, %v1916, %v1917
        %v1919 = vrot.slane %v1905, 4
        %v1920 = vrot.slane %v1440, 6
        %v1921 = vsel %vm1722, %v1919, %v1920
        %v1922 = vrot.slane %v1909, 4
        %v1923 = vrot.slane %v1441, 6
        %v1924 = vsel %vm1722, %v1922, %v1923
        %v1925 = vrot.slane %v1913, 4
        %v1926 = vrot.slane %v1442, 6
        %v1927 = vsel %vm1722, %v1925, %v1926
        %v1928 = vrot.slane %v1917, 4
        %v1929 = vrot.slane %v1443, 6
        %v1930 = vsel %vm1722, %v1928, %v1929
        %v1931 = vrot.slane %v1920, 4
        %v1932 = vrot.slane %v1444, 6
        %v1933 = vsel %vm1722, %v1931, %v1932
        %v1934 = vrot.slane %v1923, 4
        %v1935 = vrot.slane %v1445, 6
        %v1936 = vsel %vm1722, %v1934, %v1935
        %v1937 = vrot.slane %v1926, 4
        %v1938 = vrot.slane %v1446, 6
        %v1939 = vsel %vm1722, %v1937, %v1938
        %v1940 = vrot.slane %v1929, 4
        %v1941 = vrot.slane %v1447, 6
        %v1942 = vsel %vm1722, %v1940, %v1941
        %v1943 = vrot.slane %v1448, 6
        %v1944 = vrot.slane %v1943, 4
        %v1945 = vrot.slane %v1452, 6
        %v1946 = vsel %vm1722, %v1944, %v1945
        %v1947 = vrot.slane %v1449, 6
        %v1948 = vrot.slane %v1947, 4
        %v1949 = vrot.slane %v1453, 6
        %v1950 = vsel %vm1722, %v1948, %v1949
        %v1951 = vrot.slane %v1450, 6
        %v1952 = vrot.slane %v1951, 4
        %v1953 = vrot.slane %v1454, 6
        %v1954 = vsel %vm1722, %v1952, %v1953
        %v1955 = vrot.slane %v1451, 6
        %v1956 = vrot.slane %v1955, 4
        %v1957 = vrot.slane %v1455, 6
        %v1958 = vsel %vm1722, %v1956, %v1957
        %v1959 = vrot.slane %v1945, 4
        %v1960 = vrot.slane %v1456, 6
        %v1961 = vsel %vm1722, %v1959, %v1960
        %v1962 = vrot.slane %v1949, 4
        %v1963 = vrot.slane %v1457, 6
        %v1964 = vsel %vm1722, %v1962, %v1963
        %v1965 = vrot.slane %v1953, 4
        %v1966 = vrot.slane %v1458, 6
        %v1967 = vsel %vm1722, %v1965, %v1966
        %v1968 = vrot.slane %v1957, 4
        %v1969 = vrot.slane %v1459, 6
        %v1970 = vsel %vm1722, %v1968, %v1969
        %v1971 = vrot.slane %v1960, 4
        %v1972 = vrot.slane %v1460, 6
        %v1973 = vsel %vm1722, %v1971, %v1972
        %v1974 = vrot.slane %v1963, 4
        %v1975 = vrot.slane %v1461, 6
        %v1976 = vsel %vm1722, %v1974, %v1975
        %v1977 = vrot.slane %v1966, 4
        %v1978 = vrot.slane %v1462, 6
        %v1979 = vsel %vm1722, %v1977, %v1978
        %v1980 = vrot.slane %v1969, 4
        %v1981 = vrot.slane %v1463, 6
        %v1982 = vsel %vm1722, %v1980, %v1981
        %v1983 = vrot.slane %v1464, 6
        %v1984 = vrot.slane %v1983, 4
        %v1985 = vrot.slane %v1468, 6
        %v1986 = vsel %vm1722, %v1984, %v1985
        %v1987 = vrot.slane %v1465, 6
        %v1988 = vrot.slane %v1987, 4
        %v1989 = vrot.slane %v1469, 6
        %v1990 = vsel %vm1722, %v1988, %v1989
        %v1991 = vrot.slane %v1466, 6
        %v1992 = vrot.slane %v1991, 4
        %v1993 = vrot.slane %v1470, 6
        %v1994 = vsel %vm1722, %v1992, %v1993
        %v1995 = vrot.slane %v1467, 6
        %v1996 = vrot.slane %v1995, 4
        %v1997 = vrot.slane %v1471, 6
        %v1998 = vsel %vm1722, %v1996, %v1997
        %v1999 = vrot.slane %v1985, 4
        %v2000 = vrot.slane %v1472, 6
        %v2001 = vsel %vm1722, %v1999, %v2000
        %v2002 = vrot.slane %v1989, 4
        %v2003 = vrot.slane %v1473, 6
        %v2004 = vsel %vm1722, %v2002, %v2003
        %v2005 = vrot.slane %v1993, 4
        %v2006 = vrot.slane %v1474, 6
        %v2007 = vsel %vm1722, %v2005, %v2006
        %v2008 = vrot.slane %v1997, 4
        %v2009 = vrot.slane %v1475, 6
        %v2010 = vsel %vm1722, %v2008, %v2009
        %v2011 = vrot.slane %v2000, 4
        %v2012 = vrot.slane %v1476, 6
        %v2013 = vsel %vm1722, %v2011, %v2012
        %v2014 = vrot.slane %v2003, 4
        %v2015 = vrot.slane %v1477, 6
        %v2016 = vsel %vm1722, %v2014, %v2015
        %v2017 = vrot.slane %v2006, 4
        %v2018 = vrot.slane %v1478, 6
        %v2019 = vsel %vm1722, %v2017, %v2018
        %v2020 = vrot.slane %v2009, 4
        %v2021 = vrot.slane %v1479, 6
        %v2022 = vsel %vm1722, %v2020, %v2021
        %v2023 = vrot.slane %v1480, 6
        %v2024 = vrot.slane %v2023, 4
        %v2025 = vrot.slane %v1484, 6
        %v2026 = vsel %vm1722, %v2024, %v2025
        %v2027 = vrot.slane %v1481, 6
        %v2028 = vrot.slane %v2027, 4
        %v2029 = vrot.slane %v1485, 6
        %v2030 = vsel %vm1722, %v2028, %v2029
        %v2031 = vrot.slane %v1482, 6
        %v2032 = vrot.slane %v2031, 4
        %v2033 = vrot.slane %v1486, 6
        %v2034 = vsel %vm1722, %v2032, %v2033
        %v2035 = vrot.slane %v1483, 6
        %v2036 = vrot.slane %v2035, 4
        %v2037 = vrot.slane %v1487, 6
        %v2038 = vsel %vm1722, %v2036, %v2037
        %v2039 = vrot.slane %v2025, 4
        %v2040 = vrot.slane %v1488, 6
        %v2041 = vsel %vm1722, %v2039, %v2040
        %v2042 = vrot.slane %v2029, 4
        %v2043 = vrot.slane %v1489, 6
        %v2044 = vsel %vm1722, %v2042, %v2043
        %v2045 = vrot.slane %v2033, 4
        %v2046 = vrot.slane %v1490, 6
        %v2047 = vsel %vm1722, %v2045, %v2046
        %v2048 = vrot.slane %v2037, 4
        %v2049 = vrot.slane %v1491, 6
        %v2050 = vsel %vm1722, %v2048, %v2049
        %v2051 = vrot.slane %v2040, 4
        %v2052 = vrot.slane %v1492, 6
        %v2053 = vsel %vm1722, %v2051, %v2052
        %v2054 = vrot.slane %v2043, 4
        %v2055 = vrot.slane %v1493, 6
        %v2056 = vsel %vm1722, %v2054, %v2055
        %v2057 = vrot.slane %v2046, 4
        %v2058 = vrot.slane %v1494, 6
        %v2059 = vsel %vm1722, %v2057, %v2058
        %v2060 = vrot.slane %v2049, 4
        %v2061 = vrot.slane %v1495, 6
        %v2062 = vsel %vm1722, %v2060, %v2061
        %v2063 = vrot.slane %v1496, 6
        %v2064 = vrot.slane %v2063, 4
        %v2065 = vrot.slane %v1500, 6
        %v2066 = vsel %vm1722, %v2064, %v2065
        %v2067 = vrot.slane %v1497, 6
        %v2068 = vrot.slane %v2067, 4
        %v2069 = vrot.slane %v1501, 6
        %v2070 = vsel %vm1722, %v2068, %v2069
        %v2071 = vrot.slane %v1498, 6
        %v2072 = vrot.slane %v2071, 4
        %v2073 = vrot.slane %v1502, 6
        %v2074 = vsel %vm1722, %v2072, %v2073
        %v2075 = vrot.slane %v1499, 6
        %v2076 = vrot.slane %v2075, 4
        %v2077 = vrot.slane %v1503, 6
        %v2078 = vsel %vm1722, %v2076, %v2077
        %v2079 = vrot.slane %v2065, 4
        %v2080 = vrot.slane %v1504, 6
        %v2081 = vsel %vm1722, %v2079, %v2080
        %v2082 = vrot.slane %v2069, 4
        %v2083 = vrot.slane %v1505, 6
        %v2084 = vsel %vm1722, %v2082, %v2083
        %v2085 = vrot.slane %v2073, 4
        %v2086 = vrot.slane %v1506, 6
        %v2087 = vsel %vm1722, %v2085, %v2086
        %v2088 = vrot.slane %v2077, 4
        %v2089 = vrot.slane %v1507, 6
        %v2090 = vsel %vm1722, %v2088, %v2089
        %v2091 = vrot.slane %v2080, 4
        %v2092 = vrot.slane %v1508, 6
        %v2093 = vsel %vm1722, %v2091, %v2092
        %v2094 = vrot.slane %v2083, 4
        %v2095 = vrot.slane %v1509, 6
        %v2096 = vsel %vm1722, %v2094, %v2095
        %v2097 = vrot.slane %v2086, 4
        %v2098 = vrot.slane %v1510, 6
        %v2099 = vsel %vm1722, %v2097, %v2098
        %v2100 = vrot.slane %v2089, 4
        %v2101 = vrot.slane %v1511, 6
        %v2102 = vsel %vm1722, %v2100, %v2101
        %v2103 = vrot.slane %v1512, 6
        %v2104 = vrot.slane %v2103, 4
        %v2105 = vrot.slane %v1516, 6
        %v2106 = vsel %vm1722, %v2104, %v2105
        %v2107 = vrot.slane %v1513, 6
        %v2108 = vrot.slane %v2107, 4
        %v2109 = vrot.slane %v1517, 6
        %v2110 = vsel %vm1722, %v2108, %v2109
        %v2111 = vrot.slane %v1514, 6
        %v2112 = vrot.slane %v2111, 4
        %v2113 = vrot.slane %v1518, 6
        %v2114 = vsel %vm1722, %v2112, %v2113
        %v2115 = vrot.slane %v1515, 6
        %v2116 = vrot.slane %v2115, 4
        %v2117 = vrot.slane %v1519, 6
        %v2118 = vsel %vm1722, %v2116, %v2117
        %v2119 = vrot.slane %v2105, 4
        %v2120 = vrot.slane %v1520, 6
        %v2121 = vsel %vm1722, %v2119, %v2120
        %v2122 = vrot.slane %v2109, 4
        %v2123 = vrot.slane %v1521, 6
        %v2124 = vsel %vm1722, %v2122, %v2123
        %v2125 = vrot.slane %v2113, 4
        %v2126 = vrot.slane %v1522, 6
        %v2127 = vsel %vm1722, %v2125, %v2126
        %v2128 = vrot.slane %v2117, 4
        %v2129 = vrot.slane %v1523, 6
        %v2130 = vsel %vm1722, %v2128, %v2129
        %v2131 = vrot.slane %v2120, 4
        %v2132 = vrot.slane %v1524, 6
        %v2133 = vsel %vm1722, %v2131, %v2132
        %v2134 = vrot.slane %v2123, 4
        %v2135 = vrot.slane %v1525, 6
        %v2136 = vsel %vm1722, %v2134, %v2135
        %v2137 = vrot.slane %v2126, 4
        %v2138 = vrot.slane %v1526, 6
        %v2139 = vsel %vm1722, %v2137, %v2138
        %v2140 = vrot.slane %v2129, 4
        %v2141 = vrot.slane %v1527, 6
        %v2142 = vsel %vm1722, %v2140, %v2141
        %v2143 = vrot.slane %v1528, 6
        %v2144 = vrot.slane %v2143, 4
        %v2145 = vrot.slane %v1532, 6
        %v2146 = vsel %vm1722, %v2144, %v2145
        %v2147 = vrot.slane %v1529, 6
        %v2148 = vrot.slane %v2147, 4
        %v2149 = vrot.slane %v1533, 6
        %v2150 = vsel %vm1722, %v2148, %v2149
        %v2151 = vrot.slane %v1530, 6
        %v2152 = vrot.slane %v2151, 4
        %v2153 = vrot.slane %v1534, 6
        %v2154 = vsel %vm1722, %v2152, %v2153
        %v2155 = vrot.slane %v1531, 6
        %v2156 = vrot.slane %v2155, 4
        %v2157 = vrot.slane %v1535, 6
        %v2158 = vsel %vm1722, %v2156, %v2157
        %v2159 = vrot.slane %v2145, 4
        %v2160 = vrot.slane %v1536, 6
        %v2161 = vsel %vm1722, %v2159, %v2160
        %v2162 = vrot.slane %v2149, 4
        %v2163 = vrot.slane %v1537, 6
        %v2164 = vsel %vm1722, %v2162, %v2163
        %v2165 = vrot.slane %v2153, 4
        %v2166 = vrot.slane %v1538, 6
        %v2167 = vsel %vm1722, %v2165, %v2166
        %v2168 = vrot.slane %v2157, 4
        %v2169 = vrot.slane %v1539, 6
        %v2170 = vsel %vm1722, %v2168, %v2169
        %v2171 = vrot.slane %v2160, 4
        %v2172 = vrot.slane %v1540, 6
        %v2173 = vsel %vm1722, %v2171, %v2172
        %v2174 = vrot.slane %v2163, 4
        %v2175 = vrot.slane %v1541, 6
        %v2176 = vsel %vm1722, %v2174, %v2175
        %v2177 = vrot.slane %v2166, 4
        %v2178 = vrot.slane %v1542, 6
        %v2179 = vsel %vm1722, %v2177, %v2178
        %v2180 = vrot.slane %v2169, 4
        %v2181 = vrot.slane %v1543, 6
        %v2182 = vsel %vm1722, %v2180, %v2181
        %v2183 = vrot.slane %v1544, 6
        %v2184 = vrot.slane %v2183, 4
        %v2185 = vrot.slane %v1548, 6
        %v2186 = vsel %vm1722, %v2184, %v2185
        %v2187 = vrot.slane %v1545, 6
        %v2188 = vrot.slane %v2187, 4
        %v2189 = vrot.slane %v1549, 6
        %v2190 = vsel %vm1722, %v2188, %v2189
        %v2191 = vrot.slane %v1546, 6
        %v2192 = vrot.slane %v2191, 4
        %v2193 = vrot.slane %v1550, 6
        %v2194 = vsel %vm1722, %v2192, %v2193
        %v2195 = vrot.slane %v1547, 6
        %v2196 = vrot.slane %v2195, 4
        %v2197 = vrot.slane %v1551, 6
        %v2198 = vsel %vm1722, %v2196, %v2197
        %v2199 = vrot.slane %v2185, 4
        %v2200 = vrot.slane %v1552, 6
        %v2201 = vsel %vm1722, %v2199, %v2200
        %v2202 = vrot.slane %v2189, 4
        %v2203 = vrot.slane %v1553, 6
        %v2204 = vsel %vm1722, %v2202, %v2203
        %v2205 = vrot.slane %v2193, 4
        %v2206 = vrot.slane %v1554, 6
        %v2207 = vsel %vm1722, %v2205, %v2206
        %v2208 = vrot.slane %v2197, 4
        %v2209 = vrot.slane %v1555, 6
        %v2210 = vsel %vm1722, %v2208, %v2209
        %v2211 = vrot.slane %v2200, 4
        %v2212 = vrot.slane %v1556, 6
        %v2213 = vsel %vm1722, %v2211, %v2212
        %v2214 = vrot.slane %v2203, 4
        %v2215 = vrot.slane %v1557, 6
        %v2216 = vsel %vm1722, %v2214, %v2215
        %v2217 = vrot.slane %v2206, 4
        %v2218 = vrot.slane %v1558, 6
        %v2219 = vsel %vm1722, %v2217, %v2218
        %v2220 = vrot.slane %v2209, 4
        %v2221 = vrot.slane %v1559, 6
        %v2222 = vsel %vm1722, %v2220, %v2221
        %v2223 = vrot.slane %v1560, 6
        %v2224 = vrot.slane %v2223, 4
        %v2225 = vrot.slane %v1564, 6
        %v2226 = vsel %vm1722, %v2224, %v2225
        %v2227 = vrot.slane %v1561, 6
        %v2228 = vrot.slane %v2227, 4
        %v2229 = vrot.slane %v1565, 6
        %v2230 = vsel %vm1722, %v2228, %v2229
        %v2231 = vrot.slane %v1562, 6
        %v2232 = vrot.slane %v2231, 4
        %v2233 = vrot.slane %v1566, 6
        %v2234 = vsel %vm1722, %v2232, %v2233
        %v2235 = vrot.slane %v1563, 6
        %v2236 = vrot.slane %v2235, 4
        %v2237 = vrot.slane %v1567, 6
        %v2238 = vsel %vm1722, %v2236, %v2237
        %v2239 = vrot.slane %v2225, 4
        %v2240 = vrot.slane %v1568, 6
        %v2241 = vsel %vm1722, %v2239, %v2240
        %v2242 = vrot.slane %v2229, 4
        %v2243 = vrot.slane %v1569, 6
        %v2244 = vsel %vm1722, %v2242, %v2243
        %v2245 = vrot.slane %v2233, 4
        %v2246 = vrot.slane %v1570, 6
        %v2247 = vsel %vm1722, %v2245, %v2246
        %v2248 = vrot.slane %v2237, 4
        %v2249 = vrot.slane %v1571, 6
        %v2250 = vsel %vm1722, %v2248, %v2249
        %v2251 = vrot.slane %v2240, 4
        %v2252 = vrot.slane %v1572, 6
        %v2253 = vsel %vm1722, %v2251, %v2252
        %v2254 = vrot.slane %v2243, 4
        %v2255 = vrot.slane %v1573, 6
        %v2256 = vsel %vm1722, %v2254, %v2255
        %v2257 = vrot.slane %v2246, 4
        %v2258 = vrot.slane %v1574, 6
        %v2259 = vsel %vm1722, %v2257, %v2258
        %v2260 = vrot.slane %v2249, 4
        %v2261 = vrot.slane %v1575, 6
        %v2262 = vsel %vm1722, %v2260, %v2261
        %v2263 = vrot.slane %v1576, 6
        %v2264 = vrot.slane %v2263, 4
        %v2265 = vrot.slane %v1580, 6
        %v2266 = vsel %vm1722, %v2264, %v2265
        %v2267 = vrot.slane %v1577, 6
        %v2268 = vrot.slane %v2267, 4
        %v2269 = vrot.slane %v1581, 6
        %v2270 = vsel %vm1722, %v2268, %v2269
        %v2271 = vrot.slane %v1578, 6
        %v2272 = vrot.slane %v2271, 4
        %v2273 = vrot.slane %v1582, 6
        %v2274 = vsel %vm1722, %v2272, %v2273
        %v2275 = vrot.slane %v1579, 6
        %v2276 = vrot.slane %v2275, 4
        %v2277 = vrot.slane %v1583, 6
        %v2278 = vsel %vm1722, %v2276, %v2277
        %v2279 = vrot.slane %v2265, 4
        %v2280 = vrot.slane %v1584, 6
        %v2281 = vsel %vm1722, %v2279, %v2280
        %v2282 = vrot.slane %v2269, 4
        %v2283 = vrot.slane %v1585, 6
        %v2284 = vsel %vm1722, %v2282, %v2283
        %v2285 = vrot.slane %v2273, 4
        %v2286 = vrot.slane %v1586, 6
        %v2287 = vsel %vm1722, %v2285, %v2286
        %v2288 = vrot.slane %v2277, 4
        %v2289 = vrot.slane %v1587, 6
        %v2290 = vsel %vm1722, %v2288, %v2289
        %v2291 = vrot.slane %v2280, 4
        %v2292 = vrot.slane %v1588, 6
        %v2293 = vsel %vm1722, %v2291, %v2292
        %v2294 = vrot.slane %v2283, 4
        %v2295 = vrot.slane %v1589, 6
        %v2296 = vsel %vm1722, %v2294, %v2295
        %v2297 = vrot.slane %v2286, 4
        %v2298 = vrot.slane %v1590, 6
        %v2299 = vsel %vm1722, %v2297, %v2298
        %v2300 = vrot.slane %v2289, 4
        %v2301 = vrot.slane %v1591, 6
        %v2302 = vsel %vm1722, %v2300, %v2301
        %v2303 = vrot.slane %v1592, 6
        %v2304 = vrot.slane %v2303, 4
        %v2305 = vrot.slane %v1596, 6
        %v2306 = vsel %vm1722, %v2304, %v2305
        %v2307 = vrot.slane %v1593, 6
        %v2308 = vrot.slane %v2307, 4
        %v2309 = vrot.slane %v1597, 6
        %v2310 = vsel %vm1722, %v2308, %v2309
        %v2311 = vrot.slane %v1594, 6
        %v2312 = vrot.slane %v2311, 4
        %v2313 = vrot.slane %v1598, 6
        %v2314 = vsel %vm1722, %v2312, %v2313
        %v2315 = vrot.slane %v1595, 6
        %v2316 = vrot.slane %v2315, 4
        %v2317 = vrot.slane %v1599, 6
        %v2318 = vsel %vm1722, %v2316, %v2317
        %v2319 = vrot.slane %v2305, 4
        %v2320 = vrot.slane %v1600, 6
        %v2321 = vsel %vm1722, %v2319, %v2320
        %v2322 = vrot.slane %v2309, 4
        %v2323 = vrot.slane %v1601, 6
        %v2324 = vsel %vm1722, %v2322, %v2323
        %v2325 = vrot.slane %v2313, 4
        %v2326 = vrot.slane %v1602, 6
        %v2327 = vsel %vm1722, %v2325, %v2326
        %v2328 = vrot.slane %v2317, 4
        %v2329 = vrot.slane %v1603, 6
        %v2330 = vsel %vm1722, %v2328, %v2329
        %v2331 = vrot.slane %v2320, 4
        %v2332 = vrot.slane %v1604, 6
        %v2333 = vsel %vm1722, %v2331, %v2332
        %v2334 = vrot.slane %v2323, 4
        %v2335 = vrot.slane %v1605, 6
        %v2336 = vsel %vm1722, %v2334, %v2335
        %v2337 = vrot.slane %v2326, 4
        %v2338 = vrot.slane %v1606, 6
        %v2339 = vsel %vm1722, %v2337, %v2338
        %v2340 = vrot.slane %v2329, 4
        %v2341 = vrot.slane %v1607, 6
        %v2342 = vsel %vm1722, %v2340, %v2341
        %v2343 = vrot.slane %v1608, 6
        %v2344 = vrot.slane %v2343, 4
        %v2345 = vrot.slane %v1612, 6
        %v2346 = vsel %vm1722, %v2344, %v2345
        %v2347 = vrot.slane %v1609, 6
        %v2348 = vrot.slane %v2347, 4
        %v2349 = vrot.slane %v1613, 6
        %v2350 = vsel %vm1722, %v2348, %v2349
        %v2351 = vrot.slane %v1610, 6
        %v2352 = vrot.slane %v2351, 4
        %v2353 = vrot.slane %v1614, 6
        %v2354 = vsel %vm1722, %v2352, %v2353
        %v2355 = vrot.slane %v1611, 6
        %v2356 = vrot.slane %v2355, 4
        %v2357 = vrot.slane %v1615, 6
        %v2358 = vsel %vm1722, %v2356, %v2357
        %v2359 = vrot.slane %v2345, 4
        %v2360 = vrot.slane %v1616, 6
        %v2361 = vsel %vm1722, %v2359, %v2360
        %v2362 = vrot.slane %v2349, 4
        %v2363 = vrot.slane %v1617, 6
        %v2364 = vsel %vm1722, %v2362, %v2363
        %v2365 = vrot.slane %v2353, 4
        %v2366 = vrot.slane %v1618, 6
        %v2367 = vsel %vm1722, %v2365, %v2366
        %v2368 = vrot.slane %v2357, 4
        %v2369 = vrot.slane %v1619, 6
        %v2370 = vsel %vm1722, %v2368, %v2369
        %v2371 = vrot.slane %v2360, 4
        %v2372 = vrot.slane %v1620, 6
        %v2373 = vsel %vm1722, %v2371, %v2372
        %v2374 = vrot.slane %v2363, 4
        %v2375 = vrot.slane %v1621, 6
        %v2376 = vsel %vm1722, %v2374, %v2375
        %v2377 = vrot.slane %v2366, 4
        %v2378 = vrot.slane %v1622, 6
        %v2379 = vsel %vm1722, %v2377, %v2378
        %v2380 = vrot.slane %v2369, 4
        %v2381 = vrot.slane %v1623, 6
        %v2382 = vsel %vm1722, %v2380, %v2381
        %v2383 = vrot.slane %v1624, 6
        %v2384 = vrot.slane %v2383, 4
        %v2385 = vrot.slane %v1628, 6
        %v2386 = vsel %vm1722, %v2384, %v2385
        %v2387 = vrot.slane %v1625, 6
        %v2388 = vrot.slane %v2387, 4
        %v2389 = vrot.slane %v1629, 6
        %v2390 = vsel %vm1722, %v2388, %v2389
        %v2391 = vrot.slane %v1626, 6
        %v2392 = vrot.slane %v2391, 4
        %v2393 = vrot.slane %v1630, 6
        %v2394 = vsel %vm1722, %v2392, %v2393
        %v2395 = vrot.slane %v1627, 6
        %v2396 = vrot.slane %v2395, 4
        %v2397 = vrot.slane %v1631, 6
        %v2398 = vsel %vm1722, %v2396, %v2397
        %v2399 = vrot.slane %v2385, 4
        %v2400 = vrot.slane %v1632, 6
        %v2401 = vsel %vm1722, %v2399, %v2400
        %v2402 = vrot.slane %v2389, 4
        %v2403 = vrot.slane %v1633, 6
        %v2404 = vsel %vm1722, %v2402, %v2403
        %v2405 = vrot.slane %v2393, 4
        %v2406 = vrot.slane %v1634, 6
        %v2407 = vsel %vm1722, %v2405, %v2406
        %v2408 = vrot.slane %v2397, 4
        %v2409 = vrot.slane %v1635, 6
        %v2410 = vsel %vm1722, %v2408, %v2409
        %v2411 = vrot.slane %v2400, 4
        %v2412 = vrot.slane %v1636, 6
        %v2413 = vsel %vm1722, %v2411, %v2412
        %v2414 = vrot.slane %v2403, 4
        %v2415 = vrot.slane %v1637, 6
        %v2416 = vsel %vm1722, %v2414, %v2415
        %v2417 = vrot.slane %v2406, 4
        %v2418 = vrot.slane %v1638, 6
        %v2419 = vsel %vm1722, %v2417, %v2418
        %v2420 = vrot.slane %v2409, 4
        %v2421 = vrot.slane %v1639, 6
        %v2422 = vsel %vm1722, %v2420, %v2421
        %v2423 = vrot.slane %v1640, 6
        %v2424 = vrot.slane %v2423, 4
        %v2425 = vrot.slane %v1644, 6
        %v2426 = vsel %vm1722, %v2424, %v2425
        %v2427 = vrot.slane %v1641, 6
        %v2428 = vrot.slane %v2427, 4
        %v2429 = vrot.slane %v1645, 6
        %v2430 = vsel %vm1722, %v2428, %v2429
        %v2431 = vrot.slane %v1642, 6
        %v2432 = vrot.slane %v2431, 4
        %v2433 = vrot.slane %v1646, 6
        %v2434 = vsel %vm1722, %v2432, %v2433
        %v2435 = vrot.slane %v1643, 6
        %v2436 = vrot.slane %v2435, 4
        %v2437 = vrot.slane %v1647, 6
        %v2438 = vsel %vm1722, %v2436, %v2437
        %v2439 = vrot.slane %v2425, 4
        %v2440 = vrot.slane %v1648, 6
        %v2441 = vsel %vm1722, %v2439, %v2440
        %v2442 = vrot.slane %v2429, 4
        %v2443 = vrot.slane %v1649, 6
        %v2444 = vsel %vm1722, %v2442, %v2443
        %v2445 = vrot.slane %v2433, 4
        %v2446 = vrot.slane %v1650, 6
        %v2447 = vsel %vm1722, %v2445, %v2446
        %v2448 = vrot.slane %v2437, 4
        %v2449 = vrot.slane %v1651, 6
        %v2450 = vsel %vm1722, %v2448, %v2449
        %v2451 = vrot.slane %v2440, 4
        %v2452 = vrot.slane %v1652, 6
        %v2453 = vsel %vm1722, %v2451, %v2452
        %v2454 = vrot.slane %v2443, 4
        %v2455 = vrot.slane %v1653, 6
        %v2456 = vsel %vm1722, %v2454, %v2455
        %v2457 = vrot.slane %v2446, 4
        %v2458 = vrot.slane %v1654, 6
        %v2459 = vsel %vm1722, %v2457, %v2458
        %v2460 = vrot.slane %v2449, 4
        %v2461 = vrot.slane %v1655, 6
        %v2462 = vsel %vm1722, %v2460, %v2461
        %v2463 = vrot.slane %v1656, 6
        %v2464 = vrot.slane %v2463, 4
        %v2465 = vrot.slane %v1660, 6
        %v2466 = vsel %vm1722, %v2464, %v2465
        %v2467 = vrot.slane %v1657, 6
        %v2468 = vrot.slane %v2467, 4
        %v2469 = vrot.slane %v1661, 6
        %v2470 = vsel %vm1722, %v2468, %v2469
        %v2471 = vrot.slane %v1658, 6
        %v2472 = vrot.slane %v2471, 4
        %v2473 = vrot.slane %v1662, 6
        %v2474 = vsel %vm1722, %v2472, %v2473
        %v2475 = vrot.slane %v1659, 6
        %v2476 = vrot.slane %v2475, 4
        %v2477 = vrot.slane %v1663, 6
        %v2478 = vsel %vm1722, %v2476, %v2477
        %v2479 = vrot.slane %v2465, 4
        %v2480 = vrot.slane %v1664, 6
        %v2481 = vsel %vm1722, %v2479, %v2480
        %v2482 = vrot.slane %v2469, 4
        %v2483 = vrot.slane %v1665, 6
        %v2484 = vsel %vm1722, %v2482, %v2483
        %v2485 = vrot.slane %v2473, 4
        %v2486 = vrot.slane %v1666, 6
        %v2487 = vsel %vm1722, %v2485, %v2486
        %v2488 = vrot.slane %v2477, 4
        %v2489 = vrot.slane %v1667, 6
        %v2490 = vsel %vm1722, %v2488, %v2489
        %v2491 = vrot.slane %v2480, 4
        %v2492 = vrot.slane %v1668, 6
        %v2493 = vsel %vm1722, %v2491, %v2492
        %v2494 = vrot.slane %v2483, 4
        %v2495 = vrot.slane %v1669, 6
        %v2496 = vsel %vm1722, %v2494, %v2495
        %v2497 = vrot.slane %v2486, 4
        %v2498 = vrot.slane %v1670, 6
        %v2499 = vsel %vm1722, %v2497, %v2498
        %v2500 = vrot.slane %v2489, 4
        %v2501 = vrot.slane %v1671, 6
        %v2502 = vsel %vm1722, %v2500, %v2501
        %v2503 = vrot.slane %v1672, 6
        %v2504 = vrot.slane %v2503, 4
        %v2505 = vrot.slane %v1676, 6
        %v2506 = vsel %vm1722, %v2504, %v2505
        %v2507 = vrot.slane %v1673, 6
        %v2508 = vrot.slane %v2507, 4
        %v2509 = vrot.slane %v1677, 6
        %v2510 = vsel %vm1722, %v2508, %v2509
        %v2511 = vrot.slane %v1674, 6
        %v2512 = vrot.slane %v2511, 4
        %v2513 = vrot.slane %v1678, 6
        %v2514 = vsel %vm1722, %v2512, %v2513
        %v2515 = vrot.slane %v1675, 6
        %v2516 = vrot.slane %v2515, 4
        %v2517 = vrot.slane %v1679, 6
        %v2518 = vsel %vm1722, %v2516, %v2517
        %v2519 = vrot.slane %v2505, 4
        %v2520 = vrot.slane %v1680, 6
        %v2521 = vsel %vm1722, %v2519, %v2520
        %v2522 = vrot.slane %v2509, 4
        %v2523 = vrot.slane %v1681, 6
        %v2524 = vsel %vm1722, %v2522, %v2523
        %v2525 = vrot.slane %v2513, 4
        %v2526 = vrot.slane %v1682, 6
        %v2527 = vsel %vm1722, %v2525, %v2526
        %v2528 = vrot.slane %v2517, 4
        %v2529 = vrot.slane %v1683, 6
        %v2530 = vsel %vm1722, %v2528, %v2529
        %v2531 = vrot.slane %v2520, 4
        %v2532 = vrot.slane %v1684, 6
        %v2533 = vsel %vm1722, %v2531, %v2532
        %v2534 = vrot.slane %v2523, 4
        %v2535 = vrot.slane %v1685, 6
        %v2536 = vsel %vm1722, %v2534, %v2535
        %v2537 = vrot.slane %v2526, 4
        %v2538 = vrot.slane %v1686, 6
        %v2539 = vsel %vm1722, %v2537, %v2538
        %v2540 = vrot.slane %v2529, 4
        %v2541 = vrot.slane %v1687, 6
        %v2542 = vsel %vm1722, %v2540, %v2541
        %v2543 = vrot.slane %v1688, 6
        %v2544 = vrot.slane %v2543, 4
        %v2545 = vrot.slane %v1692, 6
        %v2546 = vsel %vm1722, %v2544, %v2545
        %v2547 = vrot.slane %v1689, 6
        %v2548 = vrot.slane %v2547, 4
        %v2549 = vrot.slane %v1693, 6
        %v2550 = vsel %vm1722, %v2548, %v2549
        %v2551 = vrot.slane %v1690, 6
        %v2552 = vrot.slane %v2551, 4
        %v2553 = vrot.slane %v1694, 6
        %v2554 = vsel %vm1722, %v2552, %v2553
        %v2555 = vrot.slane %v1691, 6
        %v2556 = vrot.slane %v2555, 4
        %v2557 = vrot.slane %v1695, 6
        %v2558 = vsel %vm1722, %v2556, %v2557
        %v2559 = vrot.slane %v2545, 4
        %v2560 = vrot.slane %v1696, 6
        %v2561 = vsel %vm1722, %v2559, %v2560
        %v2562 = vrot.slane %v2549, 4
        %v2563 = vrot.slane %v1697, 6
        %v2564 = vsel %vm1722, %v2562, %v2563
        %v2565 = vrot.slane %v2553, 4
        %v2566 = vrot.slane %v1698, 6
        %v2567 = vsel %vm1722, %v2565, %v2566
        %v2568 = vrot.slane %v2557, 4
        %v2569 = vrot.slane %v1699, 6
        %v2570 = vsel %vm1722, %v2568, %v2569
        %v2571 = vrot.slane %v2560, 4
        %v2572 = vrot.slane %v1700, 6
        %v2573 = vsel %vm1722, %v2571, %v2572
        %v2574 = vrot.slane %v2563, 4
        %v2575 = vrot.slane %v1701, 6
        %v2576 = vsel %vm1722, %v2574, %v2575
        %v2577 = vrot.slane %v2566, 4
        %v2578 = vrot.slane %v1702, 6
        %v2579 = vsel %vm1722, %v2577, %v2578
        %v2580 = vrot.slane %v2569, 4
        %v2581 = vrot.slane %v1703, 6
        %v2582 = vsel %vm1722, %v2580, %v2581
        %v2583 = vrot.slane %v1704, 6
        %v2584 = vrot.slane %v2583, 4
        %v2585 = vrot.slane %v1708, 6
        %v2586 = vsel %vm1722, %v2584, %v2585
        %v2587 = vrot.slane %v1705, 6
        %v2588 = vrot.slane %v2587, 4
        %v2589 = vrot.slane %v1709, 6
        %v2590 = vsel %vm1722, %v2588, %v2589
        %v2591 = vrot.slane %v1706, 6
        %v2592 = vrot.slane %v2591, 4
        %v2593 = vrot.slane %v1710, 6
        %v2594 = vsel %vm1722, %v2592, %v2593
        %v2595 = vrot.slane %v1707, 6
        %v2596 = vrot.slane %v2595, 4
        %v2597 = vrot.slane %v1711, 6
        %v2598 = vsel %vm1722, %v2596, %v2597
        %v2599 = vrot.slane %v2585, 4
        %v2600 = vrot.slane %v1712, 6
        %v2601 = vsel %vm1722, %v2599, %v2600
        %v2602 = vrot.slane %v2589, 4
        %v2603 = vrot.slane %v1713, 6
        %v2604 = vsel %vm1722, %v2602, %v2603
        %v2605 = vrot.slane %v2593, 4
        %v2606 = vrot.slane %v1714, 6
        %v2607 = vsel %vm1722, %v2605, %v2606
        %v2608 = vrot.slane %v2597, 4
        %v2609 = vrot.slane %v1715, 6
        %v2610 = vsel %vm1722, %v2608, %v2609
        %v2611 = vrot.slane %v2600, 4
        %v2612 = vrot.slane %v1716, 6
        %v2613 = vsel %vm1722, %v2611, %v2612
        %v2614 = vrot.slane %v2603, 4
        %v2615 = vrot.slane %v1717, 6
        %v2616 = vsel %vm1722, %v2614, %v2615
        %v2617 = vrot.slane %v2606, 4
        %v2618 = vrot.slane %v1718, 6
        %v2619 = vsel %vm1722, %v2617, %v2618
        %v2620 = vrot.slane %v2609, 4
        %v2621 = vrot.slane %v1719, 6
        %v2622 = vsel %vm1722, %v2620, %v2621
        %v2623 = vld [vmem:[#allocation5] sm:$0xf]
        %v2624 = vld [vmem:[#allocation5 + $0x4] sm:$0xf]
        %v2625 = vld [vmem:[#allocation5 + $0x8] sm:$0xf]
        %v2626 = vld [vmem:[#allocation5 + $0xc] sm:$0xf]
        %v2627 = vld [vmem:[#allocation5 + $0x10] sm:$0xf]
        %v2628 = vld [vmem:[#allocation5 + $0x14] sm:$0xf]
        %v2629 = vld [vmem:[#allocation5 + $0x18] sm:$0xf]
        %v2630 = vld [vmem:[#allocation5 + $0x1c] sm:$0xf]
        %v2631 = vld [vmem:[#allocation5 + $0x20] sm:$0xf]
        %v2632 = vld [vmem:[#allocation5 + $0x24] sm:$0xf]
        %v2633 = vld [vmem:[#allocation5 + $0x28] sm:$0xf]
        %v2634 = vld [vmem:[#allocation5 + $0x2c] sm:$0xf]
        %v2635 = vld [vmem:[#allocation5 + $0x30] sm:$0xf]
        %v2636 = vld [vmem:[#allocation5 + $0x34] sm:$0xf]
        %v2637 = vld [vmem:[#allocation5 + $0x38] sm:$0xf]
        %v2638 = vld [vmem:[#allocation5 + $0x3c] sm:$0xf]
        %v2639 = vld [vmem:[#allocation5 + $0x40] sm:$0xf]
        %v2640 = vld [vmem:[#allocation5 + $0x44] sm:$0xf]
        %v2641 = vld [vmem:[#allocation5 + $0x48] sm:$0xf]
        %v2642 = vld [vmem:[#allocation5 + $0x4c] sm:$0xf]
        %v2643 = vld [vmem:[#allocation5 + $0x50] sm:$0xf]
        %v2644 = vld [vmem:[#allocation5 + $0x54] sm:$0xf]
        %v2645 = vld [vmem:[#allocation5 + $0x58] sm:$0xf]
        %v2646 = vld [vmem:[#allocation5 + $0x5c] sm:$0xf]
        %v2647 = vld [vmem:[#allocation5 + $0x60] sm:$0xf]
        %v2648 = vld [vmem:[#allocation5 + $0x64] sm:$0xf]
        %v2649 = vld [vmem:[#allocation5 + $0x68] sm:$0xf]
        %v2650 = vld [vmem:[#allocation5 + $0x6c] sm:$0xf]
        %v2651 = vld [vmem:[#allocation5 + $0x70] sm:$0xf]
        %v2652 = vld [vmem:[#allocation5 + $0x74] sm:$0xf]
        %v2653 = vld [vmem:[#allocation5 + $0x78] sm:$0xf]
        %v2654 = vld [vmem:[#allocation5 + $0x7c] sm:$0xf]
        %v2655 = vld [vmem:[#allocation5 + $0x80] sm:$0xf]
        %v2656 = vld [vmem:[#allocation5 + $0x84] sm:$0xf]
        %v2657 = vld [vmem:[#allocation5 + $0x88] sm:$0xf]
        %v2658 = vld [vmem:[#allocation5 + $0x8c] sm:$0xf]
        %v2659 = vld [vmem:[#allocation5 + $0x90] sm:$0xf]
        %v2660 = vld [vmem:[#allocation5 + $0x94] sm:$0xf]
        %v2661 = vld [vmem:[#allocation5 + $0x98] sm:$0xf]
        %v2662 = vld [vmem:[#allocation5 + $0x9c] sm:$0xf]
        %v2663 = vld [vmem:[#allocation5 + $0xa0] sm:$0xf]
        %v2664 = vld [vmem:[#allocation5 + $0xa4] sm:$0xf]
        %v2665 = vld [vmem:[#allocation5 + $0xa8] sm:$0xf]
        %v2666 = vld [vmem:[#allocation5 + $0xac] sm:$0xf]
        %v2667 = vld [vmem:[#allocation5 + $0xb0] sm:$0xf]
        %v2668 = vld [vmem:[#allocation5 + $0xb4] sm:$0xf]
        %v2669 = vld [vmem:[#allocation5 + $0xb8] sm:$0xf]
        %v2670 = vld [vmem:[#allocation5 + $0xbc] sm:$0xf]
        %v2671 = vld [vmem:[#allocation5 + $0xc0] sm:$0xf]
        %v2672 = vld [vmem:[#allocation5 + $0xc4] sm:$0xf]
        %v2673 = vld [vmem:[#allocation5 + $0xc8] sm:$0xf]
        %v2674 = vld [vmem:[#allocation5 + $0xcc] sm:$0xf]
        %v2675 = vld [vmem:[#allocation5 + $0xd0] sm:$0xf]
        %v2676 = vld [vmem:[#allocation5 + $0xd4] sm:$0xf]
        %v2677 = vld [vmem:[#allocation5 + $0xd8] sm:$0xf]
        %v2678 = vld [vmem:[#allocation5 + $0xdc] sm:$0xf]
        %v2679 = vld [vmem:[#allocation5 + $0xe0] sm:$0xf]
        %v2680 = vld [vmem:[#allocation5 + $0xe4] sm:$0xf]
        %v2681 = vld [vmem:[#allocation5 + $0xe8] sm:$0xf]
        %v2682 = vld [vmem:[#allocation5 + $0xec] sm:$0xf]
        %v2683 = vld [vmem:[#allocation5 + $0xf0] sm:$0xf]
        %v2684 = vld [vmem:[#allocation5 + $0xf4] sm:$0xf]
        %v2685 = vld [vmem:[#allocation5 + $0xf8] sm:$0xf]
        %v2686 = vld [vmem:[#allocation5 + $0xfc] sm:$0xf]
        %v2687 = vld [vmem:[#allocation5 + $0x100] sm:$0xf]
        %v2688 = vld [vmem:[#allocation5 + $0x104] sm:$0xf]
        %v2689 = vld [vmem:[#allocation5 + $0x108] sm:$0xf]
        %v2690 = vld [vmem:[#allocation5 + $0x10c] sm:$0xf]
        %v2691 = vld [vmem:[#allocation5 + $0x110] sm:$0xf]
        %v2692 = vld [vmem:[#allocation5 + $0x114] sm:$0xf]
        %v2693 = vld [vmem:[#allocation5 + $0x118] sm:$0xf]
        %v2694 = vld [vmem:[#allocation5 + $0x11c] sm:$0xf]
        %v2695 = vld [vmem:[#allocation5 + $0x120] sm:$0xf]
        %v2696 = vld [vmem:[#allocation5 + $0x124] sm:$0xf]
        %v2697 = vld [vmem:[#allocation5 + $0x128] sm:$0xf]
        %v2698 = vld [vmem:[#allocation5 + $0x12c] sm:$0xf]
        %v2699 = vld [vmem:[#allocation5 + $0x130] sm:$0xf]
        %v2700 = vld [vmem:[#allocation5 + $0x134] sm:$0xf]
        %v2701 = vld [vmem:[#allocation5 + $0x138] sm:$0xf]
        %v2702 = vld [vmem:[#allocation5 + $0x13c] sm:$0xf]
        %v2703 = vld [vmem:[#allocation5 + $0x140] sm:$0xf]
        %v2704 = vld [vmem:[#allocation5 + $0x144] sm:$0xf]
        %v2705 = vld [vmem:[#allocation5 + $0x148] sm:$0xf]
        %v2706 = vld [vmem:[#allocation5 + $0x14c] sm:$0xf]
        %v2707 = vld [vmem:[#allocation5 + $0x150] sm:$0xf]
        %v2708 = vld [vmem:[#allocation5 + $0x154] sm:$0xf]
        %v2709 = vld [vmem:[#allocation5 + $0x158] sm:$0xf]
        %v2710 = vld [vmem:[#allocation5 + $0x15c] sm:$0xf]
        %v2711 = vld [vmem:[#allocation5 + $0x160] sm:$0xf]
        %v2712 = vld [vmem:[#allocation5 + $0x164] sm:$0xf]
        %v2713 = vld [vmem:[#allocation5 + $0x168] sm:$0xf]
        %v2714 = vld [vmem:[#allocation5 + $0x16c] sm:$0xf]
        %v2715 = vld [vmem:[#allocation5 + $0x170] sm:$0xf]
        %v2716 = vld [vmem:[#allocation5 + $0x174] sm:$0xf]
        %v2717 = vld [vmem:[#allocation5 + $0x178] sm:$0xf]
        %v2718 = vld [vmem:[#allocation5 + $0x17c] sm:$0xf]
        %v2719 = vld [vmem:[#allocation5 + $0x180] sm:$0xf]
        %v2720 = vld [vmem:[#allocation5 + $0x184] sm:$0xf]
        %v2721 = vld [vmem:[#allocation5 + $0x188] sm:$0xf]
        %v2722 = vld [vmem:[#allocation5 + $0x18c] sm:$0xf]
        %v2723 = vld [vmem:[#allocation5 + $0x190] sm:$0xf]
        %v2724 = vld [vmem:[#allocation5 + $0x194] sm:$0xf]
        %v2725 = vld [vmem:[#allocation5 + $0x198] sm:$0xf]
        %v2726 = vld [vmem:[#allocation5 + $0x19c] sm:$0xf]
        %v2727 = vld [vmem:[#allocation5 + $0x1a0] sm:$0xf]
        %v2728 = vld [vmem:[#allocation5 + $0x1a4] sm:$0xf]
        %v2729 = vld [vmem:[#allocation5 + $0x1a8] sm:$0xf]
        %v2730 = vld [vmem:[#allocation5 + $0x1ac] sm:$0xf]
        %v2731 = vld [vmem:[#allocation5 + $0x1b0] sm:$0xf]
        %v2732 = vld [vmem:[#allocation5 + $0x1b4] sm:$0xf]
        %v2733 = vld [vmem:[#allocation5 + $0x1b8] sm:$0xf]
        %v2734 = vld [vmem:[#allocation5 + $0x1bc] sm:$0xf]
        %v2735 = vld [vmem:[#allocation5 + $0x1c0] sm:$0xf]
        %v2736 = vld [vmem:[#allocation5 + $0x1c4] sm:$0xf]
        %v2737 = vld [vmem:[#allocation5 + $0x1c8] sm:$0xf]
        %v2738 = vld [vmem:[#allocation5 + $0x1cc] sm:$0xf]
        %v2739 = vld [vmem:[#allocation5 + $0x1d0] sm:$0xf]
        %v2740 = vld [vmem:[#allocation5 + $0x1d4] sm:$0xf]
        %v2741 = vld [vmem:[#allocation5 + $0x1d8] sm:$0xf]
        %v2742 = vld [vmem:[#allocation5 + $0x1dc] sm:$0xf]
        %v2743 = vld [vmem:[#allocation5 + $0x1e0] sm:$0xf]
        %v2744 = vld [vmem:[#allocation5 + $0x1e4] sm:$0xf]
        %v2745 = vld [vmem:[#allocation5 + $0x1e8] sm:$0xf]
        %v2746 = vld [vmem:[#allocation5 + $0x1ec] sm:$0xf]
        %v2747 = vld [vmem:[#allocation5 + $0x1f0] sm:$0xf]
        %v2748 = vld [vmem:[#allocation5 + $0x1f4] sm:$0xf]
        %v2749 = vld [vmem:[#allocation5 + $0x1f8] sm:$0xf]
        %v2750 = vld [vmem:[#allocation5 + $0x1fc] sm:$0xf]
        %v2751 = vld [vmem:[#allocation5 + $0x200] sm:$0xf]
        %v2752 = vld [vmem:[#allocation5 + $0x204] sm:$0xf]
        %v2753 = vld [vmem:[#allocation5 + $0x208] sm:$0xf]
        %v2754 = vld [vmem:[#allocation5 + $0x20c] sm:$0xf]
        %v2755 = vld [vmem:[#allocation5 + $0x210] sm:$0xf]
        %v2756 = vld [vmem:[#allocation5 + $0x214] sm:$0xf]
        %v2757 = vld [vmem:[#allocation5 + $0x218] sm:$0xf]
        %v2758 = vld [vmem:[#allocation5 + $0x21c] sm:$0xf]
        %v2759 = vld [vmem:[#allocation5 + $0x220] sm:$0xf]
        %v2760 = vld [vmem:[#allocation5 + $0x224] sm:$0xf]
        %v2761 = vld [vmem:[#allocation5 + $0x228] sm:$0xf]
        %v2762 = vld [vmem:[#allocation5 + $0x22c] sm:$0xf]
        %v2763 = vld [vmem:[#allocation5 + $0x230] sm:$0xf]
        %v2764 = vld [vmem:[#allocation5 + $0x234] sm:$0xf]
        %v2765 = vld [vmem:[#allocation5 + $0x238] sm:$0xf]
        %v2766 = vld [vmem:[#allocation5 + $0x23c] sm:$0xf]
        %v2767 = vld [vmem:[#allocation7] sm:$0x1]
        %v2769 = vlaneseq
        %v2770 = vshrl.u32 %v2769, 7
        %v2771 = vsub.s32 0, %v2770
        %v2772 = vrot.slane %v2767, %v2771
        %v2774 = vunpack.c.l.b16 %v1726
        %v2775 = vunpack.c.h.b16 %v1726
        %v2776 = vunpack.c.l.b16 %v1730
        %v2777 = vunpack.c.h.b16 %v1730
        %v2778 = vunpack.c.l.b16 %v1734
        %v2779 = vunpack.c.h.b16 %v1734
        %v2780 = vunpack.c.l.b16 %v1738
        %v2781 = vunpack.c.h.b16 %v1738
        %v2782 = vunpack.c.l.b16 %v1742
        %v2783 = vunpack.c.l.b16 %v1745
        %v2784 = vunpack.c.h.b16 %v1745
        %v2785 = vunpack.c.l.b16 %v1748
        %v2786 = vunpack.c.h.b16 %v1748
        %v2787 = vunpack.c.l.b16 %v1751
        %v2788 = vunpack.c.h.b16 %v1751
        %v2789 = vunpack.c.l.b16 %v1754
        %v2790 = vunpack.c.h.b16 %v1754
        %v2791 = vunpack.c.l.b16 %v1757
        %v2792 = vunpack.c.l.b16 %v1760
        %v2793 = vunpack.c.h.b16 %v1760
        %v2794 = vunpack.c.l.b16 %v1763
        %v2795 = vunpack.c.h.b16 %v1763
        %v2796 = vunpack.c.l.b16 %v1766
        %v2797 = vunpack.c.h.b16 %v1766
        %v2798 = vunpack.c.l.b16 %v1769
        %v2799 = vunpack.c.h.b16 %v1769
        %v2800 = vunpack.c.l.b16 %v1772
        %v2801 = vunpack.c.l.b16 %v1776
        %v2802 = vunpack.c.h.b16 %v1776
        %v2803 = vunpack.c.l.b16 %v1780
        %v2804 = vunpack.c.h.b16 %v1780
        %v2805 = vunpack.c.l.b16 %v1784
        %v2806 = vunpack.c.h.b16 %v1784
        %v2807 = vunpack.c.l.b16 %v1788
        %v2808 = vunpack.c.h.b16 %v1788
        %v2809 = vunpack.c.l.b16 %v1792
        %v2810 = vunpack.c.l.b16 %v1795
        %v2811 = vunpack.c.h.b16 %v1795
        %v2812 = vunpack.c.l.b16 %v1798
        %v2813 = vunpack.c.h.b16 %v1798
        %v2814 = vunpack.c.l.b16 %v1801
        %v2815 = vunpack.c.h.b16 %v1801
        %v2816 = vunpack.c.l.b16 %v1804
        %v2817 = vunpack.c.h.b16 %v1804
        %v2818 = vunpack.c.l.b16 %v1807
        %v2819 = vunpack.c.l.b16 %v1810
        %v2820 = vunpack.c.h.b16 %v1810
        %v2821 = vunpack.c.l.b16 %v1813
        %v2822 = vunpack.c.h.b16 %v1813
        %v2823 = vunpack.c.l.b16 %v1816
        %v2824 = vunpack.c.h.b16 %v1816
        %v2825 = vunpack.c.l.b16 %v1819
        %v2826 = vunpack.c.h.b16 %v1819
        %v2827 = vunpack.c.l.b16 %v1822
        %v2828 = vunpack.c.l.b16 %v1826
        %v2829 = vunpack.c.h.b16 %v1826
        %v2830 = vunpack.c.l.b16 %v1830
        %v2831 = vunpack.c.h.b16 %v1830
        %v2832 = vunpack.c.l.b16 %v1834
        %v2833 = vunpack.c.h.b16 %v1834
        %v2834 = vunpack.c.l.b16 %v1838
        %v2835 = vunpack.c.l.b16 %v1841
        %v2836 = vunpack.c.h.b16 %v1841
        %v2837 = vunpack.c.l.b16 %v1844
        %v2838 = vunpack.c.h.b16 %v1844
        %v2839 = vunpack.c.l.b16 %v1847
        %v2840 = vunpack.c.h.b16 %v1847
        %v2841 = vunpack.c.l.b16 %v1850
        %v2842 = vunpack.c.l.b16 %v1853
        %v2843 = vunpack.c.h.b16 %v1853
        %v2844 = vunpack.c.l.b16 %v1856
        %v2845 = vunpack.c.h.b16 %v1856
        %v2846 = vunpack.c.l.b16 %v1859
        %v2847 = vunpack.c.h.b16 %v1859
        %v2848 = vunpack.c.l.b16 %v1862
        %v2849 = vunpack.c.l.b16 %v1866
        %v2850 = vunpack.c.h.b16 %v1866
        %v2851 = vunpack.c.l.b16 %v1870
        %v2852 = vunpack.c.h.b16 %v1870
        %v2853 = vunpack.c.l.b16 %v1874
        %v2854 = vunpack.c.h.b16 %v1874
        %v2855 = vunpack.c.l.b16 %v1878
        %v2856 = vunpack.c.l.b16 %v1881
        %v2857 = vunpack.c.h.b16 %v1881
        %v2858 = vunpack.c.l.b16 %v1884
        %v2859 = vunpack.c.h.b16 %v1884
        %v2860 = vunpack.c.l.b16 %v1887
        %v2861 = vunpack.c.h.b16 %v1887
        %v2862 = vunpack.c.l.b16 %v1890
        %v2863 = vunpack.c.l.b16 %v1893
        %v2864 = vunpack.c.h.b16 %v1893
        %v2865 = vunpack.c.l.b16 %v1896
        %v2866 = vunpack.c.h.b16 %v1896
        %v2867 = vunpack.c.l.b16 %v1899
        %v2868 = vunpack.c.h.b16 %v1899
        %v2869 = vunpack.c.l.b16 %v1902
        %v2870 = vunpack.c.l.b16 %v1906
        %v2871 = vunpack.c.h.b16 %v1906
        %v2872 = vunpack.c.l.b16 %v1910
        %v2873 = vunpack.c.h.b16 %v1910
        %v2874 = vunpack.c.l.b16 %v1914
        %v2875 = vunpack.c.h.b16 %v1914
        %v2876 = vunpack.c.l.b16 %v1918
        %v2877 = vunpack.c.l.b16 %v1921
        %v2878 = vunpack.c.h.b16 %v1921
        %v2879 = vunpack.c.l.b16 %v1924
        %v2880 = vunpack.c.h.b16 %v1924
        %v2881 = vunpack.c.l.b16 %v1927
        %v2882 = vunpack.c.h.b16 %v1927
        %v2883 = vunpack.c.l.b16 %v1930
        %v2884 = vunpack.c.l.b16 %v1933
        %v2885 = vunpack.c.h.b16 %v1933
        %v2886 = vunpack.c.l.b16 %v1936
        %v2887 = vunpack.c.h.b16 %v1936
        %v2888 = vunpack.c.l.b16 %v1939
        %v2889 = vunpack.c.h.b16 %v1939
        %v2890 = vunpack.c.l.b16 %v1942
        %v2891 = vunpack.c.l.b16 %v1946
        %v2892 = vunpack.c.h.b16 %v1946
        %v2893 = vunpack.c.l.b16 %v1950
        %v2894 = vunpack.c.h.b16 %v1950
        %v2895 = vunpack.c.l.b16 %v1954
        %v2896 = vunpack.c.h.b16 %v1954
        %v2897 = vunpack.c.l.b16 %v1958
        %v2898 = vunpack.c.l.b16 %v1961
        %v2899 = vunpack.c.h.b16 %v1961
        %v2900 = vunpack.c.l.b16 %v1964
        %v2901 = vunpack.c.h.b16 %v1964
        %v2902 = vunpack.c.l.b16 %v1967
        %v2903 = vunpack.c.h.b16 %v1967
        %v2904 = vunpack.c.l.b16 %v1970
        %v2905 = vunpack.c.l.b16 %v1973
        %v2906 = vunpack.c.h.b16 %v1973
        %v2907 = vunpack.c.l.b16 %v1976
        %v2908 = vunpack.c.h.b16 %v1976
        %v2909 = vunpack.c.l.b16 %v1979
        %v2910 = vunpack.c.h.b16 %v1979
        %v2911 = vunpack.c.l.b16 %v1982
        %v2912 = vunpack.c.l.b16 %v1986
        %v2913 = vunpack.c.h.b16 %v1986
        %v2914 = vunpack.c.l.b16 %v1990
        %v2915 = vunpack.c.h.b16 %v1990
        %v2916 = vunpack.c.l.b16 %v1994
        %v2917 = vunpack.c.h.b16 %v1994
        %v2918 = vunpack.c.l.b16 %v1998
        %v2919 = vunpack.c.l.b16 %v2001
        %v2920 = vunpack.c.h.b16 %v2001
        %v2921 = vunpack.c.l.b16 %v2004
        %v2922 = vunpack.c.h.b16 %v2004
        %v2923 = vunpack.c.l.b16 %v2007
        %v2924 = vunpack.c.h.b16 %v2007
        %v2925 = vunpack.c.l.b16 %v2010
        %v2926 = vunpack.c.l.b16 %v2013
        %v2927 = vunpack.c.h.b16 %v2013
        %v2928 = vunpack.c.l.b16 %v2016
        %v2929 = vunpack.c.h.b16 %v2016
        %v2930 = vunpack.c.l.b16 %v2019
        %v2931 = vunpack.c.h.b16 %v2019
        %v2932 = vunpack.c.l.b16 %v2022
        %v2933 = vunpack.c.l.b16 %v2026
        %v2934 = vunpack.c.h.b16 %v2026
        %v2935 = vunpack.c.l.b16 %v2030
        %v2936 = vunpack.c.h.b16 %v2030
        %v2937 = vunpack.c.l.b16 %v2034
        %v2938 = vunpack.c.h.b16 %v2034
        %v2939 = vunpack.c.l.b16 %v2038
        %v2940 = vunpack.c.l.b16 %v2041
        %v2941 = vunpack.c.h.b16 %v2041
        %v2942 = vunpack.c.l.b16 %v2044
        %v2943 = vunpack.c.h.b16 %v2044
        %v2944 = vunpack.c.l.b16 %v2047
        %v2945 = vunpack.c.h.b16 %v2047
        %v2946 = vunpack.c.l.b16 %v2050
        %v2947 = vunpack.c.l.b16 %v2053
        %v2948 = vunpack.c.h.b16 %v2053
        %v2949 = vunpack.c.l.b16 %v2056
        %v2950 = vunpack.c.h.b16 %v2056
        %v2951 = vunpack.c.l.b16 %v2059
        %v2952 = vunpack.c.h.b16 %v2059
        %v2953 = vunpack.c.l.b16 %v2062
        %v2954 = vunpack.c.l.b16 %v2066
        %v2955 = vunpack.c.h.b16 %v2066
        %v2956 = vunpack.c.l.b16 %v2070
        %v2957 = vunpack.c.h.b16 %v2070
        %v2958 = vunpack.c.l.b16 %v2074
        %v2959 = vunpack.c.h.b16 %v2074
        %v2960 = vunpack.c.l.b16 %v2078
        %v2961 = vunpack.c.l.b16 %v2081
        %v2962 = vunpack.c.h.b16 %v2081
        %v2963 = vunpack.c.l.b16 %v2084
        %v2964 = vunpack.c.h.b16 %v2084
        %v2965 = vunpack.c.l.b16 %v2087
        %v2966 = vunpack.c.h.b16 %v2087
        %v2967 = vunpack.c.l.b16 %v2090
        %v2968 = vunpack.c.l.b16 %v2093
        %v2969 = vunpack.c.h.b16 %v2093
        %v2970 = vunpack.c.l.b16 %v2096
        %v2971 = vunpack.c.h.b16 %v2096
        %v2972 = vunpack.c.l.b16 %v2099
        %v2973 = vunpack.c.h.b16 %v2099
        %v2974 = vunpack.c.l.b16 %v2102
        %v2975 = vunpack.c.l.b16 %v2106
        %v2976 = vunpack.c.h.b16 %v2106
        %v2977 = vunpack.c.l.b16 %v2110
        %v2978 = vunpack.c.h.b16 %v2110
        %v2979 = vunpack.c.l.b16 %v2114
        %v2980 = vunpack.c.h.b16 %v2114
        %v2981 = vunpack.c.l.b16 %v2118
        %v2982 = vunpack.c.l.b16 %v2121
        %v2983 = vunpack.c.h.b16 %v2121
        %v2984 = vunpack.c.l.b16 %v2124
        %v2985 = vunpack.c.h.b16 %v2124
        %v2986 = vunpack.c.l.b16 %v2127
        %v2987 = vunpack.c.h.b16 %v2127
        %v2988 = vunpack.c.l.b16 %v2130
        %v2989 = vunpack.c.l.b16 %v2133
        %v2990 = vunpack.c.h.b16 %v2133
        %v2991 = vunpack.c.l.b16 %v2136
        %v2992 = vunpack.c.h.b16 %v2136
        %v2993 = vunpack.c.l.b16 %v2139
        %v2994 = vunpack.c.h.b16 %v2139
        %v2995 = vunpack.c.l.b16 %v2142
        %v2996 = vunpack.c.l.b16 %v2146
        %v2997 = vunpack.c.h.b16 %v2146
        %v2998 = vunpack.c.l.b16 %v2150
        %v2999 = vunpack.c.h.b16 %v2150
        %v3000 = vunpack.c.l.b16 %v2154
        %v3001 = vunpack.c.h.b16 %v2154
        %v3002 = vunpack.c.l.b16 %v2158
        %v3003 = vunpack.c.l.b16 %v2161
        %v3004 = vunpack.c.h.b16 %v2161
        %v3005 = vunpack.c.l.b16 %v2164
        %v3006 = vunpack.c.h.b16 %v2164
        %v3007 = vunpack.c.l.b16 %v2167
        %v3008 = vunpack.c.h.b16 %v2167
        %v3009 = vunpack.c.l.b16 %v2170
        %v3010 = vunpack.c.l.b16 %v2173
        %v3011 = vunpack.c.h.b16 %v2173
        %v3012 = vunpack.c.l.b16 %v2176
        %v3013 = vunpack.c.h.b16 %v2176
        %v3014 = vunpack.c.l.b16 %v2179
        %v3015 = vunpack.c.h.b16 %v2179
        %v3016 = vunpack.c.l.b16 %v2182
        %v3017 = vunpack.c.l.b16 %v2186
        %v3018 = vunpack.c.h.b16 %v2186
        %v3019 = vunpack.c.l.b16 %v2190
        %v3020 = vunpack.c.h.b16 %v2190
        %v3021 = vunpack.c.l.b16 %v2194
        %v3022 = vunpack.c.h.b16 %v2194
        %v3023 = vunpack.c.l.b16 %v2198
        %v3024 = vunpack.c.l.b16 %v2201
        %v3025 = vunpack.c.h.b16 %v2201
        %v3026 = vunpack.c.l.b16 %v2204
        %v3027 = vunpack.c.h.b16 %v2204
        %v3028 = vunpack.c.l.b16 %v2207
        %v3029 = vunpack.c.h.b16 %v2207
        %v3030 = vunpack.c.l.b16 %v2210
        %v3031 = vunpack.c.l.b16 %v2213
        %v3032 = vunpack.c.h.b16 %v2213
        %v3033 = vunpack.c.l.b16 %v2216
        %v3034 = vunpack.c.h.b16 %v2216
        %v3035 = vunpack.c.l.b16 %v2219
        %v3036 = vunpack.c.h.b16 %v2219
        %v3037 = vunpack.c.l.b16 %v2222
        %v3038 = vunpack.c.l.b16 %v2226
        %v3039 = vunpack.c.h.b16 %v2226
        %v3040 = vunpack.c.l.b16 %v2230
        %v3041 = vunpack.c.h.b16 %v2230
        %v3042 = vunpack.c.l.b16 %v2234
        %v3043 = vunpack.c.h.b16 %v2234
        %v3044 = vunpack.c.l.b16 %v2238
        %v3045 = vunpack.c.l.b16 %v2241
        %v3046 = vunpack.c.h.b16 %v2241
        %v3047 = vunpack.c.l.b16 %v2244
        %v3048 = vunpack.c.h.b16 %v2244
        %v3049 = vunpack.c.l.b16 %v2247
        %v3050 = vunpack.c.h.b16 %v2247
        %v3051 = vunpack.c.l.b16 %v2250
        %v3052 = vunpack.c.l.b16 %v2253
        %v3053 = vunpack.c.h.b16 %v2253
        %v3054 = vunpack.c.l.b16 %v2256
        %v3055 = vunpack.c.h.b16 %v2256
        %v3056 = vunpack.c.l.b16 %v2259
        %v3057 = vunpack.c.h.b16 %v2259
        %v3058 = vunpack.c.l.b16 %v2262
        %v3059 = vunpack.c.l.b16 %v2266
        %v3060 = vunpack.c.h.b16 %v2266
        %v3061 = vunpack.c.l.b16 %v2270
        %v3062 = vunpack.c.h.b16 %v2270
        %v3063 = vunpack.c.l.b16 %v2274
        %v3064 = vunpack.c.h.b16 %v2274
        %v3065 = vunpack.c.l.b16 %v2278
        %v3066 = vunpack.c.l.b16 %v2281
        %v3067 = vunpack.c.h.b16 %v2281
        %v3068 = vunpack.c.l.b16 %v2284
        %v3069 = vunpack.c.h.b16 %v2284
        %v3070 = vunpack.c.l.b16 %v2287
        %v3071 = vunpack.c.h.b16 %v2287
        %v3072 = vunpack.c.l.b16 %v2290
        %v3073 = vunpack.c.l.b16 %v2293
        %v3074 = vunpack.c.h.b16 %v2293
        %v3075 = vunpack.c.l.b16 %v2296
        %v3076 = vunpack.c.h.b16 %v2296
        %v3077 = vunpack.c.l.b16 %v2299
        %v3078 = vunpack.c.h.b16 %v2299
        %v3079 = vunpack.c.l.b16 %v2302
        %v3080 = vunpack.c.l.b16 %v2306
        %v3081 = vunpack.c.h.b16 %v2306
        %v3082 = vunpack.c.l.b16 %v2310
        %v3083 = vunpack.c.h.b16 %v2310
        %v3084 = vunpack.c.l.b16 %v2314
        %v3085 = vunpack.c.h.b16 %v2314
        %v3086 = vunpack.c.l.b16 %v2318
        %v3087 = vunpack.c.l.b16 %v2321
        %v3088 = vunpack.c.h.b16 %v2321
        %v3089 = vunpack.c.l.b16 %v2324
        %v3090 = vunpack.c.h.b16 %v2324
        %v3091 = vunpack.c.l.b16 %v2327
        %v3092 = vunpack.c.h.b16 %v2327
        %v3093 = vunpack.c.l.b16 %v2330
        %v3094 = vunpack.c.l.b16 %v2333
        %v3095 = vunpack.c.h.b16 %v2333
        %v3096 = vunpack.c.l.b16 %v2336
        %v3097 = vunpack.c.h.b16 %v2336
        %v3098 = vunpack.c.l.b16 %v2339
        %v3099 = vunpack.c.h.b16 %v2339
        %v3100 = vunpack.c.l.b16 %v2342
        %v3101 = vunpack.c.l.b16 %v2346
        %v3102 = vunpack.c.h.b16 %v2346
        %v3103 = vunpack.c.l.b16 %v2350
        %v3104 = vunpack.c.h.b16 %v2350
        %v3105 = vunpack.c.l.b16 %v2354
        %v3106 = vunpack.c.h.b16 %v2354
        %v3107 = vunpack.c.l.b16 %v2358
        %v3108 = vunpack.c.l.b16 %v2361
        %v3109 = vunpack.c.h.b16 %v2361
        %v3110 = vunpack.c.l.b16 %v2364
        %v3111 = vunpack.c.h.b16 %v2364
        %v3112 = vunpack.c.l.b16 %v2367
        %v3113 = vunpack.c.h.b16 %v2367
        %v3114 = vunpack.c.l.b16 %v2370
        %v3115 = vunpack.c.l.b16 %v2373
        %v3116 = vunpack.c.h.b16 %v2373
        %v3117 = vunpack.c.l.b16 %v2376
        %v3118 = vunpack.c.h.b16 %v2376
        %v3119 = vunpack.c.l.b16 %v2379
        %v3120 = vunpack.c.h.b16 %v2379
        %v3121 = vunpack.c.l.b16 %v2382
        %v3122 = vunpack.c.l.b16 %v2386
        %v3123 = vunpack.c.h.b16 %v2386
        %v3124 = vunpack.c.l.b16 %v2390
        %v3125 = vunpack.c.h.b16 %v2390
        %v3126 = vunpack.c.l.b16 %v2394
        %v3127 = vunpack.c.h.b16 %v2394
        %v3128 = vunpack.c.l.b16 %v2398
        %v3129 = vunpack.c.l.b16 %v2401
        %v3130 = vunpack.c.h.b16 %v2401
        %v3131 = vunpack.c.l.b16 %v2404
        %v3132 = vunpack.c.h.b16 %v2404
        %v3133 = vunpack.c.l.b16 %v2407
        %v3134 = vunpack.c.h.b16 %v2407
        %v3135 = vunpack.c.l.b16 %v2410
        %v3136 = vunpack.c.l.b16 %v2413
        %v3137 = vunpack.c.h.b16 %v2413
        %v3138 = vunpack.c.l.b16 %v2416
        %v3139 = vunpack.c.h.b16 %v2416
        %v3140 = vunpack.c.l.b16 %v2419
        %v3141 = vunpack.c.h.b16 %v2419
        %v3142 = vunpack.c.l.b16 %v2422
        %v3143 = vunpack.c.l.b16 %v2426
        %v3144 = vunpack.c.h.b16 %v2426
        %v3145 = vunpack.c.l.b16 %v2430
        %v3146 = vunpack.c.h.b16 %v2430
        %v3147 = vunpack.c.l.b16 %v2434
        %v3148 = vunpack.c.h.b16 %v2434
        %v3149 = vunpack.c.l.b16 %v2438
        %v3150 = vunpack.c.l.b16 %v2441
        %v3151 = vunpack.c.h.b16 %v2441
        %v3152 = vunpack.c.l.b16 %v2444
        %v3153 = vunpack.c.h.b16 %v2444
        %v3154 = vunpack.c.l.b16 %v2447
        %v3155 = vunpack.c.h.b16 %v2447
        %v3156 = vunpack.c.l.b16 %v2450
        %v3157 = vunpack.c.l.b16 %v2453
        %v3158 = vunpack.c.h.b16 %v2453
        %v3159 = vunpack.c.l.b16 %v2456
        %v3160 = vunpack.c.h.b16 %v2456
        %v3161 = vunpack.c.l.b16 %v2459
        %v3162 = vunpack.c.h.b16 %v2459
        %v3163 = vunpack.c.l.b16 %v2462
        %v3164 = vunpack.c.l.b16 %v2466
        %v3165 = vunpack.c.h.b16 %v2466
        %v3166 = vunpack.c.l.b16 %v2470
        %v3167 = vunpack.c.h.b16 %v2470
        %v3168 = vunpack.c.l.b16 %v2474
        %v3169 = vunpack.c.h.b16 %v2474
        %v3170 = vunpack.c.l.b16 %v2478
        %v3171 = vunpack.c.l.b16 %v2481
        %v3172 = vunpack.c.h.b16 %v2481
        %v3173 = vunpack.c.l.b16 %v2484
        %v3174 = vunpack.c.h.b16 %v2484
        %v3175 = vunpack.c.l.b16 %v2487
        %v3176 = vunpack.c.h.b16 %v2487
        %v3177 = vunpack.c.l.b16 %v2490
        %v3178 = vunpack.c.l.b16 %v2493
        %v3179 = vunpack.c.h.b16 %v2493
        %v3180 = vunpack.c.l.b16 %v2496
        %v3181 = vunpack.c.h.b16 %v2496
        %v3182 = vunpack.c.l.b16 %v2499
        %v3183 = vunpack.c.h.b16 %v2499
        %v3184 = vunpack.c.l.b16 %v2502
        %v3185 = vunpack.c.l.b16 %v2506
        %v3186 = vunpack.c.h.b16 %v2506
        %v3187 = vunpack.c.l.b16 %v2510
        %v3188 = vunpack.c.h.b16 %v2510
        %v3189 = vunpack.c.l.b16 %v2514
        %v3190 = vunpack.c.h.b16 %v2514
        %v3191 = vunpack.c.l.b16 %v2518
        %v3192 = vunpack.c.l.b16 %v2521
        %v3193 = vunpack.c.h.b16 %v2521
        %v3194 = vunpack.c.l.b16 %v2524
        %v3195 = vunpack.c.h.b16 %v2524
        %v3196 = vunpack.c.l.b16 %v2527
        %v3197 = vunpack.c.h.b16 %v2527
        %v3198 = vunpack.c.l.b16 %v2530
        %v3199 = vunpack.c.l.b16 %v2533
        %v3200 = vunpack.c.h.b16 %v2533
        %v3201 = vunpack.c.l.b16 %v2536
        %v3202 = vunpack.c.h.b16 %v2536
        %v3203 = vunpack.c.l.b16 %v2539
        %v3204 = vunpack.c.h.b16 %v2539
        %v3205 = vunpack.c.l.b16 %v2542
        %v3206 = vunpack.c.l.b16 %v2546
        %v3207 = vunpack.c.h.b16 %v2546
        %v3208 = vunpack.c.l.b16 %v2550
        %v3209 = vunpack.c.h.b16 %v2550
        %v3210 = vunpack.c.l.b16 %v2554
        %v3211 = vunpack.c.h.b16 %v2554
        %v3212 = vunpack.c.l.b16 %v2558
        %v3213 = vunpack.c.l.b16 %v2561
        %v3214 = vunpack.c.h.b16 %v2561
        %v3215 = vunpack.c.l.b16 %v2564
        %v3216 = vunpack.c.h.b16 %v2564
        %v3217 = vunpack.c.l.b16 %v2567
        %v3218 = vunpack.c.h.b16 %v2567
        %v3219 = vunpack.c.l.b16 %v2570
        %v3220 = vunpack.c.l.b16 %v2573
        %v3221 = vunpack.c.h.b16 %v2573
        %v3222 = vunpack.c.l.b16 %v2576
        %v3223 = vunpack.c.h.b16 %v2576
        %v3224 = vunpack.c.l.b16 %v2579
        %v3225 = vunpack.c.h.b16 %v2579
        %v3226 = vunpack.c.l.b16 %v2582
        %v3227 = vunpack.c.l.b16 %v2586
        %v3228 = vunpack.c.h.b16 %v2586
        %v3229 = vunpack.c.l.b16 %v2590
        %v3230 = vunpack.c.h.b16 %v2590
        %v3231 = vunpack.c.l.b16 %v2594
        %v3232 = vunpack.c.h.b16 %v2594
        %v3233 = vunpack.c.l.b16 %v2598
        %v3234 = vunpack.c.l.b16 %v2601
        %v3235 = vunpack.c.h.b16 %v2601
        %v3236 = vunpack.c.l.b16 %v2604
        %v3237 = vunpack.c.h.b16 %v2604
        %v3238 = vunpack.c.l.b16 %v2607
        %v3239 = vunpack.c.h.b16 %v2607
        %v3240 = vunpack.c.l.b16 %v2610
        %v3241 = vunpack.c.l.b16 %v2613
        %v3242 = vunpack.c.h.b16 %v2613
        %v3243 = vunpack.c.l.b16 %v2616
        %v3244 = vunpack.c.h.b16 %v2616
        %v3245 = vunpack.c.l.b16 %v2619
        %v3246 = vunpack.c.h.b16 %v2619
        %v3247 = vunpack.c.l.b16 %v2622
        %v3248 = vpack.c.b16 %v2783, %v2774
        %v3249 = vpack.c.b16 %v2784, %v2775
        %v3250 = vpack.c.b16 %v2785, %v2776
        %v3251 = vpack.c.b16 %v2786, %v2777
        %v3252 = vpack.c.b16 %v2787, %v2778
        %v3253 = vpack.c.b16 %v2788, %v2779
        %v3254 = vpack.c.b16 %v2789, %v2780
        %v3255 = vpack.c.b16 %v2790, %v2781
        %v3256 = vpack.c.b16 %v2791, %v2782
        %v3257 = vpack.c.b16 %v2801, %v2792
        %v3258 = vpack.c.b16 %v2802, %v2793
        %v3259 = vpack.c.b16 %v2803, %v2794
        %v3260 = vpack.c.b16 %v2804, %v2795
        %v3261 = vpack.c.b16 %v2805, %v2796
        %v3262 = vpack.c.b16 %v2806, %v2797
        %v3263 = vpack.c.b16 %v2807, %v2798
        %v3264 = vpack.c.b16 %v2808, %v2799
        %v3265 = vpack.c.b16 %v2809, %v2800
        %v3266 = vpack.c.b16 %v2819, %v2810
        %v3267 = vpack.c.b16 %v2820, %v2811
        %v3268 = vpack.c.b16 %v2821, %v2812
        %v3269 = vpack.c.b16 %v2822, %v2813
        %v3270 = vpack.c.b16 %v2823, %v2814
        %v3271 = vpack.c.b16 %v2824, %v2815
        %v3272 = vpack.c.b16 %v2825, %v2816
        %v3273 = vpack.c.b16 %v2826, %v2817
        %v3274 = vpack.c.b16 %v2827, %v2818
        %v3275 = vpack.c.b16 %v2835, %v2828
        %v3276 = vpack.c.b16 %v2836, %v2829
        %v3277 = vpack.c.b16 %v2837, %v2830
        %v3278 = vpack.c.b16 %v2838, %v2831
        %v3279 = vpack.c.b16 %v2839, %v2832
        %v3280 = vpack.c.b16 %v2840, %v2833
        %v3281 = vpack.c.b16 %v2841, %v2834
        %v3282 = vpack.c.b16 %v2849, %v2842
        %v3283 = vpack.c.b16 %v2850, %v2843
        %v3284 = vpack.c.b16 %v2851, %v2844
        %v3285 = vpack.c.b16 %v2852, %v2845
        %v3286 = vpack.c.b16 %v2853, %v2846
        %v3287 = vpack.c.b16 %v2854, %v2847
        %v3288 = vpack.c.b16 %v2855, %v2848
        %v3289 = vpack.c.b16 %v2863, %v2856
        %v3290 = vpack.c.b16 %v2864, %v2857
        %v3291 = vpack.c.b16 %v2865, %v2858
        %v3292 = vpack.c.b16 %v2866, %v2859
        %v3293 = vpack.c.b16 %v2867, %v2860
        %v3294 = vpack.c.b16 %v2868, %v2861
        %v3295 = vpack.c.b16 %v2869, %v2862
        %v3296 = vpack.c.b16 %v2877, %v2870
        %v3297 = vpack.c.b16 %v2878, %v2871
        %v3298 = vpack.c.b16 %v2879, %v2872
        %v3299 = vpack.c.b16 %v2880, %v2873
        %v3300 = vpack.c.b16 %v2881, %v2874
        %v3301 = vpack.c.b16 %v2882, %v2875
        %v3302 = vpack.c.b16 %v2883, %v2876
        %v3303 = vpack.c.b16 %v2891, %v2884
        %v3304 = vpack.c.b16 %v2892, %v2885
        %v3305 = vpack.c.b16 %v2893, %v2886
        %v3306 = vpack.c.b16 %v2894, %v2887
        %v3307 = vpack.c.b16 %v2895, %v2888
        %v3308 = vpack.c.b16 %v2896, %v2889
        %v3309 = vpack.c.b16 %v2897, %v2890
        %v3310 = vpack.c.b16 %v2905, %v2898
        %v3311 = vpack.c.b16 %v2906, %v2899
        %v3312 = vpack.c.b16 %v2907, %v2900
        %v3313 = vpack.c.b16 %v2908, %v2901
        %v3314 = vpack.c.b16 %v2909, %v2902
        %v3315 = vpack.c.b16 %v2910, %v2903
        %v3316 = vpack.c.b16 %v2911, %v2904
        %v3317 = vpack.c.b16 %v2919, %v2912
        %v3318 = vpack.c.b16 %v2920, %v2913
        %v3319 = vpack.c.b16 %v2921, %v2914
        %v3320 = vpack.c.b16 %v2922, %v2915
        %v3321 = vpack.c.b16 %v2923, %v2916
        %v3322 = vpack.c.b16 %v2924, %v2917
        %v3323 = vpack.c.b16 %v2925, %v2918
        %v3324 = vpack.c.b16 %v2933, %v2926
        %v3325 = vpack.c.b16 %v2934, %v2927
        %v3326 = vpack.c.b16 %v2935, %v2928
        %v3327 = vpack.c.b16 %v2936, %v2929
        %v3328 = vpack.c.b16 %v2937, %v2930
        %v3329 = vpack.c.b16 %v2938, %v2931
        %v3330 = vpack.c.b16 %v2939, %v2932
        %v3331 = vpack.c.b16 %v2947, %v2940
        %v3332 = vpack.c.b16 %v2948, %v2941
        %v3333 = vpack.c.b16 %v2949, %v2942
        %v3334 = vpack.c.b16 %v2950, %v2943
        %v3335 = vpack.c.b16 %v2951, %v2944
        %v3336 = vpack.c.b16 %v2952, %v2945
        %v3337 = vpack.c.b16 %v2953, %v2946
        %v3338 = vpack.c.b16 %v2961, %v2954
        %v3339 = vpack.c.b16 %v2962, %v2955
        %v3340 = vpack.c.b16 %v2963, %v2956
        %v3341 = vpack.c.b16 %v2964, %v2957
        %v3342 = vpack.c.b16 %v2965, %v2958
        %v3343 = vpack.c.b16 %v2966, %v2959
        %v3344 = vpack.c.b16 %v2967, %v2960
        %v3345 = vpack.c.b16 %v2975, %v2968
        %v3346 = vpack.c.b16 %v2976, %v2969
        %v3347 = vpack.c.b16 %v2977, %v2970
        %v3348 = vpack.c.b16 %v2978, %v2971
        %v3349 = vpack.c.b16 %v2979, %v2972
        %v3350 = vpack.c.b16 %v2980, %v2973
        %v3351 = vpack.c.b16 %v2981, %v2974
        %v3352 = vpack.c.b16 %v2989, %v2982
        %v3353 = vpack.c.b16 %v2990, %v2983
        %v3354 = vpack.c.b16 %v2991, %v2984
        %v3355 = vpack.c.b16 %v2992, %v2985
        %v3356 = vpack.c.b16 %v2993, %v2986
        %v3357 = vpack.c.b16 %v2994, %v2987
        %v3358 = vpack.c.b16 %v2995, %v2988
        %v3359 = vpack.c.b16 %v3003, %v2996
        %v3360 = vpack.c.b16 %v3004, %v2997
        %v3361 = vpack.c.b16 %v3005, %v2998
        %v3362 = vpack.c.b16 %v3006, %v2999
        %v3363 = vpack.c.b16 %v3007, %v3000
        %v3364 = vpack.c.b16 %v3008, %v3001
        %v3365 = vpack.c.b16 %v3009, %v3002
        %v3366 = vpack.c.b16 %v3017, %v3010
        %v3367 = vpack.c.b16 %v3018, %v3011
        %v3368 = vpack.c.b16 %v3019, %v3012
        %v3369 = vpack.c.b16 %v3020, %v3013
        %v3370 = vpack.c.b16 %v3021, %v3014
        %v3371 = vpack.c.b16 %v3022, %v3015
        %v3372 = vpack.c.b16 %v3023, %v3016
        %v3373 = vpack.c.b16 %v3031, %v3024
        %v3374 = vpack.c.b16 %v3032, %v3025
        %v3375 = vpack.c.b16 %v3033, %v3026
        %v3376 = vpack.c.b16 %v3034, %v3027
        %v3377 = vpack.c.b16 %v3035, %v3028
        %v3378 = vpack.c.b16 %v3036, %v3029
        %v3379 = vpack.c.b16 %v3037, %v3030
        %v3380 = vpack.c.b16 %v3045, %v3038
        %v3381 = vpack.c.b16 %v3046, %v3039
        %v3382 = vpack.c.b16 %v3047, %v3040
        %v3383 = vpack.c.b16 %v3048, %v3041
        %v3384 = vpack.c.b16 %v3049, %v3042
        %v3385 = vpack.c.b16 %v3050, %v3043
        %v3386 = vpack.c.b16 %v3051, %v3044
        %v3387 = vpack.c.b16 %v3059, %v3052
        %v3388 = vpack.c.b16 %v3060, %v3053
        %v3389 = vpack.c.b16 %v3061, %v3054
        %v3390 = vpack.c.b16 %v3062, %v3055
        %v3391 = vpack.c.b16 %v3063, %v3056
        %v3392 = vpack.c.b16 %v3064, %v3057
        %v3393 = vpack.c.b16 %v3065, %v3058
        %v3394 = vpack.c.b16 %v3073, %v3066
        %v3395 = vpack.c.b16 %v3074, %v3067
        %v3396 = vpack.c.b16 %v3075, %v3068
        %v3397 = vpack.c.b16 %v3076, %v3069
        %v3398 = vpack.c.b16 %v3077, %v3070
        %v3399 = vpack.c.b16 %v3078, %v3071
        %v3400 = vpack.c.b16 %v3079, %v3072
        %v3401 = vpack.c.b16 %v3087, %v3080
        %v3402 = vpack.c.b16 %v3088, %v3081
        %v3403 = vpack.c.b16 %v3089, %v3082
        %v3404 = vpack.c.b16 %v3090, %v3083
        %v3405 = vpack.c.b16 %v3091, %v3084
        %v3406 = vpack.c.b16 %v3092, %v3085
        %v3407 = vpack.c.b16 %v3093, %v3086
        %v3408 = vpack.c.b16 %v3101, %v3094
        %v3409 = vpack.c.b16 %v3102, %v3095
        %v3410 = vpack.c.b16 %v3103, %v3096
        %v3411 = vpack.c.b16 %v3104, %v3097
        %v3412 = vpack.c.b16 %v3105, %v3098
        %v3413 = vpack.c.b16 %v3106, %v3099
        %v3414 = vpack.c.b16 %v3107, %v3100
        %v3415 = vpack.c.b16 %v3115, %v3108
        %v3416 = vpack.c.b16 %v3116, %v3109
        %v3417 = vpack.c.b16 %v3117, %v3110
        %v3418 = vpack.c.b16 %v3118, %v3111
        %v3419 = vpack.c.b16 %v3119, %v3112
        %v3420 = vpack.c.b16 %v3120, %v3113
        %v3421 = vpack.c.b16 %v3121, %v3114
        %v3422 = vpack.c.b16 %v3129, %v3122
        %v3423 = vpack.c.b16 %v3130, %v3123
        %v3424 = vpack.c.b16 %v3131, %v3124
        %v3425 = vpack.c.b16 %v3132, %v3125
        %v3426 = vpack.c.b16 %v3133, %v3126
        %v3427 = vpack.c.b16 %v3134, %v3127
        %v3428 = vpack.c.b16 %v3135, %v3128
        %v3429 = vpack.c.b16 %v3143, %v3136
        %v3430 = vpack.c.b16 %v3144, %v3137
        %v3431 = vpack.c.b16 %v3145, %v3138
        %v3432 = vpack.c.b16 %v3146, %v3139
        %v3433 = vpack.c.b16 %v3147, %v3140
        %v3434 = vpack.c.b16 %v3148, %v3141
        %v3435 = vpack.c.b16 %v3149, %v3142
        %v3436 = vpack.c.b16 %v3157, %v3150
        %v3437 = vpack.c.b16 %v3158, %v3151
        %v3438 = vpack.c.b16 %v3159, %v3152
        %v3439 = vpack.c.b16 %v3160, %v3153
        %v3440 = vpack.c.b16 %v3161, %v3154
        %v3441 = vpack.c.b16 %v3162, %v3155
        %v3442 = vpack.c.b16 %v3163, %v3156
        %v3443 = vpack.c.b16 %v3171, %v3164
        %v3444 = vpack.c.b16 %v3172, %v3165
        %v3445 = vpack.c.b16 %v3173, %v3166
        %v3446 = vpack.c.b16 %v3174, %v3167
        %v3447 = vpack.c.b16 %v3175, %v3168
        %v3448 = vpack.c.b16 %v3176, %v3169
        %v3449 = vpack.c.b16 %v3177, %v3170
        %v3450 = vpack.c.b16 %v3185, %v3178
        %v3451 = vpack.c.b16 %v3186, %v3179
        %v3452 = vpack.c.b16 %v3187, %v3180
        %v3453 = vpack.c.b16 %v3188, %v3181
        %v3454 = vpack.c.b16 %v3189, %v3182
        %v3455 = vpack.c.b16 %v3190, %v3183
        %v3456 = vpack.c.b16 %v3191, %v3184
        %v3457 = vpack.c.b16 %v3199, %v3192
        %v3458 = vpack.c.b16 %v3200, %v3193
        %v3459 = vpack.c.b16 %v3201, %v3194
        %v3460 = vpack.c.b16 %v3202, %v3195
        %v3461 = vpack.c.b16 %v3203, %v3196
        %v3462 = vpack.c.b16 %v3204, %v3197
        %v3463 = vpack.c.b16 %v3205, %v3198
        %v3464 = vpack.c.b16 %v3213, %v3206
        %v3465 = vpack.c.b16 %v3214, %v3207
        %v3466 = vpack.c.b16 %v3215, %v3208
        %v3467 = vpack.c.b16 %v3216, %v3209
        %v3468 = vpack.c.b16 %v3217, %v3210
        %v3469 = vpack.c.b16 %v3218, %v3211
        %v3470 = vpack.c.b16 %v3219, %v3212
        %v3471 = vpack.c.b16 %v3227, %v3220
        %v3472 = vpack.c.b16 %v3228, %v3221
        %v3473 = vpack.c.b16 %v3229, %v3222
        %v3474 = vpack.c.b16 %v3230, %v3223
        %v3475 = vpack.c.b16 %v3231, %v3224
        %v3476 = vpack.c.b16 %v3232, %v3225
        %v3477 = vpack.c.b16 %v3233, %v3226
        %v3478 = vpack.c.b16 %v3241, %v3234
        %v3479 = vpack.c.b16 %v3242, %v3235
        %v3480 = vpack.c.b16 %v3243, %v3236
        %v3481 = vpack.c.b16 %v3244, %v3237
        %v3482 = vpack.c.b16 %v3245, %v3238
        %v3483 = vpack.c.b16 %v3246, %v3239
        %v3484 = vpack.c.b16 %v3247, %v3240
        %v3866 = vunpack.c.l.b16 %v2623
        %v3867 = vunpack.c.l.b16 %v2624
        %v3868 = vunpack.c.l.b16 %v2625
        %v3869 = vunpack.c.l.b16 %v2626
        %v3870 = vunpack.c.l.b16 %v2627
        %v3871 = vunpack.c.l.b16 %v2628
        %v3872 = vunpack.c.l.b16 %v2629
        %v3873 = vunpack.c.l.b16 %v2630
        %v3874 = vunpack.c.l.b16 %v2631
        %v3875 = vunpack.c.l.b16 %v2632
        %v3876 = vunpack.c.l.b16 %v2633
        %v3877 = vunpack.c.l.b16 %v2634
        %v3878 = vunpack.c.l.b16 %v2635
        %v3879 = vunpack.c.l.b16 %v2636
        %v3880 = vunpack.c.l.b16 %v2637
        %v3881 = vunpack.c.l.b16 %v2638
        %v3882 = vunpack.c.l.b16 %v2639
        %v3883 = vunpack.c.l.b16 %v2640
        %v3884 = vunpack.c.l.b16 %v2641
        %v3885 = vunpack.c.l.b16 %v2642
        %v3886 = vunpack.c.l.b16 %v2643
        %v3887 = vunpack.c.l.b16 %v2644
        %v3888 = vunpack.c.l.b16 %v2645
        %v3889 = vunpack.c.l.b16 %v2646
        %v3890 = vunpack.c.l.b16 %v2647
        %v3891 = vunpack.c.l.b16 %v2648
        %v3892 = vunpack.c.l.b16 %v2649
        %v3893 = vunpack.c.l.b16 %v2650
        %v3894 = vunpack.c.l.b16 %v2651
        %v3895 = vunpack.c.l.b16 %v2652
        %v3896 = vunpack.c.l.b16 %v2653
        %v3897 = vunpack.c.l.b16 %v2654
        %v3898 = vunpack.c.l.b16 %v2655
        %v3899 = vunpack.c.l.b16 %v2656
        %v3900 = vunpack.c.l.b16 %v2657
        %v3901 = vunpack.c.l.b16 %v2658
        %v3902 = vunpack.c.l.b16 %v2659
        %v3903 = vunpack.c.l.b16 %v2660
        %v3904 = vunpack.c.l.b16 %v2661
        %v3905 = vunpack.c.l.b16 %v2662
        %v3906 = vunpack.c.l.b16 %v2663
        %v3907 = vunpack.c.l.b16 %v2664
        %v3908 = vunpack.c.l.b16 %v2665
        %v3909 = vunpack.c.l.b16 %v2666
        %v3910 = vunpack.c.l.b16 %v2667
        %v3911 = vunpack.c.l.b16 %v2668
        %v3912 = vunpack.c.l.b16 %v2669
        %v3913 = vunpack.c.l.b16 %v2670
        %v3914 = vunpack.c.l.b16 %v2671
        %v3915 = vunpack.c.l.b16 %v2672
        %v3916 = vunpack.c.l.b16 %v2673
        %v3917 = vunpack.c.l.b16 %v2674
        %v3918 = vunpack.c.l.b16 %v2675
        %v3919 = vunpack.c.l.b16 %v2676
        %v3920 = vunpack.c.l.b16 %v2677
        %v3921 = vunpack.c.l.b16 %v2678
        %v3922 = vunpack.c.l.b16 %v2679
        %v3923 = vunpack.c.l.b16 %v2680
        %v3924 = vunpack.c.l.b16 %v2681
        %v3925 = vunpack.c.l.b16 %v2682
        %v3926 = vunpack.c.l.b16 %v2683
        %v3927 = vunpack.c.l.b16 %v2684
        %v3928 = vunpack.c.l.b16 %v2685
        %v3929 = vunpack.c.l.b16 %v2686
        %v3930 = vunpack.c.l.b16 %v2687
        %v3931 = vunpack.c.l.b16 %v2688
        %v3932 = vunpack.c.l.b16 %v2689
        %v3933 = vunpack.c.l.b16 %v2690
        %v3934 = vunpack.c.l.b16 %v2691
        %v3935 = vunpack.c.l.b16 %v2692
        %v3936 = vunpack.c.l.b16 %v2693
        %v3937 = vunpack.c.l.b16 %v2694
        %v3938 = vunpack.c.l.b16 %v2695
        %v3939 = vunpack.c.l.b16 %v2696
        %v3940 = vunpack.c.l.b16 %v2697
        %v3941 = vunpack.c.l.b16 %v2698
        %v3942 = vunpack.c.l.b16 %v2699
        %v3943 = vunpack.c.l.b16 %v2700
        %v3944 = vunpack.c.l.b16 %v2701
        %v3945 = vunpack.c.l.b16 %v2702
        %v3946 = vunpack.c.l.b16 %v2703
        %v3947 = vunpack.c.l.b16 %v2704
        %v3948 = vunpack.c.l.b16 %v2705
        %v3949 = vunpack.c.l.b16 %v2706
        %v3950 = vunpack.c.l.b16 %v2707
        %v3951 = vunpack.c.l.b16 %v2708
        %v3952 = vunpack.c.l.b16 %v2709
        %v3953 = vunpack.c.l.b16 %v2710
        %v3954 = vunpack.c.l.b16 %v2711
        %v3955 = vunpack.c.l.b16 %v2712
        %v3956 = vunpack.c.l.b16 %v2713
        %v3957 = vunpack.c.l.b16 %v2714
        %v3958 = vunpack.c.l.b16 %v2715
        %v3959 = vunpack.c.l.b16 %v2716
        %v3960 = vunpack.c.l.b16 %v2717
        %v3961 = vunpack.c.l.b16 %v2718
        %v3962 = vunpack.c.l.b16 %v2719
        %v3963 = vunpack.c.l.b16 %v2720
        %v3964 = vunpack.c.l.b16 %v2721
        %v3965 = vunpack.c.l.b16 %v2722
        %v3966 = vunpack.c.l.b16 %v2723
        %v3967 = vunpack.c.l.b16 %v2724
        %v3968 = vunpack.c.l.b16 %v2725
        %v3969 = vunpack.c.l.b16 %v2726
        %v3970 = vunpack.c.l.b16 %v2727
        %v3971 = vunpack.c.l.b16 %v2728
        %v3972 = vunpack.c.l.b16 %v2729
        %v3973 = vunpack.c.l.b16 %v2730
        %v3974 = vunpack.c.l.b16 %v2731
        %v3975 = vunpack.c.l.b16 %v2732
        %v3976 = vunpack.c.l.b16 %v2733
        %v3977 = vunpack.c.l.b16 %v2734
        %v3978 = vunpack.c.l.b16 %v2735
        %v3979 = vunpack.c.l.b16 %v2736
        %v3980 = vunpack.c.l.b16 %v2737
        %v3981 = vunpack.c.l.b16 %v2738
        %v3982 = vunpack.c.l.b16 %v2739
        %v3983 = vunpack.c.l.b16 %v2740
        %v3984 = vunpack.c.l.b16 %v2741
        %v3985 = vunpack.c.l.b16 %v2742
        %v3986 = vunpack.c.l.b16 %v2743
        %v3987 = vunpack.c.l.b16 %v2744
        %v3988 = vunpack.c.l.b16 %v2745
        %v3989 = vunpack.c.l.b16 %v2746
        %v3990 = vunpack.c.l.b16 %v2747
        %v3991 = vunpack.c.l.b16 %v2748
        %v3992 = vunpack.c.l.b16 %v2749
        %v3993 = vunpack.c.l.b16 %v2750
        %v3994 = vunpack.c.l.b16 %v2751
        %v3995 = vunpack.c.l.b16 %v2752
        %v3996 = vunpack.c.l.b16 %v2753
        %v3997 = vunpack.c.l.b16 %v2754
        %v3998 = vunpack.c.l.b16 %v2755
        %v3999 = vunpack.c.l.b16 %v2756
        %v4000 = vunpack.c.l.b16 %v2757
        %v4001 = vunpack.c.l.b16 %v2758
        %v4002 = vunpack.c.l.b16 %v2759
        %v4003 = vunpack.c.l.b16 %v2760
        %v4004 = vunpack.c.l.b16 %v2761
        %v4005 = vunpack.c.l.b16 %v2762
        %v4006 = vunpack.c.l.b16 %v2763
        %v4007 = vunpack.c.l.b16 %v2764
        %v4008 = vunpack.c.l.b16 %v2765
        %v4009 = vunpack.c.l.b16 %v2766
        %v4010 = vpack.c.b16 %v3867, %v3866
        %v4011 = vpack.c.b16 %v3869, %v3868
        %v4012 = vpack.c.b16 %v3871, %v3870
        %v4013 = vpack.c.b16 %v3873, %v3872
        %v4014 = vpack.c.b16 %v3875, %v3874
        %v4015 = vpack.c.b16 %v3877, %v3876
        %v4016 = vpack.c.b16 %v3879, %v3878
        %v4017 = vpack.c.b16 %v3881, %v3880
        %v4018 = vpack.c.b16 %v3883, %v3882
        %v4019 = vpack.c.b16 %v3885, %v3884
        %v4020 = vpack.c.b16 %v3887, %v3886
        %v4021 = vpack.c.b16 %v3889, %v3888
        %v4022 = vpack.c.b16 %v3891, %v3890
        %v4023 = vpack.c.b16 %v3893, %v3892
        %v4024 = vpack.c.b16 %v3895, %v3894
        %v4025 = vpack.c.b16 %v3897, %v3896
        %v4026 = vpack.c.b16 %v3899, %v3898
        %v4027 = vpack.c.b16 %v3901, %v3900
        %v4028 = vpack.c.b16 %v3903, %v3902
        %v4029 = vpack.c.b16 %v3905, %v3904
        %v4030 = vpack.c.b16 %v3907, %v3906
        %v4031 = vpack.c.b16 %v3909, %v3908
        %v4032 = vpack.c.b16 %v3911, %v3910
        %v4033 = vpack.c.b16 %v3913, %v3912
        %v4034 = vpack.c.b16 %v3915, %v3914
        %v4035 = vpack.c.b16 %v3917, %v3916
        %v4036 = vpack.c.b16 %v3919, %v3918
        %v4037 = vpack.c.b16 %v3921, %v3920
        %v4038 = vpack.c.b16 %v3923, %v3922
        %v4039 = vpack.c.b16 %v3925, %v3924
        %v4040 = vpack.c.b16 %v3927, %v3926
        %v4041 = vpack.c.b16 %v3929, %v3928
        %v4042 = vpack.c.b16 %v3931, %v3930
        %v4043 = vpack.c.b16 %v3933, %v3932
        %v4044 = vpack.c.b16 %v3935, %v3934
        %v4045 = vpack.c.b16 %v3937, %v3936
        %v4046 = vpack.c.b16 %v3939, %v3938
        %v4047 = vpack.c.b16 %v3941, %v3940
        %v4048 = vpack.c.b16 %v3943, %v3942
        %v4049 = vpack.c.b16 %v3945, %v3944
        %v4050 = vpack.c.b16 %v3947, %v3946
        %v4051 = vpack.c.b16 %v3949, %v3948
        %v4052 = vpack.c.b16 %v3951, %v3950
        %v4053 = vpack.c.b16 %v3953, %v3952
        %v4054 = vpack.c.b16 %v3955, %v3954
        %v4055 = vpack.c.b16 %v3957, %v3956
        %v4056 = vpack.c.b16 %v3959, %v3958
        %v4057 = vpack.c.b16 %v3961, %v3960
        %v4058 = vpack.c.b16 %v3963, %v3962
        %v4059 = vpack.c.b16 %v3965, %v3964
        %v4060 = vpack.c.b16 %v3967, %v3966
        %v4061 = vpack.c.b16 %v3969, %v3968
        %v4062 = vpack.c.b16 %v3971, %v3970
        %v4063 = vpack.c.b16 %v3973, %v3972
        %v4064 = vpack.c.b16 %v3975, %v3974
        %v4065 = vpack.c.b16 %v3977, %v3976
        %v4066 = vpack.c.b16 %v3979, %v3978
        %v4067 = vpack.c.b16 %v3981, %v3980
        %v4068 = vpack.c.b16 %v3983, %v3982
        %v4069 = vpack.c.b16 %v3985, %v3984
        %v4070 = vpack.c.b16 %v3987, %v3986
        %v4071 = vpack.c.b16 %v3989, %v3988
        %v4072 = vpack.c.b16 %v3991, %v3990
        %v4073 = vpack.c.b16 %v3993, %v3992
        %v4074 = vpack.c.b16 %v3995, %v3994
        %v4075 = vpack.c.b16 %v3997, %v3996
        %v4076 = vpack.c.b16 %v3999, %v3998
        %v4077 = vpack.c.b16 %v4001, %v4000
        %v4078 = vpack.c.b16 %v4003, %v4002
        %v4079 = vpack.c.b16 %v4005, %v4004
        %v4080 = vpack.c.b16 %v4007, %v4006
        %v4081 = vpack.c.b16 %v4009, %v4008
        %4154 = vmatprep.subr.bf16.mxu0 0
        %4155 = vmatpush1.bf16.msra.mxu0 %v4010
        %4156 = vmatprep.subr.bf16.mxu0 0
        %4157 = vmatpush1.bf16.msra.mxu0 %v4011
        %4158 = vmatprep.subr.bf16.mxu0 0
        %4159 = vmatpush1.bf16.msra.mxu0 %v4012
        %4160 = vmatprep.subr.bf16.mxu0 0
        %4161 = vmatpush1.bf16.msra.mxu0 %v4013
        %4162 = vmatprep.subr.bf16.mxu0 0
        %4163 = vmatpush1.bf16.msra.mxu0 %v4014
        %4164 = vmatprep.subr.bf16.mxu0 0
        %4165 = vmatpush1.bf16.msra.mxu0 %v4015
        %4166 = vmatprep.subr.bf16.mxu0 0
        %4167 = vmatpush1.bf16.msra.mxu0 %v4016
        %4168 = vmatprep.subr.bf16.mxu0 0
        %4169 = vmatpush1.bf16.msra.mxu0 %v4017
        %4170 = vmatprep.subr.bf16.mxu0 0
        %4171 = vmatpush1.bf16.msra.mxu0 %v4018
        %4172 = vmatprep.subr.bf16.mxu0 0
        %4173 = vmatpush1.bf16.msra.mxu0 %v4019
        %4174 = vmatprep.subr.bf16.mxu0 0
        %4175 = vmatpush1.bf16.msra.mxu0 %v4020
        %4176 = vmatprep.subr.bf16.mxu0 0
        %4177 = vmatpush1.bf16.msra.mxu0 %v4021
        %4178 = vmatprep.subr.bf16.mxu0 0
        %4179 = vmatpush1.bf16.msra.mxu0 %v4022
        %4180 = vmatprep.subr.bf16.mxu0 0
        %4181 = vmatpush1.bf16.msra.mxu0 %v4023
        %4182 = vmatprep.subr.bf16.mxu0 0
        %4183 = vmatpush1.bf16.msra.mxu0 %v4024
        %4184 = vmatprep.subr.bf16.mxu0 0
        %4185 = vmatpush1.bf16.msra.mxu0 %v4025
        %4186 = vmatprep.mubr.bf16.mxu0 %v3249
        %4187 = vmatmul.mubr.bf16.gmra.mrb[0].mxu0 %v3248
        %v4188 = vpop.f32.mrb[0].mxu0
        %v4189 = vadd.f32 %v2772, %v4188
        %v4190 = vpop.f32.mrb[0].mxu0
        %v4191 = vpop.f32.mrb[0].mxu0
        %v4192 = vadd.f32 %v2772, %v4191
        %v4193 = vpop.f32.mrb[0].mxu0
        %4194 = vmatprep.mubr.bf16.mxu0 %v3258
        %4195 = vmatmul.mubr.bf16.gmra.mrb[0].mxu0 %v3257
        %v4196 = vpop.f32.mrb[0].mxu0
        %v4197 = vadd.f32 %v2772, %v4196
        %v4198 = vpop.f32.mrb[0].mxu0
        %v4199 = vpop.f32.mrb[0].mxu0
        %v4200 = vadd.f32 %v2772, %v4199
        %v4201 = vpop.f32.mrb[0].mxu0
        %4202 = vmatprep.mubr.bf16.mxu0 %v3267
        %4203 = vmatmul.mubr.bf16.gmra.mrb[0].mxu0 %v3266
        %v4204 = vpop.f32.mrb[0].mxu0
        %v4205 = vadd.f32 %v2772, %v4204
        %v4206 = vpop.f32.mrb[0].mxu0
        %v4207 = vpop.f32.mrb[0].mxu0
        %v4208 = vadd.f32 %v2772, %v4207
        %v4209 = vpop.f32.mrb[0].mxu0
        %4210 = vmatprep.mubr.bf16.mxu0 %v3255
        %4211 = vmatmul.mubr.bf16.gmra.mrb[0].mxu0 %v3254
        %v4212 = vpop.f32.mrb[0].mxu0
        %v4213 = vadd.f32 %v2772, %v4212
        %v4214 = vpop.f32.mrb[0].mxu0
        %v4215 = vpop.f32.mrb[0].mxu0
        %v4216 = vadd.f32 %v2772, %v4215
        %v4217 = vpop.f32.mrb[0].mxu0
        %4218 = vmatprep.mubr.bf16.mxu0 %v3264
        %4219 = vmatmul.mubr.bf16.gmra.mrb[0].mxu0 %v3263
        %v4220 = vpop.f32.mrb[0].mxu0
        %v4221 = vadd.f32 %v2772, %v4220
        %v4222 = vpop.f32.mrb[0].mxu0
        %v4223 = vpop.f32.mrb[0].mxu0
        %v4224 = vadd.f32 %v2772, %v4223
        %v4225 = vpop.f32.mrb[0].mxu0
        %4226 = vmatprep.mubr.bf16.mxu0 %v3273
        %4227 = vmatmul.mubr.bf16.gmra.mrb[0].mxu0 %v3272
        %v4228 = vpop.f32.mrb[0].mxu0
        %v4229 = vadd.f32 %v2772, %v4228
        %v4230 = vpop.f32.mrb[0].mxu0
        %v4231 = vpop.f32.mrb[0].mxu0
        %v4232 = vadd.f32 %v2772, %v4231
        %v4233 = vpop.f32.mrb[0].mxu0
        %4234 = vmatprep.mubr.bf16.mxu0 %v3280
        %4235 = vmatmul.mubr.bf16.gmra.mrb[0].mxu0 %v3279
        %v4236 = vpop.f32.mrb[0].mxu0
        %v4237 = vadd.f32 %v2772, %v4236
        %v4238 = vpop.f32.mrb[0].mxu0
        %v4239 = vpop.f32.mrb[0].mxu0
        %v4240 = vadd.f32 %v2772, %v4239
        %v4241 = vpop.f32.mrb[0].mxu0
        %4242 = vmatprep.mubr.bf16.mxu0 %v3287
        %4243 = vmatmul.mubr.bf16.gmra.mrb[0].mxu0 %v3286
        %v4244 = vpop.f32.mrb[0].mxu0
        %v4245 = vadd.f32 %v2772, %v4244
        %v4246 = vpop.f32.mrb[0].mxu0
        %v4247 = vpop.f32.mrb[0].mxu0
        %v4248 = vadd.f32 %v2772, %v4247
        %v4249 = vpop.f32.mrb[0].mxu0
        %4250 = vmatprep.mubr.bf16.mxu0 %v3294
        %4251 = vmatmul.mubr.bf16.gmra.mrb[0].mxu0 %v3293
        %v4252 = vpop.f32.mrb[0].mxu0
        %v4253 = vadd.f32 %v2772, %v4252
        %v4254 = vpop.f32.mrb[0].mxu0
        %v4255 = vpop.f32.mrb[0].mxu0
        %v4256 = vadd.f32 %v2772, %v4255
        %v4257 = vpop.f32.mrb[0].mxu0
        %4258 = vmatprep.mubr.bf16.mxu0 %v3301
        %4259 = vmatmul.mubr.bf16.gmra.mrb[0].mxu0 %v3300
        %v4260 = vpop.f32.mrb[0].mxu0
        %v4261 = vadd.f32 %v2772, %v4260
        %v4262 = vpop.f32.mrb[0].mxu0
        %v4263 = vpop.f32.mrb[0].mxu0
        %v4264 = vadd.f32 %v2772, %v4263
        %v4265 = vpop.f32.mrb[0].mxu0
        %4266 = vmatprep.mubr.bf16.mxu0 %v3308
        %4267 = vmatmul.mubr.bf16.gmra.mrb[0].mxu0 %v3307
        %v4268 = vpop.f32.mrb[0].mxu0
        %v4269 = vadd.f32 %v2772, %v4268
        %v4270 = vpop.f32.mrb[0].mxu0
        %v4271 = vpop.f32.mrb[0].mxu0
        %v4272 = vadd.f32 %v2772, %v4271
        %v4273 = vpop.f32.mrb[0].mxu0
        %4274 = vmatprep.mubr.bf16.mxu0 %v3315
        %4275 = vmatmul.mubr.bf16.gmra.mrb[0].mxu0 %v3314
        %v4276 = vpop.f32.mrb[0].mxu0
        %v4277 = vadd.f32 %v2772, %v4276
        %v4278 = vpop.f32.mrb[0].mxu0
        %v4279 = vpop.f32.mrb[0].mxu0
        %v4280 = vadd.f32 %v2772, %v4279
        %v4281 = vpop.f32.mrb[0].mxu0
        %4282 = vmatprep.mubr.bf16.mxu0 %v3322
        %4283 = vmatmul.mubr.bf16.gmra.mrb[0].mxu0 %v3321
        %v4284 = vpop.f32.mrb[0].mxu0
        %v4285 = vadd.f32 %v2772, %v4284
        %v4286 = vpop.f32.mrb[0].mxu0
        %v4287 = vpop.f32.mrb[0].mxu0
        %v4288 = vadd.f32 %v2772, %v4287
        %v4289 = vpop.f32.mrb[0].mxu0
        %4290 = vmatprep.mubr.bf16.mxu0 %v3329
        %4291 = vmatmul.mubr.bf16.gmra.mrb[0].mxu0 %v3328
        %v4292 = vpop.f32.mrb[0].mxu0
        %v4293 = vadd.f32 %v2772, %v4292
        %v4294 = vpop.f32.mrb[0].mxu0
        %v4295 = vpop.f32.mrb[0].mxu0
        %v4296 = vadd.f32 %v2772, %v4295
        %v4297 = vpop.f32.mrb[0].mxu0
        %4298 = vmatprep.mubr.bf16.mxu0 %v3336
        %4299 = vmatmul.mubr.bf16.gmra.mrb[0].mxu0 %v3335
        %v4300 = vpop.f32.mrb[0].mxu0
        %v4301 = vadd.f32 %v2772, %v4300
        %v4302 = vpop.f32.mrb[0].mxu0
        %v4303 = vpop.f32.mrb[0].mxu0
        %v4304 = vadd.f32 %v2772, %v4303
        %v4305 = vpop.f32.mrb[0].mxu0
        %4306 = vmatprep.mubr.bf16.mxu0 %v3343
        %4307 = vmatmul.mubr.bf16.gmra.mrb[0].mxu0 %v3342
        %v4308 = vpop.f32.mrb[0].mxu0
        %v4309 = vadd.f32 %v2772, %v4308
        %v4310 = vpop.f32.mrb[0].mxu0
        %v4311 = vpop.f32.mrb[0].mxu0
        %v4312 = vadd.f32 %v2772, %v4311
        %v4313 = vpop.f32.mrb[0].mxu0
        %4314 = vmatprep.mubr.bf16.mxu0 %v3350
        %4315 = vmatmul.mubr.bf16.gmra.mrb[0].mxu0 %v3349
        %v4316 = vpop.f32.mrb[0].mxu0
        %v4317 = vadd.f32 %v2772, %v4316
        %v4318 = vpop.f32.mrb[0].mxu0
        %v4319 = vpop.f32.mrb[0].mxu0
        %v4320 = vadd.f32 %v2772, %v4319
        %v4321 = vpop.f32.mrb[0].mxu0
        %4322 = vmatprep.mubr.bf16.mxu0 %v3357
        %4323 = vmatmul.mubr.bf16.gmra.mrb[0].mxu0 %v3356
        %v4324 = vpop.f32.mrb[0].mxu0
        %v4325 = vadd.f32 %v2772, %v4324
        %v4326 = vpop.f32.mrb[0].mxu0
        %v4327 = vpop.f32.mrb[0].mxu0
        %v4328 = vadd.f32 %v2772, %v4327
        %v4329 = vpop.f32.mrb[0].mxu0
        %4330 = vmatprep.mubr.bf16.mxu0 %v3364
        %4331 = vmatmul.mubr.bf16.gmra.mrb[0].mxu0 %v3363
        %v4332 = vpop.f32.mrb[0].mxu0
        %v4333 = vadd.f32 %v2772, %v4332
        %v4334 = vpop.f32.mrb[0].mxu0
        %v4335 = vpop.f32.mrb[0].mxu0
        %v4336 = vadd.f32 %v2772, %v4335
        %v4337 = vpop.f32.mrb[0].mxu0
        %4338 = vmatprep.mubr.bf16.mxu0 %v3371
        %4339 = vmatmul.mubr.bf16.gmra.mrb[0].mxu0 %v3370
        %v4340 = vpop.f32.mrb[0].mxu0
        %v4341 = vadd.f32 %v2772, %v4340
        %v4342 = vpop.f32.mrb[0].mxu0
        %v4343 = vpop.f32.mrb[0].mxu0
        %v4344 = vadd.f32 %v2772, %v4343
        %v4345 = vpop.f32.mrb[0].mxu0
        %4346 = vmatprep.mubr.bf16.mxu0 %v3378
        %4347 = vmatmul.mubr.bf16.gmra.mrb[0].mxu0 %v3377
        %v4348 = vpop.f32.mrb[0].mxu0
        %v4349 = vadd.f32 %v2772, %v4348
        %v4350 = vpop.f32.mrb[0].mxu0
        %v4351 = vpop.f32.mrb[0].mxu0
        %v4352 = vadd.f32 %v2772, %v4351
        %v4353 = vpop.f32.mrb[0].mxu0
        %4354 = vmatprep.mubr.bf16.mxu0 %v3385
        %4355 = vmatmul.mubr.bf16.gmra.mrb[0].mxu0 %v3384
        %v4356 = vpop.f32.mrb[0].mxu0
        %v4357 = vadd.f32 %v2772, %v4356
        %v4358 = vpop.f32.mrb[0].mxu0
        %v4359 = vpop.f32.mrb[0].mxu0
        %v4360 = vadd.f32 %v2772, %v4359
        %v4361 = vpop.f32.mrb[0].mxu0
        %4362 = vmatprep.mubr.bf16.mxu0 %v3392
        %4363 = vmatmul.mubr.bf16.gmra.mrb[0].mxu0 %v3391
        %v4364 = vpop.f32.mrb[0].mxu0
        %v4365 = vadd.f32 %v2772, %v4364
        %v4366 = vpop.f32.mrb[0].mxu0
        %v4367 = vpop.f32.mrb[0].mxu0
        %v4368 = vadd.f32 %v2772, %v4367
        %v4369 = vpop.f32.mrb[0].mxu0
        %4370 = vmatprep.mubr.bf16.mxu0 %v3399
        %4371 = vmatmul.mubr.bf16.gmra.mrb[0].mxu0 %v3398
        %v4372 = vpop.f32.mrb[0].mxu0
        %v4373 = vadd.f32 %v2772, %v4372
        %v4374 = vpop.f32.mrb[0].mxu0
        %v4375 = vpop.f32.mrb[0].mxu0
        %v4376 = vadd.f32 %v2772, %v4375
        %v4377 = vpop.f32.mrb[0].mxu0
        %4378 = vmatprep.mubr.bf16.mxu0 %v3406
        %4379 = vmatmul.mubr.bf16.gmra.mrb[0].mxu0 %v3405
        %v4380 = vpop.f32.mrb[0].mxu0
        %v4381 = vadd.f32 %v2772, %v4380
        %v4382 = vpop.f32.mrb[0].mxu0
        %v4383 = vpop.f32.mrb[0].mxu0
        %v4384 = vadd.f32 %v2772, %v4383
        %v4385 = vpop.f32.mrb[0].mxu0
        %4386 = vmatprep.mubr.bf16.mxu0 %v3413
        %4387 = vmatmul.mubr.bf16.gmra.mrb[0].mxu0 %v3412
        %v4388 = vpop.f32.mrb[0].mxu0
        %v4389 = vadd.f32 %v2772, %v4388
        %v4390 = vpop.f32.mrb[0].mxu0
        %v4391 = vpop.f32.mrb[0].mxu0
        %v4392 = vadd.f32 %v2772, %v4391
        %v4393 = vpop.f32.mrb[0].mxu0
        %4394 = vmatprep.mubr.bf16.mxu0 %v3420
        %4395 = vmatmul.mubr.bf16.gmra.mrb[0].mxu0 %v3419
        %v4396 = vpop.f32.mrb[0].mxu0
        %v4397 = vadd.f32 %v2772, %v4396
        %v4398 = vpop.f32.mrb[0].mxu0
        %v4399 = vpop.f32.mrb[0].mxu0
        %v4400 = vadd.f32 %v2772, %v4399
        %v4401 = vpop.f32.mrb[0].mxu0
        %4402 = vmatprep.mubr.bf16.mxu0 %v3427
        %4403 = vmatmul.mubr.bf16.gmra.mrb[0].mxu0 %v3426
        %v4404 = vpop.f32.mrb[0].mxu0
        %v4405 = vadd.f32 %v2772, %v4404
        %v4406 = vpop.f32.mrb[0].mxu0
        %v4407 = vpop.f32.mrb[0].mxu0
        %v4408 = vadd.f32 %v2772, %v4407
        %v4409 = vpop.f32.mrb[0].mxu0
        %4410 = vmatprep.mubr.bf16.mxu0 %v3434
        %4411 = vmatmul.mubr.bf16.gmra.mrb[0].mxu0 %v3433
        %v4412 = vpop.f32.mrb[0].mxu0
        %v4413 = vadd.f32 %v2772, %v4412
        %v4414 = vpop.f32.mrb[0].mxu0
        %v4415 = vpop.f32.mrb[0].mxu0
        %v4416 = vadd.f32 %v2772, %v4415
        %v4417 = vpop.f32.mrb[0].mxu0
        %4418 = vmatprep.mubr.bf16.mxu0 %v3441
        %4419 = vmatmul.mubr.bf16.gmra.mrb[0].mxu0 %v3440
        %v4420 = vpop.f32.mrb[0].mxu0
        %v4421 = vadd.f32 %v2772, %v4420
        %v4422 = vpop.f32.mrb[0].mxu0
        %v4423 = vpop.f32.mrb[0].mxu0
        %v4424 = vadd.f32 %v2772, %v4423
        %v4425 = vpop.f32.mrb[0].mxu0
        %4426 = vmatprep.mubr.bf16.mxu0 %v3448
        %4427 = vmatmul.mubr.bf16.gmra.mrb[0].mxu0 %v3447
        %v4428 = vpop.f32.mrb[0].mxu0
        %v4429 = vadd.f32 %v2772, %v4428
        %v4430 = vpop.f32.mrb[0].mxu0
        %v4431 = vpop.f32.mrb[0].mxu0
        %v4432 = vadd.f32 %v2772, %v4431
        %v4433 = vpop.f32.mrb[0].mxu0
        %4434 = vmatprep.mubr.bf16.mxu0 %v3455
        %4435 = vmatmul.mubr.bf16.gmra.mrb[0].mxu0 %v3454
        %v4436 = vpop.f32.mrb[0].mxu0
        %v4437 = vadd.f32 %v2772, %v4436
        %v4438 = vpop.f32.mrb[0].mxu0
        %v4439 = vpop.f32.mrb[0].mxu0
        %v4440 = vadd.f32 %v2772, %v4439
        %v4441 = vpop.f32.mrb[0].mxu0
        %4442 = vmatprep.mubr.bf16.mxu0 %v3462
        %4443 = vmatmul.mubr.bf16.gmra.mrb[0].mxu0 %v3461
        %v4444 = vpop.f32.mrb[0].mxu0
        %v4445 = vadd.f32 %v2772, %v4444
        %v4446 = vpop.f32.mrb[0].mxu0
        %v4447 = vpop.f32.mrb[0].mxu0
        %v4448 = vadd.f32 %v2772, %v4447
        %v4449 = vpop.f32.mrb[0].mxu0
        %4450 = vdwg.mxu0
        %4451 = vmatprep.subr.bf16.mxu0 0
        %4452 = vmatpush1.bf16.msra.mxu0 %v4026
        %4453 = vmatprep.subr.bf16.mxu0 0
        %4454 = vmatpush1.bf16.msra.mxu0 %v4027
        %4455 = vmatprep.subr.bf16.mxu0 0
        %4456 = vmatpush1.bf16.msra.mxu0 %v4028
        %4457 = vmatprep.subr.bf16.mxu0 0
        %4458 = vmatpush1.bf16.msra.mxu0 %v4029
        %4459 = vmatprep.subr.bf16.mxu0 0
        %4460 = vmatpush1.bf16.msra.mxu0 %v4030
        %4461 = vmatprep.subr.bf16.mxu0 0
        %4462 = vmatpush1.bf16.msra.mxu0 %v4031
        %4463 = vmatprep.subr.bf16.mxu0 0
        %4464 = vmatpush1.bf16.msra.mxu0 %v4032
        %4465 = vmatprep.subr.bf16.mxu0 0
        %4466 = vmatpush1.bf16.msra.mxu0 %v4033
        %4467 = vmatprep.subr.bf16.mxu0 0
        %4468 = vmatpush1.bf16.msra.mxu0 %v4034
        %4469 = vmatprep.subr.bf16.mxu0 0
        %4470 = vmatpush1.bf16.msra.mxu0 %v4035
        %4471 = vmatprep.subr.bf16.mxu0 0
        %4472 = vmatpush1.bf16.msra.mxu0 %v4036
        %4473 = vmatprep.subr.bf16.mxu0 0
        %4474 = vmatpush1.bf16.msra.mxu0 %v4037
        %4475 = vmatprep.subr.bf16.mxu0 0
        %4476 = vmatpush1.bf16.msra.mxu0 %v4038
        %4477 = vmatprep.subr.bf16.mxu0 0
        %4478 = vmatpush1.bf16.msra.mxu0 %v4039
        %4479 = vmatprep.subr.bf16.mxu0 0
        %4480 = vmatpush1.bf16.msra.mxu0 %v4040
        %4481 = vmatprep.subr.bf16.mxu0 0
        %4482 = vmatpush1.bf16.msra.mxu0 %v4041
        %4483 = vmatprep.mubr.bf16.mxu0 %v3251
        %4484 = vmatmul.mubr.bf16.gmra.mrb[0].mxu0 %v3250
        %v4485 = vpop.f32.mrb[0].mxu0
        %v4486 = vadd.f32 %v4189, %v4485
        %v4487 = vpop.f32.mrb[0].mxu0
        %v4488 = vpop.f32.mrb[0].mxu0
        %v4489 = vadd.f32 %v4192, %v4488
        %v4490 = vpop.f32.mrb[0].mxu0
        %4491 = vmatprep.mubr.bf16.mxu0 %v3260
        %4492 = vmatmul.mubr.bf16.gmra.mrb[0].mxu0 %v3259
        %v4493 = vpop.f32.mrb[0].mxu0
        %v4494 = vadd.f32 %v4197, %v4493
        %v4495 = vpop.f32.mrb[0].mxu0
        %v4496 = vpop.f32.mrb[0].mxu0
        %v4497 = vadd.f32 %v4200, %v4496
        %v4498 = vpop.f32.mrb[0].mxu0
        %4499 = vmatprep.mubr.bf16.mxu0 %v3269
        %4500 = vmatmul.mubr.bf16.gmra.mrb[0].mxu0 %v3268
        %v4501 = vpop.f32.mrb[0].mxu0
        %v4502 = vadd.f32 %v4205, %v4501
        %v4503 = vpop.f32.mrb[0].mxu0
        %v4504 = vpop.f32.mrb[0].mxu0
        %v4505 = vadd.f32 %v4208, %v4504
        %v4506 = vpop.f32.mrb[0].mxu0
        %4507 = vmatprep.mubr.bf16.mxu0 %v3276
        %4508 = vmatmul.mubr.bf16.gmra.mrb[0].mxu0 %v3275
        %v4509 = vpop.f32.mrb[0].mxu0
        %v4510 = vadd.f32 %v4213, %v4509
        %v4511 = vpop.f32.mrb[0].mxu0
        %v4512 = vpop.f32.mrb[0].mxu0
        %v4513 = vadd.f32 %v4216, %v4512
        %v4514 = vpop.f32.mrb[0].mxu0
        %4515 = vmatprep.mubr.bf16.mxu0 %v3283
        %4516 = vmatmul.mubr.bf16.gmra.mrb[0].mxu0 %v3282
        %v4517 = vpop.f32.mrb[0].mxu0
        %v4518 = vadd.f32 %v4221, %v4517
        %v4519 = vpop.f32.mrb[0].mxu0
        %v4520 = vpop.f32.mrb[0].mxu0
        %v4521 = vadd.f32 %v4224, %v4520
        %v4522 = vpop.f32.mrb[0].mxu0
        %4523 = vmatprep.mubr.bf16.mxu0 %v3290
        %4524 = vmatmul.mubr.bf16.gmra.mrb[0].mxu0 %v3289
        %v4525 = vpop.f32.mrb[0].mxu0
        %v4526 = vadd.f32 %v4229, %v4525
        %v4527 = vpop.f32.mrb[0].mxu0
        %v4528 = vpop.f32.mrb[0].mxu0
        %v4529 = vadd.f32 %v4232, %v4528
        %v4530 = vpop.f32.mrb[0].mxu0
        %4531 = vmatprep.mubr.bf16.mxu0 %v3297
        %4532 = vmatmul.mubr.bf16.gmra.mrb[0].mxu0 %v3296
        %v4533 = vpop.f32.mrb[0].mxu0
        %v4534 = vadd.f32 %v4237, %v4533
        %v4535 = vpop.f32.mrb[0].mxu0
        %v4536 = vpop.f32.mrb[0].mxu0
        %v4537 = vadd.f32 %v4240, %v4536
        %v4538 = vpop.f32.mrb[0].mxu0
        %4539 = vmatprep.mubr.bf16.mxu0 %v3304
        %4540 = vmatmul.mubr.bf16.gmra.mrb[0].mxu0 %v3303
        %v4541 = vpop.f32.mrb[0].mxu0
        %v4542 = vadd.f32 %v4245, %v4541
        %v4543 = vpop.f32.mrb[0].mxu0
        %v4544 = vpop.f32.mrb[0].mxu0
        %v4545 = vadd.f32 %v4248, %v4544
        %v4546 = vpop.f32.mrb[0].mxu0
        %4547 = vmatprep.mubr.bf16.mxu0 %v3311
        %4548 = vmatmul.mubr.bf16.gmra.mrb[0].mxu0 %v3310
        %v4549 = vpop.f32.mrb[0].mxu0
        %v4550 = vadd.f32 %v4253, %v4549
        %v4551 = vpop.f32.mrb[0].mxu0
        %v4552 = vpop.f32.mrb[0].mxu0
        %v4553 = vadd.f32 %v4256, %v4552
        %v4554 = vpop.f32.mrb[0].mxu0
        %4555 = vmatprep.mubr.bf16.mxu0 %v3318
        %4556 = vmatmul.mubr.bf16.gmra.mrb[0].mxu0 %v3317
        %v4557 = vpop.f32.mrb[0].mxu0
        %v4558 = vadd.f32 %v4261, %v4557
        %v4559 = vpop.f32.mrb[0].mxu0
        %v4560 = vpop.f32.mrb[0].mxu0
        %v4561 = vadd.f32 %v4264, %v4560
        %v4562 = vpop.f32.mrb[0].mxu0
        %4563 = vmatprep.mubr.bf16.mxu0 %v3325
        %4564 = vmatmul.mubr.bf16.gmra.mrb[0].mxu0 %v3324
        %v4565 = vpop.f32.mrb[0].mxu0
        %v4566 = vadd.f32 %v4269, %v4565
        %v4567 = vpop.f32.mrb[0].mxu0
        %v4568 = vpop.f32.mrb[0].mxu0
        %v4569 = vadd.f32 %v4272, %v4568
        %v4570 = vpop.f32.mrb[0].mxu0
        %4571 = vmatprep.mubr.bf16.mxu0 %v3332
        %4572 = vmatmul.mubr.bf16.gmra.mrb[0].mxu0 %v3331
        %v4573 = vpop.f32.mrb[0].mxu0
        %v4574 = vadd.f32 %v4277, %v4573
        %v4575 = vpop.f32.mrb[0].mxu0
        %v4576 = vpop.f32.mrb[0].mxu0
        %v4577 = vadd.f32 %v4280, %v4576
        %v4578 = vpop.f32.mrb[0].mxu0
        %4579 = vmatprep.mubr.bf16.mxu0 %v3339
        %4580 = vmatmul.mubr.bf16.gmra.mrb[0].mxu0 %v3338
        %v4581 = vpop.f32.mrb[0].mxu0
        %v4582 = vadd.f32 %v4285, %v4581
        %v4583 = vpop.f32.mrb[0].mxu0
        %v4584 = vpop.f32.mrb[0].mxu0
        %v4585 = vadd.f32 %v4288, %v4584
        %v4586 = vpop.f32.mrb[0].mxu0
        %4587 = vmatprep.mubr.bf16.mxu0 %v3346
        %4588 = vmatmul.mubr.bf16.gmra.mrb[0].mxu0 %v3345
        %v4589 = vpop.f32.mrb[0].mxu0
        %v4590 = vadd.f32 %v4293, %v4589
        %v4591 = vpop.f32.mrb[0].mxu0
        %v4592 = vpop.f32.mrb[0].mxu0
        %v4593 = vadd.f32 %v4296, %v4592
        %v4594 = vpop.f32.mrb[0].mxu0
        %4595 = vmatprep.mubr.bf16.mxu0 %v3353
        %4596 = vmatmul.mubr.bf16.gmra.mrb[0].mxu0 %v3352
        %v4597 = vpop.f32.mrb[0].mxu0
        %v4598 = vadd.f32 %v4301, %v4597
        %v4599 = vpop.f32.mrb[0].mxu0
        %v4600 = vpop.f32.mrb[0].mxu0
        %v4601 = vadd.f32 %v4304, %v4600
        %v4602 = vpop.f32.mrb[0].mxu0
        %4603 = vmatprep.mubr.bf16.mxu0 %v3360
        %4604 = vmatmul.mubr.bf16.gmra.mrb[0].mxu0 %v3359
        %v4605 = vpop.f32.mrb[0].mxu0
        %v4606 = vadd.f32 %v4309, %v4605
        %v4607 = vpop.f32.mrb[0].mxu0
        %v4608 = vpop.f32.mrb[0].mxu0
        %v4609 = vadd.f32 %v4312, %v4608
        %v4610 = vpop.f32.mrb[0].mxu0
        %4611 = vmatprep.mubr.bf16.mxu0 %v3367
        %4612 = vmatmul.mubr.bf16.gmra.mrb[0].mxu0 %v3366
        %v4613 = vpop.f32.mrb[0].mxu0
        %v4614 = vadd.f32 %v4317, %v4613
        %v4615 = vpop.f32.mrb[0].mxu0
        %v4616 = vpop.f32.mrb[0].mxu0
        %v4617 = vadd.f32 %v4320, %v4616
        %v4618 = vpop.f32.mrb[0].mxu0
        %4619 = vmatprep.mubr.bf16.mxu0 %v3374
        %4620 = vmatmul.mubr.bf16.gmra.mrb[0].mxu0 %v3373
        %v4621 = vpop.f32.mrb[0].mxu0
        %v4622 = vadd.f32 %v4325, %v4621
        %v4623 = vpop.f32.mrb[0].mxu0
        %v4624 = vpop.f32.mrb[0].mxu0
        %v4625 = vadd.f32 %v4328, %v4624
        %v4626 = vpop.f32.mrb[0].mxu0
        %4627 = vmatprep.mubr.bf16.mxu0 %v3381
        %4628 = vmatmul.mubr.bf16.gmra.mrb[0].mxu0 %v3380
        %v4629 = vpop.f32.mrb[0].mxu0
        %v4630 = vadd.f32 %v4333, %v4629
        %v4631 = vpop.f32.mrb[0].mxu0
        %v4632 = vpop.f32.mrb[0].mxu0
        %v4633 = vadd.f32 %v4336, %v4632
        %v4634 = vpop.f32.mrb[0].mxu0
        %4635 = vmatprep.mubr.bf16.mxu0 %v3388
        %4636 = vmatmul.mubr.bf16.gmra.mrb[0].mxu0 %v3387
        %v4637 = vpop.f32.mrb[0].mxu0
        %v4638 = vadd.f32 %v4341, %v4637
        %v4639 = vpop.f32.mrb[0].mxu0
        %v4640 = vpop.f32.mrb[0].mxu0
        %v4641 = vadd.f32 %v4344, %v4640
        %v4642 = vpop.f32.mrb[0].mxu0
        %4643 = vmatprep.mubr.bf16.mxu0 %v3395
        %4644 = vmatmul.mubr.bf16.gmra.mrb[0].mxu0 %v3394
        %v4645 = vpop.f32.mrb[0].mxu0
        %v4646 = vadd.f32 %v4349, %v4645
        %v4647 = vpop.f32.mrb[0].mxu0
        %v4648 = vpop.f32.mrb[0].mxu0
        %v4649 = vadd.f32 %v4352, %v4648
        %v4650 = vpop.f32.mrb[0].mxu0
        %4651 = vmatprep.mubr.bf16.mxu0 %v3402
        %4652 = vmatmul.mubr.bf16.gmra.mrb[0].mxu0 %v3401
        %v4653 = vpop.f32.mrb[0].mxu0
        %v4654 = vadd.f32 %v4357, %v4653
        %v4655 = vpop.f32.mrb[0].mxu0
        %v4656 = vpop.f32.mrb[0].mxu0
        %v4657 = vadd.f32 %v4360, %v4656
        %v4658 = vpop.f32.mrb[0].mxu0
        %4659 = vmatprep.mubr.bf16.mxu0 %v3409
        %4660 = vmatmul.mubr.bf16.gmra.mrb[0].mxu0 %v3408
        %v4661 = vpop.f32.mrb[0].mxu0
        %v4662 = vadd.f32 %v4365, %v4661
        %v4663 = vpop.f32.mrb[0].mxu0
        %v4664 = vpop.f32.mrb[0].mxu0
        %v4665 = vadd.f32 %v4368, %v4664
        %v4666 = vpop.f32.mrb[0].mxu0
        %4667 = vmatprep.mubr.bf16.mxu0 %v3416
        %4668 = vmatmul.mubr.bf16.gmra.mrb[0].mxu0 %v3415
        %v4669 = vpop.f32.mrb[0].mxu0
        %v4670 = vadd.f32 %v4373, %v4669
        %v4671 = vpop.f32.mrb[0].mxu0
        %v4672 = vpop.f32.mrb[0].mxu0
        %v4673 = vadd.f32 %v4376, %v4672
        %v4674 = vpop.f32.mrb[0].mxu0
        %4675 = vmatprep.mubr.bf16.mxu0 %v3423
        %4676 = vmatmul.mubr.bf16.gmra.mrb[0].mxu0 %v3422
        %v4677 = vpop.f32.mrb[0].mxu0
        %v4678 = vadd.f32 %v4381, %v4677
        %v4679 = vpop.f32.mrb[0].mxu0
        %v4680 = vpop.f32.mrb[0].mxu0
        %v4681 = vadd.f32 %v4384, %v4680
        %v4682 = vpop.f32.mrb[0].mxu0
        %4683 = vmatprep.mubr.bf16.mxu0 %v3430
        %4684 = vmatmul.mubr.bf16.gmra.mrb[0].mxu0 %v3429
        %v4685 = vpop.f32.mrb[0].mxu0
        %v4686 = vadd.f32 %v4389, %v4685
        %v4687 = vpop.f32.mrb[0].mxu0
        %v4688 = vpop.f32.mrb[0].mxu0
        %v4689 = vadd.f32 %v4392, %v4688
        %v4690 = vpop.f32.mrb[0].mxu0
        %4691 = vmatprep.mubr.bf16.mxu0 %v3437
        %4692 = vmatmul.mubr.bf16.gmra.mrb[0].mxu0 %v3436
        %v4693 = vpop.f32.mrb[0].mxu0
        %v4694 = vadd.f32 %v4397, %v4693
        %v4695 = vpop.f32.mrb[0].mxu0
        %v4696 = vpop.f32.mrb[0].mxu0
        %v4697 = vadd.f32 %v4400, %v4696
        %v4698 = vpop.f32.mrb[0].mxu0
        %4699 = vmatprep.mubr.bf16.mxu0 %v3444
        %4700 = vmatmul.mubr.bf16.gmra.mrb[0].mxu0 %v3443
        %v4701 = vpop.f32.mrb[0].mxu0
        %v4702 = vadd.f32 %v4405, %v4701
        %v4703 = vpop.f32.mrb[0].mxu0
        %v4704 = vpop.f32.mrb[0].mxu0
        %v4705 = vadd.f32 %v4408, %v4704
        %v4706 = vpop.f32.mrb[0].mxu0
        %4707 = vmatprep.mubr.bf16.mxu0 %v3451
        %4708 = vmatmul.mubr.bf16.gmra.mrb[0].mxu0 %v3450
        %v4709 = vpop.f32.mrb[0].mxu0
        %v4710 = vadd.f32 %v4413, %v4709
        %v4711 = vpop.f32.mrb[0].mxu0
        %v4712 = vpop.f32.mrb[0].mxu0
        %v4713 = vadd.f32 %v4416, %v4712
        %v4714 = vpop.f32.mrb[0].mxu0
        %4715 = vmatprep.mubr.bf16.mxu0 %v3458
        %4716 = vmatmul.mubr.bf16.gmra.mrb[0].mxu0 %v3457
        %v4717 = vpop.f32.mrb[0].mxu0
        %v4718 = vadd.f32 %v4421, %v4717
        %v4719 = vpop.f32.mrb[0].mxu0
        %v4720 = vpop.f32.mrb[0].mxu0
        %v4721 = vadd.f32 %v4424, %v4720
        %v4722 = vpop.f32.mrb[0].mxu0
        %4723 = vmatprep.mubr.bf16.mxu0 %v3465
        %4724 = vmatmul.mubr.bf16.gmra.mrb[0].mxu0 %v3464
        %v4725 = vpop.f32.mrb[0].mxu0
        %v4726 = vadd.f32 %v4429, %v4725
        %v4727 = vpop.f32.mrb[0].mxu0
        %v4728 = vpop.f32.mrb[0].mxu0
        %v4729 = vadd.f32 %v4432, %v4728
        %v4730 = vpop.f32.mrb[0].mxu0
        %4731 = vmatprep.mubr.bf16.mxu0 %v3472
        %4732 = vmatmul.mubr.bf16.gmra.mrb[0].mxu0 %v3471
        %v4733 = vpop.f32.mrb[0].mxu0
        %v4734 = vadd.f32 %v4437, %v4733
        %v4735 = vpop.f32.mrb[0].mxu0
        %v4736 = vpop.f32.mrb[0].mxu0
        %v4737 = vadd.f32 %v4440, %v4736
        %v4738 = vpop.f32.mrb[0].mxu0
        %4739 = vmatprep.mubr.bf16.mxu0 %v3479
        %4740 = vmatmul.mubr.bf16.gmra.mrb[0].mxu0 %v3478
        %v4741 = vpop.f32.mrb[0].mxu0
        %v4742 = vadd.f32 %v4445, %v4741
        %v4743 = vpop.f32.mrb[0].mxu0
        %v4744 = vpop.f32.mrb[0].mxu0
        %v4745 = vadd.f32 %v4448, %v4744
        %v4746 = vpop.f32.mrb[0].mxu0
        %4747 = vdwg.mxu0
        %4748 = vmatprep.subr.bf16.mxu0 0
        %4749 = vmatpush1.bf16.msra.mxu0 %v4042
        %4750 = vmatprep.subr.bf16.mxu0 0
        %4751 = vmatpush1.bf16.msra.mxu0 %v4043
        %4752 = vmatprep.subr.bf16.mxu0 0
        %4753 = vmatpush1.bf16.msra.mxu0 %v4044
        %4754 = vmatprep.subr.bf16.mxu0 0
        %4755 = vmatpush1.bf16.msra.mxu0 %v4045
        %4756 = vmatprep.subr.bf16.mxu0 0
        %4757 = vmatpush1.bf16.msra.mxu0 %v4046
        %4758 = vmatprep.subr.bf16.mxu0 0
        %4759 = vmatpush1.bf16.msra.mxu0 %v4047
        %4760 = vmatprep.subr.bf16.mxu0 0
        %4761 = vmatpush1.bf16.msra.mxu0 %v4048
        %4762 = vmatprep.subr.bf16.mxu0 0
        %4763 = vmatpush1.bf16.msra.mxu0 %v4049
        %4764 = vmatprep.subr.bf16.mxu0 0
        %4765 = vmatpush1.bf16.msra.mxu0 %v4050
        %4766 = vmatprep.subr.bf16.mxu0 0
        %4767 = vmatpush1.bf16.msra.mxu0 %v4051
        %4768 = vmatprep.subr.bf16.mxu0 0
        %4769 = vmatpush1.bf16.msra.mxu0 %v4052
        %4770 = vmatprep.subr.bf16.mxu0 0
        %4771 = vmatpush1.bf16.msra.mxu0 %v4053
        %4772 = vmatprep.subr.bf16.mxu0 0
        %4773 = vmatpush1.bf16.msra.mxu0 %v4054
        %4774 = vmatprep.subr.bf16.mxu0 0
        %4775 = vmatpush1.bf16.msra.mxu0 %v4055
        %4776 = vmatprep.subr.bf16.mxu0 0
        %4777 = vmatpush1.bf16.msra.mxu0 %v4056
        %4778 = vmatprep.subr.bf16.mxu0 0
        %4779 = vmatpush1.bf16.msra.mxu0 %v4057
        %4780 = vmatprep.mubr.bf16.mxu0 %v3253
        %4781 = vmatmul.mubr.bf16.gmra.mrb[0].mxu0 %v3252
        %v4782 = vpop.f32.mrb[0].mxu0
        %v4783 = vadd.f32 %v4486, %v4782
        %v4784 = vpop.f32.mrb[0].mxu0
        %v4785 = vpop.f32.mrb[0].mxu0
        %v4786 = vadd.f32 %v4489, %v4785
        %v4787 = vpop.f32.mrb[0].mxu0
        %4788 = vmatprep.mubr.bf16.mxu0 %v3262
        %4789 = vmatmul.mubr.bf16.gmra.mrb[0].mxu0 %v3261
        %v4790 = vpop.f32.mrb[0].mxu0
        %v4791 = vadd.f32 %v4494, %v4790
        %v4792 = vpop.f32.mrb[0].mxu0
        %v4793 = vpop.f32.mrb[0].mxu0
        %v4794 = vadd.f32 %v4497, %v4793
        %v4795 = vpop.f32.mrb[0].mxu0
        %4796 = vmatprep.mubr.bf16.mxu0 %v3271
        %4797 = vmatmul.mubr.bf16.gmra.mrb[0].mxu0 %v3270
        %v4798 = vpop.f32.mrb[0].mxu0
        %v4799 = vadd.f32 %v4502, %v4798
        %v4800 = vpop.f32.mrb[0].mxu0
        %v4801 = vpop.f32.mrb[0].mxu0
        %v4802 = vadd.f32 %v4505, %v4801
        %v4803 = vpop.f32.mrb[0].mxu0
        %4804 = vmatprep.mubr.bf16.mxu0 %v3278
        %4805 = vmatmul.mubr.bf16.gmra.mrb[0].mxu0 %v3277
        %v4806 = vpop.f32.mrb[0].mxu0
        %v4807 = vadd.f32 %v4510, %v4806
        %v4808 = vpop.f32.mrb[0].mxu0
        %v4809 = vpop.f32.mrb[0].mxu0
        %v4810 = vadd.f32 %v4513, %v4809
        %v4811 = vpop.f32.mrb[0].mxu0
        %4812 = vmatprep.mubr.bf16.mxu0 %v3285
        %4813 = vmatmul.mubr.bf16.gmra.mrb[0].mxu0 %v3284
        %v4814 = vpop.f32.mrb[0].mxu0
        %v4815 = vadd.f32 %v4518, %v4814
        %v4816 = vpop.f32.mrb[0].mxu0
        %v4817 = vpop.f32.mrb[0].mxu0
        %v4818 = vadd.f32 %v4521, %v4817
        %v4819 = vpop.f32.mrb[0].mxu0
        %4820 = vmatprep.mubr.bf16.mxu0 %v3292
        %4821 = vmatmul.mubr.bf16.gmra.mrb[0].mxu0 %v3291
        %v4822 = vpop.f32.mrb[0].mxu0
        %v4823 = vadd.f32 %v4526, %v4822
        %v4824 = vpop.f32.mrb[0].mxu0
        %v4825 = vpop.f32.mrb[0].mxu0
        %v4826 = vadd.f32 %v4529, %v4825
        %v4827 = vpop.f32.mrb[0].mxu0
        %4828 = vmatprep.mubr.bf16.mxu0 %v3299
        %4829 = vmatmul.mubr.bf16.gmra.mrb[0].mxu0 %v3298
        %v4830 = vpop.f32.mrb[0].mxu0
        %v4831 = vadd.f32 %v4534, %v4830
        %v4832 = vpop.f32.mrb[0].mxu0
        %v4833 = vpop.f32.mrb[0].mxu0
        %v4834 = vadd.f32 %v4537, %v4833
        %v4835 = vpop.f32.mrb[0].mxu0
        %4836 = vmatprep.mubr.bf16.mxu0 %v3306
        %4837 = vmatmul.mubr.bf16.gmra.mrb[0].mxu0 %v3305
        %v4838 = vpop.f32.mrb[0].mxu0
        %v4839 = vadd.f32 %v4542, %v4838
        %v4840 = vpop.f32.mrb[0].mxu0
        %v4841 = vpop.f32.mrb[0].mxu0
        %v4842 = vadd.f32 %v4545, %v4841
        %v4843 = vpop.f32.mrb[0].mxu0
        %4844 = vmatprep.mubr.bf16.mxu0 %v3313
        %4845 = vmatmul.mubr.bf16.gmra.mrb[0].mxu0 %v3312
        %v4846 = vpop.f32.mrb[0].mxu0
        %v4847 = vadd.f32 %v4550, %v4846
        %v4848 = vpop.f32.mrb[0].mxu0
        %v4849 = vpop.f32.mrb[0].mxu0
        %v4850 = vadd.f32 %v4553, %v4849
        %v4851 = vpop.f32.mrb[0].mxu0
        %4852 = vmatprep.mubr.bf16.mxu0 %v3320
        %4853 = vmatmul.mubr.bf16.gmra.mrb[0].mxu0 %v3319
        %v4854 = vpop.f32.mrb[0].mxu0
        %v4855 = vadd.f32 %v4558, %v4854
        %v4856 = vpop.f32.mrb[0].mxu0
        %v4857 = vpop.f32.mrb[0].mxu0
        %v4858 = vadd.f32 %v4561, %v4857
        %v4859 = vpop.f32.mrb[0].mxu0
        %4860 = vmatprep.mubr.bf16.mxu0 %v3327
        %4861 = vmatmul.mubr.bf16.gmra.mrb[0].mxu0 %v3326
        %v4862 = vpop.f32.mrb[0].mxu0
        %v4863 = vadd.f32 %v4566, %v4862
        %v4864 = vpop.f32.mrb[0].mxu0
        %v4865 = vpop.f32.mrb[0].mxu0
        %v4866 = vadd.f32 %v4569, %v4865
        %v4867 = vpop.f32.mrb[0].mxu0
        %4868 = vmatprep.mubr.bf16.mxu0 %v3334
        %4869 = vmatmul.mubr.bf16.gmra.mrb[0].mxu0 %v3333
        %v4870 = vpop.f32.mrb[0].mxu0
        %v4871 = vadd.f32 %v4574, %v4870
        %v4872 = vpop.f32.mrb[0].mxu0
        %v4873 = vpop.f32.mrb[0].mxu0
        %v4874 = vadd.f32 %v4577, %v4873
        %v4875 = vpop.f32.mrb[0].mxu0
        %4876 = vmatprep.mubr.bf16.mxu0 %v3341
        %4877 = vmatmul.mubr.bf16.gmra.mrb[0].mxu0 %v3340
        %v4878 = vpop.f32.mrb[0].mxu0
        %v4879 = vadd.f32 %v4582, %v4878
        %v4880 = vpop.f32.mrb[0].mxu0
        %v4881 = vpop.f32.mrb[0].mxu0
        %v4882 = vadd.f32 %v4585, %v4881
        %v4883 = vpop.f32.mrb[0].mxu0
        %4884 = vmatprep.mubr.bf16.mxu0 %v3348
        %4885 = vmatmul.mubr.bf16.gmra.mrb[0].mxu0 %v3347
        %v4886 = vpop.f32.mrb[0].mxu0
        %v4887 = vadd.f32 %v4590, %v4886
        %v4888 = vpop.f32.mrb[0].mxu0
        %v4889 = vpop.f32.mrb[0].mxu0
        %v4890 = vadd.f32 %v4593, %v4889
        %v4891 = vpop.f32.mrb[0].mxu0
        %4892 = vmatprep.mubr.bf16.mxu0 %v3355
        %4893 = vmatmul.mubr.bf16.gmra.mrb[0].mxu0 %v3354
        %v4894 = vpop.f32.mrb[0].mxu0
        %v4895 = vadd.f32 %v4598, %v4894
        %v4896 = vpop.f32.mrb[0].mxu0
        %v4897 = vpop.f32.mrb[0].mxu0
        %v4898 = vadd.f32 %v4601, %v4897
        %v4899 = vpop.f32.mrb[0].mxu0
        %4900 = vmatprep.mubr.bf16.mxu0 %v3362
        %4901 = vmatmul.mubr.bf16.gmra.mrb[0].mxu0 %v3361
        %v4902 = vpop.f32.mrb[0].mxu0
        %v4903 = vadd.f32 %v4606, %v4902
        %v4904 = vpop.f32.mrb[0].mxu0
        %v4905 = vpop.f32.mrb[0].mxu0
        %v4906 = vadd.f32 %v4609, %v4905
        %v4907 = vpop.f32.mrb[0].mxu0
        %4908 = vmatprep.mubr.bf16.mxu0 %v3369
        %4909 = vmatmul.mubr.bf16.gmra.mrb[0].mxu0 %v3368
        %v4910 = vpop.f32.mrb[0].mxu0
        %v4911 = vadd.f32 %v4614, %v4910
        %v4912 = vpop.f32.mrb[0].mxu0
        %v4913 = vpop.f32.mrb[0].mxu0
        %v4914 = vadd.f32 %v4617, %v4913
        %v4915 = vpop.f32.mrb[0].mxu0
        %4916 = vmatprep.mubr.bf16.mxu0 %v3376
        %4917 = vmatmul.mubr.bf16.gmra.mrb[0].mxu0 %v3375
        %v4918 = vpop.f32.mrb[0].mxu0
        %v4919 = vadd.f32 %v4622, %v4918
        %v4920 = vpop.f32.mrb[0].mxu0
        %v4921 = vpop.f32.mrb[0].mxu0
        %v4922 = vadd.f32 %v4625, %v4921
        %v4923 = vpop.f32.mrb[0].mxu0
        %4924 = vmatprep.mubr.bf16.mxu0 %v3383
        %4925 = vmatmul.mubr.bf16.gmra.mrb[0].mxu0 %v3382
        %v4926 = vpop.f32.mrb[0].mxu0
        %v4927 = vadd.f32 %v4630, %v4926
        %v4928 = vpop.f32.mrb[0].mxu0
        %v4929 = vpop.f32.mrb[0].mxu0
        %v4930 = vadd.f32 %v4633, %v4929
        %v4931 = vpop.f32.mrb[0].mxu0
        %4932 = vmatprep.mubr.bf16.mxu0 %v3390
        %4933 = vmatmul.mubr.bf16.gmra.mrb[0].mxu0 %v3389
        %v4934 = vpop.f32.mrb[0].mxu0
        %v4935 = vadd.f32 %v4638, %v4934
        %v4936 = vpop.f32.mrb[0].mxu0
        %v4937 = vpop.f32.mrb[0].mxu0
        %v4938 = vadd.f32 %v4641, %v4937
        %v4939 = vpop.f32.mrb[0].mxu0
        %4940 = vmatprep.mubr.bf16.mxu0 %v3397
        %4941 = vmatmul.mubr.bf16.gmra.mrb[0].mxu0 %v3396
        %v4942 = vpop.f32.mrb[0].mxu0
        %v4943 = vadd.f32 %v4646, %v4942
        %v4944 = vpop.f32.mrb[0].mxu0
        %v4945 = vpop.f32.mrb[0].mxu0
        %v4946 = vadd.f32 %v4649, %v4945
        %v4947 = vpop.f32.mrb[0].mxu0
        %4948 = vmatprep.mubr.bf16.mxu0 %v3404
        %4949 = vmatmul.mubr.bf16.gmra.mrb[0].mxu0 %v3403
        %v4950 = vpop.f32.mrb[0].mxu0
        %v4951 = vadd.f32 %v4654, %v4950
        %v4952 = vpop.f32.mrb[0].mxu0
        %v4953 = vpop.f32.mrb[0].mxu0
        %v4954 = vadd.f32 %v4657, %v4953
        %v4955 = vpop.f32.mrb[0].mxu0
        %4956 = vmatprep.mubr.bf16.mxu0 %v3411
        %4957 = vmatmul.mubr.bf16.gmra.mrb[0].mxu0 %v3410
        %v4958 = vpop.f32.mrb[0].mxu0
        %v4959 = vadd.f32 %v4662, %v4958
        %v4960 = vpop.f32.mrb[0].mxu0
        %v4961 = vpop.f32.mrb[0].mxu0
        %v4962 = vadd.f32 %v4665, %v4961
        %v4963 = vpop.f32.mrb[0].mxu0
        %4964 = vmatprep.mubr.bf16.mxu0 %v3418
        %4965 = vmatmul.mubr.bf16.gmra.mrb[0].mxu0 %v3417
        %v4966 = vpop.f32.mrb[0].mxu0
        %v4967 = vadd.f32 %v4670, %v4966
        %v4968 = vpop.f32.mrb[0].mxu0
        %v4969 = vpop.f32.mrb[0].mxu0
        %v4970 = vadd.f32 %v4673, %v4969
        %v4971 = vpop.f32.mrb[0].mxu0
        %4972 = vmatprep.mubr.bf16.mxu0 %v3425
        %4973 = vmatmul.mubr.bf16.gmra.mrb[0].mxu0 %v3424
        %v4974 = vpop.f32.mrb[0].mxu0
        %v4975 = vadd.f32 %v4678, %v4974
        %v4976 = vpop.f32.mrb[0].mxu0
        %v4977 = vpop.f32.mrb[0].mxu0
        %v4978 = vadd.f32 %v4681, %v4977
        %v4979 = vpop.f32.mrb[0].mxu0
        %4980 = vmatprep.mubr.bf16.mxu0 %v3432
        %4981 = vmatmul.mubr.bf16.gmra.mrb[0].mxu0 %v3431
        %v4982 = vpop.f32.mrb[0].mxu0
        %v4983 = vadd.f32 %v4686, %v4982
        %v4984 = vpop.f32.mrb[0].mxu0
        %v4985 = vpop.f32.mrb[0].mxu0
        %v4986 = vadd.f32 %v4689, %v4985
        %v4987 = vpop.f32.mrb[0].mxu0
        %4988 = vmatprep.mubr.bf16.mxu0 %v3439
        %4989 = vmatmul.mubr.bf16.gmra.mrb[0].mxu0 %v3438
        %v4990 = vpop.f32.mrb[0].mxu0
        %v4991 = vadd.f32 %v4694, %v4990
        %v4992 = vpop.f32.mrb[0].mxu0
        %v4993 = vpop.f32.mrb[0].mxu0
        %v4994 = vadd.f32 %v4697, %v4993
        %v4995 = vpop.f32.mrb[0].mxu0
        %4996 = vmatprep.mubr.bf16.mxu0 %v3446
        %4997 = vmatmul.mubr.bf16.gmra.mrb[0].mxu0 %v3445
        %v4998 = vpop.f32.mrb[0].mxu0
        %v4999 = vadd.f32 %v4702, %v4998
        %v5000 = vpop.f32.mrb[0].mxu0
        %v5001 = vpop.f32.mrb[0].mxu0
        %v5002 = vadd.f32 %v4705, %v5001
        %v5003 = vpop.f32.mrb[0].mxu0
        %5004 = vmatprep.mubr.bf16.mxu0 %v3453
        %5005 = vmatmul.mubr.bf16.gmra.mrb[0].mxu0 %v3452
        %v5006 = vpop.f32.mrb[0].mxu0
        %v5007 = vadd.f32 %v4710, %v5006
        %v5008 = vpop.f32.mrb[0].mxu0
        %v5009 = vpop.f32.mrb[0].mxu0
        %v5010 = vadd.f32 %v4713, %v5009
        %v5011 = vpop.f32.mrb[0].mxu0
        %5012 = vmatprep.mubr.bf16.mxu0 %v3460
        %5013 = vmatmul.mubr.bf16.gmra.mrb[0].mxu0 %v3459
        %v5014 = vpop.f32.mrb[0].mxu0
        %v5015 = vadd.f32 %v4718, %v5014
        %v5016 = vpop.f32.mrb[0].mxu0
        %v5017 = vpop.f32.mrb[0].mxu0
        %v5018 = vadd.f32 %v4721, %v5017
        %v5019 = vpop.f32.mrb[0].mxu0
        %5020 = vmatprep.mubr.bf16.mxu0 %v3467
        %5021 = vmatmul.mubr.bf16.gmra.mrb[0].mxu0 %v3466
        %v5022 = vpop.f32.mrb[0].mxu0
        %v5023 = vadd.f32 %v4726, %v5022
        %v5024 = vpop.f32.mrb[0].mxu0
        %v5025 = vpop.f32.mrb[0].mxu0
        %v5026 = vadd.f32 %v4729, %v5025
        %v5027 = vpop.f32.mrb[0].mxu0
        %5028 = vmatprep.mubr.bf16.mxu0 %v3474
        %5029 = vmatmul.mubr.bf16.gmra.mrb[0].mxu0 %v3473
        %v5030 = vpop.f32.mrb[0].mxu0
        %v5031 = vadd.f32 %v4734, %v5030
        %v5032 = vpop.f32.mrb[0].mxu0
        %v5033 = vpop.f32.mrb[0].mxu0
        %v5034 = vadd.f32 %v4737, %v5033
        %v5035 = vpop.f32.mrb[0].mxu0
        %5036 = vmatprep.mubr.bf16.mxu0 %v3481
        %5037 = vmatmul.mubr.bf16.gmra.mrb[0].mxu0 %v3480
        %v5038 = vpop.f32.mrb[0].mxu0
        %v5039 = vadd.f32 %v4742, %v5038
        %v5040 = vpop.f32.mrb[0].mxu0
        %v5041 = vpop.f32.mrb[0].mxu0
        %v5042 = vadd.f32 %v4745, %v5041
        %v5043 = vpop.f32.mrb[0].mxu0
        %5044 = vdwg.mxu0
        %5045 = vmatprep.subr.bf16.mxu0 0
        %5046 = vmatpush1.bf16.msra.mxu0 %v4058
        %5047 = vmatprep.subr.bf16.mxu0 0
        %5048 = vmatpush1.bf16.msra.mxu0 %v4059
        %5049 = vmatprep.subr.bf16.mxu0 0
        %5050 = vmatpush1.bf16.msra.mxu0 %v4060
        %5051 = vmatprep.subr.bf16.mxu0 0
        %5052 = vmatpush1.bf16.msra.mxu0 %v4061
        %5053 = vmatprep.subr.bf16.mxu0 0
        %5054 = vmatpush1.bf16.msra.mxu0 %v4062
        %5055 = vmatprep.subr.bf16.mxu0 0
        %5056 = vmatpush1.bf16.msra.mxu0 %v4063
        %5057 = vmatprep.subr.bf16.mxu0 0
        %5058 = vmatpush1.bf16.msra.mxu0 %v4064
        %5059 = vmatprep.subr.bf16.mxu0 0
        %5060 = vmatpush1.bf16.msra.mxu0 %v4065
        %5061 = vmatprep.subr.bf16.mxu0 0
        %5062 = vmatpush1.bf16.msra.mxu0 %v4066
        %5063 = vmatprep.subr.bf16.mxu0 0
        %5064 = vmatpush1.bf16.msra.mxu0 %v4067
        %5065 = vmatprep.subr.bf16.mxu0 0
        %5066 = vmatpush1.bf16.msra.mxu0 %v4068
        %5067 = vmatprep.subr.bf16.mxu0 0
        %5068 = vmatpush1.bf16.msra.mxu0 %v4069
        %5069 = vmatprep.subr.bf16.mxu0 0
        %5070 = vmatpush1.bf16.msra.mxu0 %v4070
        %5071 = vmatprep.subr.bf16.mxu0 0
        %5072 = vmatpush1.bf16.msra.mxu0 %v4071
        %5073 = vmatprep.subr.bf16.mxu0 0
        %5074 = vmatpush1.bf16.msra.mxu0 %v4072
        %5075 = vmatprep.subr.bf16.mxu0 0
        %5076 = vmatpush1.bf16.msra.mxu0 %v4073
        %5077 = vmatprep.mubr.bf16.mxu0 %v3255
        %5078 = vmatmul.mubr.bf16.gmra.mrb[0].mxu0 %v3254
        %v5079 = vpop.f32.mrb[0].mxu0
        %v5080 = vadd.f32 %v4783, %v5079
        %v5081 = vpop.f32.mrb[0].mxu0
        %v5082 = vpop.f32.mrb[0].mxu0
        %v5083 = vadd.f32 %v4786, %v5082
        %v5084 = vpop.f32.mrb[0].mxu0
        %5085 = vmatprep.mubr.bf16.mxu0 %v3264
        %5086 = vmatmul.mubr.bf16.gmra.mrb[0].mxu0 %v3263
        %v5087 = vpop.f32.mrb[0].mxu0
        %v5088 = vadd.f32 %v4791, %v5087
        %v5089 = vpop.f32.mrb[0].mxu0
        %v5090 = vpop.f32.mrb[0].mxu0
        %v5091 = vadd.f32 %v4794, %v5090
        %v5092 = vpop.f32.mrb[0].mxu0
        %5093 = vmatprep.mubr.bf16.mxu0 %v3273
        %5094 = vmatmul.mubr.bf16.gmra.mrb[0].mxu0 %v3272
        %v5095 = vpop.f32.mrb[0].mxu0
        %v5096 = vadd.f32 %v4799, %v5095
        %v5097 = vpop.f32.mrb[0].mxu0
        %v5098 = vpop.f32.mrb[0].mxu0
        %v5099 = vadd.f32 %v4802, %v5098
        %v5100 = vpop.f32.mrb[0].mxu0
        %5101 = vmatprep.mubr.bf16.mxu0 %v3280
        %5102 = vmatmul.mubr.bf16.gmra.mrb[0].mxu0 %v3279
        %v5103 = vpop.f32.mrb[0].mxu0
        %v5104 = vadd.f32 %v4807, %v5103
        %v5105 = vpop.f32.mrb[0].mxu0
        %v5106 = vpop.f32.mrb[0].mxu0
        %v5107 = vadd.f32 %v4810, %v5106
        %v5108 = vpop.f32.mrb[0].mxu0
        %5109 = vmatprep.mubr.bf16.mxu0 %v3287
        %5110 = vmatmul.mubr.bf16.gmra.mrb[0].mxu0 %v3286
        %v5111 = vpop.f32.mrb[0].mxu0
        %v5112 = vadd.f32 %v4815, %v5111
        %v5113 = vpop.f32.mrb[0].mxu0
        %v5114 = vpop.f32.mrb[0].mxu0
        %v5115 = vadd.f32 %v4818, %v5114
        %v5116 = vpop.f32.mrb[0].mxu0
        %5117 = vmatprep.mubr.bf16.mxu0 %v3294
        %5118 = vmatmul.mubr.bf16.gmra.mrb[0].mxu0 %v3293
        %v5119 = vpop.f32.mrb[0].mxu0
        %v5120 = vadd.f32 %v4823, %v5119
        %v5121 = vpop.f32.mrb[0].mxu0
        %v5122 = vpop.f32.mrb[0].mxu0
        %v5123 = vadd.f32 %v4826, %v5122
        %v5124 = vpop.f32.mrb[0].mxu0
        %5125 = vmatprep.mubr.bf16.mxu0 %v3301
        %5126 = vmatmul.mubr.bf16.gmra.mrb[0].mxu0 %v3300
        %v5127 = vpop.f32.mrb[0].mxu0
        %v5128 = vadd.f32 %v4831, %v5127
        %v5129 = vpop.f32.mrb[0].mxu0
        %v5130 = vpop.f32.mrb[0].mxu0
        %v5131 = vadd.f32 %v4834, %v5130
        %v5132 = vpop.f32.mrb[0].mxu0
        %5133 = vmatprep.mubr.bf16.mxu0 %v3308
        %5134 = vmatmul.mubr.bf16.gmra.mrb[0].mxu0 %v3307
        %v5135 = vpop.f32.mrb[0].mxu0
        %v5136 = vadd.f32 %v4839, %v5135
        %v5137 = vpop.f32.mrb[0].mxu0
        %v5138 = vpop.f32.mrb[0].mxu0
        %v5139 = vadd.f32 %v4842, %v5138
        %v5140 = vpop.f32.mrb[0].mxu0
        %5141 = vmatprep.mubr.bf16.mxu0 %v3315
        %5142 = vmatmul.mubr.bf16.gmra.mrb[0].mxu0 %v3314
        %v5143 = vpop.f32.mrb[0].mxu0
        %v5144 = vadd.f32 %v4847, %v5143
        %v5145 = vpop.f32.mrb[0].mxu0
        %v5146 = vpop.f32.mrb[0].mxu0
        %v5147 = vadd.f32 %v4850, %v5146
        %v5148 = vpop.f32.mrb[0].mxu0
        %5149 = vmatprep.mubr.bf16.mxu0 %v3322
        %5150 = vmatmul.mubr.bf16.gmra.mrb[0].mxu0 %v3321
        %v5151 = vpop.f32.mrb[0].mxu0
        %v5152 = vadd.f32 %v4855, %v5151
        %v5153 = vpop.f32.mrb[0].mxu0
        %v5154 = vpop.f32.mrb[0].mxu0
        %v5155 = vadd.f32 %v4858, %v5154
        %v5156 = vpop.f32.mrb[0].mxu0
        %5157 = vmatprep.mubr.bf16.mxu0 %v3329
        %5158 = vmatmul.mubr.bf16.gmra.mrb[0].mxu0 %v3328
        %v5159 = vpop.f32.mrb[0].mxu0
        %v5160 = vadd.f32 %v4863, %v5159
        %v5161 = vpop.f32.mrb[0].mxu0
        %v5162 = vpop.f32.mrb[0].mxu0
        %v5163 = vadd.f32 %v4866, %v5162
        %v5164 = vpop.f32.mrb[0].mxu0
        %5165 = vmatprep.mubr.bf16.mxu0 %v3336
        %5166 = vmatmul.mubr.bf16.gmra.mrb[0].mxu0 %v3335
        %v5167 = vpop.f32.mrb[0].mxu0
        %v5168 = vadd.f32 %v4871, %v5167
        %v5169 = vpop.f32.mrb[0].mxu0
        %v5170 = vpop.f32.mrb[0].mxu0
        %v5171 = vadd.f32 %v4874, %v5170
        %v5172 = vpop.f32.mrb[0].mxu0
        %5173 = vmatprep.mubr.bf16.mxu0 %v3343
        %5174 = vmatmul.mubr.bf16.gmra.mrb[0].mxu0 %v3342
        %v5175 = vpop.f32.mrb[0].mxu0
        %v5176 = vadd.f32 %v4879, %v5175
        %v5177 = vpop.f32.mrb[0].mxu0
        %v5178 = vpop.f32.mrb[0].mxu0
        %v5179 = vadd.f32 %v4882, %v5178
        %v5180 = vpop.f32.mrb[0].mxu0
        %5181 = vmatprep.mubr.bf16.mxu0 %v3350
        %5182 = vmatmul.mubr.bf16.gmra.mrb[0].mxu0 %v3349
        %v5183 = vpop.f32.mrb[0].mxu0
        %v5184 = vadd.f32 %v4887, %v5183
        %v5185 = vpop.f32.mrb[0].mxu0
        %v5186 = vpop.f32.mrb[0].mxu0
        %v5187 = vadd.f32 %v4890, %v5186
        %v5188 = vpop.f32.mrb[0].mxu0
        %5189 = vmatprep.mubr.bf16.mxu0 %v3357
        %5190 = vmatmul.mubr.bf16.gmra.mrb[0].mxu0 %v3356
        %v5191 = vpop.f32.mrb[0].mxu0
        %v5192 = vadd.f32 %v4895, %v5191
        %v5193 = vpop.f32.mrb[0].mxu0
        %v5194 = vpop.f32.mrb[0].mxu0
        %v5195 = vadd.f32 %v4898, %v5194
        %v5196 = vpop.f32.mrb[0].mxu0
        %5197 = vmatprep.mubr.bf16.mxu0 %v3364
        %5198 = vmatmul.mubr.bf16.gmra.mrb[0].mxu0 %v3363
        %v5199 = vpop.f32.mrb[0].mxu0
        %v5200 = vadd.f32 %v4903, %v5199
        %v5201 = vpop.f32.mrb[0].mxu0
        %v5202 = vpop.f32.mrb[0].mxu0
        %v5203 = vadd.f32 %v4906, %v5202
        %v5204 = vpop.f32.mrb[0].mxu0
        %5205 = vmatprep.mubr.bf16.mxu0 %v3371
        %5206 = vmatmul.mubr.bf16.gmra.mrb[0].mxu0 %v3370
        %v5207 = vpop.f32.mrb[0].mxu0
        %v5208 = vadd.f32 %v4911, %v5207
        %v5209 = vpop.f32.mrb[0].mxu0
        %v5210 = vpop.f32.mrb[0].mxu0
        %v5211 = vadd.f32 %v4914, %v5210
        %v5212 = vpop.f32.mrb[0].mxu0
        %5213 = vmatprep.mubr.bf16.mxu0 %v3378
        %5214 = vmatmul.mubr.bf16.gmra.mrb[0].mxu0 %v3377
        %v5215 = vpop.f32.mrb[0].mxu0
        %v5216 = vadd.f32 %v4919, %v5215
        %v5217 = vpop.f32.mrb[0].mxu0
        %v5218 = vpop.f32.mrb[0].mxu0
        %v5219 = vadd.f32 %v4922, %v5218
        %v5220 = vpop.f32.mrb[0].mxu0
        %5221 = vmatprep.mubr.bf16.mxu0 %v3385
        %5222 = vmatmul.mubr.bf16.gmra.mrb[0].mxu0 %v3384
        %v5223 = vpop.f32.mrb[0].mxu0
        %v5224 = vadd.f32 %v4927, %v5223
        %v5225 = vpop.f32.mrb[0].mxu0
        %v5226 = vpop.f32.mrb[0].mxu0
        %v5227 = vadd.f32 %v4930, %v5226
        %v5228 = vpop.f32.mrb[0].mxu0
        %5229 = vmatprep.mubr.bf16.mxu0 %v3392
        %5230 = vmatmul.mubr.bf16.gmra.mrb[0].mxu0 %v3391
        %v5231 = vpop.f32.mrb[0].mxu0
        %v5232 = vadd.f32 %v4935, %v5231
        %v5233 = vpop.f32.mrb[0].mxu0
        %v5234 = vpop.f32.mrb[0].mxu0
        %v5235 = vadd.f32 %v4938, %v5234
        %v5236 = vpop.f32.mrb[0].mxu0
        %5237 = vmatprep.mubr.bf16.mxu0 %v3399
        %5238 = vmatmul.mubr.bf16.gmra.mrb[0].mxu0 %v3398
        %v5239 = vpop.f32.mrb[0].mxu0
        %v5240 = vadd.f32 %v4943, %v5239
        %v5241 = vpop.f32.mrb[0].mxu0
        %v5242 = vpop.f32.mrb[0].mxu0
        %v5243 = vadd.f32 %v4946, %v5242
        %v5244 = vpop.f32.mrb[0].mxu0
        %5245 = vmatprep.mubr.bf16.mxu0 %v3406
        %5246 = vmatmul.mubr.bf16.gmra.mrb[0].mxu0 %v3405
        %v5247 = vpop.f32.mrb[0].mxu0
        %v5248 = vadd.f32 %v4951, %v5247
        %v5249 = vpop.f32.mrb[0].mxu0
        %v5250 = vpop.f32.mrb[0].mxu0
        %v5251 = vadd.f32 %v4954, %v5250
        %v5252 = vpop.f32.mrb[0].mxu0
        %5253 = vmatprep.mubr.bf16.mxu0 %v3413
        %5254 = vmatmul.mubr.bf16.gmra.mrb[0].mxu0 %v3412
        %v5255 = vpop.f32.mrb[0].mxu0
        %v5256 = vadd.f32 %v4959, %v5255
        %v5257 = vpop.f32.mrb[0].mxu0
        %v5258 = vpop.f32.mrb[0].mxu0
        %v5259 = vadd.f32 %v4962, %v5258
        %v5260 = vpop.f32.mrb[0].mxu0
        %5261 = vmatprep.mubr.bf16.mxu0 %v3420
        %5262 = vmatmul.mubr.bf16.gmra.mrb[0].mxu0 %v3419
        %v5263 = vpop.f32.mrb[0].mxu0
        %v5264 = vadd.f32 %v4967, %v5263
        %v5265 = vpop.f32.mrb[0].mxu0
        %v5266 = vpop.f32.mrb[0].mxu0
        %v5267 = vadd.f32 %v4970, %v5266
        %v5268 = vpop.f32.mrb[0].mxu0
        %5269 = vmatprep.mubr.bf16.mxu0 %v3427
        %5270 = vmatmul.mubr.bf16.gmra.mrb[0].mxu0 %v3426
        %v5271 = vpop.f32.mrb[0].mxu0
        %v5272 = vadd.f32 %v4975, %v5271
        %v5273 = vpop.f32.mrb[0].mxu0
        %v5274 = vpop.f32.mrb[0].mxu0
        %v5275 = vadd.f32 %v4978, %v5274
        %v5276 = vpop.f32.mrb[0].mxu0
        %5277 = vmatprep.mubr.bf16.mxu0 %v3434
        %5278 = vmatmul.mubr.bf16.gmra.mrb[0].mxu0 %v3433
        %v5279 = vpop.f32.mrb[0].mxu0
        %v5280 = vadd.f32 %v4983, %v5279
        %v5281 = vpop.f32.mrb[0].mxu0
        %v5282 = vpop.f32.mrb[0].mxu0
        %v5283 = vadd.f32 %v4986, %v5282
        %v5284 = vpop.f32.mrb[0].mxu0
        %5285 = vmatprep.mubr.bf16.mxu0 %v3441
        %5286 = vmatmul.mubr.bf16.gmra.mrb[0].mxu0 %v3440
        %v5287 = vpop.f32.mrb[0].mxu0
        %v5288 = vadd.f32 %v4991, %v5287
        %v5289 = vpop.f32.mrb[0].mxu0
        %v5290 = vpop.f32.mrb[0].mxu0
        %v5291 = vadd.f32 %v4994, %v5290
        %v5292 = vpop.f32.mrb[0].mxu0
        %5293 = vmatprep.mubr.bf16.mxu0 %v3448
        %5294 = vmatmul.mubr.bf16.gmra.mrb[0].mxu0 %v3447
        %v5295 = vpop.f32.mrb[0].mxu0
        %v5296 = vadd.f32 %v4999, %v5295
        %v5297 = vpop.f32.mrb[0].mxu0
        %v5298 = vpop.f32.mrb[0].mxu0
        %v5299 = vadd.f32 %v5002, %v5298
        %v5300 = vpop.f32.mrb[0].mxu0
        %5301 = vmatprep.mubr.bf16.mxu0 %v3455
        %5302 = vmatmul.mubr.bf16.gmra.mrb[0].mxu0 %v3454
        %v5303 = vpop.f32.mrb[0].mxu0
        %v5304 = vadd.f32 %v5007, %v5303
        %v5305 = vpop.f32.mrb[0].mxu0
        %v5306 = vpop.f32.mrb[0].mxu0
        %v5307 = vadd.f32 %v5010, %v5306
        %v5308 = vpop.f32.mrb[0].mxu0
        %5309 = vmatprep.mubr.bf16.mxu0 %v3462
        %5310 = vmatmul.mubr.bf16.gmra.mrb[0].mxu0 %v3461
        %v5311 = vpop.f32.mrb[0].mxu0
        %v5312 = vadd.f32 %v5015, %v5311
        %v5313 = vpop.f32.mrb[0].mxu0
        %v5314 = vpop.f32.mrb[0].mxu0
        %v5315 = vadd.f32 %v5018, %v5314
        %v5316 = vpop.f32.mrb[0].mxu0
        %5317 = vmatprep.mubr.bf16.mxu0 %v3469
        %5318 = vmatmul.mubr.bf16.gmra.mrb[0].mxu0 %v3468
        %v5319 = vpop.f32.mrb[0].mxu0
        %v5320 = vadd.f32 %v5023, %v5319
        %v5321 = vpop.f32.mrb[0].mxu0
        %v5322 = vpop.f32.mrb[0].mxu0
        %v5323 = vadd.f32 %v5026, %v5322
        %v5324 = vpop.f32.mrb[0].mxu0
        %5325 = vmatprep.mubr.bf16.mxu0 %v3476
        %5326 = vmatmul.mubr.bf16.gmra.mrb[0].mxu0 %v3475
        %v5327 = vpop.f32.mrb[0].mxu0
        %v5328 = vadd.f32 %v5031, %v5327
        %v5329 = vpop.f32.mrb[0].mxu0
        %v5330 = vpop.f32.mrb[0].mxu0
        %v5331 = vadd.f32 %v5034, %v5330
        %v5332 = vpop.f32.mrb[0].mxu0
        %5333 = vmatprep.mubr.bf16.mxu0 %v3483
        %5334 = vmatmul.mubr.bf16.gmra.mrb[0].mxu0 %v3482
        %v5335 = vpop.f32.mrb[0].mxu0
        %v5336 = vadd.f32 %v5039, %v5335
        %v5337 = vpop.f32.mrb[0].mxu0
        %v5338 = vpop.f32.mrb[0].mxu0
        %v5339 = vadd.f32 %v5042, %v5338
        %v5340 = vpop.f32.mrb[0].mxu0
        %5341 = vdwg.mxu0
        %5342 = vmatprep.subr.bf16.mxu0 0
        %5343 = vmatpush1.bf16.msra.mxu0 %v4074
        %5344 = vmatprep.subr.bf16.mxu0 0
        %5345 = vmatpush1.bf16.msra.mxu0 %v4075
        %5346 = vmatprep.subr.bf16.mxu0 0
        %5347 = vmatpush1.bf16.msra.mxu0 %v4076
        %5348 = vmatprep.subr.bf16.mxu0 0
        %5349 = vmatpush1.bf16.msra.mxu0 %v4077
        %5350 = vmatprep.subr.bf16.mxu0 0
        %5351 = vmatpush1.bf16.msra.mxu0 %v4078
        %5352 = vmatprep.subr.bf16.mxu0 0
        %5353 = vmatpush1.bf16.msra.mxu0 %v4079
        %5354 = vmatprep.subr.bf16.mxu0 0
        %5355 = vmatpush1.bf16.msra.mxu0 %v4080
        %5356 = vmatprep.subr.bf16.mxu0 0
        %5357 = vmatpush1.bf16.msra.mxu0 %v4081
        %5358 = vmatprep.subr.bf16.mxu0 0
        %5359 = vmatpush1.bf16.msra.mxu0 0
        %5360 = vmatprep.subr.bf16.mxu0 0
        %5361 = vmatpush1.bf16.msra.mxu0 0
        %5362 = vmatprep.subr.bf16.mxu0 0
        %5363 = vmatpush1.bf16.msra.mxu0 0
        %5364 = vmatprep.subr.bf16.mxu0 0
        %5365 = vmatpush1.bf16.msra.mxu0 0
        %5366 = vmatprep.subr.bf16.mxu0 0
        %5367 = vmatpush1.bf16.msra.mxu0 0
        %5368 = vmatprep.subr.bf16.mxu0 0
        %5369 = vmatpush1.bf16.msra.mxu0 0
        %5370 = vmatprep.subr.bf16.mxu0 0
        %5371 = vmatpush1.bf16.msra.mxu0 0
        %5372 = vmatprep.subr.bf16.mxu0 0
        %5373 = vmatpush1.bf16.msra.mxu0 0
        %5374 = vmatprep.mubr.bf16.mxu0 0
        %5375 = vmatmul.mubr.bf16.gmra.mrb[0].mxu0 %v3256
        %v5376 = vpop.f32.mrb[0].mxu0
        %v5377 = vadd.f32 %v5080, %v5376
        %v5378 = vpop.f32.mrb[0].mxu0
        %v5379 = vpop.f32.mrb[0].mxu0
        %v5380 = vadd.f32 %v5083, %v5379
        %v5381 = vpop.f32.mrb[0].mxu0
        %5382 = vmatprep.mubr.bf16.mxu0 0
        %5383 = vmatmul.mubr.bf16.gmra.mrb[0].mxu0 %v3265
        %v5384 = vpop.f32.mrb[0].mxu0
        %v5385 = vadd.f32 %v5088, %v5384
        %v5386 = vpop.f32.mrb[0].mxu0
        %v5387 = vpop.f32.mrb[0].mxu0
        %v5388 = vadd.f32 %v5091, %v5387
        %v5389 = vpop.f32.mrb[0].mxu0
        %5390 = vmatprep.mubr.bf16.mxu0 0
        %5391 = vmatmul.mubr.bf16.gmra.mrb[0].mxu0 %v3274
        %v5392 = vpop.f32.mrb[0].mxu0
        %v5393 = vadd.f32 %v5096, %v5392
        %v5394 = vpop.f32.mrb[0].mxu0
        %v5395 = vpop.f32.mrb[0].mxu0
        %v5396 = vadd.f32 %v5099, %v5395
        %v5397 = vpop.f32.mrb[0].mxu0
        %5398 = vmatprep.mubr.bf16.mxu0 0
        %5399 = vmatmul.mubr.bf16.gmra.mrb[0].mxu0 %v3281
        %v5400 = vpop.f32.mrb[0].mxu0
        %v5401 = vadd.f32 %v5104, %v5400
        %v5402 = vpop.f32.mrb[0].mxu0
        %v5403 = vpop.f32.mrb[0].mxu0
        %v5404 = vadd.f32 %v5107, %v5403
        %v5405 = vpop.f32.mrb[0].mxu0
        %5406 = vmatprep.mubr.bf16.mxu0 0
        %5407 = vmatmul.mubr.bf16.gmra.mrb[0].mxu0 %v3288
        %v5408 = vpop.f32.mrb[0].mxu0
        %v5409 = vadd.f32 %v5112, %v5408
        %v5410 = vpop.f32.mrb[0].mxu0
        %v5411 = vpop.f32.mrb[0].mxu0
        %v5412 = vadd.f32 %v5115, %v5411
        %v5413 = vpop.f32.mrb[0].mxu0
        %5414 = vmatprep.mubr.bf16.mxu0 0
        %5415 = vmatmul.mubr.bf16.gmra.mrb[0].mxu0 %v3295
        %v5416 = vpop.f32.mrb[0].mxu0
        %v5417 = vadd.f32 %v5120, %v5416
        %v5418 = vpop.f32.mrb[0].mxu0
        %v5419 = vpop.f32.mrb[0].mxu0
        %v5420 = vadd.f32 %v5123, %v5419
        %v5421 = vpop.f32.mrb[0].mxu0
        %5422 = vmatprep.mubr.bf16.mxu0 0
        %5423 = vmatmul.mubr.bf16.gmra.mrb[0].mxu0 %v3302
        %v5424 = vpop.f32.mrb[0].mxu0
        %v5425 = vadd.f32 %v5128, %v5424
        %v5426 = vpop.f32.mrb[0].mxu0
        %v5427 = vpop.f32.mrb[0].mxu0
        %v5428 = vadd.f32 %v5131, %v5427
        %v5429 = vpop.f32.mrb[0].mxu0
        %5430 = vmatprep.mubr.bf16.mxu0 0
        %5431 = vmatmul.mubr.bf16.gmra.mrb[0].mxu0 %v3309
        %v5432 = vpop.f32.mrb[0].mxu0
        %v5433 = vadd.f32 %v5136, %v5432
        %v5434 = vpop.f32.mrb[0].mxu0
        %v5435 = vpop.f32.mrb[0].mxu0
        %v5436 = vadd.f32 %v5139, %v5435
        %v5437 = vpop.f32.mrb[0].mxu0
        %5438 = vmatprep.mubr.bf16.mxu0 0
        %5439 = vmatmul.mubr.bf16.gmra.mrb[0].mxu0 %v3316
        %v5440 = vpop.f32.mrb[0].mxu0
        %v5441 = vadd.f32 %v5144, %v5440
        %v5442 = vpop.f32.mrb[0].mxu0
        %v5443 = vpop.f32.mrb[0].mxu0
        %v5444 = vadd.f32 %v5147, %v5443
        %v5445 = vpop.f32.mrb[0].mxu0
        %5446 = vmatprep.mubr.bf16.mxu0 0
        %5447 = vmatmul.mubr.bf16.gmra.mrb[0].mxu0 %v3323
        %v5448 = vpop.f32.mrb[0].mxu0
        %v5449 = vadd.f32 %v5152, %v5448
        %v5450 = vpop.f32.mrb[0].mxu0
        %v5451 = vpop.f32.mrb[0].mxu0
        %v5452 = vadd.f32 %v5155, %v5451
        %v5453 = vpop.f32.mrb[0].mxu0
        %5454 = vmatprep.mubr.bf16.mxu0 0
        %5455 = vmatmul.mubr.bf16.gmra.mrb[0].mxu0 %v3330
        %v5456 = vpop.f32.mrb[0].mxu0
        %v5457 = vadd.f32 %v5160, %v5456
        %v5458 = vpop.f32.mrb[0].mxu0
        %v5459 = vpop.f32.mrb[0].mxu0
        %v5460 = vadd.f32 %v5163, %v5459
        %v5461 = vpop.f32.mrb[0].mxu0
        %5462 = vmatprep.mubr.bf16.mxu0 0
        %5463 = vmatmul.mubr.bf16.gmra.mrb[0].mxu0 %v3337
        %v5464 = vpop.f32.mrb[0].mxu0
        %v5465 = vadd.f32 %v5168, %v5464
        %v5466 = vpop.f32.mrb[0].mxu0
        %v5467 = vpop.f32.mrb[0].mxu0
        %v5468 = vadd.f32 %v5171, %v5467
        %v5469 = vpop.f32.mrb[0].mxu0
        %5470 = vmatprep.mubr.bf16.mxu0 0
        %5471 = vmatmul.mubr.bf16.gmra.mrb[0].mxu0 %v3344
        %v5472 = vpop.f32.mrb[0].mxu0
        %v5473 = vadd.f32 %v5176, %v5472
        %v5474 = vpop.f32.mrb[0].mxu0
        %v5475 = vpop.f32.mrb[0].mxu0
        %v5476 = vadd.f32 %v5179, %v5475
        %v5477 = vpop.f32.mrb[0].mxu0
        %5478 = vmatprep.mubr.bf16.mxu0 0
        %5479 = vmatmul.mubr.bf16.gmra.mrb[0].mxu0 %v3351
        %v5480 = vpop.f32.mrb[0].mxu0
        %v5481 = vadd.f32 %v5184, %v5480
        %v5482 = vpop.f32.mrb[0].mxu0
        %v5483 = vpop.f32.mrb[0].mxu0
        %v5484 = vadd.f32 %v5187, %v5483
        %v5485 = vpop.f32.mrb[0].mxu0
        %5486 = vmatprep.mubr.bf16.mxu0 0
        %5487 = vmatmul.mubr.bf16.gmra.mrb[0].mxu0 %v3358
        %v5488 = vpop.f32.mrb[0].mxu0
        %v5489 = vadd.f32 %v5192, %v5488
        %v5490 = vpop.f32.mrb[0].mxu0
        %v5491 = vpop.f32.mrb[0].mxu0
        %v5492 = vadd.f32 %v5195, %v5491
        %v5493 = vpop.f32.mrb[0].mxu0
        %5494 = vmatprep.mubr.bf16.mxu0 0
        %5495 = vmatmul.mubr.bf16.gmra.mrb[0].mxu0 %v3365
        %v5496 = vpop.f32.mrb[0].mxu0
        %v5497 = vadd.f32 %v5200, %v5496
        %v5498 = vpop.f32.mrb[0].mxu0
        %v5499 = vpop.f32.mrb[0].mxu0
        %v5500 = vadd.f32 %v5203, %v5499
        %v5501 = vpop.f32.mrb[0].mxu0
        %5502 = vmatprep.mubr.bf16.mxu0 0
        %5503 = vmatmul.mubr.bf16.gmra.mrb[0].mxu0 %v3372
        %v5504 = vpop.f32.mrb[0].mxu0
        %v5505 = vadd.f32 %v5208, %v5504
        %v5506 = vpop.f32.mrb[0].mxu0
        %v5507 = vpop.f32.mrb[0].mxu0
        %v5508 = vadd.f32 %v5211, %v5507
        %v5509 = vpop.f32.mrb[0].mxu0
        %5510 = vmatprep.mubr.bf16.mxu0 0
        %5511 = vmatmul.mubr.bf16.gmra.mrb[0].mxu0 %v3379
        %v5512 = vpop.f32.mrb[0].mxu0
        %v5513 = vadd.f32 %v5216, %v5512
        %v5514 = vpop.f32.mrb[0].mxu0
        %v5515 = vpop.f32.mrb[0].mxu0
        %v5516 = vadd.f32 %v5219, %v5515
        %v5517 = vpop.f32.mrb[0].mxu0
        %5518 = vmatprep.mubr.bf16.mxu0 0
        %5519 = vmatmul.mubr.bf16.gmra.mrb[0].mxu0 %v3386
        %v5520 = vpop.f32.mrb[0].mxu0
        %v5521 = vadd.f32 %v5224, %v5520
        %v5522 = vpop.f32.mrb[0].mxu0
        %v5523 = vpop.f32.mrb[0].mxu0
        %v5524 = vadd.f32 %v5227, %v5523
        %v5525 = vpop.f32.mrb[0].mxu0
        %5526 = vmatprep.mubr.bf16.mxu0 0
        %5527 = vmatmul.mubr.bf16.gmra.mrb[0].mxu0 %v3393
        %v5528 = vpop.f32.mrb[0].mxu0
        %v5529 = vadd.f32 %v5232, %v5528
        %v5530 = vpop.f32.mrb[0].mxu0
        %v5531 = vpop.f32.mrb[0].mxu0
        %v5532 = vadd.f32 %v5235, %v5531
        %v5533 = vpop.f32.mrb[0].mxu0
        %5534 = vmatprep.mubr.bf16.mxu0 0
        %5535 = vmatmul.mubr.bf16.gmra.mrb[0].mxu0 %v3400
        %v5536 = vpop.f32.mrb[0].mxu0
        %v5537 = vadd.f32 %v5240, %v5536
        %v5538 = vpop.f32.mrb[0].mxu0
        %v5539 = vpop.f32.mrb[0].mxu0
        %v5540 = vadd.f32 %v5243, %v5539
        %v5541 = vpop.f32.mrb[0].mxu0
        %5542 = vmatprep.mubr.bf16.mxu0 0
        %5543 = vmatmul.mubr.bf16.gmra.mrb[0].mxu0 %v3407
        %v5544 = vpop.f32.mrb[0].mxu0
        %v5545 = vadd.f32 %v5248, %v5544
        %v5546 = vpop.f32.mrb[0].mxu0
        %v5547 = vpop.f32.mrb[0].mxu0
        %v5548 = vadd.f32 %v5251, %v5547
        %v5549 = vpop.f32.mrb[0].mxu0
        %5550 = vmatprep.mubr.bf16.mxu0 0
        %5551 = vmatmul.mubr.bf16.gmra.mrb[0].mxu0 %v3414
        %v5552 = vpop.f32.mrb[0].mxu0
        %v5553 = vadd.f32 %v5256, %v5552
        %v5554 = vpop.f32.mrb[0].mxu0
        %v5555 = vpop.f32.mrb[0].mxu0
        %v5556 = vadd.f32 %v5259, %v5555
        %v5557 = vpop.f32.mrb[0].mxu0
        %5558 = vmatprep.mubr.bf16.mxu0 0
        %5559 = vmatmul.mubr.bf16.gmra.mrb[0].mxu0 %v3421
        %v5560 = vpop.f32.mrb[0].mxu0
        %v5561 = vadd.f32 %v5264, %v5560
        %v5562 = vpop.f32.mrb[0].mxu0
        %v5563 = vpop.f32.mrb[0].mxu0
        %v5564 = vadd.f32 %v5267, %v5563
        %v5565 = vpop.f32.mrb[0].mxu0
        %5566 = vmatprep.mubr.bf16.mxu0 0
        %5567 = vmatmul.mubr.bf16.gmra.mrb[0].mxu0 %v3428
        %v5568 = vpop.f32.mrb[0].mxu0
        %v5569 = vadd.f32 %v5272, %v5568
        %v5570 = vpop.f32.mrb[0].mxu0
        %v5571 = vpop.f32.mrb[0].mxu0
        %v5572 = vadd.f32 %v5275, %v5571
        %v5573 = vpop.f32.mrb[0].mxu0
        %5574 = vmatprep.mubr.bf16.mxu0 0
        %5575 = vmatmul.mubr.bf16.gmra.mrb[0].mxu0 %v3435
        %v5576 = vpop.f32.mrb[0].mxu0
        %v5577 = vadd.f32 %v5280, %v5576
        %v5578 = vpop.f32.mrb[0].mxu0
        %v5579 = vpop.f32.mrb[0].mxu0
        %v5580 = vadd.f32 %v5283, %v5579
        %v5581 = vpop.f32.mrb[0].mxu0
        %5582 = vmatprep.mubr.bf16.mxu0 0
        %5583 = vmatmul.mubr.bf16.gmra.mrb[0].mxu0 %v3442
        %v5584 = vpop.f32.mrb[0].mxu0
        %v5585 = vadd.f32 %v5288, %v5584
        %v5586 = vpop.f32.mrb[0].mxu0
        %v5587 = vpop.f32.mrb[0].mxu0
        %v5588 = vadd.f32 %v5291, %v5587
        %v5589 = vpop.f32.mrb[0].mxu0
        %5590 = vmatprep.mubr.bf16.mxu0 0
        %5591 = vmatmul.mubr.bf16.gmra.mrb[0].mxu0 %v3449
        %v5592 = vpop.f32.mrb[0].mxu0
        %v5593 = vadd.f32 %v5296, %v5592
        %v5594 = vpop.f32.mrb[0].mxu0
        %v5595 = vpop.f32.mrb[0].mxu0
        %v5596 = vadd.f32 %v5299, %v5595
        %v5597 = vpop.f32.mrb[0].mxu0
        %5598 = vmatprep.mubr.bf16.mxu0 0
        %5599 = vmatmul.mubr.bf16.gmra.mrb[0].mxu0 %v3456
        %v5600 = vpop.f32.mrb[0].mxu0
        %v5601 = vadd.f32 %v5304, %v5600
        %v5602 = vpop.f32.mrb[0].mxu0
        %v5603 = vpop.f32.mrb[0].mxu0
        %v5604 = vadd.f32 %v5307, %v5603
        %v5605 = vpop.f32.mrb[0].mxu0
        %5606 = vmatprep.mubr.bf16.mxu0 0
        %5607 = vmatmul.mubr.bf16.gmra.mrb[0].mxu0 %v3463
        %v5608 = vpop.f32.mrb[0].mxu0
        %v5609 = vadd.f32 %v5312, %v5608
        %v5610 = vpop.f32.mrb[0].mxu0
        %v5611 = vpop.f32.mrb[0].mxu0
        %v5612 = vadd.f32 %v5315, %v5611
        %v5613 = vpop.f32.mrb[0].mxu0
        %5614 = vmatprep.mubr.bf16.mxu0 0
        %5615 = vmatmul.mubr.bf16.gmra.mrb[0].mxu0 %v3470
        %v5616 = vpop.f32.mrb[0].mxu0
        %v5617 = vadd.f32 %v5320, %v5616
        %v5618 = vpop.f32.mrb[0].mxu0
        %v5619 = vpop.f32.mrb[0].mxu0
        %v5620 = vadd.f32 %v5323, %v5619
        %v5621 = vpop.f32.mrb[0].mxu0
        %5622 = vmatprep.mubr.bf16.mxu0 0
        %5623 = vmatmul.mubr.bf16.gmra.mrb[0].mxu0 %v3477
        %v5624 = vpop.f32.mrb[0].mxu0
        %v5625 = vadd.f32 %v5328, %v5624
        %v5626 = vpop.f32.mrb[0].mxu0
        %v5627 = vpop.f32.mrb[0].mxu0
        %v5628 = vadd.f32 %v5331, %v5627
        %v5629 = vpop.f32.mrb[0].mxu0
        %5630 = vmatprep.mubr.bf16.mxu0 0
        %5631 = vmatmul.mubr.bf16.gmra.mrb[0].mxu0 %v3484
        %v5632 = vpop.f32.mrb[0].mxu0
        %v5633 = vadd.f32 %v5336, %v5632
        %v5634 = vpop.f32.mrb[0].mxu0
        %v5635 = vpop.f32.mrb[0].mxu0
        %v5636 = vadd.f32 %v5339, %v5635
        %v5637 = vpop.f32.mrb[0].mxu0
        %5638 = vdwg.mxu0
        %v5639 = vpack.c.bf16 %v5380, %v5377
        %v5640 = vpack.c.bf16 %v5385, %v5385
        %v5641 = vpack.c.bf16 %v5393, %v5388
        %v5642 = vpack.c.bf16 %v5396, %v5396
        %v5643 = vpack.c.bf16 %v5404, %v5401
        %v5644 = vpack.c.bf16 %v5409, %v5409
        %v5645 = vpack.c.bf16 %v5417, %v5412
        %v5646 = vpack.c.bf16 %v5420, %v5420
        %v5647 = vpack.c.bf16 %v5428, %v5425
        %v5648 = vpack.c.bf16 %v5433, %v5433
        %v5649 = vpack.c.bf16 %v5441, %v5436
        %v5650 = vpack.c.bf16 %v5444, %v5444
        %v5651 = vpack.c.bf16 %v5452, %v5449
        %v5652 = vpack.c.bf16 %v5457, %v5457
        %v5653 = vpack.c.bf16 %v5465, %v5460
        %v5654 = vpack.c.bf16 %v5468, %v5468
        %v5655 = vpack.c.bf16 %v5476, %v5473
        %v5656 = vpack.c.bf16 %v5481, %v5481
        %v5657 = vpack.c.bf16 %v5489, %v5484
        %v5658 = vpack.c.bf16 %v5492, %v5492
        %v5659 = vpack.c.bf16 %v5500, %v5497
        %v5660 = vpack.c.bf16 %v5505, %v5505
        %v5661 = vpack.c.bf16 %v5513, %v5508
        %v5662 = vpack.c.bf16 %v5516, %v5516
        %v5663 = vpack.c.bf16 %v5524, %v5521
        %v5664 = vpack.c.bf16 %v5529, %v5529
        %v5665 = vpack.c.bf16 %v5537, %v5532
        %v5666 = vpack.c.bf16 %v5540, %v5540
        %v5667 = vpack.c.bf16 %v5548, %v5545
        %v5668 = vpack.c.bf16 %v5553, %v5553
        %v5669 = vpack.c.bf16 %v5561, %v5556
        %v5670 = vpack.c.bf16 %v5564, %v5564
        %v5671 = vpack.c.bf16 %v5572, %v5569
        %v5672 = vpack.c.bf16 %v5577, %v5577
        %v5673 = vpack.c.bf16 %v5585, %v5580
        %v5674 = vpack.c.bf16 %v5588, %v5588
        %v5675 = vpack.c.bf16 %v5596, %v5593
        %v5676 = vpack.c.bf16 %v5601, %v5601
        %v5677 = vpack.c.bf16 %v5609, %v5604
        %v5678 = vpack.c.bf16 %v5612, %v5612
        %v5679 = vpack.c.bf16 %v5620, %v5617
        %v5680 = vpack.c.bf16 %v5625, %v5625
        %v5681 = vpack.c.bf16 %v5633, %v5628
        %v5682 = vpack.c.bf16 %v5636, %v5636
        %v5683 = vlaneseq
        %v5684 = vshrl.u32 %v5683, 7
        %v5685 = vadd.s32 %v5684, 8
        %v5686 = vadd.s32 %v5684, 16
        %s5687 = ssub.s32 %s394, 3
        %v5688 = vstv %s5687
        %v5689 = vadd.s32 %v5684, %v5688
        %v5690 = vadd.s32 %v5685, %v5688
        %v5691 = vadd.s32 %v5686, %v5688
        %v5692 = vlaneseq
        %v5693 = vand.u32 %v5692, 127
        %v5694 = vsub.s32 %v5693, 3
        %vm5695 = vcmp.ge.s32.totalorder %v5689, 0
        %vm5696 = vcmp.ge.s32.totalorder %v5690, 0
        %vm5697 = vcmp.ge.s32.totalorder %v5691, 0
        %vm5698 = vcmp.lt.s32.totalorder %v5689, 16
        %vm5699 = vcmp.lt.s32.totalorder %v5690, 16
        %vm5700 = vcmp.lt.s32.totalorder %v5691, 16
        %vm5701 = vmand %vm5695, %vm5698
        %vm5702 = vmand %vm5696, %vm5699
        %vm5703 = vmand %vm5697, %vm5700
        %vm5704 = vcmp.ge.s32.totalorder %v5694, 0
        %vm5705 = vmand %vm5701, %vm5704
        %vm5706 = vmand %vm5702, %vm5704
        %vm5707 = vmand %vm5703, %vm5704
        %vm5708 = vcmp.lt.s32.totalorder %v5694, 16
        %vm5709 = vmand %vm5705, %vm5708
        %vm5710 = vmand %vm5706, %vm5708
        %vm5711 = vmand %vm5707, %vm5708
        %v5712 = vsel %vm5709, 1, 0
        %v5713 = vsel %vm5710, 1, 0
        %v5714 = vsel %vm5711, 1, 0
        %v5715 = vcvt.s32.f32 %v5712
        %v5716 = vcvt.s32.f32 %v5713
        %v5717 = vcvt.s32.f32 %v5714
        %v5718 = vpack.c.bf16 %v5716, %v5715
        %v5719 = vpack.c.bf16 %v5717, %v5717
        %v5721 = vpack.i.b16 %v5718, %v5718
        %v5723 = vlaneseq
        %v5724 = vshrl.u32 %v5723, 7
        %v5725 = vsub.s32 0, %v5724
        %v5726 = vrot.slane %v5721, %v5725
        %5728 = vbcast.lane.c.b16.xlu0 %v5726, 256
        %v5729 = vpop.permute.xlu0 %5728
        %s5731 = sor.u32 256, 16
        %5732 = vbcast.lane.c.b16.xlu0 %v5726, %s5731
        %v5733 = vpop.permute.xlu0 %5732
        %v5734 = vshrl.u32 %v5718, 16
        %v5735 = vpack.i.b16 %v5734, %v5734
        %v5737 = vlaneseq
        %v5738 = vshrl.u32 %v5737, 7
        %v5739 = vsub.s32 0, %v5738
        %v5740 = vrot.slane %v5735, %v5739
        %5742 = vbcast.lane.c.b16.xlu0 %v5740, 256
        %v5743 = vpop.permute.xlu0 %5742
        %s5745 = sor.u32 256, 16
        %5746 = vbcast.lane.c.b16.xlu0 %v5740, %s5745
        %v5747 = vpop.permute.xlu0 %5746
        %v5748 = vlaneseq
        %v5749 = vshrl.u32 %v5748, 7
        %v5750 = vsub.s32 1, %v5749
        %v5751 = vrot.slane %v5721, %v5750
        %5753 = vbcast.lane.c.b16.xlu0 %v5751, 256
        %v5754 = vpop.permute.xlu0 %5753
        %s5756 = sor.u32 256, 16
        %5757 = vbcast.lane.c.b16.xlu0 %v5751, %s5756
        %v5758 = vpop.permute.xlu0 %5757
        %v5759 = vlaneseq
        %v5760 = vshrl.u32 %v5759, 7
        %v5761 = vsub.s32 1, %v5760
        %v5762 = vrot.slane %v5735, %v5761
        %5764 = vbcast.lane.c.b16.xlu0 %v5762, 256
        %v5765 = vpop.permute.xlu0 %5764
        %s5767 = sor.u32 256, 16
        %5768 = vbcast.lane.c.b16.xlu0 %v5762, %s5767
        %v5769 = vpop.permute.xlu0 %5768
        %v5770 = vlaneseq
        %v5771 = vshrl.u32 %v5770, 7
        %v5772 = vsub.s32 2, %v5771
        %v5773 = vrot.slane %v5721, %v5772
        %5775 = vbcast.lane.c.b16.xlu0 %v5773, 256
        %v5776 = vpop.permute.xlu0 %5775
        %s5778 = sor.u32 256, 16
        %5779 = vbcast.lane.c.b16.xlu0 %v5773, %s5778
        %v5780 = vpop.permute.xlu0 %5779
        %v5781 = vlaneseq
        %v5782 = vshrl.u32 %v5781, 7
        %v5783 = vsub.s32 2, %v5782
        %v5784 = vrot.slane %v5735, %v5783
        %5786 = vbcast.lane.c.b16.xlu0 %v5784, 256
        %v5787 = vpop.permute.xlu0 %5786
        %s5789 = sor.u32 256, 16
        %5790 = vbcast.lane.c.b16.xlu0 %v5784, %s5789
        %v5791 = vpop.permute.xlu0 %5790
        %v5792 = vlaneseq
        %v5793 = vshrl.u32 %v5792, 7
        %v5794 = vsub.s32 3, %v5793
        %v5795 = vrot.slane %v5721, %v5794
        %5797 = vbcast.lane.c.b16.xlu0 %v5795, 256
        %v5798 = vpop.permute.xlu0 %5797
        %s5800 = sor.u32 256, 16
        %5801 = vbcast.lane.c.b16.xlu0 %v5795, %s5800
        %v5802 = vpop.permute.xlu0 %5801
        %v5803 = vlaneseq
        %v5804 = vshrl.u32 %v5803, 7
        %v5805 = vsub.s32 3, %v5804
        %v5806 = vrot.slane %v5735, %v5805
        %5808 = vbcast.lane.c.b16.xlu0 %v5806, 256
        %v5809 = vpop.permute.xlu0 %5808
        %s5811 = sor.u32 256, 16
        %5812 = vbcast.lane.c.b16.xlu0 %v5806, %s5811
        %v5813 = vpop.permute.xlu0 %5812
        %v5814 = vlaneseq
        %v5815 = vshrl.u32 %v5814, 7
        %v5816 = vsub.s32 4, %v5815
        %v5817 = vrot.slane %v5721, %v5816
        %5819 = vbcast.lane.c.b16.xlu0 %v5817, 256
        %v5820 = vpop.permute.xlu0 %5819
        %s5822 = sor.u32 256, 16
        %5823 = vbcast.lane.c.b16.xlu0 %v5817, %s5822
        %v5824 = vpop.permute.xlu0 %5823
        %v5825 = vlaneseq
        %v5826 = vshrl.u32 %v5825, 7
        %v5827 = vsub.s32 4, %v5826
        %v5828 = vrot.slane %v5735, %v5827
        %5830 = vbcast.lane.c.b16.xlu0 %v5828, 256
        %v5831 = vpop.permute.xlu0 %5830
        %s5833 = sor.u32 256, 16
        %5834 = vbcast.lane.c.b16.xlu0 %v5828, %s5833
        %v5835 = vpop.permute.xlu0 %5834
        %v5836 = vlaneseq
        %v5837 = vshrl.u32 %v5836, 7
        %v5838 = vsub.s32 5, %v5837
        %v5839 = vrot.slane %v5721, %v5838
        %5841 = vbcast.lane.c.b16.xlu0 %v5839, 256
        %v5842 = vpop.permute.xlu0 %5841
        %s5844 = sor.u32 256, 16
        %5845 = vbcast.lane.c.b16.xlu0 %v5839, %s5844
        %v5846 = vpop.permute.xlu0 %5845
        %v5847 = vlaneseq
        %v5848 = vshrl.u32 %v5847, 7
        %v5849 = vsub.s32 5, %v5848
        %v5850 = vrot.slane %v5735, %v5849
        %5852 = vbcast.lane.c.b16.xlu0 %v5850, 256
        %v5853 = vpop.permute.xlu0 %5852
        %s5855 = sor.u32 256, 16
        %5856 = vbcast.lane.c.b16.xlu0 %v5850, %s5855
        %v5857 = vpop.permute.xlu0 %5856
        %v5858 = vlaneseq
        %v5859 = vshrl.u32 %v5858, 7
        %v5860 = vsub.s32 6, %v5859
        %v5861 = vrot.slane %v5721, %v5860
        %5863 = vbcast.lane.c.b16.xlu0 %v5861, 256
        %v5864 = vpop.permute.xlu0 %5863
        %s5866 = sor.u32 256, 16
        %5867 = vbcast.lane.c.b16.xlu0 %v5861, %s5866
        %v5868 = vpop.permute.xlu0 %5867
        %v5869 = vlaneseq
        %v5870 = vshrl.u32 %v5869, 7
        %v5871 = vsub.s32 6, %v5870
        %v5872 = vrot.slane %v5735, %v5871
        %5874 = vbcast.lane.c.b16.xlu0 %v5872, 256
        %v5875 = vpop.permute.xlu0 %5874
        %s5877 = sor.u32 256, 16
        %5878 = vbcast.lane.c.b16.xlu0 %v5872, %s5877
        %v5879 = vpop.permute.xlu0 %5878
        %v5880 = vlaneseq
        %v5881 = vshrl.u32 %v5880, 7
        %v5882 = vsub.s32 7, %v5881
        %v5883 = vrot.slane %v5721, %v5882
        %5885 = vbcast.lane.c.b16.xlu0 %v5883, 256
        %v5886 = vpop.permute.xlu0 %5885
        %s5888 = sor.u32 256, 16
        %5889 = vbcast.lane.c.b16.xlu0 %v5883, %s5888
        %v5890 = vpop.permute.xlu0 %5889
        %v5891 = vlaneseq
        %v5892 = vshrl.u32 %v5891, 7
        %v5893 = vsub.s32 7, %v5892
        %v5894 = vrot.slane %v5735, %v5893
        %5896 = vbcast.lane.c.b16.xlu0 %v5894, 256
        %v5897 = vpop.permute.xlu0 %5896
        %s5899 = sor.u32 256, 16
        %5900 = vbcast.lane.c.b16.xlu0 %v5894, %s5899
        %v5901 = vpop.permute.xlu0 %5900
        %v5903 = vpack.i.b16 %v5719, %v5719
        %v5905 = vlaneseq
        %v5906 = vshrl.u32 %v5905, 7
        %v5907 = vsub.s32 0, %v5906
        %v5908 = vrot.slane %v5903, %v5907
        %5910 = vbcast.lane.c.b16.xlu0 %v5908, 256
        %v5911 = vpop.permute.xlu0 %5910
        %s5913 = sor.u32 256, 16
        %5914 = vbcast.lane.c.b16.xlu0 %v5908, %s5913
        %v5915 = vpop.permute.xlu0 %5914
        %v5916 = vshrl.u32 %v5719, 16
        %v5917 = vpack.i.b16 %v5916, %v5916
        %v5919 = vlaneseq
        %v5920 = vshrl.u32 %v5919, 7
        %v5921 = vsub.s32 0, %v5920
        %v5922 = vrot.slane %v5917, %v5921
        %5924 = vbcast.lane.c.b16.xlu0 %v5922, 256
        %v5925 = vpop.permute.xlu0 %5924
        %s5927 = sor.u32 256, 16
        %5928 = vbcast.lane.c.b16.xlu0 %v5922, %s5927
        %v5929 = vpop.permute.xlu0 %5928
        %v5930 = vlaneseq
        %v5931 = vshrl.u32 %v5930, 7
        %v5932 = vsub.s32 1, %v5931
        %v5933 = vrot.slane %v5903, %v5932
        %5935 = vbcast.lane.c.b16.xlu0 %v5933, 256
        %v5936 = vpop.permute.xlu0 %5935
        %s5938 = sor.u32 256, 16
        %5939 = vbcast.lane.c.b16.xlu0 %v5933, %s5938
        %v5940 = vpop.permute.xlu0 %5939
        %v5941 = vlaneseq
        %v5942 = vshrl.u32 %v5941, 7
        %v5943 = vsub.s32 1, %v5942
        %v5944 = vrot.slane %v5917, %v5943
        %5946 = vbcast.lane.c.b16.xlu0 %v5944, 256
        %v5947 = vpop.permute.xlu0 %5946
        %s5949 = sor.u32 256, 16
        %5950 = vbcast.lane.c.b16.xlu0 %v5944, %s5949
        %v5951 = vpop.permute.xlu0 %5950
        %v5952 = vlaneseq
        %v5953 = vshrl.u32 %v5952, 7
        %v5954 = vsub.s32 2, %v5953
        %v5955 = vrot.slane %v5903, %v5954
        %5957 = vbcast.lane.c.b16.xlu0 %v5955, 256
        %v5958 = vpop.permute.xlu0 %5957
        %s5960 = sor.u32 256, 16
        %5961 = vbcast.lane.c.b16.xlu0 %v5955, %s5960
        %v5962 = vpop.permute.xlu0 %5961
        %v5963 = vlaneseq
        %v5964 = vshrl.u32 %v5963, 7
        %v5965 = vsub.s32 2, %v5964
        %v5966 = vrot.slane %v5917, %v5965
        %5968 = vbcast.lane.c.b16.xlu0 %v5966, 256
        %v5969 = vpop.permute.xlu0 %5968
        %s5971 = sor.u32 256, 16
        %5972 = vbcast.lane.c.b16.xlu0 %v5966, %s5971
        %v5973 = vpop.permute.xlu0 %5972
        %v5974 = vmul.bf16 %v5639, %v5729
        %v5975 = vmul.bf16 %v5640, %v5733
        %v5976 = vmul.bf16 %v5641, %v5743
        %v5977 = vmul.bf16 %v5642, %v5747
        %v5978 = vmul.bf16 %v5643, %v5754
        %v5979 = vmul.bf16 %v5644, %v5758
        %v5980 = vmul.bf16 %v5645, %v5765
        %v5981 = vmul.bf16 %v5646, %v5769
        %v5982 = vmul.bf16 %v5647, %v5776
        %v5983 = vmul.bf16 %v5648, %v5780
        %v5984 = vmul.bf16 %v5649, %v5787
        %v5985 = vmul.bf16 %v5650, %v5791
        %v5986 = vmul.bf16 %v5651, %v5798
        %v5987 = vmul.bf16 %v5652, %v5802
        %v5988 = vmul.bf16 %v5653, %v5809
        %v5989 = vmul.bf16 %v5654, %v5813
        %v5990 = vmul.bf16 %v5655, %v5820
        %v5991 = vmul.bf16 %v5656, %v5824
        %v5992 = vmul.bf16 %v5657, %v5831
        %v5993 = vmul.bf16 %v5658, %v5835
        %v5994 = vmul.bf16 %v5659, %v5842
        %v5995 = vmul.bf16 %v5660, %v5846
        %v5996 = vmul.bf16 %v5661, %v5853
        %v5997 = vmul.bf16 %v5662, %v5857
        %v5998 = vmul.bf16 %v5663, %v5864
        %v5999 = vmul.bf16 %v5664, %v5868
        %v6000 = vmul.bf16 %v5665, %v5875
        %v6001 = vmul.bf16 %v5666, %v5879
        %v6002 = vmul.bf16 %v5667, %v5886
        %v6003 = vmul.bf16 %v5668, %v5890
        %v6004 = vmul.bf16 %v5669, %v5897
        %v6005 = vmul.bf16 %v5670, %v5901
        %v6006 = vmul.bf16 %v5671, %v5911
        %v6007 = vmul.bf16 %v5672, %v5915
        %v6008 = vmul.bf16 %v5673, %v5925
        %v6009 = vmul.bf16 %v5674, %v5929
        %v6010 = vmul.bf16 %v5675, %v5936
        %v6011 = vmul.bf16 %v5676, %v5940
        %v6012 = vmul.bf16 %v5677, %v5947
        %v6013 = vmul.bf16 %v5678, %v5951
        %v6014 = vmul.bf16 %v5679, %v5958
        %v6015 = vmul.bf16 %v5680, %v5962
        %v6016 = vmul.bf16 %v5681, %v5969
        %v6017 = vmul.bf16 %v5682, %v5973
        %vm6018 = vsmask.f32 6400
        %v6020 = vshrl.u32 %v5974, 16
        %v6022 = vrot.slane %v6020, 1
        %v6023 = vshll.u32 %v5974, 16
        %v6025 = vrot.slane %v6023, 2
        %v6026 = vor.u32 %v6022, %v6025
        %v6028 = vshrl.u32 %v5975, 16
        %v6030 = vrot.slane %v6028, 1
        %v6031 = vshll.u32 %v5975, 16
        %v6033 = vrot.slane %v6031, 2
        %v6034 = vor.u32 %v6030, %v6033
        %v6035 = vsel %vm6018, %v6026, %v6034
        %v6037 = vshrl.u32 %v5976, 16
        %v6039 = vrot.slane %v6037, 1
        %v6040 = vshll.u32 %v5976, 16
        %v6042 = vrot.slane %v6040, 2
        %v6043 = vor.u32 %v6039, %v6042
        %v6045 = vshrl.u32 %v5977, 16
        %v6047 = vrot.slane %v6045, 1
        %v6048 = vshll.u32 %v5977, 16
        %v6050 = vrot.slane %v6048, 2
        %v6051 = vor.u32 %v6047, %v6050
        %v6052 = vsel %vm6018, %v6043, %v6051
        %v6054 = vshrl.u32 %v5978, 16
        %v6056 = vrot.slane %v6054, 1
        %v6057 = vshll.u32 %v5978, 16
        %v6059 = vrot.slane %v6057, 2
        %v6060 = vor.u32 %v6056, %v6059
        %v6062 = vshrl.u32 %v5979, 16
        %v6064 = vrot.slane %v6062, 1
        %v6065 = vshll.u32 %v5979, 16
        %v6067 = vrot.slane %v6065, 2
        %v6068 = vor.u32 %v6064, %v6067
        %v6069 = vsel %vm6018, %v6060, %v6068
        %v6071 = vshrl.u32 %v5980, 16
        %v6073 = vrot.slane %v6071, 1
        %v6074 = vshll.u32 %v5980, 16
        %v6076 = vrot.slane %v6074, 2
        %v6077 = vor.u32 %v6073, %v6076
        %v6079 = vshrl.u32 %v5981, 16
        %v6081 = vrot.slane %v6079, 1
        %v6082 = vshll.u32 %v5981, 16
        %v6084 = vrot.slane %v6082, 2
        %v6085 = vor.u32 %v6081, %v6084
        %v6086 = vsel %vm6018, %v6077, %v6085
        %v6088 = vshrl.u32 %v5982, 16
        %v6090 = vrot.slane %v6088, 1
        %v6091 = vshll.u32 %v5982, 16
        %v6093 = vrot.slane %v6091, 2
        %v6094 = vor.u32 %v6090, %v6093
        %v6096 = vshrl.u32 %v5983, 16
        %v6098 = vrot.slane %v6096, 1
        %v6099 = vshll.u32 %v5983, 16
        %v6101 = vrot.slane %v6099, 2
        %v6102 = vor.u32 %v6098, %v6101
        %v6103 = vsel %vm6018, %v6094, %v6102
        %v6105 = vshrl.u32 %v5984, 16
        %v6107 = vrot.slane %v6105, 1
        %v6108 = vshll.u32 %v5984, 16
        %v6110 = vrot.slane %v6108, 2
        %v6111 = vor.u32 %v6107, %v6110
        %v6113 = vshrl.u32 %v5985, 16
        %v6115 = vrot.slane %v6113, 1
        %v6116 = vshll.u32 %v5985, 16
        %v6118 = vrot.slane %v6116, 2
        %v6119 = vor.u32 %v6115, %v6118
        %v6120 = vsel %vm6018, %v6111, %v6119
        %v6122 = vshrl.u32 %v5986, 16
        %v6124 = vrot.slane %v6122, 1
        %v6125 = vshll.u32 %v5986, 16
        %v6127 = vrot.slane %v6125, 2
        %v6128 = vor.u32 %v6124, %v6127
        %v6130 = vshrl.u32 %v5987, 16
        %v6132 = vrot.slane %v6130, 1
        %v6133 = vshll.u32 %v5987, 16
        %v6135 = vrot.slane %v6133, 2
        %v6136 = vor.u32 %v6132, %v6135
        %v6137 = vsel %vm6018, %v6128, %v6136
        %v6139 = vshrl.u32 %v5988, 16
        %v6141 = vrot.slane %v6139, 1
        %v6142 = vshll.u32 %v5988, 16
        %v6144 = vrot.slane %v6142, 2
        %v6145 = vor.u32 %v6141, %v6144
        %v6147 = vshrl.u32 %v5989, 16
        %v6149 = vrot.slane %v6147, 1
        %v6150 = vshll.u32 %v5989, 16
        %v6152 = vrot.slane %v6150, 2
        %v6153 = vor.u32 %v6149, %v6152
        %v6154 = vsel %vm6018, %v6145, %v6153
        %v6156 = vshrl.u32 %v5990, 16
        %v6158 = vrot.slane %v6156, 1
        %v6159 = vshll.u32 %v5990, 16
        %v6161 = vrot.slane %v6159, 2
        %v6162 = vor.u32 %v6158, %v6161
        %v6164 = vshrl.u32 %v5991, 16
        %v6166 = vrot.slane %v6164, 1
        %v6167 = vshll.u32 %v5991, 16
        %v6169 = vrot.slane %v6167, 2
        %v6170 = vor.u32 %v6166, %v6169
        %v6171 = vsel %vm6018, %v6162, %v6170
        %v6173 = vshrl.u32 %v5992, 16
        %v6175 = vrot.slane %v6173, 1
        %v6176 = vshll.u32 %v5992, 16
        %v6178 = vrot.slane %v6176, 2
        %v6179 = vor.u32 %v6175, %v6178
        %v6181 = vshrl.u32 %v5993, 16
        %v6183 = vrot.slane %v6181, 1
        %v6184 = vshll.u32 %v5993, 16
        %v6186 = vrot.slane %v6184, 2
        %v6187 = vor.u32 %v6183, %v6186
        %v6188 = vsel %vm6018, %v6179, %v6187
        %v6190 = vshrl.u32 %v5994, 16
        %v6192 = vrot.slane %v6190, 1
        %v6193 = vshll.u32 %v5994, 16
        %v6195 = vrot.slane %v6193, 2
        %v6196 = vor.u32 %v6192, %v6195
        %v6198 = vshrl.u32 %v5995, 16
        %v6200 = vrot.slane %v6198, 1
        %v6201 = vshll.u32 %v5995, 16
        %v6203 = vrot.slane %v6201, 2
        %v6204 = vor.u32 %v6200, %v6203
        %v6205 = vsel %vm6018, %v6196, %v6204
        %v6207 = vshrl.u32 %v5996, 16
        %v6209 = vrot.slane %v6207, 1
        %v6210 = vshll.u32 %v5996, 16
        %v6212 = vrot.slane %v6210, 2
        %v6213 = vor.u32 %v6209, %v6212
        %v6215 = vshrl.u32 %v5997, 16
        %v6217 = vrot.slane %v6215, 1
        %v6218 = vshll.u32 %v5997, 16
        %v6220 = vrot.slane %v6218, 2
        %v6221 = vor.u32 %v6217, %v6220
        %v6222 = vsel %vm6018, %v6213, %v6221
        %v6224 = vshrl.u32 %v5998, 16
        %v6226 = vrot.slane %v6224, 1
        %v6227 = vshll.u32 %v5998, 16
        %v6229 = vrot.slane %v6227, 2
        %v6230 = vor.u32 %v6226, %v6229
        %v6232 = vshrl.u32 %v5999, 16
        %v6234 = vrot.slane %v6232, 1
        %v6235 = vshll.u32 %v5999, 16
        %v6237 = vrot.slane %v6235, 2
        %v6238 = vor.u32 %v6234, %v6237
        %v6239 = vsel %vm6018, %v6230, %v6238
        %v6241 = vshrl.u32 %v6000, 16
        %v6243 = vrot.slane %v6241, 1
        %v6244 = vshll.u32 %v6000, 16
        %v6246 = vrot.slane %v6244, 2
        %v6247 = vor.u32 %v6243, %v6246
        %v6249 = vshrl.u32 %v6001, 16
        %v6251 = vrot.slane %v6249, 1
        %v6252 = vshll.u32 %v6001, 16
        %v6254 = vrot.slane %v6252, 2
        %v6255 = vor.u32 %v6251, %v6254
        %v6256 = vsel %vm6018, %v6247, %v6255
        %v6258 = vshrl.u32 %v6002, 16
        %v6260 = vrot.slane %v6258, 1
        %v6261 = vshll.u32 %v6002, 16
        %v6263 = vrot.slane %v6261, 2
        %v6264 = vor.u32 %v6260, %v6263
        %v6266 = vshrl.u32 %v6003, 16
        %v6268 = vrot.slane %v6266, 1
        %v6269 = vshll.u32 %v6003, 16
        %v6271 = vrot.slane %v6269, 2
        %v6272 = vor.u32 %v6268, %v6271
        %v6273 = vsel %vm6018, %v6264, %v6272
        %v6275 = vshrl.u32 %v6004, 16
        %v6277 = vrot.slane %v6275, 1
        %v6278 = vshll.u32 %v6004, 16
        %v6280 = vrot.slane %v6278, 2
        %v6281 = vor.u32 %v6277, %v6280
        %v6283 = vshrl.u32 %v6005, 16
        %v6285 = vrot.slane %v6283, 1
        %v6286 = vshll.u32 %v6005, 16
        %v6288 = vrot.slane %v6286, 2
        %v6289 = vor.u32 %v6285, %v6288
        %v6290 = vsel %vm6018, %v6281, %v6289
        %vm6339 = vcmask 1044480
        %v6340 = vrot.slane %v5974, 3
        %v6341 = vrot.slane %v5975, 3
        %v6342 = vsel %vm6339, %v6340, %v6341
        %v6343 = vrot.slane %v5976, 3
        %v6344 = vrot.slane %v5977, 3
        %v6345 = vsel %vm6339, %v6343, %v6344
        %v6346 = vrot.slane %v5978, 3
        %v6347 = vrot.slane %v5979, 3
        %v6348 = vsel %vm6339, %v6346, %v6347
        %v6349 = vrot.slane %v5980, 3
        %v6350 = vrot.slane %v5981, 3
        %v6351 = vsel %vm6339, %v6349, %v6350
        %v6352 = vrot.slane %v5982, 3
        %v6353 = vrot.slane %v5983, 3
        %v6354 = vsel %vm6339, %v6352, %v6353
        %v6355 = vrot.slane %v5984, 3
        %v6356 = vrot.slane %v5985, 3
        %v6357 = vsel %vm6339, %v6355, %v6356
        %v6358 = vrot.slane %v5986, 3
        %v6359 = vrot.slane %v5987, 3
        %v6360 = vsel %vm6339, %v6358, %v6359
        %v6361 = vrot.slane %v5988, 3
        %v6362 = vrot.slane %v5989, 3
        %v6363 = vsel %vm6339, %v6361, %v6362
        %v6364 = vrot.slane %v5990, 3
        %v6365 = vrot.slane %v5991, 3
        %v6366 = vsel %vm6339, %v6364, %v6365
        %v6367 = vrot.slane %v5992, 3
        %v6368 = vrot.slane %v5993, 3
        %v6369 = vsel %vm6339, %v6367, %v6368
        %v6370 = vrot.slane %v5994, 3
        %v6371 = vrot.slane %v5995, 3
        %v6372 = vsel %vm6339, %v6370, %v6371
        %v6373 = vrot.slane %v5996, 3
        %v6374 = vrot.slane %v5997, 3
        %v6375 = vsel %vm6339, %v6373, %v6374
        %v6376 = vrot.slane %v5998, 3
        %v6377 = vrot.slane %v5999, 3
        %v6378 = vsel %vm6339, %v6376, %v6377
        %v6379 = vrot.slane %v6000, 3
        %v6380 = vrot.slane %v6001, 3
        %v6381 = vsel %vm6339, %v6379, %v6380
        %v6382 = vrot.slane %v6002, 3
        %v6383 = vrot.slane %v6003, 3
        %v6384 = vsel %vm6339, %v6382, %v6383
        %v6385 = vrot.slane %v6004, 3
        %v6386 = vrot.slane %v6005, 3
        %v6387 = vsel %vm6339, %v6385, %v6386
        %v6405 = vshrl.u32 %v6006, 16
        %v6407 = vrot.slane %v6405, 1
        %v6408 = vshll.u32 %v6006, 16
        %v6410 = vrot.slane %v6408, 2
        %v6411 = vor.u32 %v6407, %v6410
        %v6413 = vshrl.u32 %v6007, 16
        %v6415 = vrot.slane %v6413, 1
        %v6416 = vshll.u32 %v6007, 16
        %v6418 = vrot.slane %v6416, 2
        %v6419 = vor.u32 %v6415, %v6418
        %v6420 = vsel %vm6018, %v6411, %v6419
        %v6422 = vshrl.u32 %v6008, 16
        %v6424 = vrot.slane %v6422, 1
        %v6425 = vshll.u32 %v6008, 16
        %v6427 = vrot.slane %v6425, 2
        %v6428 = vor.u32 %v6424, %v6427
        %v6430 = vshrl.u32 %v6009, 16
        %v6432 = vrot.slane %v6430, 1
        %v6433 = vshll.u32 %v6009, 16
        %v6435 = vrot.slane %v6433, 2
        %v6436 = vor.u32 %v6432, %v6435
        %v6437 = vsel %vm6018, %v6428, %v6436
        %v6439 = vshrl.u32 %v6010, 16
        %v6441 = vrot.slane %v6439, 1
        %v6442 = vshll.u32 %v6010, 16
        %v6444 = vrot.slane %v6442, 2
        %v6445 = vor.u32 %v6441, %v6444
        %v6447 = vshrl.u32 %v6011, 16
        %v6449 = vrot.slane %v6447, 1
        %v6450 = vshll.u32 %v6011, 16
        %v6452 = vrot.slane %v6450, 2
        %v6453 = vor.u32 %v6449, %v6452
        %v6454 = vsel %vm6018, %v6445, %v6453
        %v6464 = vrot.slane %v6006, 3
        %v6465 = vrot.slane %v6007, 3
        %v6466 = vsel %vm6339, %v6464, %v6465
        %v6467 = vrot.slane %v6008, 3
        %v6468 = vrot.slane %v6009, 3
        %v6469 = vsel %vm6339, %v6467, %v6468
        %v6470 = vrot.slane %v6010, 3
        %v6471 = vrot.slane %v6011, 3
        %v6472 = vsel %vm6339, %v6470, %v6471
        %v6477 = vshrl.u32 %v6012, 16
        %v6479 = vrot.slane %v6477, 1
        %v6480 = vshll.u32 %v6012, 16
        %v6482 = vrot.slane %v6480, 2
        %v6483 = vor.u32 %v6479, %v6482
        %v6485 = vshrl.u32 %v6013, 16
        %v6487 = vrot.slane %v6485, 1
        %v6488 = vshll.u32 %v6013, 16
        %v6490 = vrot.slane %v6488, 2
        %v6491 = vor.u32 %v6487, %v6490
        %v6492 = vsel %vm6018, %v6483, %v6491
        %v6494 = vshrl.u32 %v6014, 16
        %v6496 = vrot.slane %v6494, 1
        %v6497 = vshll.u32 %v6014, 16
        %v6499 = vrot.slane %v6497, 2
        %v6500 = vor.u32 %v6496, %v6499
        %v6502 = vshrl.u32 %v6015, 16
        %v6504 = vrot.slane %v6502, 1
        %v6505 = vshll.u32 %v6015, 16
        %v6507 = vrot.slane %v6505, 2
        %v6508 = vor.u32 %v6504, %v6507
        %v6509 = vsel %vm6018, %v6500, %v6508
        %v6511 = vshrl.u32 %v6016, 16
        %v6513 = vrot.slane %v6511, 1
        %v6514 = vshll.u32 %v6016, 16
        %v6516 = vrot.slane %v6514, 2
        %v6517 = vor.u32 %v6513, %v6516
        %v6519 = vshrl.u32 %v6017, 16
        %v6521 = vrot.slane %v6519, 1
        %v6522 = vshll.u32 %v6017, 16
        %v6524 = vrot.slane %v6522, 2
        %v6525 = vor.u32 %v6521, %v6524
        %v6526 = vsel %vm6018, %v6517, %v6525
        %v6536 = vrot.slane %v6012, 3
        %v6537 = vrot.slane %v6013, 3
        %v6538 = vsel %vm6339, %v6536, %v6537
        %v6539 = vrot.slane %v6014, 3
        %v6540 = vrot.slane %v6015, 3
        %v6541 = vsel %vm6339, %v6539, %v6540
        %v6542 = vrot.slane %v6016, 3
        %v6543 = vrot.slane %v6017, 3
        %v6544 = vsel %vm6339, %v6542, %v6543
        %v6548 = vld [vmem:[#allocation8] sm:$0xf]
        %v6549 = vld [vmem:[#allocation8 + $0x4] sm:$0xf]
        %v6550 = vld [vmem:[#allocation8 + $0x8] sm:$0xf]
        %v6551 = vld [vmem:[#allocation8 + $0xc] sm:$0xf]
        %v6552 = vld [vmem:[#allocation8 + $0x10] sm:$0xf]
        %v6553 = vld [vmem:[#allocation8 + $0x14] sm:$0xf]
        %v6554 = vld [vmem:[#allocation8 + $0x18] sm:$0xf]
        %v6555 = vld [vmem:[#allocation8 + $0x1c] sm:$0xf]
        %v6556 = vld [vmem:[#allocation8 + $0x20] sm:$0xf]
        %v6557 = vld [vmem:[#allocation8 + $0x24] sm:$0xf]
        %v6558 = vld [vmem:[#allocation8 + $0x28] sm:$0xf]
        %v6559 = vld [vmem:[#allocation8 + $0x2c] sm:$0xf]
        %v6560 = vld [vmem:[#allocation8 + $0x30] sm:$0xf]
        %v6561 = vld [vmem:[#allocation8 + $0x34] sm:$0xf]
        %v6562 = vld [vmem:[#allocation8 + $0x38] sm:$0xf]
        %v6563 = vld [vmem:[#allocation8 + $0x3c] sm:$0xf]
        %v6564 = vld [vmem:[#allocation8 + $0x40] sm:$0xf]
        %v6565 = vld [vmem:[#allocation8 + $0x44] sm:$0xf]
        %v6566 = vld [vmem:[#allocation8 + $0x48] sm:$0xf]
        %v6567 = vld [vmem:[#allocation8 + $0x4c] sm:$0xf]
        %v6568 = vld [vmem:[#allocation8 + $0x50] sm:$0xf]
        %v6569 = vld [vmem:[#allocation8 + $0x54] sm:$0xf]
        %v6570 = vld [vmem:[#allocation8 + $0x58] sm:$0xf]
        %v6571 = vld [vmem:[#allocation8 + $0x5c] sm:$0xf]
        %v6572 = vld [vmem:[#allocation8 + $0x60] sm:$0xf]
        %v6573 = vld [vmem:[#allocation8 + $0x64] sm:$0xf]
        %v6574 = vld [vmem:[#allocation8 + $0x68] sm:$0xf]
        %v6575 = vld [vmem:[#allocation8 + $0x6c] sm:$0xf]
        %v6576 = vld [vmem:[#allocation8 + $0x70] sm:$0xf]
        %v6577 = vld [vmem:[#allocation8 + $0x74] sm:$0xf]
        %v6578 = vld [vmem:[#allocation8 + $0x78] sm:$0xf]
        %v6579 = vld [vmem:[#allocation8 + $0x7c] sm:$0xf]
        %v6580 = vld [vmem:[#allocation8 + $0x80] sm:$0xf]
        %v6581 = vld [vmem:[#allocation8 + $0x84] sm:$0xf]
        %v6582 = vld [vmem:[#allocation8 + $0x88] sm:$0xf]
        %v6583 = vld [vmem:[#allocation8 + $0x8c] sm:$0xf]
        %v6584 = vld [vmem:[#allocation8 + $0x90] sm:$0xf]
        %v6585 = vld [vmem:[#allocation8 + $0x94] sm:$0xf]
        %v6586 = vld [vmem:[#allocation8 + $0x98] sm:$0xf]
        %v6587 = vld [vmem:[#allocation8 + $0x9c] sm:$0xf]
        %v6588 = vld [vmem:[#allocation8 + $0xa0] sm:$0xf]
        %v6589 = vld [vmem:[#allocation8 + $0xa4] sm:$0xf]
        %v6590 = vld [vmem:[#allocation8 + $0xa8] sm:$0xf]
        %v6591 = vld [vmem:[#allocation8 + $0xac] sm:$0xf]
        %v6592 = vld [vmem:[#allocation8 + $0xb0] sm:$0xf]
        %v6593 = vld [vmem:[#allocation8 + $0xb4] sm:$0xf]
        %v6594 = vld [vmem:[#allocation8 + $0xb8] sm:$0xf]
        %v6595 = vld [vmem:[#allocation8 + $0xbc] sm:$0xf]
        %v6596 = vld [vmem:[#allocation8 + $0xc0] sm:$0xf]
        %v6597 = vld [vmem:[#allocation8 + $0xc4] sm:$0xf]
        %v6598 = vld [vmem:[#allocation8 + $0xc8] sm:$0xf]
        %v6599 = vld [vmem:[#allocation8 + $0xcc] sm:$0xf]
        %v6600 = vld [vmem:[#allocation8 + $0xd0] sm:$0xf]
        %v6601 = vld [vmem:[#allocation8 + $0xd4] sm:$0xf]
        %v6602 = vld [vmem:[#allocation8 + $0xd8] sm:$0xf]
        %v6603 = vld [vmem:[#allocation8 + $0xdc] sm:$0xf]
        %v6604 = vld [vmem:[#allocation8 + $0xe0] sm:$0xf]
        %v6605 = vld [vmem:[#allocation8 + $0xe4] sm:$0xf]
        %v6606 = vld [vmem:[#allocation8 + $0xe8] sm:$0xf]
        %v6607 = vld [vmem:[#allocation8 + $0xec] sm:$0xf]
        %v6608 = vld [vmem:[#allocation8 + $0xf0] sm:$0xf]
        %v6609 = vld [vmem:[#allocation8 + $0xf4] sm:$0xf]
        %v6610 = vld [vmem:[#allocation8 + $0xf8] sm:$0xf]
        %v6611 = vld [vmem:[#allocation8 + $0xfc] sm:$0xf]
        %v6612 = vld [vmem:[#allocation8 + $0x100] sm:$0xf]
        %v6613 = vld [vmem:[#allocation8 + $0x104] sm:$0xf]
        %v6614 = vld [vmem:[#allocation8 + $0x108] sm:$0xf]
        %v6615 = vld [vmem:[#allocation8 + $0x10c] sm:$0xf]
        %v6616 = vld [vmem:[#allocation8 + $0x110] sm:$0xf]
        %v6617 = vld [vmem:[#allocation8 + $0x114] sm:$0xf]
        %v6618 = vld [vmem:[#allocation8 + $0x118] sm:$0xf]
        %v6619 = vld [vmem:[#allocation8 + $0x11c] sm:$0xf]
        %v6620 = vld [vmem:[#allocation8 + $0x120] sm:$0xf]
        %v6621 = vld [vmem:[#allocation8 + $0x124] sm:$0xf]
        %v6622 = vld [vmem:[#allocation8 + $0x128] sm:$0xf]
        %v6623 = vld [vmem:[#allocation8 + $0x12c] sm:$0xf]
        %v6624 = vld [vmem:[#allocation8 + $0x130] sm:$0xf]
        %v6625 = vld [vmem:[#allocation8 + $0x134] sm:$0xf]
        %v6626 = vld [vmem:[#allocation8 + $0x138] sm:$0xf]
        %v6627 = vld [vmem:[#allocation8 + $0x13c] sm:$0xf]
        %v6628 = vld [vmem:[#allocation8 + $0x140] sm:$0xf]
        %v6629 = vld [vmem:[#allocation8 + $0x144] sm:$0xf]
        %v6630 = vld [vmem:[#allocation8 + $0x148] sm:$0xf]
        %v6631 = vld [vmem:[#allocation8 + $0x14c] sm:$0xf]
        %v6632 = vld [vmem:[#allocation8 + $0x150] sm:$0xf]
        %v6633 = vld [vmem:[#allocation8 + $0x154] sm:$0xf]
        %v6634 = vld [vmem:[#allocation8 + $0x158] sm:$0xf]
        %v6635 = vld [vmem:[#allocation8 + $0x15c] sm:$0xf]
        %v6636 = vld [vmem:[#allocation8 + $0x160] sm:$0xf]
        %v6637 = vld [vmem:[#allocation8 + $0x164] sm:$0xf]
        %v6638 = vld [vmem:[#allocation8 + $0x168] sm:$0xf]
        %v6639 = vld [vmem:[#allocation8 + $0x16c] sm:$0xf]
        %v6640 = vld [vmem:[#allocation8 + $0x170] sm:$0xf]
        %v6641 = vld [vmem:[#allocation8 + $0x174] sm:$0xf]
        %v6642 = vld [vmem:[#allocation8 + $0x178] sm:$0xf]
        %v6643 = vld [vmem:[#allocation8 + $0x17c] sm:$0xf]
        %v6644 = vld [vmem:[#allocation8 + $0x180] sm:$0xf]
        %v6645 = vld [vmem:[#allocation8 + $0x184] sm:$0xf]
        %v6646 = vld [vmem:[#allocation8 + $0x188] sm:$0xf]
        %v6647 = vld [vmem:[#allocation8 + $0x18c] sm:$0xf]
        %v6648 = vld [vmem:[#allocation8 + $0x190] sm:$0xf]
        %v6649 = vld [vmem:[#allocation8 + $0x194] sm:$0xf]
        %v6650 = vld [vmem:[#allocation8 + $0x198] sm:$0xf]
        %v6651 = vld [vmem:[#allocation8 + $0x19c] sm:$0xf]
        %v6652 = vld [vmem:[#allocation8 + $0x1a0] sm:$0xf]
        %v6653 = vld [vmem:[#allocation8 + $0x1a4] sm:$0xf]
        %v6654 = vld [vmem:[#allocation8 + $0x1a8] sm:$0xf]
        %v6655 = vld [vmem:[#allocation8 + $0x1ac] sm:$0xf]
        %v6656 = vld [vmem:[#allocation8 + $0x1b0] sm:$0xf]
        %v6657 = vld [vmem:[#allocation8 + $0x1b4] sm:$0xf]
        %v6658 = vld [vmem:[#allocation8 + $0x1b8] sm:$0xf]
        %v6659 = vld [vmem:[#allocation8 + $0x1bc] sm:$0xf]
        %v6660 = vld [vmem:[#allocation8 + $0x1c0] sm:$0xf]
        %v6661 = vld [vmem:[#allocation8 + $0x1c4] sm:$0xf]
        %v6662 = vld [vmem:[#allocation8 + $0x1c8] sm:$0xf]
        %v6663 = vld [vmem:[#allocation8 + $0x1cc] sm:$0xf]
        %v6664 = vld [vmem:[#allocation8 + $0x1d0] sm:$0xf]
        %v6665 = vld [vmem:[#allocation8 + $0x1d4] sm:$0xf]
        %v6666 = vld [vmem:[#allocation8 + $0x1d8] sm:$0xf]
        %v6667 = vld [vmem:[#allocation8 + $0x1dc] sm:$0xf]
        %v6668 = vld [vmem:[#allocation8 + $0x1e0] sm:$0xf]
        %v6669 = vld [vmem:[#allocation8 + $0x1e4] sm:$0xf]
        %v6670 = vld [vmem:[#allocation8 + $0x1e8] sm:$0xf]
        %v6671 = vld [vmem:[#allocation8 + $0x1ec] sm:$0xf]
        %v6672 = vld [vmem:[#allocation8 + $0x1f0] sm:$0xf]
        %v6673 = vld [vmem:[#allocation8 + $0x1f4] sm:$0xf]
        %v6674 = vld [vmem:[#allocation8 + $0x1f8] sm:$0xf]
        %v6675 = vld [vmem:[#allocation8 + $0x1fc] sm:$0xf]
        %v6676 = vld [vmem:[#allocation8 + $0x200] sm:$0xf]
        %v6677 = vld [vmem:[#allocation8 + $0x204] sm:$0xf]
        %v6678 = vld [vmem:[#allocation8 + $0x208] sm:$0xf]
        %v6679 = vld [vmem:[#allocation8 + $0x20c] sm:$0xf]
        %v6680 = vld [vmem:[#allocation8 + $0x210] sm:$0xf]
        %v6681 = vld [vmem:[#allocation8 + $0x214] sm:$0xf]
        %v6682 = vld [vmem:[#allocation8 + $0x218] sm:$0xf]
        %v6683 = vld [vmem:[#allocation8 + $0x21c] sm:$0xf]
        %v6684 = vld [vmem:[#allocation8 + $0x220] sm:$0xf]
        %v6685 = vld [vmem:[#allocation8 + $0x224] sm:$0xf]
        %v6686 = vld [vmem:[#allocation8 + $0x228] sm:$0xf]
        %v6687 = vld [vmem:[#allocation8 + $0x22c] sm:$0xf]
        %v6688 = vld [vmem:[#allocation8 + $0x230] sm:$0xf]
        %v6689 = vld [vmem:[#allocation8 + $0x234] sm:$0xf]
        %v6690 = vld [vmem:[#allocation8 + $0x238] sm:$0xf]
        %v6691 = vld [vmem:[#allocation8 + $0x23c] sm:$0xf]
        %v6692 = vld [vmem:[#allocation10] sm:$0x1]
        %v6694 = vlaneseq
        %v6695 = vshrl.u32 %v6694, 7
        %v6696 = vsub.s32 0, %v6695
        %v6697 = vrot.slane %v6692, %v6696
        %v6843 = vunpack.c.l.b16 %v6548
        %v6844 = vunpack.c.l.b16 %v6549
        %v6845 = vunpack.c.l.b16 %v6550
        %v6846 = vunpack.c.l.b16 %v6551
        %v6847 = vunpack.c.l.b16 %v6552
        %v6848 = vunpack.c.l.b16 %v6553
        %v6849 = vunpack.c.l.b16 %v6554
        %v6850 = vunpack.c.l.b16 %v6555
        %v6851 = vunpack.c.l.b16 %v6556
        %v6852 = vunpack.c.l.b16 %v6557
        %v6853 = vunpack.c.l.b16 %v6558
        %v6854 = vunpack.c.l.b16 %v6559
        %v6855 = vunpack.c.l.b16 %v6560
        %v6856 = vunpack.c.l.b16 %v6561
        %v6857 = vunpack.c.l.b16 %v6562
        %v6858 = vunpack.c.l.b16 %v6563
        %v6859 = vunpack.c.l.b16 %v6564
        %v6860 = vunpack.c.l.b16 %v6565
        %v6861 = vunpack.c.l.b16 %v6566
        %v6862 = vunpack.c.l.b16 %v6567
        %v6863 = vunpack.c.l.b16 %v6568
        %v6864 = vunpack.c.l.b16 %v6569
        %v6865 = vunpack.c.l.b16 %v6570
        %v6866 = vunpack.c.l.b16 %v6571
        %v6867 = vunpack.c.l.b16 %v6572
        %v6868 = vunpack.c.l.b16 %v6573
        %v6869 = vunpack.c.l.b16 %v6574
        %v6870 = vunpack.c.l.b16 %v6575
        %v6871 = vunpack.c.l.b16 %v6576
        %v6872 = vunpack.c.l.b16 %v6577
        %v6873 = vunpack.c.l.b16 %v6578
        %v6874 = vunpack.c.l.b16 %v6579
        %v6875 = vunpack.c.l.b16 %v6580
        %v6876 = vunpack.c.l.b16 %v6581
        %v6877 = vunpack.c.l.b16 %v6582
        %v6878 = vunpack.c.l.b16 %v6583
        %v6879 = vunpack.c.l.b16 %v6584
        %v6880 = vunpack.c.l.b16 %v6585
        %v6881 = vunpack.c.l.b16 %v6586
        %v6882 = vunpack.c.l.b16 %v6587
        %v6883 = vunpack.c.l.b16 %v6588
        %v6884 = vunpack.c.l.b16 %v6589
        %v6885 = vunpack.c.l.b16 %v6590
        %v6886 = vunpack.c.l.b16 %v6591
        %v6887 = vunpack.c.l.b16 %v6592
        %v6888 = vunpack.c.l.b16 %v6593
        %v6889 = vunpack.c.l.b16 %v6594
        %v6890 = vunpack.c.l.b16 %v6595
        %v6891 = vunpack.c.l.b16 %v6596
        %v6892 = vunpack.c.l.b16 %v6597
        %v6893 = vunpack.c.l.b16 %v6598
        %v6894 = vunpack.c.l.b16 %v6599
        %v6895 = vunpack.c.l.b16 %v6600
        %v6896 = vunpack.c.l.b16 %v6601
        %v6897 = vunpack.c.l.b16 %v6602
        %v6898 = vunpack.c.l.b16 %v6603
        %v6899 = vunpack.c.l.b16 %v6604
        %v6900 = vunpack.c.l.b16 %v6605
        %v6901 = vunpack.c.l.b16 %v6606
        %v6902 = vunpack.c.l.b16 %v6607
        %v6903 = vunpack.c.l.b16 %v6608
        %v6904 = vunpack.c.l.b16 %v6609
        %v6905 = vunpack.c.l.b16 %v6610
        %v6906 = vunpack.c.l.b16 %v6611
        %v6907 = vunpack.c.l.b16 %v6612
        %v6908 = vunpack.c.l.b16 %v6613
        %v6909 = vunpack.c.l.b16 %v6614
        %v6910 = vunpack.c.l.b16 %v6615
        %v6911 = vunpack.c.l.b16 %v6616
        %v6912 = vunpack.c.l.b16 %v6617
        %v6913 = vunpack.c.l.b16 %v6618
        %v6914 = vunpack.c.l.b16 %v6619
        %v6915 = vunpack.c.l.b16 %v6620
        %v6916 = vunpack.c.l.b16 %v6621
        %v6917 = vunpack.c.l.b16 %v6622
        %v6918 = vunpack.c.l.b16 %v6623
        %v6919 = vunpack.c.l.b16 %v6624
        %v6920 = vunpack.c.l.b16 %v6625
        %v6921 = vunpack.c.l.b16 %v6626
        %v6922 = vunpack.c.l.b16 %v6627
        %v6923 = vunpack.c.l.b16 %v6628
        %v6924 = vunpack.c.l.b16 %v6629
        %v6925 = vunpack.c.l.b16 %v6630
        %v6926 = vunpack.c.l.b16 %v6631
        %v6927 = vunpack.c.l.b16 %v6632
        %v6928 = vunpack.c.l.b16 %v6633
        %v6929 = vunpack.c.l.b16 %v6634
        %v6930 = vunpack.c.l.b16 %v6635
        %v6931 = vunpack.c.l.b16 %v6636
        %v6932 = vunpack.c.l.b16 %v6637
        %v6933 = vunpack.c.l.b16 %v6638
        %v6934 = vunpack.c.l.b16 %v6639
        %v6935 = vunpack.c.l.b16 %v6640
        %v6936 = vunpack.c.l.b16 %v6641
        %v6937 = vunpack.c.l.b16 %v6642
        %v6938 = vunpack.c.l.b16 %v6643
        %v6939 = vunpack.c.l.b16 %v6644
        %v6940 = vunpack.c.l.b16 %v6645
        %v6941 = vunpack.c.l.b16 %v6646
        %v6942 = vunpack.c.l.b16 %v6647
        %v6943 = vunpack.c.l.b16 %v6648
        %v6944 = vunpack.c.l.b16 %v6649
        %v6945 = vunpack.c.l.b16 %v6650
        %v6946 = vunpack.c.l.b16 %v6651
        %v6947 = vunpack.c.l.b16 %v6652
        %v6948 = vunpack.c.l.b16 %v6653
        %v6949 = vunpack.c.l.b16 %v6654
        %v6950 = vunpack.c.l.b16 %v6655
        %v6951 = vunpack.c.l.b16 %v6656
        %v6952 = vunpack.c.l.b16 %v6657
        %v6953 = vunpack.c.l.b16 %v6658
        %v6954 = vunpack.c.l.b16 %v6659
        %v6955 = vunpack.c.l.b16 %v6660
        %v6956 = vunpack.c.l.b16 %v6661
        %v6957 = vunpack.c.l.b16 %v6662
        %v6958 = vunpack.c.l.b16 %v6663
        %v6959 = vunpack.c.l.b16 %v6664
        %v6960 = vunpack.c.l.b16 %v6665
        %v6961 = vunpack.c.l.b16 %v6666
        %v6962 = vunpack.c.l.b16 %v6667
        %v6963 = vunpack.c.l.b16 %v6668
        %v6964 = vunpack.c.l.b16 %v6669
        %v6965 = vunpack.c.l.b16 %v6670
        %v6966 = vunpack.c.l.b16 %v6671
        %v6967 = vunpack.c.l.b16 %v6672
        %v6968 = vunpack.c.l.b16 %v6673
        %v6969 = vunpack.c.l.b16 %v6674
        %v6970 = vunpack.c.l.b16 %v6675
        %v6971 = vunpack.c.l.b16 %v6676
        %v6972 = vunpack.c.l.b16 %v6677
        %v6973 = vunpack.c.l.b16 %v6678
        %v6974 = vunpack.c.l.b16 %v6679
        %v6975 = vunpack.c.l.b16 %v6680
        %v6976 = vunpack.c.l.b16 %v6681
        %v6977 = vunpack.c.l.b16 %v6682
        %v6978 = vunpack.c.l.b16 %v6683
        %v6979 = vunpack.c.l.b16 %v6684
        %v6980 = vunpack.c.l.b16 %v6685
        %v6981 = vunpack.c.l.b16 %v6686
        %v6982 = vunpack.c.l.b16 %v6687
        %v6983 = vunpack.c.l.b16 %v6688
        %v6984 = vunpack.c.l.b16 %v6689
        %v6985 = vunpack.c.l.b16 %v6690
        %v6986 = vunpack.c.l.b16 %v6691
        %v6987 = vpack.c.b16 %v6844, %v6843
        %v6988 = vpack.c.b16 %v6846, %v6845
        %v6989 = vpack.c.b16 %v6848, %v6847
        %v6990 = vpack.c.b16 %v6850, %v6849
        %v6991 = vpack.c.b16 %v6852, %v6851
        %v6992 = vpack.c.b16 %v6854, %v6853
        %v6993 = vpack.c.b16 %v6856, %v6855
        %v6994 = vpack.c.b16 %v6858, %v6857
        %v6995 = vpack.c.b16 %v6860, %v6859
        %v6996 = vpack.c.b16 %v6862, %v6861
        %v6997 = vpack.c.b16 %v6864, %v6863
        %v6998 = vpack.c.b16 %v6866, %v6865
        %v6999 = vpack.c.b16 %v6868, %v6867
        %v7000 = vpack.c.b16 %v6870, %v6869
        %v7001 = vpack.c.b16 %v6872, %v6871
        %v7002 = vpack.c.b16 %v6874, %v6873
        %v7003 = vpack.c.b16 %v6876, %v6875
        %v7004 = vpack.c.b16 %v6878, %v6877
        %v7005 = vpack.c.b16 %v6880, %v6879
        %v7006 = vpack.c.b16 %v6882, %v6881
        %v7007 = vpack.c.b16 %v6884, %v6883
        %v7008 = vpack.c.b16 %v6886, %v6885
        %v7009 = vpack.c.b16 %v6888, %v6887
        %v7010 = vpack.c.b16 %v6890, %v6889
        %v7011 = vpack.c.b16 %v6892, %v6891
        %v7012 = vpack.c.b16 %v6894, %v6893
        %v7013 = vpack.c.b16 %v6896, %v6895
        %v7014 = vpack.c.b16 %v6898, %v6897
        %v7015 = vpack.c.b16 %v6900, %v6899
        %v7016 = vpack.c.b16 %v6902, %v6901
        %v7017 = vpack.c.b16 %v6904, %v6903
        %v7018 = vpack.c.b16 %v6906, %v6905
        %v7019 = vpack.c.b16 %v6908, %v6907
        %v7020 = vpack.c.b16 %v6910, %v6909
        %v7021 = vpack.c.b16 %v6912, %v6911
        %v7022 = vpack.c.b16 %v6914, %v6913
        %v7023 = vpack.c.b16 %v6916, %v6915
        %v7024 = vpack.c.b16 %v6918, %v6917
        %v7025 = vpack.c.b16 %v6920, %v6919
        %v7026 = vpack.c.b16 %v6922, %v6921
        %v7027 = vpack.c.b16 %v6924, %v6923
        %v7028 = vpack.c.b16 %v6926, %v6925
        %v7029 = vpack.c.b16 %v6928, %v6927
        %v7030 = vpack.c.b16 %v6930, %v6929
        %v7031 = vpack.c.b16 %v6932, %v6931
        %v7032 = vpack.c.b16 %v6934, %v6933
        %v7033 = vpack.c.b16 %v6936, %v6935
        %v7034 = vpack.c.b16 %v6938, %v6937
        %v7035 = vpack.c.b16 %v6940, %v6939
        %v7036 = vpack.c.b16 %v6942, %v6941
        %v7037 = vpack.c.b16 %v6944, %v6943
        %v7038 = vpack.c.b16 %v6946, %v6945
        %v7039 = vpack.c.b16 %v6948, %v6947
        %v7040 = vpack.c.b16 %v6950, %v6949
        %v7041 = vpack.c.b16 %v6952, %v6951
        %v7042 = vpack.c.b16 %v6954, %v6953
        %v7043 = vpack.c.b16 %v6956, %v6955
        %v7044 = vpack.c.b16 %v6958, %v6957
        %v7045 = vpack.c.b16 %v6960, %v6959
        %v7046 = vpack.c.b16 %v6962, %v6961
        %v7047 = vpack.c.b16 %v6964, %v6963
        %v7048 = vpack.c.b16 %v6966, %v6965
        %v7049 = vpack.c.b16 %v6968, %v6967
        %v7050 = vpack.c.b16 %v6970, %v6969
        %v7051 = vpack.c.b16 %v6972, %v6971
        %v7052 = vpack.c.b16 %v6974, %v6973
        %v7053 = vpack.c.b16 %v6976, %v6975
        %v7054 = vpack.c.b16 %v6978, %v6977
        %v7055 = vpack.c.b16 %v6980, %v6979
        %v7056 = vpack.c.b16 %v6982, %v6981
        %v7057 = vpack.c.b16 %v6984, %v6983
        %v7058 = vpack.c.b16 %v6986, %v6985
        %7131 = vmatprep.subr.bf16.mxu0 0
        %7132 = vmatpush1.bf16.msra.mxu0 %v6987
        %7133 = vmatprep.subr.bf16.mxu0 0
        %7134 = vmatpush1.bf16.msra.mxu0 %v6988
        %7135 = vmatprep.subr.bf16.mxu0 0
        %7136 = vmatpush1.bf16.msra.mxu0 %v6989
        %7137 = vmatprep.subr.bf16.mxu0 0
        %7138 = vmatpush1.bf16.msra.mxu0 %v6990
        %7139 = vmatprep.subr.bf16.mxu0 0
        %7140 = vmatpush1.bf16.msra.mxu0 %v6991
        %7141 = vmatprep.subr.bf16.mxu0 0
        %7142 = vmatpush1.bf16.msra.mxu0 %v6992
        %7143 = vmatprep.subr.bf16.mxu0 0
        %7144 = vmatpush1.bf16.msra.mxu0 %v6993
        %7145 = vmatprep.subr.bf16.mxu0 0
        %7146 = vmatpush1.bf16.msra.mxu0 %v6994
        %7147 = vmatprep.subr.bf16.mxu0 0
        %7148 = vmatpush1.bf16.msra.mxu0 %v6995
        %7149 = vmatprep.subr.bf16.mxu0 0
        %7150 = vmatpush1.bf16.msra.mxu0 %v6996
        %7151 = vmatprep.subr.bf16.mxu0 0
        %7152 = vmatpush1.bf16.msra.mxu0 %v6997
        %7153 = vmatprep.subr.bf16.mxu0 0
        %7154 = vmatpush1.bf16.msra.mxu0 %v6998
        %7155 = vmatprep.subr.bf16.mxu0 0
        %7156 = vmatpush1.bf16.msra.mxu0 %v6999
        %7157 = vmatprep.subr.bf16.mxu0 0
        %7158 = vmatpush1.bf16.msra.mxu0 %v7000
        %7159 = vmatprep.subr.bf16.mxu0 0
        %7160 = vmatpush1.bf16.msra.mxu0 %v7001
        %7161 = vmatprep.subr.bf16.mxu0 0
        %7162 = vmatpush1.bf16.msra.mxu0 %v7002
        %7163 = vmatprep.mubr.bf16.mxu0 %v6035
        %7164 = vmatmul.mubr.bf16.gmra.mrb[0].mxu0 %v5974
        %v7165 = vpop.f32.mrb[0].mxu0
        %v7166 = vadd.f32 %v6697, %v7165
        %v7167 = vpop.f32.mrb[0].mxu0
        %v7168 = vpop.f32.mrb[0].mxu0
        %v7169 = vadd.f32 %v6697, %v7168
        %v7170 = vpop.f32.mrb[0].mxu0
        %7171 = vmatprep.mubr.bf16.mxu0 %v6052
        %7172 = vmatmul.mubr.bf16.gmra.mrb[0].mxu0 %v5976
        %v7173 = vpop.f32.mrb[0].mxu0
        %v7174 = vadd.f32 %v6697, %v7173
        %v7175 = vpop.f32.mrb[0].mxu0
        %v7176 = vpop.f32.mrb[0].mxu0
        %v7177 = vadd.f32 %v6697, %v7176
        %v7178 = vpop.f32.mrb[0].mxu0
        %7179 = vmatprep.mubr.bf16.mxu0 %v6069
        %7180 = vmatmul.mubr.bf16.gmra.mrb[0].mxu0 %v5978
        %v7181 = vpop.f32.mrb[0].mxu0
        %v7182 = vadd.f32 %v6697, %v7181
        %v7183 = vpop.f32.mrb[0].mxu0
        %v7184 = vpop.f32.mrb[0].mxu0
        %v7185 = vadd.f32 %v6697, %v7184
        %v7186 = vpop.f32.mrb[0].mxu0
        %7187 = vmatprep.mubr.bf16.mxu0 %v6086
        %7188 = vmatmul.mubr.bf16.gmra.mrb[0].mxu0 %v5980
        %v7189 = vpop.f32.mrb[0].mxu0
        %v7190 = vadd.f32 %v6697, %v7189
        %v7191 = vpop.f32.mrb[0].mxu0
        %v7192 = vpop.f32.mrb[0].mxu0
        %v7193 = vadd.f32 %v6697, %v7192
        %v7194 = vpop.f32.mrb[0].mxu0
        %7195 = vmatprep.mubr.bf16.mxu0 %v6103
        %7196 = vmatmul.mubr.bf16.gmra.mrb[0].mxu0 %v5982
        %v7197 = vpop.f32.mrb[0].mxu0
        %v7198 = vadd.f32 %v6697, %v7197
        %v7199 = vpop.f32.mrb[0].mxu0
        %v7200 = vpop.f32.mrb[0].mxu0
        %v7201 = vadd.f32 %v6697, %v7200
        %v7202 = vpop.f32.mrb[0].mxu0
        %7203 = vmatprep.mubr.bf16.mxu0 %v6120
        %7204 = vmatmul.mubr.bf16.gmra.mrb[0].mxu0 %v5984
        %v7205 = vpop.f32.mrb[0].mxu0
        %v7206 = vadd.f32 %v6697, %v7205
        %v7207 = vpop.f32.mrb[0].mxu0
        %v7208 = vpop.f32.mrb[0].mxu0
        %v7209 = vadd.f32 %v6697, %v7208
        %v7210 = vpop.f32.mrb[0].mxu0
        %7211 = vmatprep.mubr.bf16.mxu0 %v6137
        %7212 = vmatmul.mubr.bf16.gmra.mrb[0].mxu0 %v5986
        %v7213 = vpop.f32.mrb[0].mxu0
        %v7214 = vadd.f32 %v6697, %v7213
        %v7215 = vpop.f32.mrb[0].mxu0
        %v7216 = vpop.f32.mrb[0].mxu0
        %v7217 = vadd.f32 %v6697, %v7216
        %v7218 = vpop.f32.mrb[0].mxu0
        %7219 = vmatprep.mubr.bf16.mxu0 %v6154
        %7220 = vmatmul.mubr.bf16.gmra.mrb[0].mxu0 %v5988
        %v7221 = vpop.f32.mrb[0].mxu0
        %v7222 = vadd.f32 %v6697, %v7221
        %v7223 = vpop.f32.mrb[0].mxu0
        %v7224 = vpop.f32.mrb[0].mxu0
        %v7225 = vadd.f32 %v6697, %v7224
        %v7226 = vpop.f32.mrb[0].mxu0
        %7227 = vmatprep.mubr.bf16.mxu0 %v6171
        %7228 = vmatmul.mubr.bf16.gmra.mrb[0].mxu0 %v5990
        %v7229 = vpop.f32.mrb[0].mxu0
        %v7230 = vadd.f32 %v6697, %v7229
        %v7231 = vpop.f32.mrb[0].mxu0
        %v7232 = vpop.f32.mrb[0].mxu0
        %v7233 = vadd.f32 %v6697, %v7232
        %v7234 = vpop.f32.mrb[0].mxu0
        %7235 = vmatprep.mubr.bf16.mxu0 %v6188
        %7236 = vmatmul.mubr.bf16.gmra.mrb[0].mxu0 %v5992
        %v7237 = vpop.f32.mrb[0].mxu0
        %v7238 = vadd.f32 %v6697, %v7237
        %v7239 = vpop.f32.mrb[0].mxu0
        %v7240 = vpop.f32.mrb[0].mxu0
        %v7241 = vadd.f32 %v6697, %v7240
        %v7242 = vpop.f32.mrb[0].mxu0
        %7243 = vmatprep.mubr.bf16.mxu0 %v6205
        %7244 = vmatmul.mubr.bf16.gmra.mrb[0].mxu0 %v5994
        %v7245 = vpop.f32.mrb[0].mxu0
        %v7246 = vadd.f32 %v6697, %v7245
        %v7247 = vpop.f32.mrb[0].mxu0
        %v7248 = vpop.f32.mrb[0].mxu0
        %v7249 = vadd.f32 %v6697, %v7248
        %v7250 = vpop.f32.mrb[0].mxu0
        %7251 = vmatprep.mubr.bf16.mxu0 %v6222
        %7252 = vmatmul.mubr.bf16.gmra.mrb[0].mxu0 %v5996
        %v7253 = vpop.f32.mrb[0].mxu0
        %v7254 = vadd.f32 %v6697, %v7253
        %v7255 = vpop.f32.mrb[0].mxu0
        %v7256 = vpop.f32.mrb[0].mxu0
        %v7257 = vadd.f32 %v6697, %v7256
        %v7258 = vpop.f32.mrb[0].mxu0
        %7259 = vmatprep.mubr.bf16.mxu0 %v6239
        %7260 = vmatmul.mubr.bf16.gmra.mrb[0].mxu0 %v5998
        %v7261 = vpop.f32.mrb[0].mxu0
        %v7262 = vadd.f32 %v6697, %v7261
        %v7263 = vpop.f32.mrb[0].mxu0
        %v7264 = vpop.f32.mrb[0].mxu0
        %v7265 = vadd.f32 %v6697, %v7264
        %v7266 = vpop.f32.mrb[0].mxu0
        %7267 = vmatprep.mubr.bf16.mxu0 %v6256
        %7268 = vmatmul.mubr.bf16.gmra.mrb[0].mxu0 %v6000
        %v7269 = vpop.f32.mrb[0].mxu0
        %v7270 = vadd.f32 %v6697, %v7269
        %v7271 = vpop.f32.mrb[0].mxu0
        %v7272 = vpop.f32.mrb[0].mxu0
        %v7273 = vadd.f32 %v6697, %v7272
        %v7274 = vpop.f32.mrb[0].mxu0
        %7275 = vmatprep.mubr.bf16.mxu0 %v6273
        %7276 = vmatmul.mubr.bf16.gmra.mrb[0].mxu0 %v6002
        %v7277 = vpop.f32.mrb[0].mxu0
        %v7278 = vadd.f32 %v6697, %v7277
        %v7279 = vpop.f32.mrb[0].mxu0
        %v7280 = vpop.f32.mrb[0].mxu0
        %v7281 = vadd.f32 %v6697, %v7280
        %v7282 = vpop.f32.mrb[0].mxu0
        %7283 = vmatprep.mubr.bf16.mxu0 %v6290
        %7284 = vmatmul.mubr.bf16.gmra.mrb[0].mxu0 %v6004
        %v7285 = vpop.f32.mrb[0].mxu0
        %v7286 = vadd.f32 %v6697, %v7285
        %v7287 = vpop.f32.mrb[0].mxu0
        %v7288 = vpop.f32.mrb[0].mxu0
        %v7289 = vadd.f32 %v6697, %v7288
        %v7290 = vpop.f32.mrb[0].mxu0
        %7291 = vdwg.mxu0
        %7292 = vmatprep.subr.bf16.mxu0 0
        %7293 = vmatpush1.bf16.msra.mxu0 %v7003
        %7294 = vmatprep.subr.bf16.mxu0 0
        %7295 = vmatpush1.bf16.msra.mxu0 %v7004
        %7296 = vmatprep.subr.bf16.mxu0 0
        %7297 = vmatpush1.bf16.msra.mxu0 %v7005
        %7298 = vmatprep.subr.bf16.mxu0 0
        %7299 = vmatpush1.bf16.msra.mxu0 %v7006
        %7300 = vmatprep.subr.bf16.mxu0 0
        %7301 = vmatpush1.bf16.msra.mxu0 %v7007
        %7302 = vmatprep.subr.bf16.mxu0 0
        %7303 = vmatpush1.bf16.msra.mxu0 %v7008
        %7304 = vmatprep.subr.bf16.mxu0 0
        %7305 = vmatpush1.bf16.msra.mxu0 %v7009
        %7306 = vmatprep.subr.bf16.mxu0 0
        %7307 = vmatpush1.bf16.msra.mxu0 %v7010
        %7308 = vmatprep.subr.bf16.mxu0 0
        %7309 = vmatpush1.bf16.msra.mxu0 %v7011
        %7310 = vmatprep.subr.bf16.mxu0 0
        %7311 = vmatpush1.bf16.msra.mxu0 %v7012
        %7312 = vmatprep.subr.bf16.mxu0 0
        %7313 = vmatpush1.bf16.msra.mxu0 %v7013
        %7314 = vmatprep.subr.bf16.mxu0 0
        %7315 = vmatpush1.bf16.msra.mxu0 %v7014
        %7316 = vmatprep.subr.bf16.mxu0 0
        %7317 = vmatpush1.bf16.msra.mxu0 %v7015
        %7318 = vmatprep.subr.bf16.mxu0 0
        %7319 = vmatpush1.bf16.msra.mxu0 %v7016
        %7320 = vmatprep.subr.bf16.mxu0 0
        %7321 = vmatpush1.bf16.msra.mxu0 %v7017
        %7322 = vmatprep.subr.bf16.mxu0 0
        %7323 = vmatpush1.bf16.msra.mxu0 %v7018
        %7324 = vmatprep.mubr.bf16.mxu0 %v5980
        %7325 = vmatmul.mubr.bf16.gmra.mrb[0].mxu0 %v6342
        %v7326 = vpop.f32.mrb[0].mxu0
        %v7327 = vadd.f32 %v7166, %v7326
        %v7328 = vpop.f32.mrb[0].mxu0
        %v7329 = vpop.f32.mrb[0].mxu0
        %v7330 = vadd.f32 %v7169, %v7329
        %v7331 = vpop.f32.mrb[0].mxu0
        %7332 = vmatprep.mubr.bf16.mxu0 %v5982
        %7333 = vmatmul.mubr.bf16.gmra.mrb[0].mxu0 %v6345
        %v7334 = vpop.f32.mrb[0].mxu0
        %v7335 = vadd.f32 %v7174, %v7334
        %v7336 = vpop.f32.mrb[0].mxu0
        %v7337 = vpop.f32.mrb[0].mxu0
        %v7338 = vadd.f32 %v7177, %v7337
        %v7339 = vpop.f32.mrb[0].mxu0
        %7340 = vmatprep.mubr.bf16.mxu0 %v5984
        %7341 = vmatmul.mubr.bf16.gmra.mrb[0].mxu0 %v6348
        %v7342 = vpop.f32.mrb[0].mxu0
        %v7343 = vadd.f32 %v7182, %v7342
        %v7344 = vpop.f32.mrb[0].mxu0
        %v7345 = vpop.f32.mrb[0].mxu0
        %v7346 = vadd.f32 %v7185, %v7345
        %v7347 = vpop.f32.mrb[0].mxu0
        %7348 = vmatprep.mubr.bf16.mxu0 %v5986
        %7349 = vmatmul.mubr.bf16.gmra.mrb[0].mxu0 %v6351
        %v7350 = vpop.f32.mrb[0].mxu0
        %v7351 = vadd.f32 %v7190, %v7350
        %v7352 = vpop.f32.mrb[0].mxu0
        %v7353 = vpop.f32.mrb[0].mxu0
        %v7354 = vadd.f32 %v7193, %v7353
        %v7355 = vpop.f32.mrb[0].mxu0
        %7356 = vmatprep.mubr.bf16.mxu0 %v5988
        %7357 = vmatmul.mubr.bf16.gmra.mrb[0].mxu0 %v6354
        %v7358 = vpop.f32.mrb[0].mxu0
        %v7359 = vadd.f32 %v7198, %v7358
        %v7360 = vpop.f32.mrb[0].mxu0
        %v7361 = vpop.f32.mrb[0].mxu0
        %v7362 = vadd.f32 %v7201, %v7361
        %v7363 = vpop.f32.mrb[0].mxu0
        %7364 = vmatprep.mubr.bf16.mxu0 %v5990
        %7365 = vmatmul.mubr.bf16.gmra.mrb[0].mxu0 %v6357
        %v7366 = vpop.f32.mrb[0].mxu0
        %v7367 = vadd.f32 %v7206, %v7366
        %v7368 = vpop.f32.mrb[0].mxu0
        %v7369 = vpop.f32.mrb[0].mxu0
        %v7370 = vadd.f32 %v7209, %v7369
        %v7371 = vpop.f32.mrb[0].mxu0
        %7372 = vmatprep.mubr.bf16.mxu0 %v5992
        %7373 = vmatmul.mubr.bf16.gmra.mrb[0].mxu0 %v6360
        %v7374 = vpop.f32.mrb[0].mxu0
        %v7375 = vadd.f32 %v7214, %v7374
        %v7376 = vpop.f32.mrb[0].mxu0
        %v7377 = vpop.f32.mrb[0].mxu0
        %v7378 = vadd.f32 %v7217, %v7377
        %v7379 = vpop.f32.mrb[0].mxu0
        %7380 = vmatprep.mubr.bf16.mxu0 %v5994
        %7381 = vmatmul.mubr.bf16.gmra.mrb[0].mxu0 %v6363
        %v7382 = vpop.f32.mrb[0].mxu0
        %v7383 = vadd.f32 %v7222, %v7382
        %v7384 = vpop.f32.mrb[0].mxu0
        %v7385 = vpop.f32.mrb[0].mxu0
        %v7386 = vadd.f32 %v7225, %v7385
        %v7387 = vpop.f32.mrb[0].mxu0
        %7388 = vmatprep.mubr.bf16.mxu0 %v5996
        %7389 = vmatmul.mubr.bf16.gmra.mrb[0].mxu0 %v6366
        %v7390 = vpop.f32.mrb[0].mxu0
        %v7391 = vadd.f32 %v7230, %v7390
        %v7392 = vpop.f32.mrb[0].mxu0
        %v7393 = vpop.f32.mrb[0].mxu0
        %v7394 = vadd.f32 %v7233, %v7393
        %v7395 = vpop.f32.mrb[0].mxu0
        %7396 = vmatprep.mubr.bf16.mxu0 %v5998
        %7397 = vmatmul.mubr.bf16.gmra.mrb[0].mxu0 %v6369
        %v7398 = vpop.f32.mrb[0].mxu0
        %v7399 = vadd.f32 %v7238, %v7398
        %v7400 = vpop.f32.mrb[0].mxu0
        %v7401 = vpop.f32.mrb[0].mxu0
        %v7402 = vadd.f32 %v7241, %v7401
        %v7403 = vpop.f32.mrb[0].mxu0
        %7404 = vmatprep.mubr.bf16.mxu0 %v6000
        %7405 = vmatmul.mubr.bf16.gmra.mrb[0].mxu0 %v6372
        %v7406 = vpop.f32.mrb[0].mxu0
        %v7407 = vadd.f32 %v7246, %v7406
        %v7408 = vpop.f32.mrb[0].mxu0
        %v7409 = vpop.f32.mrb[0].mxu0
        %v7410 = vadd.f32 %v7249, %v7409
        %v7411 = vpop.f32.mrb[0].mxu0
        %7412 = vmatprep.mubr.bf16.mxu0 %v6002
        %7413 = vmatmul.mubr.bf16.gmra.mrb[0].mxu0 %v6375
        %v7414 = vpop.f32.mrb[0].mxu0
        %v7415 = vadd.f32 %v7254, %v7414
        %v7416 = vpop.f32.mrb[0].mxu0
        %v7417 = vpop.f32.mrb[0].mxu0
        %v7418 = vadd.f32 %v7257, %v7417
        %v7419 = vpop.f32.mrb[0].mxu0
        %7420 = vmatprep.mubr.bf16.mxu0 %v6004
        %7421 = vmatmul.mubr.bf16.gmra.mrb[0].mxu0 %v6378
        %v7422 = vpop.f32.mrb[0].mxu0
        %v7423 = vadd.f32 %v7262, %v7422
        %v7424 = vpop.f32.mrb[0].mxu0
        %v7425 = vpop.f32.mrb[0].mxu0
        %v7426 = vadd.f32 %v7265, %v7425
        %v7427 = vpop.f32.mrb[0].mxu0
        %7428 = vmatprep.mubr.bf16.mxu0 %v6006
        %7429 = vmatmul.mubr.bf16.gmra.mrb[0].mxu0 %v6381
        %v7430 = vpop.f32.mrb[0].mxu0
        %v7431 = vadd.f32 %v7270, %v7430
        %v7432 = vpop.f32.mrb[0].mxu0
        %v7433 = vpop.f32.mrb[0].mxu0
        %v7434 = vadd.f32 %v7273, %v7433
        %v7435 = vpop.f32.mrb[0].mxu0
        %7436 = vmatprep.mubr.bf16.mxu0 %v6008
        %7437 = vmatmul.mubr.bf16.gmra.mrb[0].mxu0 %v6384
        %v7438 = vpop.f32.mrb[0].mxu0
        %v7439 = vadd.f32 %v7278, %v7438
        %v7440 = vpop.f32.mrb[0].mxu0
        %v7441 = vpop.f32.mrb[0].mxu0
        %v7442 = vadd.f32 %v7281, %v7441
        %v7443 = vpop.f32.mrb[0].mxu0
        %7444 = vmatprep.mubr.bf16.mxu0 %v6010
        %7445 = vmatmul.mubr.bf16.gmra.mrb[0].mxu0 %v6387
        %v7446 = vpop.f32.mrb[0].mxu0
        %v7447 = vadd.f32 %v7286, %v7446
        %v7448 = vpop.f32.mrb[0].mxu0
        %v7449 = vpop.f32.mrb[0].mxu0
        %v7450 = vadd.f32 %v7289, %v7449
        %v7451 = vpop.f32.mrb[0].mxu0
        %7452 = vdwg.mxu0
        %7453 = vmatprep.subr.bf16.mxu0 0
        %7454 = vmatpush1.bf16.msra.mxu0 %v7019
        %7455 = vmatprep.subr.bf16.mxu0 0
        %7456 = vmatpush1.bf16.msra.mxu0 %v7020
        %7457 = vmatprep.subr.bf16.mxu0 0
        %7458 = vmatpush1.bf16.msra.mxu0 %v7021
        %7459 = vmatprep.subr.bf16.mxu0 0
        %7460 = vmatpush1.bf16.msra.mxu0 %v7022
        %7461 = vmatprep.subr.bf16.mxu0 0
        %7462 = vmatpush1.bf16.msra.mxu0 %v7023
        %7463 = vmatprep.subr.bf16.mxu0 0
        %7464 = vmatpush1.bf16.msra.mxu0 %v7024
        %7465 = vmatprep.subr.bf16.mxu0 0
        %7466 = vmatpush1.bf16.msra.mxu0 %v7025
        %7467 = vmatprep.subr.bf16.mxu0 0
        %7468 = vmatpush1.bf16.msra.mxu0 %v7026
        %7469 = vmatprep.subr.bf16.mxu0 0
        %7470 = vmatpush1.bf16.msra.mxu0 %v7027
        %7471 = vmatprep.subr.bf16.mxu0 0
        %7472 = vmatpush1.bf16.msra.mxu0 %v7028
        %7473 = vmatprep.subr.bf16.mxu0 0
        %7474 = vmatpush1.bf16.msra.mxu0 %v7029
        %7475 = vmatprep.subr.bf16.mxu0 0
        %7476 = vmatpush1.bf16.msra.mxu0 %v7030
        %7477 = vmatprep.subr.bf16.mxu0 0
        %7478 = vmatpush1.bf16.msra.mxu0 %v7031
        %7479 = vmatprep.subr.bf16.mxu0 0
        %7480 = vmatpush1.bf16.msra.mxu0 %v7032
        %7481 = vmatprep.subr.bf16.mxu0 0
        %7482 = vmatpush1.bf16.msra.mxu0 %v7033
        %7483 = vmatprep.subr.bf16.mxu0 0
        %7484 = vmatpush1.bf16.msra.mxu0 %v7034
        %7485 = vmatprep.mubr.bf16.mxu0 %v6351
        %7486 = vmatmul.mubr.bf16.gmra.mrb[0].mxu0 %v6086
        %v7487 = vpop.f32.mrb[0].mxu0
        %v7488 = vadd.f32 %v7327, %v7487
        %v7489 = vpop.f32.mrb[0].mxu0
        %v7490 = vpop.f32.mrb[0].mxu0
        %v7491 = vadd.f32 %v7330, %v7490
        %v7492 = vpop.f32.mrb[0].mxu0
        %7493 = vmatprep.mubr.bf16.mxu0 %v6354
        %7494 = vmatmul.mubr.bf16.gmra.mrb[0].mxu0 %v6103
        %v7495 = vpop.f32.mrb[0].mxu0
        %v7496 = vadd.f32 %v7335, %v7495
        %v7497 = vpop.f32.mrb[0].mxu0
        %v7498 = vpop.f32.mrb[0].mxu0
        %v7499 = vadd.f32 %v7338, %v7498
        %v7500 = vpop.f32.mrb[0].mxu0
        %7501 = vmatprep.mubr.bf16.mxu0 %v6357
        %7502 = vmatmul.mubr.bf16.gmra.mrb[0].mxu0 %v6120
        %v7503 = vpop.f32.mrb[0].mxu0
        %v7504 = vadd.f32 %v7343, %v7503
        %v7505 = vpop.f32.mrb[0].mxu0
        %v7506 = vpop.f32.mrb[0].mxu0
        %v7507 = vadd.f32 %v7346, %v7506
        %v7508 = vpop.f32.mrb[0].mxu0
        %7509 = vmatprep.mubr.bf16.mxu0 %v6360
        %7510 = vmatmul.mubr.bf16.gmra.mrb[0].mxu0 %v6137
        %v7511 = vpop.f32.mrb[0].mxu0
        %v7512 = vadd.f32 %v7351, %v7511
        %v7513 = vpop.f32.mrb[0].mxu0
        %v7514 = vpop.f32.mrb[0].mxu0
        %v7515 = vadd.f32 %v7354, %v7514
        %v7516 = vpop.f32.mrb[0].mxu0
        %7517 = vmatprep.mubr.bf16.mxu0 %v6363
        %7518 = vmatmul.mubr.bf16.gmra.mrb[0].mxu0 %v6154
        %v7519 = vpop.f32.mrb[0].mxu0
        %v7520 = vadd.f32 %v7359, %v7519
        %v7521 = vpop.f32.mrb[0].mxu0
        %v7522 = vpop.f32.mrb[0].mxu0
        %v7523 = vadd.f32 %v7362, %v7522
        %v7524 = vpop.f32.mrb[0].mxu0
        %7525 = vmatprep.mubr.bf16.mxu0 %v6366
        %7526 = vmatmul.mubr.bf16.gmra.mrb[0].mxu0 %v6171
        %v7527 = vpop.f32.mrb[0].mxu0
        %v7528 = vadd.f32 %v7367, %v7527
        %v7529 = vpop.f32.mrb[0].mxu0
        %v7530 = vpop.f32.mrb[0].mxu0
        %v7531 = vadd.f32 %v7370, %v7530
        %v7532 = vpop.f32.mrb[0].mxu0
        %7533 = vmatprep.mubr.bf16.mxu0 %v6369
        %7534 = vmatmul.mubr.bf16.gmra.mrb[0].mxu0 %v6188
        %v7535 = vpop.f32.mrb[0].mxu0
        %v7536 = vadd.f32 %v7375, %v7535
        %v7537 = vpop.f32.mrb[0].mxu0
        %v7538 = vpop.f32.mrb[0].mxu0
        %v7539 = vadd.f32 %v7378, %v7538
        %v7540 = vpop.f32.mrb[0].mxu0
        %7541 = vmatprep.mubr.bf16.mxu0 %v6372
        %7542 = vmatmul.mubr.bf16.gmra.mrb[0].mxu0 %v6205
        %v7543 = vpop.f32.mrb[0].mxu0
        %v7544 = vadd.f32 %v7383, %v7543
        %v7545 = vpop.f32.mrb[0].mxu0
        %v7546 = vpop.f32.mrb[0].mxu0
        %v7547 = vadd.f32 %v7386, %v7546
        %v7548 = vpop.f32.mrb[0].mxu0
        %7549 = vmatprep.mubr.bf16.mxu0 %v6375
        %7550 = vmatmul.mubr.bf16.gmra.mrb[0].mxu0 %v6222
        %v7551 = vpop.f32.mrb[0].mxu0
        %v7552 = vadd.f32 %v7391, %v7551
        %v7553 = vpop.f32.mrb[0].mxu0
        %v7554 = vpop.f32.mrb[0].mxu0
        %v7555 = vadd.f32 %v7394, %v7554
        %v7556 = vpop.f32.mrb[0].mxu0
        %7557 = vmatprep.mubr.bf16.mxu0 %v6378
        %7558 = vmatmul.mubr.bf16.gmra.mrb[0].mxu0 %v6239
        %v7559 = vpop.f32.mrb[0].mxu0
        %v7560 = vadd.f32 %v7399, %v7559
        %v7561 = vpop.f32.mrb[0].mxu0
        %v7562 = vpop.f32.mrb[0].mxu0
        %v7563 = vadd.f32 %v7402, %v7562
        %v7564 = vpop.f32.mrb[0].mxu0
        %7565 = vmatprep.mubr.bf16.mxu0 %v6381
        %7566 = vmatmul.mubr.bf16.gmra.mrb[0].mxu0 %v6256
        %v7567 = vpop.f32.mrb[0].mxu0
        %v7568 = vadd.f32 %v7407, %v7567
        %v7569 = vpop.f32.mrb[0].mxu0
        %v7570 = vpop.f32.mrb[0].mxu0
        %v7571 = vadd.f32 %v7410, %v7570
        %v7572 = vpop.f32.mrb[0].mxu0
        %7573 = vmatprep.mubr.bf16.mxu0 %v6384
        %7574 = vmatmul.mubr.bf16.gmra.mrb[0].mxu0 %v6273
        %v7575 = vpop.f32.mrb[0].mxu0
        %v7576 = vadd.f32 %v7415, %v7575
        %v7577 = vpop.f32.mrb[0].mxu0
        %v7578 = vpop.f32.mrb[0].mxu0
        %v7579 = vadd.f32 %v7418, %v7578
        %v7580 = vpop.f32.mrb[0].mxu0
        %7581 = vmatprep.mubr.bf16.mxu0 %v6387
        %7582 = vmatmul.mubr.bf16.gmra.mrb[0].mxu0 %v6290
        %v7583 = vpop.f32.mrb[0].mxu0
        %v7584 = vadd.f32 %v7423, %v7583
        %v7585 = vpop.f32.mrb[0].mxu0
        %v7586 = vpop.f32.mrb[0].mxu0
        %v7587 = vadd.f32 %v7426, %v7586
        %v7588 = vpop.f32.mrb[0].mxu0
        %7589 = vmatprep.mubr.bf16.mxu0 %v6466
        %7590 = vmatmul.mubr.bf16.gmra.mrb[0].mxu0 %v6420
        %v7591 = vpop.f32.mrb[0].mxu0
        %v7592 = vadd.f32 %v7431, %v7591
        %v7593 = vpop.f32.mrb[0].mxu0
        %v7594 = vpop.f32.mrb[0].mxu0
        %v7595 = vadd.f32 %v7434, %v7594
        %v7596 = vpop.f32.mrb[0].mxu0
        %7597 = vmatprep.mubr.bf16.mxu0 %v6469
        %7598 = vmatmul.mubr.bf16.gmra.mrb[0].mxu0 %v6437
        %v7599 = vpop.f32.mrb[0].mxu0
        %v7600 = vadd.f32 %v7439, %v7599
        %v7601 = vpop.f32.mrb[0].mxu0
        %v7602 = vpop.f32.mrb[0].mxu0
        %v7603 = vadd.f32 %v7442, %v7602
        %v7604 = vpop.f32.mrb[0].mxu0
        %7605 = vmatprep.mubr.bf16.mxu0 %v6472
        %7606 = vmatmul.mubr.bf16.gmra.mrb[0].mxu0 %v6454
        %v7607 = vpop.f32.mrb[0].mxu0
        %v7608 = vadd.f32 %v7447, %v7607
        %v7609 = vpop.f32.mrb[0].mxu0
        %v7610 = vpop.f32.mrb[0].mxu0
        %v7611 = vadd.f32 %v7450, %v7610
        %v7612 = vpop.f32.mrb[0].mxu0
        %7613 = vdwg.mxu0
        %7614 = vmatprep.subr.bf16.mxu0 0
        %7615 = vmatpush1.bf16.msra.mxu0 %v7035
        %7616 = vmatprep.subr.bf16.mxu0 0
        %7617 = vmatpush1.bf16.msra.mxu0 %v7036
        %7618 = vmatprep.subr.bf16.mxu0 0
        %7619 = vmatpush1.bf16.msra.mxu0 %v7037
        %7620 = vmatprep.subr.bf16.mxu0 0
        %7621 = vmatpush1.bf16.msra.mxu0 %v7038
        %7622 = vmatprep.subr.bf16.mxu0 0
        %7623 = vmatpush1.bf16.msra.mxu0 %v7039
        %7624 = vmatprep.subr.bf16.mxu0 0
        %7625 = vmatpush1.bf16.msra.mxu0 %v7040
        %7626 = vmatprep.subr.bf16.mxu0 0
        %7627 = vmatpush1.bf16.msra.mxu0 %v7041
        %7628 = vmatprep.subr.bf16.mxu0 0
        %7629 = vmatpush1.bf16.msra.mxu0 %v7042
        %7630 = vmatprep.subr.bf16.mxu0 0
        %7631 = vmatpush1.bf16.msra.mxu0 %v7043
        %7632 = vmatprep.subr.bf16.mxu0 0
        %7633 = vmatpush1.bf16.msra.mxu0 %v7044
        %7634 = vmatprep.subr.bf16.mxu0 0
        %7635 = vmatpush1.bf16.msra.mxu0 %v7045
        %7636 = vmatprep.subr.bf16.mxu0 0
        %7637 = vmatpush1.bf16.msra.mxu0 %v7046
        %7638 = vmatprep.subr.bf16.mxu0 0
        %7639 = vmatpush1.bf16.msra.mxu0 %v7047
        %7640 = vmatprep.subr.bf16.mxu0 0
        %7641 = vmatpush1.bf16.msra.mxu0 %v7048
        %7642 = vmatprep.subr.bf16.mxu0 0
        %7643 = vmatpush1.bf16.msra.mxu0 %v7049
        %7644 = vmatprep.subr.bf16.mxu0 0
        %7645 = vmatpush1.bf16.msra.mxu0 %v7050
        %7646 = vmatprep.mubr.bf16.mxu0 %v6137
        %7647 = vmatmul.mubr.bf16.gmra.mrb[0].mxu0 %v5986
        %v7648 = vpop.f32.mrb[0].mxu0
        %v7649 = vadd.f32 %v7488, %v7648
        %v7650 = vpop.f32.mrb[0].mxu0
        %v7651 = vpop.f32.mrb[0].mxu0
        %v7652 = vadd.f32 %v7491, %v7651
        %v7653 = vpop.f32.mrb[0].mxu0
        %7654 = vmatprep.mubr.bf16.mxu0 %v6154
        %7655 = vmatmul.mubr.bf16.gmra.mrb[0].mxu0 %v5988
        %v7656 = vpop.f32.mrb[0].mxu0
        %v7657 = vadd.f32 %v7496, %v7656
        %v7658 = vpop.f32.mrb[0].mxu0
        %v7659 = vpop.f32.mrb[0].mxu0
        %v7660 = vadd.f32 %v7499, %v7659
        %v7661 = vpop.f32.mrb[0].mxu0
        %7662 = vmatprep.mubr.bf16.mxu0 %v6171
        %7663 = vmatmul.mubr.bf16.gmra.mrb[0].mxu0 %v5990
        %v7664 = vpop.f32.mrb[0].mxu0
        %v7665 = vadd.f32 %v7504, %v7664
        %v7666 = vpop.f32.mrb[0].mxu0
        %v7667 = vpop.f32.mrb[0].mxu0
        %v7668 = vadd.f32 %v7507, %v7667
        %v7669 = vpop.f32.mrb[0].mxu0
        %7670 = vmatprep.mubr.bf16.mxu0 %v6188
        %7671 = vmatmul.mubr.bf16.gmra.mrb[0].mxu0 %v5992
        %v7672 = vpop.f32.mrb[0].mxu0
        %v7673 = vadd.f32 %v7512, %v7672
        %v7674 = vpop.f32.mrb[0].mxu0
        %v7675 = vpop.f32.mrb[0].mxu0
        %v7676 = vadd.f32 %v7515, %v7675
        %v7677 = vpop.f32.mrb[0].mxu0
        %7678 = vmatprep.mubr.bf16.mxu0 %v6205
        %7679 = vmatmul.mubr.bf16.gmra.mrb[0].mxu0 %v5994
        %v7680 = vpop.f32.mrb[0].mxu0
        %v7681 = vadd.f32 %v7520, %v7680
        %v7682 = vpop.f32.mrb[0].mxu0
        %v7683 = vpop.f32.mrb[0].mxu0
        %v7684 = vadd.f32 %v7523, %v7683
        %v7685 = vpop.f32.mrb[0].mxu0
        %7686 = vmatprep.mubr.bf16.mxu0 %v6222
        %7687 = vmatmul.mubr.bf16.gmra.mrb[0].mxu0 %v5996
        %v7688 = vpop.f32.mrb[0].mxu0
        %v7689 = vadd.f32 %v7528, %v7688
        %v7690 = vpop.f32.mrb[0].mxu0
        %v7691 = vpop.f32.mrb[0].mxu0
        %v7692 = vadd.f32 %v7531, %v7691
        %v7693 = vpop.f32.mrb[0].mxu0
        %7694 = vmatprep.mubr.bf16.mxu0 %v6239
        %7695 = vmatmul.mubr.bf16.gmra.mrb[0].mxu0 %v5998
        %v7696 = vpop.f32.mrb[0].mxu0
        %v7697 = vadd.f32 %v7536, %v7696
        %v7698 = vpop.f32.mrb[0].mxu0
        %v7699 = vpop.f32.mrb[0].mxu0
        %v7700 = vadd.f32 %v7539, %v7699
        %v7701 = vpop.f32.mrb[0].mxu0
        %7702 = vmatprep.mubr.bf16.mxu0 %v6256
        %7703 = vmatmul.mubr.bf16.gmra.mrb[0].mxu0 %v6000
        %v7704 = vpop.f32.mrb[0].mxu0
        %v7705 = vadd.f32 %v7544, %v7704
        %v7706 = vpop.f32.mrb[0].mxu0
        %v7707 = vpop.f32.mrb[0].mxu0
        %v7708 = vadd.f32 %v7547, %v7707
        %v7709 = vpop.f32.mrb[0].mxu0
        %7710 = vmatprep.mubr.bf16.mxu0 %v6273
        %7711 = vmatmul.mubr.bf16.gmra.mrb[0].mxu0 %v6002
        %v7712 = vpop.f32.mrb[0].mxu0
        %v7713 = vadd.f32 %v7552, %v7712
        %v7714 = vpop.f32.mrb[0].mxu0
        %v7715 = vpop.f32.mrb[0].mxu0
        %v7716 = vadd.f32 %v7555, %v7715
        %v7717 = vpop.f32.mrb[0].mxu0
        %7718 = vmatprep.mubr.bf16.mxu0 %v6290
        %7719 = vmatmul.mubr.bf16.gmra.mrb[0].mxu0 %v6004
        %v7720 = vpop.f32.mrb[0].mxu0
        %v7721 = vadd.f32 %v7560, %v7720
        %v7722 = vpop.f32.mrb[0].mxu0
        %v7723 = vpop.f32.mrb[0].mxu0
        %v7724 = vadd.f32 %v7563, %v7723
        %v7725 = vpop.f32.mrb[0].mxu0
        %7726 = vmatprep.mubr.bf16.mxu0 %v6420
        %7727 = vmatmul.mubr.bf16.gmra.mrb[0].mxu0 %v6006
        %v7728 = vpop.f32.mrb[0].mxu0
        %v7729 = vadd.f32 %v7568, %v7728
        %v7730 = vpop.f32.mrb[0].mxu0
        %v7731 = vpop.f32.mrb[0].mxu0
        %v7732 = vadd.f32 %v7571, %v7731
        %v7733 = vpop.f32.mrb[0].mxu0
        %7734 = vmatprep.mubr.bf16.mxu0 %v6437
        %7735 = vmatmul.mubr.bf16.gmra.mrb[0].mxu0 %v6008
        %v7736 = vpop.f32.mrb[0].mxu0
        %v7737 = vadd.f32 %v7576, %v7736
        %v7738 = vpop.f32.mrb[0].mxu0
        %v7739 = vpop.f32.mrb[0].mxu0
        %v7740 = vadd.f32 %v7579, %v7739
        %v7741 = vpop.f32.mrb[0].mxu0
        %7742 = vmatprep.mubr.bf16.mxu0 %v6454
        %7743 = vmatmul.mubr.bf16.gmra.mrb[0].mxu0 %v6010
        %v7744 = vpop.f32.mrb[0].mxu0
        %v7745 = vadd.f32 %v7584, %v7744
        %v7746 = vpop.f32.mrb[0].mxu0
        %v7747 = vpop.f32.mrb[0].mxu0
        %v7748 = vadd.f32 %v7587, %v7747
        %v7749 = vpop.f32.mrb[0].mxu0
        %7750 = vmatprep.mubr.bf16.mxu0 %v6492
        %7751 = vmatmul.mubr.bf16.gmra.mrb[0].mxu0 %v6012
        %v7752 = vpop.f32.mrb[0].mxu0
        %v7753 = vadd.f32 %v7592, %v7752
        %v7754 = vpop.f32.mrb[0].mxu0
        %v7755 = vpop.f32.mrb[0].mxu0
        %v7756 = vadd.f32 %v7595, %v7755
        %v7757 = vpop.f32.mrb[0].mxu0
        %7758 = vmatprep.mubr.bf16.mxu0 %v6509
        %7759 = vmatmul.mubr.bf16.gmra.mrb[0].mxu0 %v6014
        %v7760 = vpop.f32.mrb[0].mxu0
        %v7761 = vadd.f32 %v7600, %v7760
        %v7762 = vpop.f32.mrb[0].mxu0
        %v7763 = vpop.f32.mrb[0].mxu0
        %v7764 = vadd.f32 %v7603, %v7763
        %v7765 = vpop.f32.mrb[0].mxu0
        %7766 = vmatprep.mubr.bf16.mxu0 %v6526
        %7767 = vmatmul.mubr.bf16.gmra.mrb[0].mxu0 %v6016
        %v7768 = vpop.f32.mrb[0].mxu0
        %v7769 = vadd.f32 %v7608, %v7768
        %v7770 = vpop.f32.mrb[0].mxu0
        %v7771 = vpop.f32.mrb[0].mxu0
        %v7772 = vadd.f32 %v7611, %v7771
        %v7773 = vpop.f32.mrb[0].mxu0
        %7774 = vdwg.mxu0
        %7775 = vmatprep.subr.bf16.mxu0 0
        %7776 = vmatpush1.bf16.msra.mxu0 %v7051
        %7777 = vmatprep.subr.bf16.mxu0 0
        %7778 = vmatpush1.bf16.msra.mxu0 %v7052
        %7779 = vmatprep.subr.bf16.mxu0 0
        %7780 = vmatpush1.bf16.msra.mxu0 %v7053
        %7781 = vmatprep.subr.bf16.mxu0 0
        %7782 = vmatpush1.bf16.msra.mxu0 %v7054
        %7783 = vmatprep.subr.bf16.mxu0 0
        %7784 = vmatpush1.bf16.msra.mxu0 %v7055
        %7785 = vmatprep.subr.bf16.mxu0 0
        %7786 = vmatpush1.bf16.msra.mxu0 %v7056
        %7787 = vmatprep.subr.bf16.mxu0 0
        %7788 = vmatpush1.bf16.msra.mxu0 %v7057
        %7789 = vmatprep.subr.bf16.mxu0 0
        %7790 = vmatpush1.bf16.msra.mxu0 %v7058
        %7791 = vmatprep.subr.bf16.mxu0 0
        %7792 = vmatpush1.bf16.msra.mxu0 0
        %7793 = vmatprep.subr.bf16.mxu0 0
        %7794 = vmatpush1.bf16.msra.mxu0 0
        %7795 = vmatprep.subr.bf16.mxu0 0
        %7796 = vmatpush1.bf16.msra.mxu0 0
        %7797 = vmatprep.subr.bf16.mxu0 0
        %7798 = vmatpush1.bf16.msra.mxu0 0
        %7799 = vmatprep.subr.bf16.mxu0 0
        %7800 = vmatpush1.bf16.msra.mxu0 0
        %7801 = vmatprep.subr.bf16.mxu0 0
        %7802 = vmatpush1.bf16.msra.mxu0 0
        %7803 = vmatprep.subr.bf16.mxu0 0
        %7804 = vmatpush1.bf16.msra.mxu0 0
        %7805 = vmatprep.subr.bf16.mxu0 0
        %7806 = vmatpush1.bf16.msra.mxu0 0
        %7807 = vmatprep.mubr.bf16.mxu0 0
        %7808 = vmatmul.mubr.bf16.gmra.mrb[0].mxu0 %v6360
        %v7809 = vpop.f32.mrb[0].mxu0
        %v7810 = vadd.f32 %v7649, %v7809
        %v7811 = vpop.f32.mrb[0].mxu0
        %v7812 = vpop.f32.mrb[0].mxu0
        %v7813 = vadd.f32 %v7652, %v7812
        %v7814 = vpop.f32.mrb[0].mxu0
        %7815 = vmatprep.mubr.bf16.mxu0 0
        %7816 = vmatmul.mubr.bf16.gmra.mrb[0].mxu0 %v6363
        %v7817 = vpop.f32.mrb[0].mxu0
        %v7818 = vadd.f32 %v7657, %v7817
        %v7819 = vpop.f32.mrb[0].mxu0
        %v7820 = vpop.f32.mrb[0].mxu0
        %v7821 = vadd.f32 %v7660, %v7820
        %v7822 = vpop.f32.mrb[0].mxu0
        %7823 = vmatprep.mubr.bf16.mxu0 0
        %7824 = vmatmul.mubr.bf16.gmra.mrb[0].mxu0 %v6366
        %v7825 = vpop.f32.mrb[0].mxu0
        %v7826 = vadd.f32 %v7665, %v7825
        %v7827 = vpop.f32.mrb[0].mxu0
        %v7828 = vpop.f32.mrb[0].mxu0
        %v7829 = vadd.f32 %v7668, %v7828
        %v7830 = vpop.f32.mrb[0].mxu0
        %7831 = vmatprep.mubr.bf16.mxu0 0
        %7832 = vmatmul.mubr.bf16.gmra.mrb[0].mxu0 %v6369
        %v7833 = vpop.f32.mrb[0].mxu0
        %v7834 = vadd.f32 %v7673, %v7833
        %v7835 = vpop.f32.mrb[0].mxu0
        %v7836 = vpop.f32.mrb[0].mxu0
        %v7837 = vadd.f32 %v7676, %v7836
        %v7838 = vpop.f32.mrb[0].mxu0
        %7839 = vmatprep.mubr.bf16.mxu0 0
        %7840 = vmatmul.mubr.bf16.gmra.mrb[0].mxu0 %v6372
        %v7841 = vpop.f32.mrb[0].mxu0
        %v7842 = vadd.f32 %v7681, %v7841
        %v7843 = vpop.f32.mrb[0].mxu0
        %v7844 = vpop.f32.mrb[0].mxu0
        %v7845 = vadd.f32 %v7684, %v7844
        %v7846 = vpop.f32.mrb[0].mxu0
        %7847 = vmatprep.mubr.bf16.mxu0 0
        %7848 = vmatmul.mubr.bf16.gmra.mrb[0].mxu0 %v6375
        %v7849 = vpop.f32.mrb[0].mxu0
        %v7850 = vadd.f32 %v7689, %v7849
        %v7851 = vpop.f32.mrb[0].mxu0
        %v7852 = vpop.f32.mrb[0].mxu0
        %v7853 = vadd.f32 %v7692, %v7852
        %v7854 = vpop.f32.mrb[0].mxu0
        %7855 = vmatprep.mubr.bf16.mxu0 0
        %7856 = vmatmul.mubr.bf16.gmra.mrb[0].mxu0 %v6378
        %v7857 = vpop.f32.mrb[0].mxu0
        %v7858 = vadd.f32 %v7697, %v7857
        %v7859 = vpop.f32.mrb[0].mxu0
        %v7860 = vpop.f32.mrb[0].mxu0
        %v7861 = vadd.f32 %v7700, %v7860
        %v7862 = vpop.f32.mrb[0].mxu0
        %7863 = vmatprep.mubr.bf16.mxu0 0
        %7864 = vmatmul.mubr.bf16.gmra.mrb[0].mxu0 %v6381
        %v7865 = vpop.f32.mrb[0].mxu0
        %v7866 = vadd.f32 %v7705, %v7865
        %v7867 = vpop.f32.mrb[0].mxu0
        %v7868 = vpop.f32.mrb[0].mxu0
        %v7869 = vadd.f32 %v7708, %v7868
        %v7870 = vpop.f32.mrb[0].mxu0
        %7871 = vmatprep.mubr.bf16.mxu0 0
        %7872 = vmatmul.mubr.bf16.gmra.mrb[0].mxu0 %v6384
        %v7873 = vpop.f32.mrb[0].mxu0
        %v7874 = vadd.f32 %v7713, %v7873
        %v7875 = vpop.f32.mrb[0].mxu0
        %v7876 = vpop.f32.mrb[0].mxu0
        %v7877 = vadd.f32 %v7716, %v7876
        %v7878 = vpop.f32.mrb[0].mxu0
        %7879 = vmatprep.mubr.bf16.mxu0 0
        %7880 = vmatmul.mubr.bf16.gmra.mrb[0].mxu0 %v6387
        %v7881 = vpop.f32.mrb[0].mxu0
        %v7882 = vadd.f32 %v7721, %v7881
        %v7883 = vpop.f32.mrb[0].mxu0
        %v7884 = vpop.f32.mrb[0].mxu0
        %v7885 = vadd.f32 %v7724, %v7884
        %v7886 = vpop.f32.mrb[0].mxu0
        %7887 = vmatprep.mubr.bf16.mxu0 0
        %7888 = vmatmul.mubr.bf16.gmra.mrb[0].mxu0 %v6466
        %v7889 = vpop.f32.mrb[0].mxu0
        %v7890 = vadd.f32 %v7729, %v7889
        %v7891 = vpop.f32.mrb[0].mxu0
        %v7892 = vpop.f32.mrb[0].mxu0
        %v7893 = vadd.f32 %v7732, %v7892
        %v7894 = vpop.f32.mrb[0].mxu0
        %7895 = vmatprep.mubr.bf16.mxu0 0
        %7896 = vmatmul.mubr.bf16.gmra.mrb[0].mxu0 %v6469
        %v7897 = vpop.f32.mrb[0].mxu0
        %v7898 = vadd.f32 %v7737, %v7897
        %v7899 = vpop.f32.mrb[0].mxu0
        %v7900 = vpop.f32.mrb[0].mxu0
        %v7901 = vadd.f32 %v7740, %v7900
        %v7902 = vpop.f32.mrb[0].mxu0
        %7903 = vmatprep.mubr.bf16.mxu0 0
        %7904 = vmatmul.mubr.bf16.gmra.mrb[0].mxu0 %v6472
        %v7905 = vpop.f32.mrb[0].mxu0
        %v7906 = vadd.f32 %v7745, %v7905
        %v7907 = vpop.f32.mrb[0].mxu0
        %v7908 = vpop.f32.mrb[0].mxu0
        %v7909 = vadd.f32 %v7748, %v7908
        %v7910 = vpop.f32.mrb[0].mxu0
        %7911 = vmatprep.mubr.bf16.mxu0 0
        %7912 = vmatmul.mubr.bf16.gmra.mrb[0].mxu0 %v6538
        %v7913 = vpop.f32.mrb[0].mxu0
        %v7914 = vadd.f32 %v7753, %v7913
        %v7915 = vpop.f32.mrb[0].mxu0
        %v7916 = vpop.f32.mrb[0].mxu0
        %v7917 = vadd.f32 %v7756, %v7916
        %v7918 = vpop.f32.mrb[0].mxu0
        %7919 = vmatprep.mubr.bf16.mxu0 0
        %7920 = vmatmul.mubr.bf16.gmra.mrb[0].mxu0 %v6541
        %v7921 = vpop.f32.mrb[0].mxu0
        %v7922 = vadd.f32 %v7761, %v7921
        %v7923 = vpop.f32.mrb[0].mxu0
        %v7924 = vpop.f32.mrb[0].mxu0
        %v7925 = vadd.f32 %v7764, %v7924
        %v7926 = vpop.f32.mrb[0].mxu0
        %7927 = vmatprep.mubr.bf16.mxu0 0
        %7928 = vmatmul.mubr.bf16.gmra.mrb[0].mxu0 %v6544
        %v7929 = vpop.f32.mrb[0].mxu0
        %v7930 = vadd.f32 %v7769, %v7929
        %v7931 = vpop.f32.mrb[0].mxu0
        %v7932 = vpop.f32.mrb[0].mxu0
        %v7933 = vadd.f32 %v7772, %v7932
        %v7934 = vpop.f32.mrb[0].mxu0
        %7935 = vdwg.mxu0
        %v7936 = vpack.c.bf16 %v7813, %v7810
        %v7937 = vpack.c.bf16 %v7821, %v7818
        %v7938 = vpack.c.bf16 %v7829, %v7826
        %v7939 = vpack.c.bf16 %v7837, %v7834
        %v7940 = vpack.c.bf16 %v7845, %v7842
        %v7941 = vpack.c.bf16 %v7853, %v7850
        %v7942 = vpack.c.bf16 %v7861, %v7858
        %v7943 = vpack.c.bf16 %v7869, %v7866
        %v7944 = vpack.c.bf16 %v7877, %v7874
        %v7945 = vpack.c.bf16 %v7885, %v7882
        %v7946 = vpack.c.bf16 %v7893, %v7890
        %v7947 = vpack.c.bf16 %v7901, %v7898
        %v7948 = vpack.c.bf16 %v7909, %v7906
        %v7949 = vpack.c.bf16 %v7917, %v7914
        %v7950 = vpack.c.bf16 %v7925, %v7922
        %v7951 = vpack.c.bf16 %v7933, %v7930
        %v7952 = vld [vmem:[#allocation11] sm:$0xf]
        %v7953 = vld [vmem:[#allocation11 + $0x4] sm:$0xf]
        %v7954 = vld [vmem:[#allocation11 + $0x8] sm:$0xf]
        %v7955 = vld [vmem:[#allocation11 + $0xc] sm:$0xf]
        %v7956 = vld [vmem:[#allocation11 + $0x10] sm:$0xf]
        %v7957 = vld [vmem:[#allocation11 + $0x14] sm:$0xf]
        %v7958 = vld [vmem:[#allocation11 + $0x18] sm:$0xf]
        %v7959 = vld [vmem:[#allocation11 + $0x1c] sm:$0xf]
        %v7960 = vld [vmem:[#allocation11 + $0x20] sm:$0xf]
        %v7961 = vld [vmem:[#allocation11 + $0x24] sm:$0xf]
        %v7962 = vld [vmem:[#allocation11 + $0x28] sm:$0xf]
        %v7963 = vld [vmem:[#allocation11 + $0x2c] sm:$0xf]
        %v7964 = vld [vmem:[#allocation11 + $0x30] sm:$0xf]
        %v7965 = vld [vmem:[#allocation11 + $0x34] sm:$0xf]
        %v7966 = vld [vmem:[#allocation11 + $0x38] sm:$0xf]
        %v7967 = vld [vmem:[#allocation11 + $0x3c] sm:$0xf]
        %v7968 = vld [vmem:[#allocation13] sm:$0x1]
        %v7970 = vlaneseq
        %v7971 = vshrl.u32 %v7970, 7
        %v7972 = vsub.s32 0, %v7971
        %v7973 = vrot.slane %v7968, %v7972
        %v7991 = vunpack.c.l.b16 %v7952
        %v7992 = vunpack.c.l.b16 %v7953
        %v7993 = vunpack.c.l.b16 %v7954
        %v7994 = vunpack.c.l.b16 %v7955
        %v7995 = vunpack.c.l.b16 %v7956
        %v7996 = vunpack.c.l.b16 %v7957
        %v7997 = vunpack.c.l.b16 %v7958
        %v7998 = vunpack.c.l.b16 %v7959
        %v7999 = vunpack.c.l.b16 %v7960
        %v8000 = vunpack.c.l.b16 %v7961
        %v8001 = vunpack.c.l.b16 %v7962
        %v8002 = vunpack.c.l.b16 %v7963
        %v8003 = vunpack.c.l.b16 %v7964
        %v8004 = vunpack.c.l.b16 %v7965
        %v8005 = vunpack.c.l.b16 %v7966
        %v8006 = vunpack.c.l.b16 %v7967
        %v8007 = vpack.c.b16 %v7992, %v7991
        %v8008 = vpack.c.b16 %v7994, %v7993
        %v8009 = vpack.c.b16 %v7996, %v7995
        %v8010 = vpack.c.b16 %v7998, %v7997
        %v8011 = vpack.c.b16 %v8000, %v7999
        %v8012 = vpack.c.b16 %v8002, %v8001
        %v8013 = vpack.c.b16 %v8004, %v8003
        %v8014 = vpack.c.b16 %v8006, %v8005
        %8023 = vmatprep.subr.bf16.mxu0 0
        %8024 = vmatpush1.bf16.msra.mxu0 %v8007
        %8025 = vmatprep.subr.bf16.mxu0 0
        %8026 = vmatpush1.bf16.msra.mxu0 %v8008
        %8027 = vmatprep.subr.bf16.mxu0 0
        %8028 = vmatpush1.bf16.msra.mxu0 %v8009
        %8029 = vmatprep.subr.bf16.mxu0 0
        %8030 = vmatpush1.bf16.msra.mxu0 %v8010
        %8031 = vmatprep.subr.bf16.mxu0 0
        %8032 = vmatpush1.bf16.msra.mxu0 %v8011
        %8033 = vmatprep.subr.bf16.mxu0 0
        %8034 = vmatpush1.bf16.msra.mxu0 %v8012
        %8035 = vmatprep.subr.bf16.mxu0 0
        %8036 = vmatpush1.bf16.msra.mxu0 %v8013
        %8037 = vmatprep.subr.bf16.mxu0 0
        %8038 = vmatpush1.bf16.msra.mxu0 %v8014
        %8039 = vmatprep.subr.bf16.mxu0 0
        %8040 = vmatpush1.bf16.msra.mxu0 0
        %8041 = vmatprep.subr.bf16.mxu0 0
        %8042 = vmatpush1.bf16.msra.mxu0 0
        %8043 = vmatprep.subr.bf16.mxu0 0
        %8044 = vmatpush1.bf16.msra.mxu0 0
        %8045 = vmatprep.subr.bf16.mxu0 0
        %8046 = vmatpush1.bf16.msra.mxu0 0
        %8047 = vmatprep.subr.bf16.mxu0 0
        %8048 = vmatpush1.bf16.msra.mxu0 0
        %8049 = vmatprep.subr.bf16.mxu0 0
        %8050 = vmatpush1.bf16.msra.mxu0 0
        %8051 = vmatprep.subr.bf16.mxu0 0
        %8052 = vmatpush1.bf16.msra.mxu0 0
        %8053 = vmatprep.subr.bf16.mxu0 0
        %8054 = vmatpush1.bf16.msra.mxu0 0
        %8055 = vmatprep.mubr.bf16.mxu0 0
        %8056 = vmatmul.mubr.bf16.gmra.mrb[0].mxu0 %v7936
        %v8057 = vpop.f32.mrb[0].mxu0
        %v8058 = vadd.f32 %v7973, %v8057
        %v8059 = vpop.f32.mrb[0].mxu0
        %v8060 = vpop.f32.mrb[0].mxu0
        %v8061 = vadd.f32 %v7973, %v8060
        %v8062 = vpop.f32.mrb[0].mxu0
        %8063 = vmatprep.mubr.bf16.mxu0 0
        %8064 = vmatmul.mubr.bf16.gmra.mrb[0].mxu0 %v7937
        %v8065 = vpop.f32.mrb[0].mxu0
        %v8066 = vadd.f32 %v7973, %v8065
        %v8067 = vpop.f32.mrb[0].mxu0
        %v8068 = vpop.f32.mrb[0].mxu0
        %v8069 = vadd.f32 %v7973, %v8068
        %v8070 = vpop.f32.mrb[0].mxu0
        %8071 = vmatprep.mubr.bf16.mxu0 0
        %8072 = vmatmul.mubr.bf16.gmra.mrb[0].mxu0 %v7938
        %v8073 = vpop.f32.mrb[0].mxu0
        %v8074 = vadd.f32 %v7973, %v8073
        %v8075 = vpop.f32.mrb[0].mxu0
        %v8076 = vpop.f32.mrb[0].mxu0
        %v8077 = vadd.f32 %v7973, %v8076
        %v8078 = vpop.f32.mrb[0].mxu0
        %8079 = vmatprep.mubr.bf16.mxu0 0
        %8080 = vmatmul.mubr.bf16.gmra.mrb[0].mxu0 %v7939
        %v8081 = vpop.f32.mrb[0].mxu0
        %v8082 = vadd.f32 %v7973, %v8081
        %v8083 = vpop.f32.mrb[0].mxu0
        %v8084 = vpop.f32.mrb[0].mxu0
        %v8085 = vadd.f32 %v7973, %v8084
        %v8086 = vpop.f32.mrb[0].mxu0
        %8087 = vmatprep.mubr.bf16.mxu0 0
        %8088 = vmatmul.mubr.bf16.gmra.mrb[0].mxu0 %v7940
        %v8089 = vpop.f32.mrb[0].mxu0
        %v8090 = vadd.f32 %v7973, %v8089
        %v8091 = vpop.f32.mrb[0].mxu0
        %v8092 = vpop.f32.mrb[0].mxu0
        %v8093 = vadd.f32 %v7973, %v8092
        %v8094 = vpop.f32.mrb[0].mxu0
        %8095 = vmatprep.mubr.bf16.mxu0 0
        %8096 = vmatmul.mubr.bf16.gmra.mrb[0].mxu0 %v7941
        %v8097 = vpop.f32.mrb[0].mxu0
        %v8098 = vadd.f32 %v7973, %v8097
        %v8099 = vpop.f32.mrb[0].mxu0
        %v8100 = vpop.f32.mrb[0].mxu0
        %v8101 = vadd.f32 %v7973, %v8100
        %v8102 = vpop.f32.mrb[0].mxu0
        %8103 = vmatprep.mubr.bf16.mxu0 0
        %8104 = vmatmul.mubr.bf16.gmra.mrb[0].mxu0 %v7942
        %v8105 = vpop.f32.mrb[0].mxu0
        %v8106 = vadd.f32 %v7973, %v8105
        %v8107 = vpop.f32.mrb[0].mxu0
        %v8108 = vpop.f32.mrb[0].mxu0
        %v8109 = vadd.f32 %v7973, %v8108
        %v8110 = vpop.f32.mrb[0].mxu0
        %8111 = vmatprep.mubr.bf16.mxu0 0
        %8112 = vmatmul.mubr.bf16.gmra.mrb[0].mxu0 %v7943
        %v8113 = vpop.f32.mrb[0].mxu0
        %v8114 = vadd.f32 %v7973, %v8113
        %v8115 = vpop.f32.mrb[0].mxu0
        %v8116 = vpop.f32.mrb[0].mxu0
        %v8117 = vadd.f32 %v7973, %v8116
        %v8118 = vpop.f32.mrb[0].mxu0
        %8119 = vmatprep.mubr.bf16.mxu0 0
        %8120 = vmatmul.mubr.bf16.gmra.mrb[0].mxu0 %v7944
        %v8121 = vpop.f32.mrb[0].mxu0
        %v8122 = vadd.f32 %v7973, %v8121
        %v8123 = vpop.f32.mrb[0].mxu0
        %v8124 = vpop.f32.mrb[0].mxu0
        %v8125 = vadd.f32 %v7973, %v8124
        %v8126 = vpop.f32.mrb[0].mxu0
        %8127 = vmatprep.mubr.bf16.mxu0 0
        %8128 = vmatmul.mubr.bf16.gmra.mrb[0].mxu0 %v7945
        %v8129 = vpop.f32.mrb[0].mxu0
        %v8130 = vadd.f32 %v7973, %v8129
        %v8131 = vpop.f32.mrb[0].mxu0
        %v8132 = vpop.f32.mrb[0].mxu0
        %v8133 = vadd.f32 %v7973, %v8132
        %v8134 = vpop.f32.mrb[0].mxu0
        %8135 = vmatprep.mubr.bf16.mxu0 0
        %8136 = vmatmul.mubr.bf16.gmra.mrb[0].mxu0 %v7946
        %v8137 = vpop.f32.mrb[0].mxu0
        %v8138 = vadd.f32 %v7973, %v8137
        %v8139 = vpop.f32.mrb[0].mxu0
        %v8140 = vpop.f32.mrb[0].mxu0
        %v8141 = vadd.f32 %v7973, %v8140
        %v8142 = vpop.f32.mrb[0].mxu0
        %8143 = vmatprep.mubr.bf16.mxu0 0
        %8144 = vmatmul.mubr.bf16.gmra.mrb[0].mxu0 %v7947
        %v8145 = vpop.f32.mrb[0].mxu0
        %v8146 = vadd.f32 %v7973, %v8145
        %v8147 = vpop.f32.mrb[0].mxu0
        %v8148 = vpop.f32.mrb[0].mxu0
        %v8149 = vadd.f32 %v7973, %v8148
        %v8150 = vpop.f32.mrb[0].mxu0
        %8151 = vmatprep.mubr.bf16.mxu0 0
        %8152 = vmatmul.mubr.bf16.gmra.mrb[0].mxu0 %v7948
        %v8153 = vpop.f32.mrb[0].mxu0
        %v8154 = vadd.f32 %v7973, %v8153
        %v8155 = vpop.f32.mrb[0].mxu0
        %v8156 = vpop.f32.mrb[0].mxu0
        %v8157 = vadd.f32 %v7973, %v8156
        %v8158 = vpop.f32.mrb[0].mxu0
        %8159 = vmatprep.mubr.bf16.mxu0 0
        %8160 = vmatmul.mubr.bf16.gmra.mrb[0].mxu0 %v7949
        %v8161 = vpop.f32.mrb[0].mxu0
        %v8162 = vadd.f32 %v7973, %v8161
        %v8163 = vpop.f32.mrb[0].mxu0
        %v8164 = vpop.f32.mrb[0].mxu0
        %v8165 = vadd.f32 %v7973, %v8164
        %v8166 = vpop.f32.mrb[0].mxu0
        %8167 = vmatprep.mubr.bf16.mxu0 0
        %8168 = vmatmul.mubr.bf16.gmra.mrb[0].mxu0 %v7950
        %v8169 = vpop.f32.mrb[0].mxu0
        %v8170 = vadd.f32 %v7973, %v8169
        %v8171 = vpop.f32.mrb[0].mxu0
        %v8172 = vpop.f32.mrb[0].mxu0
        %v8173 = vadd.f32 %v7973, %v8172
        %v8174 = vpop.f32.mrb[0].mxu0
        %8175 = vmatprep.mubr.bf16.mxu0 0
        %8176 = vmatmul.mubr.bf16.gmra.mrb[0].mxu0 %v7951
        %v8177 = vpop.f32.mrb[0].mxu0
        %v8178 = vadd.f32 %v7973, %v8177
        %v8179 = vpop.f32.mrb[0].mxu0
        %v8180 = vpop.f32.mrb[0].mxu0
        %v8181 = vadd.f32 %v7973, %v8180
        %v8182 = vpop.f32.mrb[0].mxu0
        %8183 = vdwg.mxu0
        %v8184 = vunpack.c.l.bf16 %v415
        %v8185 = vunpack.c.l.bf16 %v416
        %v8186 = vunpack.c.l.bf16 %v419
        %v8187 = vunpack.c.l.bf16 %v420
        %v8188 = vunpack.c.l.bf16 %v423
        %v8189 = vunpack.c.l.bf16 %v424
        %v8190 = vunpack.c.l.bf16 %v427
        %v8191 = vunpack.c.l.bf16 %v428
        %v8192 = vunpack.c.l.bf16 %v431
        %v8193 = vunpack.c.l.bf16 %v432
        %v8194 = vunpack.c.l.bf16 %v435
        %v8195 = vunpack.c.l.bf16 %v436
        %v8196 = vunpack.c.l.bf16 %v439
        %v8197 = vunpack.c.l.bf16 %v440
        %v8198 = vunpack.c.l.bf16 %v443
        %v8199 = vunpack.c.l.bf16 %v444
        %v8200 = vunpack.c.l.bf16 %v447
        %v8201 = vunpack.c.l.bf16 %v448
        %v8202 = vunpack.c.l.bf16 %v451
        %v8203 = vunpack.c.l.bf16 %v452
        %v8204 = vunpack.c.l.bf16 %v455
        %v8205 = vunpack.c.l.bf16 %v456
        %v8206 = vunpack.c.l.bf16 %v459
        %v8207 = vunpack.c.l.bf16 %v460
        %v8208 = vunpack.c.l.bf16 %v463
        %v8209 = vunpack.c.l.bf16 %v464
        %v8210 = vunpack.c.l.bf16 %v467
        %v8211 = vunpack.c.l.bf16 %v468
        %v8212 = vunpack.c.l.bf16 %v471
        %v8213 = vunpack.c.l.bf16 %v472
        %v8214 = vunpack.c.l.bf16 %v475
        %v8215 = vunpack.c.l.bf16 %v476
        %v8216 = vmul.f32 %v8184, %v8058
        %v8217 = vmul.f32 %v8185, %v8061
        %v8218 = vmul.f32 %v8186, %v8066
        %v8219 = vmul.f32 %v8187, %v8069
        %v8220 = vmul.f32 %v8188, %v8074
        %v8221 = vmul.f32 %v8189, %v8077
        %v8222 = vmul.f32 %v8190, %v8082
        %v8223 = vmul.f32 %v8191, %v8085
        %v8224 = vmul.f32 %v8192, %v8090
        %v8225 = vmul.f32 %v8193, %v8093
        %v8226 = vmul.f32 %v8194, %v8098
        %v8227 = vmul.f32 %v8195, %v8101
        %v8228 = vmul.f32 %v8196, %v8106
        %v8229 = vmul.f32 %v8197, %v8109
        %v8230 = vmul.f32 %v8198, %v8114
        %v8231 = vmul.f32 %v8199, %v8117
        %v8232 = vmul.f32 %v8200, %v8122
        %v8233 = vmul.f32 %v8201, %v8125
        %v8234 = vmul.f32 %v8202, %v8130
        %v8235 = vmul.f32 %v8203, %v8133
        %v8236 = vmul.f32 %v8204, %v8138
        %v8237 = vmul.f32 %v8205, %v8141
        %v8238 = vmul.f32 %v8206, %v8146
        %v8239 = vmul.f32 %v8207, %v8149
        %v8240 = vmul.f32 %v8208, %v8154
        %v8241 = vmul.f32 %v8209, %v8157
        %v8242 = vmul.f32 %v8210, %v8162
        %v8243 = vmul.f32 %v8211, %v8165
        %v8244 = vmul.f32 %v8212, %v8170
        %v8245 = vmul.f32 %v8213, %v8173
        %v8246 = vmul.f32 %v8214, %v8178
        %v8247 = vmul.f32 %v8215, %v8181
        %v8248 = vpack.c.bf16 %v8217, %v8216
        %v8249 = vpack.c.bf16 %v8219, %v8218
        %v8250 = vpack.c.bf16 %v8221, %v8220
        %v8251 = vpack.c.bf16 %v8223, %v8222
        %v8252 = vpack.c.bf16 %v8225, %v8224
        %v8253 = vpack.c.bf16 %v8227, %v8226
        %v8254 = vpack.c.bf16 %v8229, %v8228
        %v8255 = vpack.c.bf16 %v8231, %v8230
        %v8256 = vpack.c.bf16 %v8233, %v8232
        %v8257 = vpack.c.bf16 %v8235, %v8234
        %v8258 = vpack.c.bf16 %v8237, %v8236
        %v8259 = vpack.c.bf16 %v8239, %v8238
        %v8260 = vpack.c.bf16 %v8241, %v8240
        %v8261 = vpack.c.bf16 %v8243, %v8242
        %v8262 = vpack.c.bf16 %v8245, %v8244
        %v8263 = vpack.c.bf16 %v8247, %v8246
        %v8280 = vunpack.c.l.b16 %v8248
        %v8281 = vunpack.c.h.b16 %v8248
        %v8282 = vunpack.c.l.b16 %v8249
        %v8283 = vunpack.c.h.b16 %v8249
        %v8284 = vunpack.c.l.b16 %v8250
        %v8285 = vunpack.c.h.b16 %v8250
        %v8286 = vunpack.c.l.b16 %v8251
        %v8287 = vunpack.c.h.b16 %v8251
        %v8288 = vunpack.c.l.b16 %v8252
        %v8289 = vunpack.c.h.b16 %v8252
        %v8290 = vunpack.c.l.b16 %v8253
        %v8291 = vunpack.c.h.b16 %v8253
        %v8292 = vunpack.c.l.b16 %v8254
        %v8293 = vunpack.c.h.b16 %v8254
        %v8294 = vunpack.c.l.b16 %v8255
        %v8295 = vunpack.c.h.b16 %v8255
        %v8296 = vunpack.c.l.b16 %v8256
        %v8297 = vunpack.c.h.b16 %v8256
        %v8298 = vunpack.c.l.b16 %v8257
        %v8299 = vunpack.c.h.b16 %v8257
        %v8300 = vunpack.c.l.b16 %v8258
        %v8301 = vunpack.c.h.b16 %v8258
        %v8302 = vunpack.c.l.b16 %v8259
        %v8303 = vunpack.c.h.b16 %v8259
        %v8304 = vunpack.c.l.b16 %v8260
        %v8305 = vunpack.c.h.b16 %v8260
        %v8306 = vunpack.c.l.b16 %v8261
        %v8307 = vunpack.c.h.b16 %v8261
        %v8308 = vunpack.c.l.b16 %v8262
        %v8309 = vunpack.c.h.b16 %v8262
        %v8310 = vunpack.c.l.b16 %v8263
        %v8311 = vunpack.c.h.b16 %v8263
        %v8312 = vpack.c.b16 %v8280, %v8280
        %v8313 = vpack.c.b16 %v8281, %v8281
        %v8314 = vpack.c.b16 %v8282, %v8282
        %v8315 = vpack.c.b16 %v8283, %v8283
        %v8316 = vpack.c.b16 %v8284, %v8284
        %v8317 = vpack.c.b16 %v8285, %v8285
        %v8318 = vpack.c.b16 %v8286, %v8286
        %v8319 = vpack.c.b16 %v8287, %v8287
        %v8320 = vpack.c.b16 %v8288, %v8288
        %v8321 = vpack.c.b16 %v8289, %v8289
        %v8322 = vpack.c.b16 %v8290, %v8290
        %v8323 = vpack.c.b16 %v8291, %v8291
        %v8324 = vpack.c.b16 %v8292, %v8292
        %v8325 = vpack.c.b16 %v8293, %v8293
        %v8326 = vpack.c.b16 %v8294, %v8294
        %v8327 = vpack.c.b16 %v8295, %v8295
        %v8328 = vpack.c.b16 %v8296, %v8296
        %v8329 = vpack.c.b16 %v8297, %v8297
        %v8330 = vpack.c.b16 %v8298, %v8298
        %v8331 = vpack.c.b16 %v8299, %v8299
        %v8332 = vpack.c.b16 %v8300, %v8300
        %v8333 = vpack.c.b16 %v8301, %v8301
        %v8334 = vpack.c.b16 %v8302, %v8302
        %v8335 = vpack.c.b16 %v8303, %v8303
        %v8336 = vpack.c.b16 %v8304, %v8304
        %v8337 = vpack.c.b16 %v8305, %v8305
        %v8338 = vpack.c.b16 %v8306, %v8306
        %v8339 = vpack.c.b16 %v8307, %v8307
        %v8340 = vpack.c.b16 %v8308, %v8308
        %v8341 = vpack.c.b16 %v8309, %v8309
        %v8342 = vpack.c.b16 %v8310, %v8310
        %v8343 = vpack.c.b16 %v8311, %v8311
        %8376 = vst [vmem:[%s391] sm:$0xf] %v8312
        %8377 = vst [vmem:[%s391 + $0x4] sm:$0xf] %v8313
        %8378 = vst [vmem:[%s391 + $0x8] sm:$0xf] %v8314
        %8379 = vst [vmem:[%s391 + $0xc] sm:$0xf] %v8315
        %8380 = vst [vmem:[%s391 + $0x10] sm:$0xf] %v8316
        %8381 = vst [vmem:[%s391 + $0x14] sm:$0xf] %v8317
        %8382 = vst [vmem:[%s391 + $0x18] sm:$0xf] %v8318
        %8383 = vst [vmem:[%s391 + $0x1c] sm:$0xf] %v8319
        %8384 = vst [vmem:[%s391 + $0x20] sm:$0xf] %v8320
        %8385 = vst [vmem:[%s391 + $0x24] sm:$0xf] %v8321
        %8386 = vst [vmem:[%s391 + $0x28] sm:$0xf] %v8322
        %8387 = vst [vmem:[%s391 + $0x2c] sm:$0xf] %v8323
        %8388 = vst [vmem:[%s391 + $0x30] sm:$0xf] %v8324
        %8389 = vst [vmem:[%s391 + $0x34] sm:$0xf] %v8325
        %8390 = vst [vmem:[%s391 + $0x38] sm:$0xf] %v8326
        %8391 = vst [vmem:[%s391 + $0x3c] sm:$0xf] %v8327
        %8392 = vst [vmem:[%s391 + $0x40] sm:$0xf] %v8328
        %8393 = vst [vmem:[%s391 + $0x44] sm:$0xf] %v8329
        %8394 = vst [vmem:[%s391 + $0x48] sm:$0xf] %v8330
        %8395 = vst [vmem:[%s391 + $0x4c] sm:$0xf] %v8331
        %8396 = vst [vmem:[%s391 + $0x50] sm:$0xf] %v8332
        %8397 = vst [vmem:[%s391 + $0x54] sm:$0xf] %v8333
        %8398 = vst [vmem:[%s391 + $0x58] sm:$0xf] %v8334
        %8399 = vst [vmem:[%s391 + $0x5c] sm:$0xf] %v8335
        %8400 = vst [vmem:[%s391 + $0x60] sm:$0xf] %v8336
        %8401 = vst [vmem:[%s391 + $0x64] sm:$0xf] %v8337
        %8402 = vst [vmem:[%s391 + $0x68] sm:$0xf] %v8338
        %8403 = vst [vmem:[%s391 + $0x6c] sm:$0xf] %v8339
        %8404 = vst [vmem:[%s391 + $0x70] sm:$0xf] %v8340
        %8405 = vst [vmem:[%s391 + $0x74] sm:$0xf] %v8341
        %8406 = vst [vmem:[%s391 + $0x78] sm:$0xf] %v8342
        %8407 = vst [vmem:[%s391 + $0x7c] sm:$0xf] %v8343
        %s8408 = sand.u32 %s201, 1
        %s8409 = scalar_lea.sflag [#allocation4], %s8408
        %s8410 = sand.u32 %s201, 1
        %s8411 = smul.addr %s8410, 128
        %s8412 = scalar_lea.vmem [#allocation14], %s8411
        // Predicated region
        $region77: #{attention_module.1} parent=47 // pred_check
          %p8413 = pneg %p211
        $region78: #{attention_module.1} parent=47 // pred_check_branch
          %8415 = sbr.rel (%p8413) target = $region80
        $region79: #{attention_module.1} parent=47 // pred_region
          %s8416 = smul.u32 16, %s32
          %s8418 = ssub.s32 2048, 2048
          %8419 = vsyncadd %s8409, %s8418
          %s8420 = smul.addr %s8416, 2
          %s8421 = smul.addr %s31, 32
          %s8422 = sadd.s32 %s8420, %s8421
          %s8423 = smul.addr %s8422, 64
          %s8424 = scalar_lea.hbm %s7, %s8423
          %s8425 = sshll.u32 %s8412, 4
          %s8426 = int_to_ptr.vmem [resolvable:$true] %s8425
          %8431 = dma.vmem_to_hbm [thread:$0]  %s8426, 2048, %s8424, %s8409, 64, 64, 4
        $region80: #{attention_module.1} parent=47 // pred_fallthru
          _
      $region48: #{attention_module.1} parent=5 // pred_fallthru
        _
      %p8432 = scmp.le.s32.totalorder 2, %s22
      // Predicated region
      $region81: #{attention_module.1} parent=5 // pred_check
        %p8433 = pneg %p8432
      $region82: #{attention_module.1} parent=5 // pred_check_branch
        %8435 = sbr.rel (%p8433) target = $region84
      $region83: #{attention_module.1} parent=5 // pred_region
        %s8436 = ssub.s32 %s22, 2
        // Predicated region
        $region85: #{attention_module.1} parent=83 // pred_check
          %p8437 = pneg %p217
        $region86: #{attention_module.1} parent=83 // pred_check_branch
          %8439 = sbr.rel (%p8437) target = $region88
        $region87: #{attention_module.1} parent=83 // pred_region
          %s8440 = sand.u32 %s202, 1
          %s8441 = scalar_lea.sflag [#allocation4], %s8440
          %s8442 = sand.u32 %s202, 1
          %s8443 = smul.addr %s8442, 128
          %s8444 = scalar_lea.vmem [#allocation14], %s8443
          %8445 = dma.done %s8441, 2048
        $region88: #{attention_module.1} parent=83 // pred_fallthru
          _
      $region84: #{attention_module.1} parent=5 // pred_fallthru
        _
    $region6: #{attention_module.1} parent=1 // loop_footer
      %s26 = sadd.s32 1, %s22
    $region7: #{attention_module.1} parent=1 // loop_footer_branch
      %21 = sbr.rel target = $region3
    $region8: #{attention_module.1} parent=1 // loop_exit
      _
    %8446 = vsyncpa [#allocation3], 1
    %s8447 = scalar_lea.sflag [#allocation3], 1
    %8448 = vsyncpa %s8447, 1
    %8449 = vsyncpa [#allocation6], 1
    %8450 = vsyncpa [#allocation9], 1
    %8451 = vsyncpa [#allocation12], 1
    %8452 = vsyncpa [#allocation4], 1
    %s8453 = scalar_lea.sflag [#allocation4], 1
    %8454 = vsyncpa %s8453, 1

</llo_original>
